<compile_context>
chip_gen: v7x
topology: tpu7x:2x2x1
jax: 0.10.0
libtpu: 0.0.40
codegen_flags: <defaults>
</compile_context>

<pallas_src>
import functools
import math

import jax
import jax.numpy as jnp
from jax.experimental import pallas as pl
from jax.experimental.pallas import tpu as pltpu

DIM = 32
WINDOW = (8, 8)          # Wh, Ww  -> N = 64 tokens per window
NUM_HEADS = 4
NUM_WINDOWS = 8          # B_ = num_windows * B


def window_attn_kernel(x_ref, wqkv_ref, bqkv_ref, wproj_ref, bproj_ref, bias_ref,
                       o_ref, qkv_sc, acc_sc, *, num_heads):
    bw, N, C = x_ref.shape           # bw windows per grid step
    hd = C // num_heads
    BN = bw * N

    # --- fused qkv projection: one fat bf16 matmul over all bw*N tokens, f32 accumulate ---
    x2 = x_ref[...].reshape(BN, C)
    qkv = jnp.dot(x2, wqkv_ref[...], preferred_element_type=jnp.float32) + bqkv_ref[...]
    # stage through VMEM scratch (bf16): bounds vreg pressure, per-head slices become vlds
    qkv_sc[...] = qkv.astype(jnp.bfloat16)

    # output accumulator initialised with the projection bias (broadcast once, outside loop)
    acc_sc[...] = jnp.broadcast_to(bproj_ref[...], (BN, C)).astype(jnp.float32)

    # --- per-head attention; projection folded into the loop as accumulation ---
    for h in range(num_heads):        # static unroll, num_heads is small
        q_h = qkv_sc[:, h * hd:(h + 1) * hd].reshape(bw, N, hd)           # scale pre-folded
        k_h = qkv_sc[:, C + h * hd:C + (h + 1) * hd].reshape(bw, N, hd)
        v_h = qkv_sc[:, 2 * C + h * hd:2 * C + (h + 1) * hd].reshape(bw, N, hd)

        s = jnp.einsum('bnd,bmd->bnm', q_h, k_h,
                       preferred_element_type=jnp.float32)                # (bw, N, N)
        s = s + bias_ref[h][None]                                         # rel-pos bias
        s = s - jnp.max(s, axis=-1, keepdims=True)                        # stable softmax
        p = jnp.exp(s)
        denom = jnp.sum(p, axis=-1, keepdims=True)                        # (bw, N, 1)

        o_h = jnp.einsum('bnm,bmd->bnd', p.astype(jnp.bfloat16), v_h,
                         preferred_element_type=jnp.float32)              # (bw, N, hd)
        # normalise AFTER PV: hd=8 lanes per row instead of N=64; EUP approx reciprocal
        o_h = o_h * pl.reciprocal(denom, approx=True)

        # fold output projection: acc += o_h @ Wproj[h*hd:(h+1)*hd, :]  (no lane concat)
        acc_sc[...] += jnp.dot(o_h.reshape(BN, hd).astype(jnp.bfloat16),
                               wproj_ref[h * hd:(h + 1) * hd, :],
                               preferred_element_type=jnp.float32)

    o_ref[...] = acc_sc[...].reshape(bw, N, C).astype(o_ref.dtype)


def _relative_position_index(window_size):
    """Same construction as the PyTorch __init__ (register_buffer)."""
    Wh, Ww = window_size
    coords = jnp.stack(jnp.meshgrid(jnp.arange(Wh), jnp.arange(Ww), indexing="ij"))
    flat = coords.reshape(2, -1)                              # (2, N)
    rel = flat[:, :, None] - flat[:, None, :]                 # (2, N, N)
    rel_h = rel[0] + (Wh - 1)
    rel_w = rel[1] + (Ww - 1)
    return rel_h * (2 * Ww - 1) + rel_w                       # (N, N)


def _num_tensorcores():
    """Best-effort TensorCores-per-device (2 on v7x); safe fallback = 1 (v5e/v6e)."""
    try:
        dev = jax.devices()[0]
    except Exception:
        return 1
    for attr in ("num_cores", "core_count"):
        v = getattr(dev, attr, None)
        if isinstance(v, int) and v > 0:
            return v
    return 1


def window_attention_forward(x, params, *, window_size, num_heads, grid_steps=None):
    """x: (num_windows*B, Wh*Ww, C), mask=None path. Returns float32 (B_, N, C)."""
    B_, N, C = x.shape
    Wh, Ww = window_size
    assert N == Wh * Ww and C % num_heads == 0
    hd = C // num_heads
    scale = hd ** (-0.5)

    # relative position bias gather: parameter-only, data-independent -> once in wrapper
    idx = _relative_position_index(window_size)
    bias = params["rpb_table"][idx.reshape(-1)].reshape(N, N, num_heads)
    bias = jnp.transpose(bias, (2, 0, 1)).astype(jnp.float32)          # (nh, N, N)

    # free constant fold: q-scale into the q slice of the qkv weights/bias; bf16 MXU operands
    wqkv = params["wqkv"].astype(jnp.float32).at[:, :C].multiply(scale).astype(jnp.bfloat16)
    bqkv = params["bqkv"].astype(jnp.float32).at[:, :C].multiply(scale)     # f32 (post-acc add)
    wproj = params["wproj"].astype(jnp.bfloat16)
    bproj = params["bproj"].astype(jnp.float32)
    xb = x.astype(jnp.bfloat16)

    # grid sizing: 1 step on 1-TC chips, num_cores "parallel" steps on multi-TC chips;
    # fall back to a single step rather than degrading to many tiny steps.
    if grid_steps is None:
        grid_steps = _num_tensorcores()
    steps = max(1, min(int(grid_steps), B_))
    if B_ % steps:
        steps = 1
    bw = B_ // steps
    grid = (steps,)

    flops = B_ * (2 * N * C * 3 * C + 4 * N * N * C + 2 * N * C * C)
    transcendentals = B_ * num_heads * N * N
    bytes_accessed = (2 * (xb.size + wqkv.size + wproj.size) + 4 * x.size
                      + 4 * (bqkv.size + bproj.size + bias.size))

    kernel = functools.partial(window_attn_kernel, num_heads=num_heads)
    out = pl.pallas_call(
        kernel,
        out_shape=jax.ShapeDtypeStruct((B_, N, C), jnp.float32),
        grid=grid,
        in_specs=[
            pl.BlockSpec((bw, N, C), lambda i: (i, 0, 0)),             # x tile
            pl.BlockSpec((C, 3 * C), lambda i: (0, 0)),                # wqkv (resident)
            pl.BlockSpec((1, 3 * C), lambda i: (0, 0)),                # bqkv
            pl.BlockSpec((C, C), lambda i: (0, 0)),                    # wproj
            pl.BlockSpec((1, C), lambda i: (0, 0)),                    # bproj
            pl.BlockSpec((num_heads, N, N), lambda i: (0, 0, 0)),      # rel-pos bias
        ],
        out_specs=pl.BlockSpec((bw, N, C), lambda i: (i, 0, 0)),
        scratch_shapes=[
            pltpu.VMEM((bw * N, 3 * C), jnp.bfloat16),                 # staged qkv
            pltpu.VMEM((bw * N, C), jnp.float32),                      # output accumulator
        ],
        compiler_params=pltpu.CompilerParams(dimension_semantics=("parallel",)),
        cost_estimate=pl.CostEstimate(flops=flops,
                                      transcendentals=transcendentals,
                                      bytes_accessed=bytes_accessed),
    )(xb, wqkv, bqkv, wproj, bproj, bias)
    return out


def init_params(key, dim, window_size, num_heads):
    """PyTorch-default-style init (Linear: uniform +-1/sqrt(fan_in); table: trunc normal 0.02)."""
    Wh, Ww = window_size
    ks = jax.random.split(key, 5)

    def u(k, shape, fan_in):
        bound = 1.0 / math.sqrt(fan_in)
        return jax.random.uniform(k, shape, jnp.float32, -bound, bound)

    num_rel = (2 * Wh - 1) * (2 * Ww - 1)
    return {
        "wqkv": u(ks[0], (dim, 3 * dim), dim),      # stored (in, out): y = x @ W + b
        "bqkv": u(ks[1], (1, 3 * dim), dim),
        "wproj": u(ks[2], (dim, dim), dim),
        "bproj": u(ks[3], (1, dim), dim),
        "rpb_table": 0.02 * jax.random.truncated_normal(
            ks[4], -2.0, 2.0, (num_rel, num_heads), jnp.float32),
    }


def reference_forward(x, params, *, window_size, num_heads):
    """Pure-JAX f32 reference matching the PyTorch module (mask=None, dropout=0)."""
    B_, N, C = x.shape
    hd = C // num_heads
    scale = hd ** (-0.5)
    qkv = x @ params["wqkv"] + params["bqkv"]
    qkv = qkv.reshape(B_, N, 3, num_heads, hd).transpose(2, 0, 3, 1, 4)
    q, k, v = qkv[0] * scale, qkv[1], qkv[2]
    attn = jnp.einsum('bhnd,bhmd->bhnm', q, k)
    idx = _relative_position_index(window_size)
    bias = params["rpb_table"][idx.reshape(-1)].reshape(N, N, num_heads).transpose(2, 0, 1)
    attn = jax.nn.softmax(attn + bias[None], axis=-1)
    out = jnp.einsum('bhnm,bhmd->bhnd', attn, v)
    out = out.transpose(0, 2, 1, 3).reshape(B_, N, C)
    return out @ params["wproj"] + params["bproj"]


if __name__ == "__main__":
    key = jax.random.PRNGKey(0)
    kx, kp = jax.random.split(key)
    N = WINDOW[0] * WINDOW[1]

    params = init_params(kp, DIM, WINDOW, NUM_HEADS)
    x = jax.random.normal(kx, (NUM_WINDOWS, N, DIM), jnp.float32)   # (num_windows*B, Wh*Ww, C)

    out = jax.block_until_ready(
        window_attention_forward(x, params, window_size=WINDOW, num_heads=NUM_HEADS))
    ref = reference_forward(x, params, window_size=WINDOW, num_heads=NUM_HEADS)

    assert out.shape == x.shape, (out.shape, x.shape)
    max_err = float(jnp.max(jnp.abs(out - ref)))
    # Tolerance reflects bf16 MXU operands with f32 accumulation + EUP approx reciprocal.
    assert jnp.allclose(out, ref, atol=3e-2, rtol=3e-2), f"max abs err {max_err}"
    print("KERNEL_OK")
</pallas_src>

<mosaic_0001>
module attributes {stable_mosaic.version = 11 : i64} {
  func.func @window_attn_kernel(%arg0: i32, %arg1: memref<8x64x32xbf16, #tpu.memory_space<vmem>>, %arg2: memref<32x96xbf16, #tpu.memory_space<vmem>>, %arg3: memref<1x96xf32, #tpu.memory_space<vmem>>, %arg4: memref<32x32xbf16, #tpu.memory_space<vmem>>, %arg5: memref<1x32xf32, #tpu.memory_space<vmem>>, %arg6: memref<4x64x64xf32, #tpu.memory_space<vmem>>, %arg7: memref<8x64x32xf32, #tpu.memory_space<vmem>>, %arg8: memref<512x96xbf16, #tpu.memory_space<vmem>>, %arg9: memref<512x32xf32, #tpu.memory_space<vmem>>) attributes {dimension_semantics = [#tpu.dimension_semantics<parallel>], iteration_bounds = array<i64: 1>, scalar_prefetch = 0 : i64, scratch_operands = 2 : i64, tpu.core_type = #tpu.core_type<tc>, window_params = [{transform_indices = @transform_0, window_bounds = array<i64: 8, 64, 32>}, {pipeline_mode = #tpu.pipeline_mode<synchronous>, transform_indices = @transform_1, window_bounds = array<i64: 32, 96>}, {pipeline_mode = #tpu.pipeline_mode<synchronous>, transform_indices = @transform_2, window_bounds = array<i64: 1, 96>}, {pipeline_mode = #tpu.pipeline_mode<synchronous>, transform_indices = @transform_3, window_bounds = array<i64: 32, 32>}, {pipeline_mode = #tpu.pipeline_mode<synchronous>, transform_indices = @transform_4, window_bounds = array<i64: 1, 32>}, {pipeline_mode = #tpu.pipeline_mode<synchronous>, transform_indices = @transform_5, window_bounds = array<i64: 4, 64, 64>}, {transform_indices = @transform_6, window_bounds = array<i64: 8, 64, 32>}]} {
    %c0 = arith.constant 0 : index
    %c0_0 = arith.constant 0 : index
    %c0_1 = arith.constant 0 : index
    %0 = vector.load %arg1[%c0, %c0_0, %c0_1] : memref<8x64x32xbf16, #tpu.memory_space<vmem>>, vector<8x64x32xbf16>
    %1 = vector.shape_cast %0 : vector<8x64x32xbf16> to vector<512x32xbf16>
    %c0_2 = arith.constant 0 : index
    %c0_3 = arith.constant 0 : index
    %2 = vector.load %arg2[%c0_2, %c0_3] : memref<32x96xbf16, #tpu.memory_space<vmem>>, vector<32x96xbf16>
    %cst = arith.constant dense<0.000000e+00> : vector<512x96xf32>
    %3 = tpu.matmul %1, %2, %cst {dimension_numbers = #tpu.dot_dimension_numbers<[1], [0], [0], [1], [0, 0, 1, 1], [], []>} : vector<512x32xbf16>, vector<32x96xbf16>, vector<512x96xf32> -> vector<512x96xf32>
    %c0_4 = arith.constant 0 : index
    %c0_5 = arith.constant 0 : index
    %4 = vector.load %arg3[%c0_4, %c0_5] : memref<1x96xf32, #tpu.memory_space<vmem>>, vector<1x96xf32>
    %5 = vector.broadcast %4 : vector<1x96xf32> to vector<512x96xf32>
    %6 = arith.addf %3, %5 : vector<512x96xf32>
    %7 = arith.truncf %6 : vector<512x96xf32> to vector<512x96xbf16>
    %c0_6 = arith.constant 0 : index
    %c0_7 = arith.constant 0 : index
    %8 = vector.load %arg8[%c0_6, %c0_7] : memref<512x96xbf16, #tpu.memory_space<vmem>>, vector<512x96xbf16>
    tpu.vector_store %arg8[%c0_6, %c0_7], %7 {strides = array<i32>} : memref<512x96xbf16, #tpu.memory_space<vmem>>, vector<512x96xbf16>,
    %c0_8 = arith.constant 0 : index
    %c0_9 = arith.constant 0 : index
    %9 = vector.load %arg5[%c0_8, %c0_9] : memref<1x32xf32, #tpu.memory_space<vmem>>, vector<1x32xf32>
    %10 = vector.shape_cast %9 : vector<1x32xf32> to vector<1x32xf32>
    %11 = vector.broadcast %10 : vector<1x32xf32> to vector<512x32xf32>
    %c0_10 = arith.constant 0 : index
    %c0_11 = arith.constant 0 : index
    %12 = vector.load %arg9[%c0_10, %c0_11] : memref<512x32xf32, #tpu.memory_space<vmem>>, vector<512x32xf32>
    tpu.vector_store %arg9[%c0_10, %c0_11], %11 {strides = array<i32>} : memref<512x32xf32, #tpu.memory_space<vmem>>, vector<512x32xf32>,
    %c0_12 = arith.constant 0 : index
    %c0_13 = arith.constant 0 : index
    %13 = vector.load %arg8[%c0_12, %c0_13] : memref<512x96xbf16, #tpu.memory_space<vmem>>, vector<512x8xbf16>
    %14 = vector.shape_cast %13 : vector<512x8xbf16> to vector<8x64x8xbf16>
    %c0_14 = arith.constant 0 : index
    %c32 = arith.constant 32 : index
    %15 = vector.load %arg8[%c0_14, %c32] : memref<512x96xbf16, #tpu.memory_space<vmem>>, vector<512x8xbf16>
    %16 = vector.shape_cast %15 : vector<512x8xbf16> to vector<8x64x8xbf16>
    %c0_15 = arith.constant 0 : index
    %c64 = arith.constant 64 : index
    %17 = vector.load %arg8[%c0_15, %c64] : memref<512x96xbf16, #tpu.memory_space<vmem>>, vector<512x8xbf16>
    %18 = vector.shape_cast %17 : vector<512x8xbf16> to vector<8x64x8xbf16>
    "tpu.trace_start"() <{level = 10 : i32, message = "bnd,bmd->bnm"}> : () -> ()
    %cst_16 = arith.constant dense<0.000000e+00> : vector<8x64x64xf32>
    %19 = tpu.matmul %14, %16, %cst_16 {dimension_numbers = #tpu.dot_dimension_numbers<[2], [2], [1], [1], [0, 0, 0, 1, 1, 1], [0], [0]>} : vector<8x64x8xbf16>, vector<8x64x8xbf16>, vector<8x64x64xf32> -> vector<8x64x64xf32>
    "tpu.trace_stop"() : () -> ()
    %c0_17 = arith.constant 0 : index
    %c0_18 = arith.constant 0 : index
    %c0_19 = arith.constant 0 : index
    %20 = vector.load %arg6[%c0_17, %c0_18, %c0_19] : memref<4x64x64xf32, #tpu.memory_space<vmem>>, vector<1x64x64xf32>
    %21 = vector.shape_cast %20 : vector<1x64x64xf32> to vector<64x64xf32>
    %22 = vector.shape_cast %21 : vector<64x64xf32> to vector<1x64x64xf32>
    %23 = vector.broadcast %22 : vector<1x64x64xf32> to vector<8x64x64xf32>
    %24 = arith.addf %19, %23 : vector<8x64x64xf32>
    %cst_20 = arith.constant dense<0xFF800000> : vector<8x64xf32>
    %25 = vector.multi_reduction <maximumf>, %24, %cst_20 [2] : vector<8x64x64xf32> to vector<8x64xf32>
    %26 = vector.shape_cast %25 : vector<8x64xf32> to vector<8x64x1xf32>
    %27 = vector.broadcast %26 : vector<8x64x1xf32> to vector<8x64x64xf32>
    %28 = arith.subf %24, %27 : vector<8x64x64xf32>
    %29 = math.exp %28 : vector<8x64x64xf32>
    %cst_21 = arith.constant dense<0.000000e+00> : vector<8x64xf32>
    %30 = vector.multi_reduction <add>, %29, %cst_21 [2] : vector<8x64x64xf32> to vector<8x64xf32>
    %31 = vector.shape_cast %30 : vector<8x64xf32> to vector<8x64x1xf32>
    %32 = arith.truncf %29 : vector<8x64x64xf32> to vector<8x64x64xbf16>
    "tpu.trace_start"() <{level = 10 : i32, message = "bnm,bmd->bnd"}> : () -> ()
    %cst_22 = arith.constant dense<0.000000e+00> : vector<8x64x8xf32>
    %33 = tpu.matmul %32, %18, %cst_22 {dimension_numbers = #tpu.dot_dimension_numbers<[2], [1], [1], [2], [0, 0, 0, 1, 1, 2], [0], [0]>} : vector<8x64x64xbf16>, vector<8x64x8xbf16>, vector<8x64x8xf32> -> vector<8x64x8xf32>
    "tpu.trace_stop"() : () -> ()
    %34 = tpu.reciprocal %31 {approx = true} : vector<8x64x1xf32> -> vector<8x64x1xf32>
    %35 = vector.broadcast %34 : vector<8x64x1xf32> to vector<8x64x8xf32>
    %36 = arith.mulf %33, %35 : vector<8x64x8xf32>
    %c0_23 = arith.constant 0 : index
    %c0_24 = arith.constant 0 : index
    %37 = vector.load %arg9[%c0_23, %c0_24] : memref<512x32xf32, #tpu.memory_space<vmem>>, vector<512x32xf32>
    %38 = vector.shape_cast %36 : vector<8x64x8xf32> to vector<512x8xf32>
    %39 = arith.truncf %38 : vector<512x8xf32> to vector<512x8xbf16>
    %c0_25 = arith.constant 0 : index
    %c0_26 = arith.constant 0 : index
    %40 = vector.load %arg4[%c0_25, %c0_26] : memref<32x32xbf16, #tpu.memory_space<vmem>>, vector<8x32xbf16>
    %cst_27 = arith.constant dense<0.000000e+00> : vector<512x32xf32>
    %41 = tpu.matmul %39, %40, %cst_27 {dimension_numbers = #tpu.dot_dimension_numbers<[1], [0], [0], [1], [0, 0, 1, 1], [], []>} : vector<512x8xbf16>, vector<8x32xbf16>, vector<512x32xf32> -> vector<512x32xf32>
    %42 = arith.addf %37, %41 : vector<512x32xf32>
    %c0_28 = arith.constant 0 : index
    %c0_29 = arith.constant 0 : index
    %43 = vector.load %arg9[%c0_28, %c0_29] : memref<512x32xf32, #tpu.memory_space<vmem>>, vector<512x32xf32>
    tpu.vector_store %arg9[%c0_28, %c0_29], %42 {strides = array<i32>} : memref<512x32xf32, #tpu.memory_space<vmem>>, vector<512x32xf32>,
    %c0_30 = arith.constant 0 : index
    %c8 = arith.constant 8 : index
    %44 = vector.load %arg8[%c0_30, %c8] : memref<512x96xbf16, #tpu.memory_space<vmem>>, vector<512x8xbf16>
    %45 = vector.shape_cast %44 : vector<512x8xbf16> to vector<8x64x8xbf16>
    %c0_31 = arith.constant 0 : index
    %c40 = arith.constant 40 : index
    %46 = vector.load %arg8[%c0_31, %c40] : memref<512x96xbf16, #tpu.memory_space<vmem>>, vector<512x8xbf16>
    %47 = vector.shape_cast %46 : vector<512x8xbf16> to vector<8x64x8xbf16>
    %c0_32 = arith.constant 0 : index
    %c72 = arith.constant 72 : index
    %48 = vector.load %arg8[%c0_32, %c72] : memref<512x96xbf16, #tpu.memory_space<vmem>>, vector<512x8xbf16>
    %49 = vector.shape_cast %48 : vector<512x8xbf16> to vector<8x64x8xbf16>
    "tpu.trace_start"() <{level = 10 : i32, message = "bnd,bmd->bnm"}> : () -> ()
    %cst_33 = arith.constant dense<0.000000e+00> : vector<8x64x64xf32>
    %50 = tpu.matmul %45, %47, %cst_33 {dimension_numbers = #tpu.dot_dimension_numbers<[2], [2], [1], [1], [0, 0, 0, 1, 1, 1], [0], [0]>} : vector<8x64x8xbf16>, vector<8x64x8xbf16>, vector<8x64x64xf32> -> vector<8x64x64xf32>
    "tpu.trace_stop"() : () -> ()
    %c1 = arith.constant 1 : index
    %c0_34 = arith.constant 0 : index
    %c0_35 = arith.constant 0 : index
    %51 = vector.load %arg6[%c1, %c0_34, %c0_35] : memref<4x64x64xf32, #tpu.memory_space<vmem>>, vector<1x64x64xf32>
    %52 = vector.shape_cast %51 : vector<1x64x64xf32> to vector<64x64xf32>
    %53 = vector.shape_cast %52 : vector<64x64xf32> to vector<1x64x64xf32>
    %54 = vector.broadcast %53 : vector<1x64x64xf32> to vector<8x64x64xf32>
    %55 = arith.addf %50, %54 : vector<8x64x64xf32>
    %cst_36 = arith.constant dense<0xFF800000> : vector<8x64xf32>
    %56 = vector.multi_reduction <maximumf>, %55, %cst_36 [2] : vector<8x64x64xf32> to vector<8x64xf32>
    %57 = vector.shape_cast %56 : vector<8x64xf32> to vector<8x64x1xf32>
    %58 = vector.broadcast %57 : vector<8x64x1xf32> to vector<8x64x64xf32>
    %59 = arith.subf %55, %58 : vector<8x64x64xf32>
    %60 = math.exp %59 : vector<8x64x64xf32>
    %cst_37 = arith.constant dense<0.000000e+00> : vector<8x64xf32>
    %61 = vector.multi_reduction <add>, %60, %cst_37 [2] : vector<8x64x64xf32> to vector<8x64xf32>
    %62 = vector.shape_cast %61 : vector<8x64xf32> to vector<8x64x1xf32>
    %63 = arith.truncf %60 : vector<8x64x64xf32> to vector<8x64x64xbf16>
    "tpu.trace_start"() <{level = 10 : i32, message = "bnm,bmd->bnd"}> : () -> ()
    %cst_38 = arith.constant dense<0.000000e+00> : vector<8x64x8xf32>
    %64 = tpu.matmul %63, %49, %cst_38 {dimension_numbers = #tpu.dot_dimension_numbers<[2], [1], [1], [2], [0, 0, 0, 1, 1, 2], [0], [0]>} : vector<8x64x64xbf16>, vector<8x64x8xbf16>, vector<8x64x8xf32> -> vector<8x64x8xf32>
    "tpu.trace_stop"() : () -> ()
    %65 = tpu.reciprocal %62 {approx = true} : vector<8x64x1xf32> -> vector<8x64x1xf32>
    %66 = vector.broadcast %65 : vector<8x64x1xf32> to vector<8x64x8xf32>
    %67 = arith.mulf %64, %66 : vector<8x64x8xf32>
    %c0_39 = arith.constant 0 : index
    %c0_40 = arith.constant 0 : index
    %68 = vector.load %arg9[%c0_39, %c0_40] : memref<512x32xf32, #tpu.memory_space<vmem>>, vector<512x32xf32>
    %69 = vector.shape_cast %67 : vector<8x64x8xf32> to vector<512x8xf32>
    %70 = arith.truncf %69 : vector<512x8xf32> to vector<512x8xbf16>
    %c8_41 = arith.constant 8 : index
    %c0_42 = arith.constant 0 : index
    %71 = vector.load %arg4[%c8_41, %c0_42] : memref<32x32xbf16, #tpu.memory_space<vmem>>, vector<8x32xbf16>
    %cst_43 = arith.constant dense<0.000000e+00> : vector<512x32xf32>
    %72 = tpu.matmul %70, %71, %cst_43 {dimension_numbers = #tpu.dot_dimension_numbers<[1], [0], [0], [1], [0, 0, 1, 1], [], []>} : vector<512x8xbf16>, vector<8x32xbf16>, vector<512x32xf32> -> vector<512x32xf32>
    %73 = arith.addf %68, %72 : vector<512x32xf32>
    %c0_44 = arith.constant 0 : index
    %c0_45 = arith.constant 0 : index
    %74 = vector.load %arg9[%c0_44, %c0_45] : memref<512x32xf32, #tpu.memory_space<vmem>>, vector<512x32xf32>
    tpu.vector_store %arg9[%c0_44, %c0_45], %73 {strides = array<i32>} : memref<512x32xf32, #tpu.memory_space<vmem>>, vector<512x32xf32>,
    %c0_46 = arith.constant 0 : index
    %c16 = arith.constant 16 : index
    %75 = vector.load %arg8[%c0_46, %c16] : memref<512x96xbf16, #tpu.memory_space<vmem>>, vector<512x8xbf16>
    %76 = vector.shape_cast %75 : vector<512x8xbf16> to vector<8x64x8xbf16>
    %c0_47 = arith.constant 0 : index
    %c48 = arith.constant 48 : index
    %77 = vector.load %arg8[%c0_47, %c48] : memref<512x96xbf16, #tpu.memory_space<vmem>>, vector<512x8xbf16>
    %78 = vector.shape_cast %77 : vector<512x8xbf16> to vector<8x64x8xbf16>
    %c0_48 = arith.constant 0 : index
    %c80 = arith.constant 80 : index
    %79 = vector.load %arg8[%c0_48, %c80] : memref<512x96xbf16, #tpu.memory_space<vmem>>, vector<512x8xbf16>
    %80 = vector.shape_cast %79 : vector<512x8xbf16> to vector<8x64x8xbf16>
    "tpu.trace_start"() <{level = 10 : i32, message = "bnd,bmd->bnm"}> : () -> ()
    %cst_49 = arith.constant dense<0.000000e+00> : vector<8x64x64xf32>
    %81 = tpu.matmul %76, %78, %cst_49 {dimension_numbers = #tpu.dot_dimension_numbers<[2], [2], [1], [1], [0, 0, 0, 1, 1, 1], [0], [0]>} : vector<8x64x8xbf16>, vector<8x64x8xbf16>, vector<8x64x64xf32> -> vector<8x64x64xf32>
    "tpu.trace_stop"() : () -> ()
    %c2 = arith.constant 2 : index
    %c0_50 = arith.constant 0 : index
    %c0_51 = arith.constant 0 : index
    %82 = vector.load %arg6[%c2, %c0_50, %c0_51] : memref<4x64x64xf32, #tpu.memory_space<vmem>>, vector<1x64x64xf32>
    %83 = vector.shape_cast %82 : vector<1x64x64xf32> to vector<64x64xf32>
    %84 = vector.shape_cast %83 : vector<64x64xf32> to vector<1x64x64xf32>
    %85 = vector.broadcast %84 : vector<1x64x64xf32> to vector<8x64x64xf32>
    %86 = arith.addf %81, %85 : vector<8x64x64xf32>
    %cst_52 = arith.constant dense<0xFF800000> : vector<8x64xf32>
    %87 = vector.multi_reduction <maximumf>, %86, %cst_52 [2] : vector<8x64x64xf32> to vector<8x64xf32>
    %88 = vector.shape_cast %87 : vector<8x64xf32> to vector<8x64x1xf32>
    %89 = vector.broadcast %88 : vector<8x64x1xf32> to vector<8x64x64xf32>
    %90 = arith.subf %86, %89 : vector<8x64x64xf32>
    %91 = math.exp %90 : vector<8x64x64xf32>
    %cst_53 = arith.constant dense<0.000000e+00> : vector<8x64xf32>
    %92 = vector.multi_reduction <add>, %91, %cst_53 [2] : vector<8x64x64xf32> to vector<8x64xf32>
    %93 = vector.shape_cast %92 : vector<8x64xf32> to vector<8x64x1xf32>
    %94 = arith.truncf %91 : vector<8x64x64xf32> to vector<8x64x64xbf16>
    "tpu.trace_start"() <{level = 10 : i32, message = "bnm,bmd->bnd"}> : () -> ()
    %cst_54 = arith.constant dense<0.000000e+00> : vector<8x64x8xf32>
    %95 = tpu.matmul %94, %80, %cst_54 {dimension_numbers = #tpu.dot_dimension_numbers<[2], [1], [1], [2], [0, 0, 0, 1, 1, 2], [0], [0]>} : vector<8x64x64xbf16>, vector<8x64x8xbf16>, vector<8x64x8xf32> -> vector<8x64x8xf32>
    "tpu.trace_stop"() : () -> ()
    %96 = tpu.reciprocal %93 {approx = true} : vector<8x64x1xf32> -> vector<8x64x1xf32>
    %97 = vector.broadcast %96 : vector<8x64x1xf32> to vector<8x64x8xf32>
    %98 = arith.mulf %95, %97 : vector<8x64x8xf32>
    %c0_55 = arith.constant 0 : index
    %c0_56 = arith.constant 0 : index
    %99 = vector.load %arg9[%c0_55, %c0_56] : memref<512x32xf32, #tpu.memory_space<vmem>>, vector<512x32xf32>
    %100 = vector.shape_cast %98 : vector<8x64x8xf32> to vector<512x8xf32>
    %101 = arith.truncf %100 : vector<512x8xf32> to vector<512x8xbf16>
    %c16_57 = arith.constant 16 : index
    %c0_58 = arith.constant 0 : index
    %102 = vector.load %arg4[%c16_57, %c0_58] : memref<32x32xbf16, #tpu.memory_space<vmem>>, vector<8x32xbf16>
    %cst_59 = arith.constant dense<0.000000e+00> : vector<512x32xf32>
    %103 = tpu.matmul %101, %102, %cst_59 {dimension_numbers = #tpu.dot_dimension_numbers<[1], [0], [0], [1], [0, 0, 1, 1], [], []>} : vector<512x8xbf16>, vector<8x32xbf16>, vector<512x32xf32> -> vector<512x32xf32>
    %104 = arith.addf %99, %103 : vector<512x32xf32>
    %c0_60 = arith.constant 0 : index
    %c0_61 = arith.constant 0 : index
    %105 = vector.load %arg9[%c0_60, %c0_61] : memref<512x32xf32, #tpu.memory_space<vmem>>, vector<512x32xf32>
    tpu.vector_store %arg9[%c0_60, %c0_61], %104 {strides = array<i32>} : memref<512x32xf32, #tpu.memory_space<vmem>>, vector<512x32xf32>,
    %c0_62 = arith.constant 0 : index
    %c24 = arith.constant 24 : index
    %106 = vector.load %arg8[%c0_62, %c24] : memref<512x96xbf16, #tpu.memory_space<vmem>>, vector<512x8xbf16>
    %107 = vector.shape_cast %106 : vector<512x8xbf16> to vector<8x64x8xbf16>
    %c0_63 = arith.constant 0 : index
    %c56 = arith.constant 56 : index
    %108 = vector.load %arg8[%c0_63, %c56] : memref<512x96xbf16, #tpu.memory_space<vmem>>, vector<512x8xbf16>
    %109 = vector.shape_cast %108 : vector<512x8xbf16> to vector<8x64x8xbf16>
    %c0_64 = arith.constant 0 : index
    %c88 = arith.constant 88 : index
    %110 = vector.load %arg8[%c0_64, %c88] : memref<512x96xbf16, #tpu.memory_space<vmem>>, vector<512x8xbf16>
    %111 = vector.shape_cast %110 : vector<512x8xbf16> to vector<8x64x8xbf16>
    "tpu.trace_start"() <{level = 10 : i32, message = "bnd,bmd->bnm"}> : () -> ()
    %cst_65 = arith.constant dense<0.000000e+00> : vector<8x64x64xf32>
    %112 = tpu.matmul %107, %109, %cst_65 {dimension_numbers = #tpu.dot_dimension_numbers<[2], [2], [1], [1], [0, 0, 0, 1, 1, 1], [0], [0]>} : vector<8x64x8xbf16>, vector<8x64x8xbf16>, vector<8x64x64xf32> -> vector<8x64x64xf32>
    "tpu.trace_stop"() : () -> ()
    %c3 = arith.constant 3 : index
    %c0_66 = arith.constant 0 : index
    %c0_67 = arith.constant 0 : index
    %113 = vector.load %arg6[%c3, %c0_66, %c0_67] : memref<4x64x64xf32, #tpu.memory_space<vmem>>, vector<1x64x64xf32>
    %114 = vector.shape_cast %113 : vector<1x64x64xf32> to vector<64x64xf32>
    %115 = vector.shape_cast %114 : vector<64x64xf32> to vector<1x64x64xf32>
    %116 = vector.broadcast %115 : vector<1x64x64xf32> to vector<8x64x64xf32>
    %117 = arith.addf %112, %116 : vector<8x64x64xf32>
    %cst_68 = arith.constant dense<0xFF800000> : vector<8x64xf32>
    %118 = vector.multi_reduction <maximumf>, %117, %cst_68 [2] : vector<8x64x64xf32> to vector<8x64xf32>
    %119 = vector.shape_cast %118 : vector<8x64xf32> to vector<8x64x1xf32>
    %120 = vector.broadcast %119 : vector<8x64x1xf32> to vector<8x64x64xf32>
    %121 = arith.subf %117, %120 : vector<8x64x64xf32>
    %122 = math.exp %121 : vector<8x64x64xf32>
    %cst_69 = arith.constant dense<0.000000e+00> : vector<8x64xf32>
    %123 = vector.multi_reduction <add>, %122, %cst_69 [2] : vector<8x64x64xf32> to vector<8x64xf32>
    %124 = vector.shape_cast %123 : vector<8x64xf32> to vector<8x64x1xf32>
    %125 = arith.truncf %122 : vector<8x64x64xf32> to vector<8x64x64xbf16>
    "tpu.trace_start"() <{level = 10 : i32, message = "bnm,bmd->bnd"}> : () -> ()
    %cst_70 = arith.constant dense<0.000000e+00> : vector<8x64x8xf32>
    %126 = tpu.matmul %125, %111, %cst_70 {dimension_numbers = #tpu.dot_dimension_numbers<[2], [1], [1], [2], [0, 0, 0, 1, 1, 2], [0], [0]>} : vector<8x64x64xbf16>, vector<8x64x8xbf16>, vector<8x64x8xf32> -> vector<8x64x8xf32>
    "tpu.trace_stop"() : () -> ()
    %127 = tpu.reciprocal %124 {approx = true} : vector<8x64x1xf32> -> vector<8x64x1xf32>
    %128 = vector.broadcast %127 : vector<8x64x1xf32> to vector<8x64x8xf32>
    %129 = arith.mulf %126, %128 : vector<8x64x8xf32>
    %c0_71 = arith.constant 0 : index
    %c0_72 = arith.constant 0 : index
    %130 = vector.load %arg9[%c0_71, %c0_72] : memref<512x32xf32, #tpu.memory_space<vmem>>, vector<512x32xf32>
    %131 = vector.shape_cast %129 : vector<8x64x8xf32> to vector<512x8xf32>
    %132 = arith.truncf %131 : vector<512x8xf32> to vector<512x8xbf16>
    %c24_73 = arith.constant 24 : index
    %c0_74 = arith.constant 0 : index
    %133 = vector.load %arg4[%c24_73, %c0_74] : memref<32x32xbf16, #tpu.memory_space<vmem>>, vector<8x32xbf16>
    %cst_75 = arith.constant dense<0.000000e+00> : vector<512x32xf32>
    %134 = tpu.matmul %132, %133, %cst_75 {dimension_numbers = #tpu.dot_dimension_numbers<[1], [0], [0], [1], [0, 0, 1, 1], [], []>} : vector<512x8xbf16>, vector<8x32xbf16>, vector<512x32xf32> -> vector<512x32xf32>
    %135 = arith.addf %130, %134 : vector<512x32xf32>
    %c0_76 = arith.constant 0 : index
    %c0_77 = arith.constant 0 : index
    %136 = vector.load %arg9[%c0_76, %c0_77] : memref<512x32xf32, #tpu.memory_space<vmem>>, vector<512x32xf32>
    tpu.vector_store %arg9[%c0_76, %c0_77], %135 {strides = array<i32>} : memref<512x32xf32, #tpu.memory_space<vmem>>, vector<512x32xf32>,
    %c0_78 = arith.constant 0 : index
    %c0_79 = arith.constant 0 : index
    %137 = vector.load %arg9[%c0_78, %c0_79] : memref<512x32xf32, #tpu.memory_space<vmem>>, vector<512x32xf32>
    %138 = vector.shape_cast %137 : vector<512x32xf32> to vector<8x64x32xf32>
    %c0_80 = arith.constant 0 : index
    %c0_81 = arith.constant 0 : index
    %c0_82 = arith.constant 0 : index
    %139 = vector.load %arg7[%c0_80, %c0_81, %c0_82] : memref<8x64x32xf32, #tpu.memory_space<vmem>>, vector<8x64x32xf32>
    tpu.vector_store %arg7[%c0_80, %c0_81, %c0_82], %138 {strides = array<i32>} : memref<8x64x32xf32, #tpu.memory_space<vmem>>, vector<8x64x32xf32>,
    return
  }
  func.func @transform_0(%arg0: i32) -> (i32, i32, i32) {
    %c0_i32 = arith.constant 0 : i32
    %c0_i32_0 = arith.constant 0 : i32
    %c0_i32_1 = arith.constant 0 : i32
    return %arg0, %c0_i32, %c0_i32_0 : i32, i32, i32
  }
  func.func @transform_1(%arg0: i32) -> (i32, i32) {
    %c0_i32 = arith.constant 0 : i32
    %c0_i32_0 = arith.constant 0 : i32
    %c0_i32_1 = arith.constant 0 : i32
    return %c0_i32, %c0_i32_0 : i32, i32
  }
  func.func @transform_2(%arg0: i32) -> (i32, i32) {
    %c0_i32 = arith.constant 0 : i32
    %c0_i32_0 = arith.constant 0 : i32
    %c0_i32_1 = arith.constant 0 : i32
    return %c0_i32, %c0_i32_0 : i32, i32
  }
  func.func @transform_3(%arg0: i32) -> (i32, i32) {
    %c0_i32 = arith.constant 0 : i32
    %c0_i32_0 = arith.constant 0 : i32
    %c0_i32_1 = arith.constant 0 : i32
    return %c0_i32, %c0_i32_0 : i32, i32
  }
  func.func @transform_4(%arg0: i32) -> (i32, i32) {
    %c0_i32 = arith.constant 0 : i32
    %c0_i32_0 = arith.constant 0 : i32
    %c0_i32_1 = arith.constant 0 : i32
    return %c0_i32, %c0_i32_0 : i32, i32
  }
  func.func @transform_5(%arg0: i32) -> (i32, i32, i32) {
    %c0_i32 = arith.constant 0 : i32
    %c0_i32_0 = arith.constant 0 : i32
    %c0_i32_1 = arith.constant 0 : i32
    %c0_i32_2 = arith.constant 0 : i32
    return %c0_i32, %c0_i32_0, %c0_i32_1 : i32, i32, i32
  }
  func.func @transform_6(%arg0: i32) -> (i32, i32, i32) {
    %c0_i32 = arith.constant 0 : i32
    %c0_i32_0 = arith.constant 0 : i32
    %c0_i32_1 = arith.constant 0 : i32
    return %arg0, %c0_i32, %c0_i32_0 : i32, i32, i32
  }
}

</mosaic_0001>

<llo_original>
// kernel: tpu_custom_call.1
$region0: #{tpu_custom_call.1}
  #allocation0 [shape = 'u32[]', space=smem, size = 0x4, offset = 0x4, fixed_abs, tag = 'smem constant byte address 0x4 - core index']
  #allocation1 [shape = 'u32[144,128]{1,0:T(1,128)}', space=vmem, size = 0x12000, scoped, tag = 'internal scratch']
  #allocation2 [shape = 'bf16[512,96]{1,0:T(16,128)(2,1)}', space=vmem, size = 0x20000, scoped, tag = 'scratch operand']
  #allocation3 [shape = 'f32[512,32]{1,0:T(8,128)}', space=vmem, size = 0x40000, scoped, tag = 'scratch operand']
  %s0 = inlined_call_operand.vmem [shape: bf16[8,64,32], index: 0, kind: input, shape index: {}]
  %s1 = inlined_call_operand.vmem [shape: bf16[32,96], index: 1, kind: input, shape index: {}]
  %s2 = inlined_call_operand.vmem [shape: f32[1,96], index: 2, kind: input, shape index: {}]
  %s3 = inlined_call_operand.vmem [shape: bf16[32,32], index: 3, kind: input, shape index: {}]
  %s4 = inlined_call_operand.vmem [shape: f32[1,32], index: 4, kind: input, shape index: {}]
  %s5 = inlined_call_operand.vmem [shape: f32[4,64,64], index: 5, kind: input, shape index: {}]
  %s6 = inlined_call_operand.vmem [shape: f32[8,64,32], index: 6, kind: output, shape index: {}]
  %s7 = sld [smem:[#allocation0]]
  $region34: #{tpu_custom_call.1} parent=0
    _
  %s9 = ssub.s32 1, %s7
  %s10 = scalar_select 0, %s9, %s7
  // Predicated region
  $region2: #{tpu_custom_call.1} parent=0 // pred_check
    _
  $region3: #{tpu_custom_call.1} parent=0 // pred_check_branch
    %12 = sbr.rel (0) target = $region5
  $region4: #{tpu_custom_call.1} parent=0 // pred_region
    _
  $region5: #{tpu_custom_call.1} parent=0 // pred_fallthru
    _
  // Predicated region
  $region6: #{tpu_custom_call.1} parent=0 // pred_check
    _
  $region7: #{tpu_custom_call.1} parent=0 // pred_check_branch
    %14 = sbr.rel (0) target = $region9
  $region8: #{tpu_custom_call.1} parent=0 // pred_region
    _
  $region9: #{tpu_custom_call.1} parent=0 // pred_fallthru
    _
  // Predicated region
  $region10: #{tpu_custom_call.1} parent=0 // pred_check
    _
  $region11: #{tpu_custom_call.1} parent=0 // pred_check_branch
    %16 = sbr.rel (0) target = $region13
  $region12: #{tpu_custom_call.1} parent=0 // pred_region
    _
  $region13: #{tpu_custom_call.1} parent=0 // pred_fallthru
    _
  // Predicated region
  $region14: #{tpu_custom_call.1} parent=0 // pred_check
    _
  $region15: #{tpu_custom_call.1} parent=0 // pred_check_branch
    %18 = sbr.rel (0) target = $region17
  $region16: #{tpu_custom_call.1} parent=0 // pred_region
    _
  $region17: #{tpu_custom_call.1} parent=0 // pred_fallthru
    _
  // Predicated region
  $region18: #{tpu_custom_call.1} parent=0 // pred_check
    _
  $region19: #{tpu_custom_call.1} parent=0 // pred_check_branch
    %20 = sbr.rel (0) target = $region21
  $region20: #{tpu_custom_call.1} parent=0 // pred_region
    _
  $region21: #{tpu_custom_call.1} parent=0 // pred_fallthru
    _
  // Predicated region
  $region22: #{tpu_custom_call.1} parent=0 // pred_check
    _
  $region23: #{tpu_custom_call.1} parent=0 // pred_check_branch
    %22 = sbr.rel (0) target = $region25
  $region24: #{tpu_custom_call.1} parent=0 // pred_region
    _
  $region25: #{tpu_custom_call.1} parent=0 // pred_fallthru
    _
  %v24 = vld [vmem:[%s0] sm:$0xf]
  %v25 = vld [vmem:[%s0 + $0x4] sm:$0xf]
  %v26 = vld [vmem:[%s0 + $0x8] sm:$0xf]
  %v27 = vld [vmem:[%s0 + $0xc] sm:$0xf]
  %v28 = vld [vmem:[%s0 + $0x10] sm:$0xf]
  %v29 = vld [vmem:[%s0 + $0x14] sm:$0xf]
  %v30 = vld [vmem:[%s0 + $0x18] sm:$0xf]
  %v31 = vld [vmem:[%s0 + $0x1c] sm:$0xf]
  %v32 = vld [vmem:[%s0 + $0x20] sm:$0xf]
  %v33 = vld [vmem:[%s0 + $0x24] sm:$0xf]
  %v34 = vld [vmem:[%s0 + $0x28] sm:$0xf]
  %v35 = vld [vmem:[%s0 + $0x2c] sm:$0xf]
  %v36 = vld [vmem:[%s0 + $0x30] sm:$0xf]
  %v37 = vld [vmem:[%s0 + $0x34] sm:$0xf]
  %v38 = vld [vmem:[%s0 + $0x38] sm:$0xf]
  %v39 = vld [vmem:[%s0 + $0x3c] sm:$0xf]
  %v40 = vld [vmem:[%s0 + $0x40] sm:$0xf]
  %v41 = vld [vmem:[%s0 + $0x44] sm:$0xf]
  %v42 = vld [vmem:[%s0 + $0x48] sm:$0xf]
  %v43 = vld [vmem:[%s0 + $0x4c] sm:$0xf]
  %v44 = vld [vmem:[%s0 + $0x50] sm:$0xf]
  %v45 = vld [vmem:[%s0 + $0x54] sm:$0xf]
  %v46 = vld [vmem:[%s0 + $0x58] sm:$0xf]
  %v47 = vld [vmem:[%s0 + $0x5c] sm:$0xf]
  %v48 = vld [vmem:[%s0 + $0x60] sm:$0xf]
  %v49 = vld [vmem:[%s0 + $0x64] sm:$0xf]
  %v50 = vld [vmem:[%s0 + $0x68] sm:$0xf]
  %v51 = vld [vmem:[%s0 + $0x6c] sm:$0xf]
  %v52 = vld [vmem:[%s0 + $0x70] sm:$0xf]
  %v53 = vld [vmem:[%s0 + $0x74] sm:$0xf]
  %v54 = vld [vmem:[%s0 + $0x78] sm:$0xf]
  %v55 = vld [vmem:[%s0 + $0x7c] sm:$0xf]
  %v56 = vld [vmem:[%s0 + $0x80] sm:$0xf]
  %v57 = vld [vmem:[%s0 + $0x84] sm:$0xf]
  %v58 = vld [vmem:[%s0 + $0x88] sm:$0xf]
  %v59 = vld [vmem:[%s0 + $0x8c] sm:$0xf]
  %v60 = vld [vmem:[%s0 + $0x90] sm:$0xf]
  %v61 = vld [vmem:[%s0 + $0x94] sm:$0xf]
  %v62 = vld [vmem:[%s0 + $0x98] sm:$0xf]
  %v63 = vld [vmem:[%s0 + $0x9c] sm:$0xf]
  %v64 = vld [vmem:[%s0 + $0xa0] sm:$0xf]
  %v65 = vld [vmem:[%s0 + $0xa4] sm:$0xf]
  %v66 = vld [vmem:[%s0 + $0xa8] sm:$0xf]
  %v67 = vld [vmem:[%s0 + $0xac] sm:$0xf]
  %v68 = vld [vmem:[%s0 + $0xb0] sm:$0xf]
  %v69 = vld [vmem:[%s0 + $0xb4] sm:$0xf]
  %v70 = vld [vmem:[%s0 + $0xb8] sm:$0xf]
  %v71 = vld [vmem:[%s0 + $0xbc] sm:$0xf]
  %v72 = vld [vmem:[%s0 + $0xc0] sm:$0xf]
  %v73 = vld [vmem:[%s0 + $0xc4] sm:$0xf]
  %v74 = vld [vmem:[%s0 + $0xc8] sm:$0xf]
  %v75 = vld [vmem:[%s0 + $0xcc] sm:$0xf]
  %v76 = vld [vmem:[%s0 + $0xd0] sm:$0xf]
  %v77 = vld [vmem:[%s0 + $0xd4] sm:$0xf]
  %v78 = vld [vmem:[%s0 + $0xd8] sm:$0xf]
  %v79 = vld [vmem:[%s0 + $0xdc] sm:$0xf]
  %v80 = vld [vmem:[%s0 + $0xe0] sm:$0xf]
  %v81 = vld [vmem:[%s0 + $0xe4] sm:$0xf]
  %v82 = vld [vmem:[%s0 + $0xe8] sm:$0xf]
  %v83 = vld [vmem:[%s0 + $0xec] sm:$0xf]
  %v84 = vld [vmem:[%s0 + $0xf0] sm:$0xf]
  %v85 = vld [vmem:[%s0 + $0xf4] sm:$0xf]
  %v86 = vld [vmem:[%s0 + $0xf8] sm:$0xf]
  %v87 = vld [vmem:[%s0 + $0xfc] sm:$0xf]
  %v88 = vld [vmem:[%s1] sm:$0xf]
  %v89 = vld [vmem:[%s1 + $0x4] sm:$0xf]
  %v90 = vld [vmem:[%s1 + $0x8] sm:$0xf]
  %v91 = vld [vmem:[%s1 + $0xc] sm:$0xf]
  %v92 = vld [vmem:[%s2] sm:$0x1]
  %v94 = vlaneseq
  %v95 = vshrl.u32 %v94, 7
  %v96 = vsub.s32 0, %v95
  %v97 = vrot.slane %v92, %v96
  %v163 = vunpack.c.l.b16 %v24
  %v164 = vunpack.c.l.b16 %v25
  %v165 = vunpack.c.l.b16 %v26
  %v166 = vunpack.c.l.b16 %v27
  %v167 = vunpack.c.l.b16 %v28
  %v168 = vunpack.c.l.b16 %v29
  %v169 = vunpack.c.l.b16 %v30
  %v170 = vunpack.c.l.b16 %v31
  %v171 = vunpack.c.l.b16 %v32
  %v172 = vunpack.c.l.b16 %v33
  %v173 = vunpack.c.l.b16 %v34
  %v174 = vunpack.c.l.b16 %v35
  %v175 = vunpack.c.l.b16 %v36
  %v176 = vunpack.c.l.b16 %v37
  %v177 = vunpack.c.l.b16 %v38
  %v178 = vunpack.c.l.b16 %v39
  %v179 = vunpack.c.l.b16 %v40
  %v180 = vunpack.c.l.b16 %v41
  %v181 = vunpack.c.l.b16 %v42
  %v182 = vunpack.c.l.b16 %v43
  %v183 = vunpack.c.l.b16 %v44
  %v184 = vunpack.c.l.b16 %v45
  %v185 = vunpack.c.l.b16 %v46
  %v186 = vunpack.c.l.b16 %v47
  %v187 = vunpack.c.l.b16 %v48
  %v188 = vunpack.c.l.b16 %v49
  %v189 = vunpack.c.l.b16 %v50
  %v190 = vunpack.c.l.b16 %v51
  %v191 = vunpack.c.l.b16 %v52
  %v192 = vunpack.c.l.b16 %v53
  %v193 = vunpack.c.l.b16 %v54
  %v194 = vunpack.c.l.b16 %v55
  %v195 = vunpack.c.l.b16 %v56
  %v196 = vunpack.c.l.b16 %v57
  %v197 = vunpack.c.l.b16 %v58
  %v198 = vunpack.c.l.b16 %v59
  %v199 = vunpack.c.l.b16 %v60
  %v200 = vunpack.c.l.b16 %v61
  %v201 = vunpack.c.l.b16 %v62
  %v202 = vunpack.c.l.b16 %v63
  %v203 = vunpack.c.l.b16 %v64
  %v204 = vunpack.c.l.b16 %v65
  %v205 = vunpack.c.l.b16 %v66
  %v206 = vunpack.c.l.b16 %v67
  %v207 = vunpack.c.l.b16 %v68
  %v208 = vunpack.c.l.b16 %v69
  %v209 = vunpack.c.l.b16 %v70
  %v210 = vunpack.c.l.b16 %v71
  %v211 = vunpack.c.l.b16 %v72
  %v212 = vunpack.c.l.b16 %v73
  %v213 = vunpack.c.l.b16 %v74
  %v214 = vunpack.c.l.b16 %v75
  %v215 = vunpack.c.l.b16 %v76
  %v216 = vunpack.c.l.b16 %v77
  %v217 = vunpack.c.l.b16 %v78
  %v218 = vunpack.c.l.b16 %v79
  %v219 = vunpack.c.l.b16 %v80
  %v220 = vunpack.c.l.b16 %v81
  %v221 = vunpack.c.l.b16 %v82
  %v222 = vunpack.c.l.b16 %v83
  %v223 = vunpack.c.l.b16 %v84
  %v224 = vunpack.c.l.b16 %v85
  %v225 = vunpack.c.l.b16 %v86
  %v226 = vunpack.c.l.b16 %v87
  %v227 = vpack.c.b16 %v164, %v163
  %v228 = vpack.c.b16 %v166, %v165
  %v229 = vpack.c.b16 %v168, %v167
  %v230 = vpack.c.b16 %v170, %v169
  %v231 = vpack.c.b16 %v172, %v171
  %v232 = vpack.c.b16 %v174, %v173
  %v233 = vpack.c.b16 %v176, %v175
  %v234 = vpack.c.b16 %v178, %v177
  %v235 = vpack.c.b16 %v180, %v179
  %v236 = vpack.c.b16 %v182, %v181
  %v237 = vpack.c.b16 %v184, %v183
  %v238 = vpack.c.b16 %v186, %v185
  %v239 = vpack.c.b16 %v188, %v187
  %v240 = vpack.c.b16 %v190, %v189
  %v241 = vpack.c.b16 %v192, %v191
  %v242 = vpack.c.b16 %v194, %v193
  %v243 = vpack.c.b16 %v196, %v195
  %v244 = vpack.c.b16 %v198, %v197
  %v245 = vpack.c.b16 %v200, %v199
  %v246 = vpack.c.b16 %v202, %v201
  %v247 = vpack.c.b16 %v204, %v203
  %v248 = vpack.c.b16 %v206, %v205
  %v249 = vpack.c.b16 %v208, %v207
  %v250 = vpack.c.b16 %v210, %v209
  %v251 = vpack.c.b16 %v212, %v211
  %v252 = vpack.c.b16 %v214, %v213
  %v253 = vpack.c.b16 %v216, %v215
  %v254 = vpack.c.b16 %v218, %v217
  %v255 = vpack.c.b16 %v220, %v219
  %v256 = vpack.c.b16 %v222, %v221
  %v257 = vpack.c.b16 %v224, %v223
  %v258 = vpack.c.b16 %v226, %v225
  %v263 = vunpack.c.l.b16 %v88
  %v264 = vunpack.c.l.b16 %v89
  %v265 = vunpack.c.l.b16 %v90
  %v266 = vunpack.c.l.b16 %v91
  %v267 = vpack.c.b16 %v264, %v263
  %v268 = vpack.c.b16 %v266, %v265
  %vm271 = vcmask 261120
  %v273 = vsel %vm271, %v227, 0
  %v276 = vsel %vm271, %v228, 0
  %v279 = vsel %vm271, %v229, 0
  %v282 = vsel %vm271, %v230, 0
  %v285 = vsel %vm271, %v231, 0
  %v288 = vsel %vm271, %v232, 0
  %v291 = vsel %vm271, %v233, 0
  %v294 = vsel %vm271, %v234, 0
  %v297 = vsel %vm271, %v235, 0
  %v300 = vsel %vm271, %v236, 0
  %v303 = vsel %vm271, %v237, 0
  %v306 = vsel %vm271, %v238, 0
  %v309 = vsel %vm271, %v239, 0
  %v312 = vsel %vm271, %v240, 0
  %v315 = vsel %vm271, %v241, 0
  %v318 = vsel %vm271, %v242, 0
  %v321 = vsel %vm271, %v243, 0
  %v324 = vsel %vm271, %v244, 0
  %v327 = vsel %vm271, %v245, 0
  %v330 = vsel %vm271, %v246, 0
  %v333 = vsel %vm271, %v247, 0
  %v336 = vsel %vm271, %v248, 0
  %v339 = vsel %vm271, %v249, 0
  %v342 = vsel %vm271, %v250, 0
  %v345 = vsel %vm271, %v251, 0
  %v348 = vsel %vm271, %v252, 0
  %v351 = vsel %vm271, %v253, 0
  %v354 = vsel %vm271, %v254, 0
  %v357 = vsel %vm271, %v255, 0
  %v360 = vsel %vm271, %v256, 0
  %v363 = vsel %vm271, %v257, 0
  %v366 = vsel %vm271, %v258, 0
  %368 = vmatprep.subr.bf16.mxu0 0
  %369 = vmatpush1.bf16.msra.mxu0 %v267
  %370 = vmatprep.subr.bf16.mxu0 0
  %371 = vmatpush1.bf16.msra.mxu0 %v268
  %372 = vmatprep.subr.bf16.mxu0 0
  %373 = vmatpush1.bf16.msra.mxu0 0
  %374 = vmatprep.subr.bf16.mxu0 0
  %375 = vmatpush1.bf16.msra.mxu0 0
  %376 = vmatprep.subr.bf16.mxu0 0
  %377 = vmatpush1.bf16.msra.mxu0 0
  %378 = vmatprep.subr.bf16.mxu0 0
  %379 = vmatpush1.bf16.msra.mxu0 0
  %380 = vmatprep.subr.bf16.mxu0 0
  %381 = vmatpush1.bf16.msra.mxu0 0
  %382 = vmatprep.subr.bf16.mxu0 0
  %383 = vmatpush1.bf16.msra.mxu0 0
  %384 = vmatprep.subr.bf16.mxu0 0
  %385 = vmatpush1.bf16.msra.mxu0 0
  %386 = vmatprep.subr.bf16.mxu0 0
  %387 = vmatpush1.bf16.msra.mxu0 0
  %388 = vmatprep.subr.bf16.mxu0 0
  %389 = vmatpush1.bf16.msra.mxu0 0
  %390 = vmatprep.subr.bf16.mxu0 0
  %391 = vmatpush1.bf16.msra.mxu0 0
  %392 = vmatprep.subr.bf16.mxu0 0
  %393 = vmatpush1.bf16.msra.mxu0 0
  %394 = vmatprep.subr.bf16.mxu0 0
  %395 = vmatpush1.bf16.msra.mxu0 0
  %396 = vmatprep.subr.bf16.mxu0 0
  %397 = vmatpush1.bf16.msra.mxu0 0
  %398 = vmatprep.subr.bf16.mxu0 0
  %399 = vmatpush1.bf16.msra.mxu0 0
  %400 = vmatprep.mubr.bf16.mxu0 0
  %401 = vmatmul.mubr.bf16.gmra.mrb[0].mxu0 %v273
  %v402 = vpop.f32.mrb[0].mxu0
  %v403 = vadd.f32 %v97, %v402
  %v404 = vpop.f32.mrb[0].mxu0
  %v405 = vpop.f32.mrb[0].mxu0
  %v406 = vadd.f32 %v97, %v405
  %v407 = vpop.f32.mrb[0].mxu0
  %408 = vmatprep.mubr.bf16.mxu0 0
  %409 = vmatmul.mubr.bf16.gmra.mrb[0].mxu0 %v276
  %v410 = vpop.f32.mrb[0].mxu0
  %v411 = vadd.f32 %v97, %v410
  %v412 = vpop.f32.mrb[0].mxu0
  %v413 = vpop.f32.mrb[0].mxu0
  %v414 = vadd.f32 %v97, %v413
  %v415 = vpop.f32.mrb[0].mxu0
  %416 = vmatprep.mubr.bf16.mxu0 0
  %417 = vmatmul.mubr.bf16.gmra.mrb[0].mxu0 %v279
  %v418 = vpop.f32.mrb[0].mxu0
  %v419 = vadd.f32 %v97, %v418
  %v420 = vpop.f32.mrb[0].mxu0
  %v421 = vpop.f32.mrb[0].mxu0
  %v422 = vadd.f32 %v97, %v421
  %v423 = vpop.f32.mrb[0].mxu0
  %424 = vmatprep.mubr.bf16.mxu0 0
  %425 = vmatmul.mubr.bf16.gmra.mrb[0].mxu0 %v282
  %v426 = vpop.f32.mrb[0].mxu0
  %v427 = vadd.f32 %v97, %v426
  %v428 = vpop.f32.mrb[0].mxu0
  %v429 = vpop.f32.mrb[0].mxu0
  %v430 = vadd.f32 %v97, %v429
  %v431 = vpop.f32.mrb[0].mxu0
  %432 = vmatprep.mubr.bf16.mxu0 0
  %433 = vmatmul.mubr.bf16.gmra.mrb[0].mxu0 %v285
  %v434 = vpop.f32.mrb[0].mxu0
  %v435 = vadd.f32 %v97, %v434
  %v436 = vpop.f32.mrb[0].mxu0
  %v437 = vpop.f32.mrb[0].mxu0
  %v438 = vadd.f32 %v97, %v437
  %v439 = vpop.f32.mrb[0].mxu0
  %440 = vmatprep.mubr.bf16.mxu0 0
  %441 = vmatmul.mubr.bf16.gmra.mrb[0].mxu0 %v288
  %v442 = vpop.f32.mrb[0].mxu0
  %v443 = vadd.f32 %v97, %v442
  %v444 = vpop.f32.mrb[0].mxu0
  %v445 = vpop.f32.mrb[0].mxu0
  %v446 = vadd.f32 %v97, %v445
  %v447 = vpop.f32.mrb[0].mxu0
  %448 = vmatprep.mubr.bf16.mxu0 0
  %449 = vmatmul.mubr.bf16.gmra.mrb[0].mxu0 %v291
  %v450 = vpop.f32.mrb[0].mxu0
  %v451 = vadd.f32 %v97, %v450
  %v452 = vpop.f32.mrb[0].mxu0
  %v453 = vpop.f32.mrb[0].mxu0
  %v454 = vadd.f32 %v97, %v453
  %v455 = vpop.f32.mrb[0].mxu0
  %456 = vmatprep.mubr.bf16.mxu0 0
  %457 = vmatmul.mubr.bf16.gmra.mrb[0].mxu0 %v294
  %v458 = vpop.f32.mrb[0].mxu0
  %v459 = vadd.f32 %v97, %v458
  %v460 = vpop.f32.mrb[0].mxu0
  %v461 = vpop.f32.mrb[0].mxu0
  %v462 = vadd.f32 %v97, %v461
  %v463 = vpop.f32.mrb[0].mxu0
  %464 = vmatprep.mubr.bf16.mxu0 0
  %465 = vmatmul.mubr.bf16.gmra.mrb[0].mxu0 %v297
  %v466 = vpop.f32.mrb[0].mxu0
  %v467 = vadd.f32 %v97, %v466
  %v468 = vpop.f32.mrb[0].mxu0
  %v469 = vpop.f32.mrb[0].mxu0
  %v470 = vadd.f32 %v97, %v469
  %v471 = vpop.f32.mrb[0].mxu0
  %472 = vmatprep.mubr.bf16.mxu0 0
  %473 = vmatmul.mubr.bf16.gmra.mrb[0].mxu0 %v300
  %v474 = vpop.f32.mrb[0].mxu0
  %v475 = vadd.f32 %v97, %v474
  %v476 = vpop.f32.mrb[0].mxu0
  %v477 = vpop.f32.mrb[0].mxu0
  %v478 = vadd.f32 %v97, %v477
  %v479 = vpop.f32.mrb[0].mxu0
  %480 = vmatprep.mubr.bf16.mxu0 0
  %481 = vmatmul.mubr.bf16.gmra.mrb[0].mxu0 %v303
  %v482 = vpop.f32.mrb[0].mxu0
  %v483 = vadd.f32 %v97, %v482
  %v484 = vpop.f32.mrb[0].mxu0
  %v485 = vpop.f32.mrb[0].mxu0
  %v486 = vadd.f32 %v97, %v485
  %v487 = vpop.f32.mrb[0].mxu0
  %488 = vmatprep.mubr.bf16.mxu0 0
  %489 = vmatmul.mubr.bf16.gmra.mrb[0].mxu0 %v306
  %v490 = vpop.f32.mrb[0].mxu0
  %v491 = vadd.f32 %v97, %v490
  %v492 = vpop.f32.mrb[0].mxu0
  %v493 = vpop.f32.mrb[0].mxu0
  %v494 = vadd.f32 %v97, %v493
  %v495 = vpop.f32.mrb[0].mxu0
  %496 = vmatprep.mubr.bf16.mxu0 0
  %497 = vmatmul.mubr.bf16.gmra.mrb[0].mxu0 %v309
  %v498 = vpop.f32.mrb[0].mxu0
  %v499 = vadd.f32 %v97, %v498
  %v500 = vpop.f32.mrb[0].mxu0
  %v501 = vpop.f32.mrb[0].mxu0
  %v502 = vadd.f32 %v97, %v501
  %v503 = vpop.f32.mrb[0].mxu0
  %504 = vmatprep.mubr.bf16.mxu0 0
  %505 = vmatmul.mubr.bf16.gmra.mrb[0].mxu0 %v312
  %v506 = vpop.f32.mrb[0].mxu0
  %v507 = vadd.f32 %v97, %v506
  %v508 = vpop.f32.mrb[0].mxu0
  %v509 = vpop.f32.mrb[0].mxu0
  %v510 = vadd.f32 %v97, %v509
  %v511 = vpop.f32.mrb[0].mxu0
  %512 = vmatprep.mubr.bf16.mxu0 0
  %513 = vmatmul.mubr.bf16.gmra.mrb[0].mxu0 %v315
  %v514 = vpop.f32.mrb[0].mxu0
  %v515 = vadd.f32 %v97, %v514
  %v516 = vpop.f32.mrb[0].mxu0
  %v517 = vpop.f32.mrb[0].mxu0
  %v518 = vadd.f32 %v97, %v517
  %v519 = vpop.f32.mrb[0].mxu0
  %520 = vmatprep.mubr.bf16.mxu0 0
  %521 = vmatmul.mubr.bf16.gmra.mrb[0].mxu0 %v318
  %v522 = vpop.f32.mrb[0].mxu0
  %v523 = vadd.f32 %v97, %v522
  %v524 = vpop.f32.mrb[0].mxu0
  %v525 = vpop.f32.mrb[0].mxu0
  %v526 = vadd.f32 %v97, %v525
  %v527 = vpop.f32.mrb[0].mxu0
  %528 = vmatprep.mubr.bf16.mxu0 0
  %529 = vmatmul.mubr.bf16.gmra.mrb[0].mxu0 %v321
  %v530 = vpop.f32.mrb[0].mxu0
  %v531 = vadd.f32 %v97, %v530
  %v532 = vpop.f32.mrb[0].mxu0
  %v533 = vpop.f32.mrb[0].mxu0
  %v534 = vadd.f32 %v97, %v533
  %v535 = vpop.f32.mrb[0].mxu0
  %536 = vmatprep.mubr.bf16.mxu0 0
  %537 = vmatmul.mubr.bf16.gmra.mrb[0].mxu0 %v324
  %v538 = vpop.f32.mrb[0].mxu0
  %v539 = vadd.f32 %v97, %v538
  %v540 = vpop.f32.mrb[0].mxu0
  %v541 = vpop.f32.mrb[0].mxu0
  %v542 = vadd.f32 %v97, %v541
  %v543 = vpop.f32.mrb[0].mxu0
  %544 = vmatprep.mubr.bf16.mxu0 0
  %545 = vmatmul.mubr.bf16.gmra.mrb[0].mxu0 %v327
  %v546 = vpop.f32.mrb[0].mxu0
  %v547 = vadd.f32 %v97, %v546
  %v548 = vpop.f32.mrb[0].mxu0
  %v549 = vpop.f32.mrb[0].mxu0
  %v550 = vadd.f32 %v97, %v549
  %v551 = vpop.f32.mrb[0].mxu0
  %552 = vmatprep.mubr.bf16.mxu0 0
  %553 = vmatmul.mubr.bf16.gmra.mrb[0].mxu0 %v330
  %v554 = vpop.f32.mrb[0].mxu0
  %v555 = vadd.f32 %v97, %v554
  %v556 = vpop.f32.mrb[0].mxu0
  %v557 = vpop.f32.mrb[0].mxu0
  %v558 = vadd.f32 %v97, %v557
  %v559 = vpop.f32.mrb[0].mxu0
  %560 = vmatprep.mubr.bf16.mxu0 0
  %561 = vmatmul.mubr.bf16.gmra.mrb[0].mxu0 %v333
  %v562 = vpop.f32.mrb[0].mxu0
  %v563 = vadd.f32 %v97, %v562
  %v564 = vpop.f32.mrb[0].mxu0
  %v565 = vpop.f32.mrb[0].mxu0
  %v566 = vadd.f32 %v97, %v565
  %v567 = vpop.f32.mrb[0].mxu0
  %568 = vmatprep.mubr.bf16.mxu0 0
  %569 = vmatmul.mubr.bf16.gmra.mrb[0].mxu0 %v336
  %v570 = vpop.f32.mrb[0].mxu0
  %v571 = vadd.f32 %v97, %v570
  %v572 = vpop.f32.mrb[0].mxu0
  %v573 = vpop.f32.mrb[0].mxu0
  %v574 = vadd.f32 %v97, %v573
  %v575 = vpop.f32.mrb[0].mxu0
  %576 = vmatprep.mubr.bf16.mxu0 0
  %577 = vmatmul.mubr.bf16.gmra.mrb[0].mxu0 %v339
  %v578 = vpop.f32.mrb[0].mxu0
  %v579 = vadd.f32 %v97, %v578
  %v580 = vpop.f32.mrb[0].mxu0
  %v581 = vpop.f32.mrb[0].mxu0
  %v582 = vadd.f32 %v97, %v581
  %v583 = vpop.f32.mrb[0].mxu0
  %584 = vmatprep.mubr.bf16.mxu0 0
  %585 = vmatmul.mubr.bf16.gmra.mrb[0].mxu0 %v342
  %v586 = vpop.f32.mrb[0].mxu0
  %v587 = vadd.f32 %v97, %v586
  %v588 = vpop.f32.mrb[0].mxu0
  %v589 = vpop.f32.mrb[0].mxu0
  %v590 = vadd.f32 %v97, %v589
  %v591 = vpop.f32.mrb[0].mxu0
  %592 = vmatprep.mubr.bf16.mxu0 0
  %593 = vmatmul.mubr.bf16.gmra.mrb[0].mxu0 %v345
  %v594 = vpop.f32.mrb[0].mxu0
  %v595 = vadd.f32 %v97, %v594
  %v596 = vpop.f32.mrb[0].mxu0
  %v597 = vpop.f32.mrb[0].mxu0
  %v598 = vadd.f32 %v97, %v597
  %v599 = vpop.f32.mrb[0].mxu0
  %600 = vmatprep.mubr.bf16.mxu0 0
  %601 = vmatmul.mubr.bf16.gmra.mrb[0].mxu0 %v348
  %v602 = vpop.f32.mrb[0].mxu0
  %v603 = vadd.f32 %v97, %v602
  %v604 = vpop.f32.mrb[0].mxu0
  %v605 = vpop.f32.mrb[0].mxu0
  %v606 = vadd.f32 %v97, %v605
  %v607 = vpop.f32.mrb[0].mxu0
  %608 = vmatprep.mubr.bf16.mxu0 0
  %609 = vmatmul.mubr.bf16.gmra.mrb[0].mxu0 %v351
  %v610 = vpop.f32.mrb[0].mxu0
  %v611 = vadd.f32 %v97, %v610
  %v612 = vpop.f32.mrb[0].mxu0
  %v613 = vpop.f32.mrb[0].mxu0
  %v614 = vadd.f32 %v97, %v613
  %v615 = vpop.f32.mrb[0].mxu0
  %616 = vmatprep.mubr.bf16.mxu0 0
  %617 = vmatmul.mubr.bf16.gmra.mrb[0].mxu0 %v354
  %v618 = vpop.f32.mrb[0].mxu0
  %v619 = vadd.f32 %v97, %v618
  %v620 = vpop.f32.mrb[0].mxu0
  %v621 = vpop.f32.mrb[0].mxu0
  %v622 = vadd.f32 %v97, %v621
  %v623 = vpop.f32.mrb[0].mxu0
  %624 = vmatprep.mubr.bf16.mxu0 0
  %625 = vmatmul.mubr.bf16.gmra.mrb[0].mxu0 %v357
  %v626 = vpop.f32.mrb[0].mxu0
  %v627 = vadd.f32 %v97, %v626
  %v628 = vpop.f32.mrb[0].mxu0
  %v629 = vpop.f32.mrb[0].mxu0
  %v630 = vadd.f32 %v97, %v629
  %v631 = vpop.f32.mrb[0].mxu0
  %632 = vmatprep.mubr.bf16.mxu0 0
  %633 = vmatmul.mubr.bf16.gmra.mrb[0].mxu0 %v360
  %v634 = vpop.f32.mrb[0].mxu0
  %v635 = vadd.f32 %v97, %v634
  %v636 = vpop.f32.mrb[0].mxu0
  %v637 = vpop.f32.mrb[0].mxu0
  %v638 = vadd.f32 %v97, %v637
  %v639 = vpop.f32.mrb[0].mxu0
  %640 = vmatprep.mubr.bf16.mxu0 0
  %641 = vmatmul.mubr.bf16.gmra.mrb[0].mxu0 %v363
  %v642 = vpop.f32.mrb[0].mxu0
  %v643 = vadd.f32 %v97, %v642
  %v644 = vpop.f32.mrb[0].mxu0
  %v645 = vpop.f32.mrb[0].mxu0
  %v646 = vadd.f32 %v97, %v645
  %v647 = vpop.f32.mrb[0].mxu0
  %648 = vmatprep.mubr.bf16.mxu0 0
  %649 = vmatmul.mubr.bf16.gmra.mrb[0].mxu0 %v366
  %v650 = vpop.f32.mrb[0].mxu0
  %v651 = vadd.f32 %v97, %v650
  %v652 = vpop.f32.mrb[0].mxu0
  %v653 = vpop.f32.mrb[0].mxu0
  %v654 = vadd.f32 %v97, %v653
  %v655 = vpop.f32.mrb[0].mxu0
  %656 = vdwg.mxu0
  %v657 = vpack.c.bf16 %v406, %v403
  %v658 = vpack.c.bf16 %v414, %v411
  %v659 = vpack.c.bf16 %v422, %v419
  %v660 = vpack.c.bf16 %v430, %v427
  %v661 = vpack.c.bf16 %v438, %v435
  %v662 = vpack.c.bf16 %v446, %v443
  %v663 = vpack.c.bf16 %v454, %v451
  %v664 = vpack.c.bf16 %v462, %v459
  %v665 = vpack.c.bf16 %v470, %v467
  %v666 = vpack.c.bf16 %v478, %v475
  %v667 = vpack.c.bf16 %v486, %v483
  %v668 = vpack.c.bf16 %v494, %v491
  %v669 = vpack.c.bf16 %v502, %v499
  %v670 = vpack.c.bf16 %v510, %v507
  %v671 = vpack.c.bf16 %v518, %v515
  %v672 = vpack.c.bf16 %v526, %v523
  %v673 = vpack.c.bf16 %v534, %v531
  %v674 = vpack.c.bf16 %v542, %v539
  %v675 = vpack.c.bf16 %v550, %v547
  %v676 = vpack.c.bf16 %v558, %v555
  %v677 = vpack.c.bf16 %v566, %v563
  %v678 = vpack.c.bf16 %v574, %v571
  %v679 = vpack.c.bf16 %v582, %v579
  %v680 = vpack.c.bf16 %v590, %v587
  %v681 = vpack.c.bf16 %v598, %v595
  %v682 = vpack.c.bf16 %v606, %v603
  %v683 = vpack.c.bf16 %v614, %v611
  %v684 = vpack.c.bf16 %v622, %v619
  %v685 = vpack.c.bf16 %v630, %v627
  %v686 = vpack.c.bf16 %v638, %v635
  %v687 = vpack.c.bf16 %v646, %v643
  %v688 = vpack.c.bf16 %v654, %v651
  %vm689 = vcmask 785408
  %690 = vst.msk [vmem:[#allocation2] sm:$0xff] %vm689, %v657
  %691 = vst.msk [vmem:[#allocation2 + $0x8] sm:$0xff] %vm689, %v658
  %692 = vst.msk [vmem:[#allocation2 + $0x10] sm:$0xff] %vm689, %v659
  %693 = vst.msk [vmem:[#allocation2 + $0x18] sm:$0xff] %vm689, %v660
  %694 = vst.msk [vmem:[#allocation2 + $0x20] sm:$0xff] %vm689, %v661
  %695 = vst.msk [vmem:[#allocation2 + $0x28] sm:$0xff] %vm689, %v662
  %696 = vst.msk [vmem:[#allocation2 + $0x30] sm:$0xff] %vm689, %v663
  %697 = vst.msk [vmem:[#allocation2 + $0x38] sm:$0xff] %vm689, %v664
  %698 = vst.msk [vmem:[#allocation2 + $0x40] sm:$0xff] %vm689, %v665
  %699 = vst.msk [vmem:[#allocation2 + $0x48] sm:$0xff] %vm689, %v666
  %700 = vst.msk [vmem:[#allocation2 + $0x50] sm:$0xff] %vm689, %v667
  %701 = vst.msk [vmem:[#allocation2 + $0x58] sm:$0xff] %vm689, %v668
  %702 = vst.msk [vmem:[#allocation2 + $0x60] sm:$0xff] %vm689, %v669
  %703 = vst.msk [vmem:[#allocation2 + $0x68] sm:$0xff] %vm689, %v670
  %704 = vst.msk [vmem:[#allocation2 + $0x70] sm:$0xff] %vm689, %v671
  %705 = vst.msk [vmem:[#allocation2 + $0x78] sm:$0xff] %vm689, %v672
  %706 = vst.msk [vmem:[#allocation2 + $0x80] sm:$0xff] %vm689, %v673
  %707 = vst.msk [vmem:[#allocation2 + $0x88] sm:$0xff] %vm689, %v674
  %708 = vst.msk [vmem:[#allocation2 + $0x90] sm:$0xff] %vm689, %v675
  %709 = vst.msk [vmem:[#allocation2 + $0x98] sm:$0xff] %vm689, %v676
  %710 = vst.msk [vmem:[#allocation2 + $0xa0] sm:$0xff] %vm689, %v677
  %711 = vst.msk [vmem:[#allocation2 + $0xa8] sm:$0xff] %vm689, %v678
  %712 = vst.msk [vmem:[#allocation2 + $0xb0] sm:$0xff] %vm689, %v679
  %713 = vst.msk [vmem:[#allocation2 + $0xb8] sm:$0xff] %vm689, %v680
  %714 = vst.msk [vmem:[#allocation2 + $0xc0] sm:$0xff] %vm689, %v681
  %715 = vst.msk [vmem:[#allocation2 + $0xc8] sm:$0xff] %vm689, %v682
  %716 = vst.msk [vmem:[#allocation2 + $0xd0] sm:$0xff] %vm689, %v683
  %717 = vst.msk [vmem:[#allocation2 + $0xd8] sm:$0xff] %vm689, %v684
  %718 = vst.msk [vmem:[#allocation2 + $0xe0] sm:$0xff] %vm689, %v685
  %719 = vst.msk [vmem:[#allocation2 + $0xe8] sm:$0xff] %vm689, %v686
  %720 = vst.msk [vmem:[#allocation2 + $0xf0] sm:$0xff] %vm689, %v687
  %721 = vst.msk [vmem:[#allocation2 + $0xf8] sm:$0xff] %vm689, %v688
  %v722 = vld [vmem:[%s4] sm:$0x1]
  %v724 = vlaneseq
  %v725 = vshrl.u32 %v724, 7
  %v726 = vsub.s32 0, %v725
  %v727 = vrot.slane %v722, %v726
  %729 = vst.msk [vmem:[#allocation3] sm:$0xff] %vm271, %v727
  %730 = vst.msk [vmem:[#allocation3 + $0x8] sm:$0xff] %vm271, %v727
  %731 = vst.msk [vmem:[#allocation3 + $0x10] sm:$0xff] %vm271, %v727
  %732 = vst.msk [vmem:[#allocation3 + $0x18] sm:$0xff] %vm271, %v727
  %733 = vst.msk [vmem:[#allocation3 + $0x20] sm:$0xff] %vm271, %v727
  %734 = vst.msk [vmem:[#allocation3 + $0x28] sm:$0xff] %vm271, %v727
  %735 = vst.msk [vmem:[#allocation3 + $0x30] sm:$0xff] %vm271, %v727
  %736 = vst.msk [vmem:[#allocation3 + $0x38] sm:$0xff] %vm271, %v727
  %737 = vst.msk [vmem:[#allocation3 + $0x40] sm:$0xff] %vm271, %v727
  %738 = vst.msk [vmem:[#allocation3 + $0x48] sm:$0xff] %vm271, %v727
  %739 = vst.msk [vmem:[#allocation3 + $0x50] sm:$0xff] %vm271, %v727
  %740 = vst.msk [vmem:[#allocation3 + $0x58] sm:$0xff] %vm271, %v727
  %741 = vst.msk [vmem:[#allocation3 + $0x60] sm:$0xff] %vm271, %v727
  %742 = vst.msk [vmem:[#allocation3 + $0x68] sm:$0xff] %vm271, %v727
  %743 = vst.msk [vmem:[#allocation3 + $0x70] sm:$0xff] %vm271, %v727
  %744 = vst.msk [vmem:[#allocation3 + $0x78] sm:$0xff] %vm271, %v727
  %745 = vst.msk [vmem:[#allocation3 + $0x80] sm:$0xff] %vm271, %v727
  %746 = vst.msk [vmem:[#allocation3 + $0x88] sm:$0xff] %vm271, %v727
  %747 = vst.msk [vmem:[#allocation3 + $0x90] sm:$0xff] %vm271, %v727
  %748 = vst.msk [vmem:[#allocation3 + $0x98] sm:$0xff] %vm271, %v727
  %749 = vst.msk [vmem:[#allocation3 + $0xa0] sm:$0xff] %vm271, %v727
  %750 = vst.msk [vmem:[#allocation3 + $0xa8] sm:$0xff] %vm271, %v727
  %751 = vst.msk [vmem:[#allocation3 + $0xb0] sm:$0xff] %vm271, %v727
  %752 = vst.msk [vmem:[#allocation3 + $0xb8] sm:$0xff] %vm271, %v727
  %753 = vst.msk [vmem:[#allocation3 + $0xc0] sm:$0xff] %vm271, %v727
  %754 = vst.msk [vmem:[#allocation3 + $0xc8] sm:$0xff] %vm271, %v727
  %755 = vst.msk [vmem:[#allocation3 + $0xd0] sm:$0xff] %vm271, %v727
  %756 = vst.msk [vmem:[#allocation3 + $0xd8] sm:$0xff] %vm271, %v727
  %757 = vst.msk [vmem:[#allocation3 + $0xe0] sm:$0xff] %vm271, %v727
  %758 = vst.msk [vmem:[#allocation3 + $0xe8] sm:$0xff] %vm271, %v727
  %759 = vst.msk [vmem:[#allocation3 + $0xf0] sm:$0xff] %vm271, %v727
  %760 = vst.msk [vmem:[#allocation3 + $0xf8] sm:$0xff] %vm271, %v727
  %761 = vst.msk [vmem:[#allocation3 + $0x100] sm:$0xff] %vm271, %v727
  %762 = vst.msk [vmem:[#allocation3 + $0x108] sm:$0xff] %vm271, %v727
  %763 = vst.msk [vmem:[#allocation3 + $0x110] sm:$0xff] %vm271, %v727
  %764 = vst.msk [vmem:[#allocation3 + $0x118] sm:$0xff] %vm271, %v727
  %765 = vst.msk [vmem:[#allocation3 + $0x120] sm:$0xff] %vm271, %v727
  %766 = vst.msk [vmem:[#allocation3 + $0x128] sm:$0xff] %vm271, %v727
  %767 = vst.msk [vmem:[#allocation3 + $0x130] sm:$0xff] %vm271, %v727
  %768 = vst.msk [vmem:[#allocation3 + $0x138] sm:$0xff] %vm271, %v727
  %769 = vst.msk [vmem:[#allocation3 + $0x140] sm:$0xff] %vm271, %v727
  %770 = vst.msk [vmem:[#allocation3 + $0x148] sm:$0xff] %vm271, %v727
  %771 = vst.msk [vmem:[#allocation3 + $0x150] sm:$0xff] %vm271, %v727
  %772 = vst.msk [vmem:[#allocation3 + $0x158] sm:$0xff] %vm271, %v727
  %773 = vst.msk [vmem:[#allocation3 + $0x160] sm:$0xff] %vm271, %v727
  %774 = vst.msk [vmem:[#allocation3 + $0x168] sm:$0xff] %vm271, %v727
  %775 = vst.msk [vmem:[#allocation3 + $0x170] sm:$0xff] %vm271, %v727
  %776 = vst.msk [vmem:[#allocation3 + $0x178] sm:$0xff] %vm271, %v727
  %777 = vst.msk [vmem:[#allocation3 + $0x180] sm:$0xff] %vm271, %v727
  %778 = vst.msk [vmem:[#allocation3 + $0x188] sm:$0xff] %vm271, %v727
  %779 = vst.msk [vmem:[#allocation3 + $0x190] sm:$0xff] %vm271, %v727
  %780 = vst.msk [vmem:[#allocation3 + $0x198] sm:$0xff] %vm271, %v727
  %781 = vst.msk [vmem:[#allocation3 + $0x1a0] sm:$0xff] %vm271, %v727
  %782 = vst.msk [vmem:[#allocation3 + $0x1a8] sm:$0xff] %vm271, %v727
  %783 = vst.msk [vmem:[#allocation3 + $0x1b0] sm:$0xff] %vm271, %v727
  %784 = vst.msk [vmem:[#allocation3 + $0x1b8] sm:$0xff] %vm271, %v727
  %785 = vst.msk [vmem:[#allocation3 + $0x1c0] sm:$0xff] %vm271, %v727
  %786 = vst.msk [vmem:[#allocation3 + $0x1c8] sm:$0xff] %vm271, %v727
  %787 = vst.msk [vmem:[#allocation3 + $0x1d0] sm:$0xff] %vm271, %v727
  %788 = vst.msk [vmem:[#allocation3 + $0x1d8] sm:$0xff] %vm271, %v727
  %789 = vst.msk [vmem:[#allocation3 + $0x1e0] sm:$0xff] %vm271, %v727
  %790 = vst.msk [vmem:[#allocation3 + $0x1e8] sm:$0xff] %vm271, %v727
  %791 = vst.msk [vmem:[#allocation3 + $0x1f0] sm:$0xff] %vm271, %v727
  %792 = vst.msk [vmem:[#allocation3 + $0x1f8] sm:$0xff] %vm271, %v727
  %v793 = vld [vmem:[#allocation2] sm:$0xff]
  %v794 = vld [vmem:[#allocation2 + $0x8] sm:$0xff]
  %v795 = vld [vmem:[#allocation2 + $0x10] sm:$0xff]
  %v796 = vld [vmem:[#allocation2 + $0x18] sm:$0xff]
  %v797 = vld [vmem:[#allocation2 + $0x20] sm:$0xff]
  %v798 = vld [vmem:[#allocation2 + $0x28] sm:$0xff]
  %v799 = vld [vmem:[#allocation2 + $0x30] sm:$0xff]
  %v800 = vld [vmem:[#allocation2 + $0x38] sm:$0xff]
  %v801 = vld [vmem:[#allocation2 + $0x40] sm:$0xff]
  %v802 = vld [vmem:[#allocation2 + $0x48] sm:$0xff]
  %v803 = vld [vmem:[#allocation2 + $0x50] sm:$0xff]
  %v804 = vld [vmem:[#allocation2 + $0x58] sm:$0xff]
  %v805 = vld [vmem:[#allocation2 + $0x60] sm:$0xff]
  %v806 = vld [vmem:[#allocation2 + $0x68] sm:$0xff]
  %v807 = vld [vmem:[#allocation2 + $0x70] sm:$0xff]
  %v808 = vld [vmem:[#allocation2 + $0x78] sm:$0xff]
  %v809 = vld [vmem:[#allocation2 + $0x80] sm:$0xff]
  %v810 = vld [vmem:[#allocation2 + $0x88] sm:$0xff]
  %v811 = vld [vmem:[#allocation2 + $0x90] sm:$0xff]
  %v812 = vld [vmem:[#allocation2 + $0x98] sm:$0xff]
  %v813 = vld [vmem:[#allocation2 + $0xa0] sm:$0xff]
  %v814 = vld [vmem:[#allocation2 + $0xa8] sm:$0xff]
  %v815 = vld [vmem:[#allocation2 + $0xb0] sm:$0xff]
  %v816 = vld [vmem:[#allocation2 + $0xb8] sm:$0xff]
  %v817 = vld [vmem:[#allocation2 + $0xc0] sm:$0xff]
  %v818 = vld [vmem:[#allocation2 + $0xc8] sm:$0xff]
  %v819 = vld [vmem:[#allocation2 + $0xd0] sm:$0xff]
  %v820 = vld [vmem:[#allocation2 + $0xd8] sm:$0xff]
  %v821 = vld [vmem:[#allocation2 + $0xe0] sm:$0xff]
  %v822 = vld [vmem:[#allocation2 + $0xe8] sm:$0xff]
  %v823 = vld [vmem:[#allocation2 + $0xf0] sm:$0xff]
  %v824 = vld [vmem:[#allocation2 + $0xf8] sm:$0xff]
  %v825 = vld [vmem:[%s5] sm:$0xff]
  %v826 = vld [vmem:[%s5 + $0x8] sm:$0xff]
  %v827 = vld [vmem:[%s5 + $0x10] sm:$0xff]
  %v828 = vld [vmem:[%s5 + $0x18] sm:$0xff]
  %v829 = vld [vmem:[%s5 + $0x20] sm:$0xff]
  %v830 = vld [vmem:[%s5 + $0x28] sm:$0xff]
  %v831 = vld [vmem:[%s5 + $0x30] sm:$0xff]
  %v832 = vld [vmem:[%s5 + $0x38] sm:$0xff]
  %837 = vrot.lane.b32.xlu0 %v793, 96
  %v838 = vpop.permute.xlu0 %837
  %839 = vrot.lane.b32.xlu0 %v794, 96
  %v840 = vpop.permute.xlu0 %839
  %841 = vrot.lane.b32.xlu0 %v795, 96
  %v842 = vpop.permute.xlu0 %841
  %843 = vrot.lane.b32.xlu0 %v796, 96
  %v844 = vpop.permute.xlu0 %843
  %vm845 = vcmask 64512
  %v847 = vsel %vm845, %v793, 0
  %v850 = vsel %vm845, %v794, 0
  %v853 = vsel %vm845, %v795, 0
  %v856 = vsel %vm845, %v796, 0
  %v859 = vsel %vm845, %v838, 0
  %v862 = vsel %vm845, %v840, 0
  %v865 = vsel %vm845, %v842, 0
  %v868 = vsel %vm845, %v844, 0
  %870 = vmatprep.subr.bf16.mxu0 0
  %871 = vmatpush1.bf16.xpose.msra.mxu0 %v859
  %872 = vmatprep.subr.bf16.mxu0 0
  %873 = vmatpush1.bf16.xpose.msra.mxu0 %v862
  %874 = vmatprep.subr.bf16.mxu0 0
  %875 = vmatpush1.bf16.xpose.msra.mxu0 %v865
  %876 = vmatprep.subr.bf16.mxu0 0
  %877 = vmatpush1.bf16.xpose.msra.mxu0 %v868
  %878 = vmatprep.subr.bf16.mxu0 0
  %879 = vmatpush1.bf16.xpose.msra.mxu0 0
  %880 = vmatprep.subr.bf16.mxu0 0
  %881 = vmatpush1.bf16.xpose.msra.mxu0 0
  %882 = vmatprep.subr.bf16.mxu0 0
  %883 = vmatpush1.bf16.xpose.msra.mxu0 0
  %884 = vmatprep.subr.bf16.mxu0 0
  %885 = vmatpush1.bf16.xpose.msra.mxu0 0
  %886 = vmatprep.subr.bf16.mxu0 0
  %887 = vmatpush1.bf16.xpose.msra.mxu0 0
  %888 = vmatprep.subr.bf16.mxu0 0
  %889 = vmatpush1.bf16.xpose.msra.mxu0 0
  %890 = vmatprep.subr.bf16.mxu0 0
  %891 = vmatpush1.bf16.xpose.msra.mxu0 0
  %892 = vmatprep.subr.bf16.mxu0 0
  %893 = vmatpush1.bf16.xpose.msra.mxu0 0
  %894 = vmatprep.subr.bf16.mxu0 0
  %895 = vmatpush1.bf16.xpose.msra.mxu0 0
  %896 = vmatprep.subr.bf16.mxu0 0
  %897 = vmatpush1.bf16.xpose.msra.mxu0 0
  %898 = vmatprep.subr.bf16.mxu0 0
  %899 = vmatpush1.bf16.xpose.msra.mxu0 0
  %900 = vmatprep.subr.bf16.mxu0 0
  %901 = vmatpush1.bf16.xpose.msra.mxu0 0
  %902 = vmatprep.mubr.bf16.mxu0 0
  %903 = vmatmul.mubr.bf16.gmra.mrb[0].mxu0 %v847
  %v904 = vpop.f32.mrb[0].mxu0
  %v905 = vadd.f32 %v825, %v904
  %v906 = vpop.f32.mrb[0].mxu0
  %v907 = vpop.f32.mrb[0].mxu0
  %v908 = vadd.f32 %v826, %v907
  %v909 = vpop.f32.mrb[0].mxu0
  %910 = vmatprep.mubr.bf16.mxu0 0
  %911 = vmatmul.mubr.bf16.gmra.mrb[0].mxu0 %v850
  %v912 = vpop.f32.mrb[0].mxu0
  %v913 = vadd.f32 %v827, %v912
  %v914 = vpop.f32.mrb[0].mxu0
  %v915 = vpop.f32.mrb[0].mxu0
  %v916 = vadd.f32 %v828, %v915
  %v917 = vpop.f32.mrb[0].mxu0
  %918 = vmatprep.mubr.bf16.mxu0 0
  %919 = vmatmul.mubr.bf16.gmra.mrb[0].mxu0 %v853
  %v920 = vpop.f32.mrb[0].mxu0
  %v921 = vadd.f32 %v829, %v920
  %v922 = vpop.f32.mrb[0].mxu0
  %v923 = vpop.f32.mrb[0].mxu0
  %v924 = vadd.f32 %v830, %v923
  %v925 = vpop.f32.mrb[0].mxu0
  %926 = vmatprep.mubr.bf16.mxu0 0
  %927 = vmatmul.mubr.bf16.gmra.mrb[0].mxu0 %v856
  %v928 = vpop.f32.mrb[0].mxu0
  %v929 = vadd.f32 %v831, %v928
  %v930 = vpop.f32.mrb[0].mxu0
  %v931 = vpop.f32.mrb[0].mxu0
  %v932 = vadd.f32 %v832, %v931
  %v933 = vpop.f32.mrb[0].mxu0
  %934 = vdwg.mxu0
  %939 = vrot.lane.b32.xlu0 %v797, 96
  %v940 = vpop.permute.xlu0 %939
  %941 = vrot.lane.b32.xlu0 %v798, 96
  %v942 = vpop.permute.xlu0 %941
  %943 = vrot.lane.b32.xlu0 %v799, 96
  %v944 = vpop.permute.xlu0 %943
  %945 = vrot.lane.b32.xlu0 %v800, 96
  %v946 = vpop.permute.xlu0 %945
  %v948 = vsel %vm845, %v797, 0
  %v951 = vsel %vm845, %v798, 0
  %v954 = vsel %vm845, %v799, 0
  %v957 = vsel %vm845, %v800, 0
  %v960 = vsel %vm845, %v940, 0
  %v963 = vsel %vm845, %v942, 0
  %v966 = vsel %vm845, %v944, 0
  %v969 = vsel %vm845, %v946, 0
  %971 = vmatprep.subr.bf16.mxu0 0
  %972 = vmatpush1.bf16.xpose.msra.mxu0 %v960
  %973 = vmatprep.subr.bf16.mxu0 0
  %974 = vmatpush1.bf16.xpose.msra.mxu0 %v963
  %975 = vmatprep.subr.bf16.mxu0 0
  %976 = vmatpush1.bf16.xpose.msra.mxu0 %v966
  %977 = vmatprep.subr.bf16.mxu0 0
  %978 = vmatpush1.bf16.xpose.msra.mxu0 %v969
  %979 = vmatprep.subr.bf16.mxu0 0
  %980 = vmatpush1.bf16.xpose.msra.mxu0 0
  %981 = vmatprep.subr.bf16.mxu0 0
  %982 = vmatpush1.bf16.xpose.msra.mxu0 0
  %983 = vmatprep.subr.bf16.mxu0 0
  %984 = vmatpush1.bf16.xpose.msra.mxu0 0
  %985 = vmatprep.subr.bf16.mxu0 0
  %986 = vmatpush1.bf16.xpose.msra.mxu0 0
  %987 = vmatprep.subr.bf16.mxu0 0
  %988 = vmatpush1.bf16.xpose.msra.mxu0 0
  %989 = vmatprep.subr.bf16.mxu0 0
  %990 = vmatpush1.bf16.xpose.msra.mxu0 0
  %991 = vmatprep.subr.bf16.mxu0 0
  %992 = vmatpush1.bf16.xpose.msra.mxu0 0
  %993 = vmatprep.subr.bf16.mxu0 0
  %994 = vmatpush1.bf16.xpose.msra.mxu0 0
  %995 = vmatprep.subr.bf16.mxu0 0
  %996 = vmatpush1.bf16.xpose.msra.mxu0 0
  %997 = vmatprep.subr.bf16.mxu0 0
  %998 = vmatpush1.bf16.xpose.msra.mxu0 0
  %999 = vmatprep.subr.bf16.mxu0 0
  %1000 = vmatpush1.bf16.xpose.msra.mxu0 0
  %1001 = vmatprep.subr.bf16.mxu0 0
  %1002 = vmatpush1.bf16.xpose.msra.mxu0 0
  %1003 = vmatprep.mubr.bf16.mxu0 0
  %1004 = vmatmul.mubr.bf16.gmra.mrb[0].mxu0 %v948
  %v1005 = vpop.f32.mrb[0].mxu0
  %v1006 = vadd.f32 %v825, %v1005
  %v1007 = vpop.f32.mrb[0].mxu0
  %v1008 = vpop.f32.mrb[0].mxu0
  %v1009 = vadd.f32 %v826, %v1008
  %v1010 = vpop.f32.mrb[0].mxu0
  %1011 = vmatprep.mubr.bf16.mxu0 0
  %1012 = vmatmul.mubr.bf16.gmra.mrb[0].mxu0 %v951
  %v1013 = vpop.f32.mrb[0].mxu0
  %v1014 = vadd.f32 %v827, %v1013
  %v1015 = vpop.f32.mrb[0].mxu0
  %v1016 = vpop.f32.mrb[0].mxu0
  %v1017 = vadd.f32 %v828, %v1016
  %v1018 = vpop.f32.mrb[0].mxu0
  %1019 = vmatprep.mubr.bf16.mxu0 0
  %1020 = vmatmul.mubr.bf16.gmra.mrb[0].mxu0 %v954
  %v1021 = vpop.f32.mrb[0].mxu0
  %v1022 = vadd.f32 %v829, %v1021
  %v1023 = vpop.f32.mrb[0].mxu0
  %v1024 = vpop.f32.mrb[0].mxu0
  %v1025 = vadd.f32 %v830, %v1024
  %v1026 = vpop.f32.mrb[0].mxu0
  %1027 = vmatprep.mubr.bf16.mxu0 0
  %1028 = vmatmul.mubr.bf16.gmra.mrb[0].mxu0 %v957
  %v1029 = vpop.f32.mrb[0].mxu0
  %v1030 = vadd.f32 %v831, %v1029
  %v1031 = vpop.f32.mrb[0].mxu0
  %v1032 = vpop.f32.mrb[0].mxu0
  %v1033 = vadd.f32 %v832, %v1032
  %v1034 = vpop.f32.mrb[0].mxu0
  %1035 = vdwg.mxu0
  %1040 = vrot.lane.b32.xlu0 %v801, 96
  %v1041 = vpop.permute.xlu0 %1040
  %1042 = vrot.lane.b32.xlu0 %v802, 96
  %v1043 = vpop.permute.xlu0 %1042
  %1044 = vrot.lane.b32.xlu0 %v803, 96
  %v1045 = vpop.permute.xlu0 %1044
  %1046 = vrot.lane.b32.xlu0 %v804, 96
  %v1047 = vpop.permute.xlu0 %1046
  %v1049 = vsel %vm845, %v801, 0
  %v1052 = vsel %vm845, %v802, 0
  %v1055 = vsel %vm845, %v803, 0
  %v1058 = vsel %vm845, %v804, 0
  %v1061 = vsel %vm845, %v1041, 0
  %v1064 = vsel %vm845, %v1043, 0
  %v1067 = vsel %vm845, %v1045, 0
  %v1070 = vsel %vm845, %v1047, 0
  %1072 = vmatprep.subr.bf16.mxu0 0
  %1073 = vmatpush1.bf16.xpose.msra.mxu0 %v1061
  %1074 = vmatprep.subr.bf16.mxu0 0
  %1075 = vmatpush1.bf16.xpose.msra.mxu0 %v1064
  %1076 = vmatprep.subr.bf16.mxu0 0
  %1077 = vmatpush1.bf16.xpose.msra.mxu0 %v1067
  %1078 = vmatprep.subr.bf16.mxu0 0
  %1079 = vmatpush1.bf16.xpose.msra.mxu0 %v1070
  %1080 = vmatprep.subr.bf16.mxu0 0
  %1081 = vmatpush1.bf16.xpose.msra.mxu0 0
  %1082 = vmatprep.subr.bf16.mxu0 0
  %1083 = vmatpush1.bf16.xpose.msra.mxu0 0
  %1084 = vmatprep.subr.bf16.mxu0 0
  %1085 = vmatpush1.bf16.xpose.msra.mxu0 0
  %1086 = vmatprep.subr.bf16.mxu0 0
  %1087 = vmatpush1.bf16.xpose.msra.mxu0 0
  %1088 = vmatprep.subr.bf16.mxu0 0
  %1089 = vmatpush1.bf16.xpose.msra.mxu0 0
  %1090 = vmatprep.subr.bf16.mxu0 0
  %1091 = vmatpush1.bf16.xpose.msra.mxu0 0
  %1092 = vmatprep.subr.bf16.mxu0 0
  %1093 = vmatpush1.bf16.xpose.msra.mxu0 0
  %1094 = vmatprep.subr.bf16.mxu0 0
  %1095 = vmatpush1.bf16.xpose.msra.mxu0 0
  %1096 = vmatprep.subr.bf16.mxu0 0
  %1097 = vmatpush1.bf16.xpose.msra.mxu0 0
  %1098 = vmatprep.subr.bf16.mxu0 0
  %1099 = vmatpush1.bf16.xpose.msra.mxu0 0
  %1100 = vmatprep.subr.bf16.mxu0 0
  %1101 = vmatpush1.bf16.xpose.msra.mxu0 0
  %1102 = vmatprep.subr.bf16.mxu0 0
  %1103 = vmatpush1.bf16.xpose.msra.mxu0 0
  %1104 = vmatprep.mubr.bf16.mxu0 0
  %1105 = vmatmul.mubr.bf16.gmra.mrb[0].mxu0 %v1049
  %v1106 = vpop.f32.mrb[0].mxu0
  %v1107 = vadd.f32 %v825, %v1106
  %v1108 = vpop.f32.mrb[0].mxu0
  %v1109 = vpop.f32.mrb[0].mxu0
  %v1110 = vadd.f32 %v826, %v1109
  %v1111 = vpop.f32.mrb[0].mxu0
  %1112 = vmatprep.mubr.bf16.mxu0 0
  %1113 = vmatmul.mubr.bf16.gmra.mrb[0].mxu0 %v1052
  %v1114 = vpop.f32.mrb[0].mxu0
  %v1115 = vadd.f32 %v827, %v1114
  %v1116 = vpop.f32.mrb[0].mxu0
  %v1117 = vpop.f32.mrb[0].mxu0
  %v1118 = vadd.f32 %v828, %v1117
  %v1119 = vpop.f32.mrb[0].mxu0
  %1120 = vmatprep.mubr.bf16.mxu0 0
  %1121 = vmatmul.mubr.bf16.gmra.mrb[0].mxu0 %v1055
  %v1122 = vpop.f32.mrb[0].mxu0
  %v1123 = vadd.f32 %v829, %v1122
  %v1124 = vpop.f32.mrb[0].mxu0
  %v1125 = vpop.f32.mrb[0].mxu0
  %v1126 = vadd.f32 %v830, %v1125
  %v1127 = vpop.f32.mrb[0].mxu0
  %1128 = vmatprep.mubr.bf16.mxu0 0
  %1129 = vmatmul.mubr.bf16.gmra.mrb[0].mxu0 %v1058
  %v1130 = vpop.f32.mrb[0].mxu0
  %v1131 = vadd.f32 %v831, %v1130
  %v1132 = vpop.f32.mrb[0].mxu0
  %v1133 = vpop.f32.mrb[0].mxu0
  %v1134 = vadd.f32 %v832, %v1133
  %v1135 = vpop.f32.mrb[0].mxu0
  %1136 = vdwg.mxu0
  %1141 = vrot.lane.b32.xlu0 %v805, 96
  %v1142 = vpop.permute.xlu0 %1141
  %1143 = vrot.lane.b32.xlu0 %v806, 96
  %v1144 = vpop.permute.xlu0 %1143
  %1145 = vrot.lane.b32.xlu0 %v807, 96
  %v1146 = vpop.permute.xlu0 %1145
  %1147 = vrot.lane.b32.xlu0 %v808, 96
  %v1148 = vpop.permute.xlu0 %1147
  %v1150 = vsel %vm845, %v805, 0
  %v1153 = vsel %vm845, %v806, 0
  %v1156 = vsel %vm845, %v807, 0
  %v1159 = vsel %vm845, %v808, 0
  %v1162 = vsel %vm845, %v1142, 0
  %v1165 = vsel %vm845, %v1144, 0
  %v1168 = vsel %vm845, %v1146, 0
  %v1171 = vsel %vm845, %v1148, 0
  %1173 = vmatprep.subr.bf16.mxu0 0
  %1174 = vmatpush1.bf16.xpose.msra.mxu0 %v1162
  %1175 = vmatprep.subr.bf16.mxu0 0
  %1176 = vmatpush1.bf16.xpose.msra.mxu0 %v1165
  %1177 = vmatprep.subr.bf16.mxu0 0
  %1178 = vmatpush1.bf16.xpose.msra.mxu0 %v1168
  %1179 = vmatprep.subr.bf16.mxu0 0
  %1180 = vmatpush1.bf16.xpose.msra.mxu0 %v1171
  %1181 = vmatprep.subr.bf16.mxu0 0
  %1182 = vmatpush1.bf16.xpose.msra.mxu0 0
  %1183 = vmatprep.subr.bf16.mxu0 0
  %1184 = vmatpush1.bf16.xpose.msra.mxu0 0
  %1185 = vmatprep.subr.bf16.mxu0 0
  %1186 = vmatpush1.bf16.xpose.msra.mxu0 0
  %1187 = vmatprep.subr.bf16.mxu0 0
  %1188 = vmatpush1.bf16.xpose.msra.mxu0 0
  %1189 = vmatprep.subr.bf16.mxu0 0
  %1190 = vmatpush1.bf16.xpose.msra.mxu0 0
  %1191 = vmatprep.subr.bf16.mxu0 0
  %1192 = vmatpush1.bf16.xpose.msra.mxu0 0
  %1193 = vmatprep.subr.bf16.mxu0 0
  %1194 = vmatpush1.bf16.xpose.msra.mxu0 0
  %1195 = vmatprep.subr.bf16.mxu0 0
  %1196 = vmatpush1.bf16.xpose.msra.mxu0 0
  %1197 = vmatprep.subr.bf16.mxu0 0
  %1198 = vmatpush1.bf16.xpose.msra.mxu0 0
  %1199 = vmatprep.subr.bf16.mxu0 0
  %1200 = vmatpush1.bf16.xpose.msra.mxu0 0
  %1201 = vmatprep.subr.bf16.mxu0 0
  %1202 = vmatpush1.bf16.xpose.msra.mxu0 0
  %1203 = vmatprep.subr.bf16.mxu0 0
  %1204 = vmatpush1.bf16.xpose.msra.mxu0 0
  %1205 = vmatprep.mubr.bf16.mxu0 0
  %1206 = vmatmul.mubr.bf16.gmra.mrb[0].mxu0 %v1150
  %v1207 = vpop.f32.mrb[0].mxu0
  %v1208 = vadd.f32 %v825, %v1207
  %v1209 = vpop.f32.mrb[0].mxu0
  %v1210 = vpop.f32.mrb[0].mxu0
  %v1211 = vadd.f32 %v826, %v1210
  %v1212 = vpop.f32.mrb[0].mxu0
  %1213 = vmatprep.mubr.bf16.mxu0 0
  %1214 = vmatmul.mubr.bf16.gmra.mrb[0].mxu0 %v1153
  %v1215 = vpop.f32.mrb[0].mxu0
  %v1216 = vadd.f32 %v827, %v1215
  %v1217 = vpop.f32.mrb[0].mxu0
  %v1218 = vpop.f32.mrb[0].mxu0
  %v1219 = vadd.f32 %v828, %v1218
  %v1220 = vpop.f32.mrb[0].mxu0
  %1221 = vmatprep.mubr.bf16.mxu0 0
  %1222 = vmatmul.mubr.bf16.gmra.mrb[0].mxu0 %v1156
  %v1223 = vpop.f32.mrb[0].mxu0
  %v1224 = vadd.f32 %v829, %v1223
  %v1225 = vpop.f32.mrb[0].mxu0
  %v1226 = vpop.f32.mrb[0].mxu0
  %v1227 = vadd.f32 %v830, %v1226
  %v1228 = vpop.f32.mrb[0].mxu0
  %1229 = vmatprep.mubr.bf16.mxu0 0
  %1230 = vmatmul.mubr.bf16.gmra.mrb[0].mxu0 %v1159
  %v1231 = vpop.f32.mrb[0].mxu0
  %v1232 = vadd.f32 %v831, %v1231
  %v1233 = vpop.f32.mrb[0].mxu0
  %v1234 = vpop.f32.mrb[0].mxu0
  %v1235 = vadd.f32 %v832, %v1234
  %v1236 = vpop.f32.mrb[0].mxu0
  %1237 = vdwg.mxu0
  %1242 = vrot.lane.b32.xlu0 %v809, 96
  %v1243 = vpop.permute.xlu0 %1242
  %1244 = vrot.lane.b32.xlu0 %v810, 96
  %v1245 = vpop.permute.xlu0 %1244
  %1246 = vrot.lane.b32.xlu0 %v811, 96
  %v1247 = vpop.permute.xlu0 %1246
  %1248 = vrot.lane.b32.xlu0 %v812, 96
  %v1249 = vpop.permute.xlu0 %1248
  %v1251 = vsel %vm845, %v809, 0
  %v1254 = vsel %vm845, %v810, 0
  %v1257 = vsel %vm845, %v811, 0
  %v1260 = vsel %vm845, %v812, 0
  %v1263 = vsel %vm845, %v1243, 0
  %v1266 = vsel %vm845, %v1245, 0
  %v1269 = vsel %vm845, %v1247, 0
  %v1272 = vsel %vm845, %v1249, 0
  %1274 = vmatprep.subr.bf16.mxu0 0
  %1275 = vmatpush1.bf16.xpose.msra.mxu0 %v1263
  %1276 = vmatprep.subr.bf16.mxu0 0
  %1277 = vmatpush1.bf16.xpose.msra.mxu0 %v1266
  %1278 = vmatprep.subr.bf16.mxu0 0
  %1279 = vmatpush1.bf16.xpose.msra.mxu0 %v1269
  %1280 = vmatprep.subr.bf16.mxu0 0
  %1281 = vmatpush1.bf16.xpose.msra.mxu0 %v1272
  %1282 = vmatprep.subr.bf16.mxu0 0
  %1283 = vmatpush1.bf16.xpose.msra.mxu0 0
  %1284 = vmatprep.subr.bf16.mxu0 0
  %1285 = vmatpush1.bf16.xpose.msra.mxu0 0
  %1286 = vmatprep.subr.bf16.mxu0 0
  %1287 = vmatpush1.bf16.xpose.msra.mxu0 0
  %1288 = vmatprep.subr.bf16.mxu0 0
  %1289 = vmatpush1.bf16.xpose.msra.mxu0 0
  %1290 = vmatprep.subr.bf16.mxu0 0
  %1291 = vmatpush1.bf16.xpose.msra.mxu0 0
  %1292 = vmatprep.subr.bf16.mxu0 0
  %1293 = vmatpush1.bf16.xpose.msra.mxu0 0
  %1294 = vmatprep.subr.bf16.mxu0 0
  %1295 = vmatpush1.bf16.xpose.msra.mxu0 0
  %1296 = vmatprep.subr.bf16.mxu0 0
  %1297 = vmatpush1.bf16.xpose.msra.mxu0 0
  %1298 = vmatprep.subr.bf16.mxu0 0
  %1299 = vmatpush1.bf16.xpose.msra.mxu0 0
  %1300 = vmatprep.subr.bf16.mxu0 0
  %1301 = vmatpush1.bf16.xpose.msra.mxu0 0
  %1302 = vmatprep.subr.bf16.mxu0 0
  %1303 = vmatpush1.bf16.xpose.msra.mxu0 0
  %1304 = vmatprep.subr.bf16.mxu0 0
  %1305 = vmatpush1.bf16.xpose.msra.mxu0 0
  %1306 = vmatprep.mubr.bf16.mxu0 0
  %1307 = vmatmul.mubr.bf16.gmra.mrb[0].mxu0 %v1251
  %v1308 = vpop.f32.mrb[0].mxu0
  %v1309 = vadd.f32 %v825, %v1308
  %v1310 = vpop.f32.mrb[0].mxu0
  %v1311 = vpop.f32.mrb[0].mxu0
  %v1312 = vadd.f32 %v826, %v1311
  %v1313 = vpop.f32.mrb[0].mxu0
  %1314 = vmatprep.mubr.bf16.mxu0 0
  %1315 = vmatmul.mubr.bf16.gmra.mrb[0].mxu0 %v1254
  %v1316 = vpop.f32.mrb[0].mxu0
  %v1317 = vadd.f32 %v827, %v1316
  %v1318 = vpop.f32.mrb[0].mxu0
  %v1319 = vpop.f32.mrb[0].mxu0
  %v1320 = vadd.f32 %v828, %v1319
  %v1321 = vpop.f32.mrb[0].mxu0
  %1322 = vmatprep.mubr.bf16.mxu0 0
  %1323 = vmatmul.mubr.bf16.gmra.mrb[0].mxu0 %v1257
  %v1324 = vpop.f32.mrb[0].mxu0
  %v1325 = vadd.f32 %v829, %v1324
  %v1326 = vpop.f32.mrb[0].mxu0
  %v1327 = vpop.f32.mrb[0].mxu0
  %v1328 = vadd.f32 %v830, %v1327
  %v1329 = vpop.f32.mrb[0].mxu0
  %1330 = vmatprep.mubr.bf16.mxu0 0
  %1331 = vmatmul.mubr.bf16.gmra.mrb[0].mxu0 %v1260
  %v1332 = vpop.f32.mrb[0].mxu0
  %v1333 = vadd.f32 %v831, %v1332
  %v1334 = vpop.f32.mrb[0].mxu0
  %v1335 = vpop.f32.mrb[0].mxu0
  %v1336 = vadd.f32 %v832, %v1335
  %v1337 = vpop.f32.mrb[0].mxu0
  %1338 = vdwg.mxu0
  %1343 = vrot.lane.b32.xlu0 %v813, 96
  %v1344 = vpop.permute.xlu0 %1343
  %1345 = vrot.lane.b32.xlu0 %v814, 96
  %v1346 = vpop.permute.xlu0 %1345
  %1347 = vrot.lane.b32.xlu0 %v815, 96
  %v1348 = vpop.permute.xlu0 %1347
  %1349 = vrot.lane.b32.xlu0 %v816, 96
  %v1350 = vpop.permute.xlu0 %1349
  %v1352 = vsel %vm845, %v813, 0
  %v1355 = vsel %vm845, %v814, 0
  %v1358 = vsel %vm845, %v815, 0
  %v1361 = vsel %vm845, %v816, 0
  %v1364 = vsel %vm845, %v1344, 0
  %v1367 = vsel %vm845, %v1346, 0
  %v1370 = vsel %vm845, %v1348, 0
  %v1373 = vsel %vm845, %v1350, 0
  %1375 = vmatprep.subr.bf16.mxu0 0
  %1376 = vmatpush1.bf16.xpose.msra.mxu0 %v1364
  %1377 = vmatprep.subr.bf16.mxu0 0
  %1378 = vmatpush1.bf16.xpose.msra.mxu0 %v1367
  %1379 = vmatprep.subr.bf16.mxu0 0
  %1380 = vmatpush1.bf16.xpose.msra.mxu0 %v1370
  %1381 = vmatprep.subr.bf16.mxu0 0
  %1382 = vmatpush1.bf16.xpose.msra.mxu0 %v1373
  %1383 = vmatprep.subr.bf16.mxu0 0
  %1384 = vmatpush1.bf16.xpose.msra.mxu0 0
  %1385 = vmatprep.subr.bf16.mxu0 0
  %1386 = vmatpush1.bf16.xpose.msra.mxu0 0
  %1387 = vmatprep.subr.bf16.mxu0 0
  %1388 = vmatpush1.bf16.xpose.msra.mxu0 0
  %1389 = vmatprep.subr.bf16.mxu0 0
  %1390 = vmatpush1.bf16.xpose.msra.mxu0 0
  %1391 = vmatprep.subr.bf16.mxu0 0
  %1392 = vmatpush1.bf16.xpose.msra.mxu0 0
  %1393 = vmatprep.subr.bf16.mxu0 0
  %1394 = vmatpush1.bf16.xpose.msra.mxu0 0
  %1395 = vmatprep.subr.bf16.mxu0 0
  %1396 = vmatpush1.bf16.xpose.msra.mxu0 0
  %1397 = vmatprep.subr.bf16.mxu0 0
  %1398 = vmatpush1.bf16.xpose.msra.mxu0 0
  %1399 = vmatprep.subr.bf16.mxu0 0
  %1400 = vmatpush1.bf16.xpose.msra.mxu0 0
  %1401 = vmatprep.subr.bf16.mxu0 0
  %1402 = vmatpush1.bf16.xpose.msra.mxu0 0
  %1403 = vmatprep.subr.bf16.mxu0 0
  %1404 = vmatpush1.bf16.xpose.msra.mxu0 0
  %1405 = vmatprep.subr.bf16.mxu0 0
  %1406 = vmatpush1.bf16.xpose.msra.mxu0 0
  %1407 = vmatprep.mubr.bf16.mxu0 0
  %1408 = vmatmul.mubr.bf16.gmra.mrb[0].mxu0 %v1352
  %v1409 = vpop.f32.mrb[0].mxu0
  %v1410 = vadd.f32 %v825, %v1409
  %v1411 = vpop.f32.mrb[0].mxu0
  %v1412 = vpop.f32.mrb[0].mxu0
  %v1413 = vadd.f32 %v826, %v1412
  %v1414 = vpop.f32.mrb[0].mxu0
  %1415 = vmatprep.mubr.bf16.mxu0 0
  %1416 = vmatmul.mubr.bf16.gmra.mrb[0].mxu0 %v1355
  %v1417 = vpop.f32.mrb[0].mxu0
  %v1418 = vadd.f32 %v827, %v1417
  %v1419 = vpop.f32.mrb[0].mxu0
  %v1420 = vpop.f32.mrb[0].mxu0
  %v1421 = vadd.f32 %v828, %v1420
  %v1422 = vpop.f32.mrb[0].mxu0
  %1423 = vmatprep.mubr.bf16.mxu0 0
  %1424 = vmatmul.mubr.bf16.gmra.mrb[0].mxu0 %v1358
  %v1425 = vpop.f32.mrb[0].mxu0
  %v1426 = vadd.f32 %v829, %v1425
  %v1427 = vpop.f32.mrb[0].mxu0
  %v1428 = vpop.f32.mrb[0].mxu0
  %v1429 = vadd.f32 %v830, %v1428
  %v1430 = vpop.f32.mrb[0].mxu0
  %1431 = vmatprep.mubr.bf16.mxu0 0
  %1432 = vmatmul.mubr.bf16.gmra.mrb[0].mxu0 %v1361
  %v1433 = vpop.f32.mrb[0].mxu0
  %v1434 = vadd.f32 %v831, %v1433
  %v1435 = vpop.f32.mrb[0].mxu0
  %v1436 = vpop.f32.mrb[0].mxu0
  %v1437 = vadd.f32 %v832, %v1436
  %v1438 = vpop.f32.mrb[0].mxu0
  %1439 = vdwg.mxu0
  %1444 = vrot.lane.b32.xlu0 %v817, 96
  %v1445 = vpop.permute.xlu0 %1444
  %1446 = vrot.lane.b32.xlu0 %v818, 96
  %v1447 = vpop.permute.xlu0 %1446
  %1448 = vrot.lane.b32.xlu0 %v819, 96
  %v1449 = vpop.permute.xlu0 %1448
  %1450 = vrot.lane.b32.xlu0 %v820, 96
  %v1451 = vpop.permute.xlu0 %1450
  %v1453 = vsel %vm845, %v817, 0
  %v1456 = vsel %vm845, %v818, 0
  %v1459 = vsel %vm845, %v819, 0
  %v1462 = vsel %vm845, %v820, 0
  %v1465 = vsel %vm845, %v1445, 0
  %v1468 = vsel %vm845, %v1447, 0
  %v1471 = vsel %vm845, %v1449, 0
  %v1474 = vsel %vm845, %v1451, 0
  %1476 = vmatprep.subr.bf16.mxu0 0
  %1477 = vmatpush1.bf16.xpose.msra.mxu0 %v1465
  %1478 = vmatprep.subr.bf16.mxu0 0
  %1479 = vmatpush1.bf16.xpose.msra.mxu0 %v1468
  %1480 = vmatprep.subr.bf16.mxu0 0
  %1481 = vmatpush1.bf16.xpose.msra.mxu0 %v1471
  %1482 = vmatprep.subr.bf16.mxu0 0
  %1483 = vmatpush1.bf16.xpose.msra.mxu0 %v1474
  %1484 = vmatprep.subr.bf16.mxu0 0
  %1485 = vmatpush1.bf16.xpose.msra.mxu0 0
  %1486 = vmatprep.subr.bf16.mxu0 0
  %1487 = vmatpush1.bf16.xpose.msra.mxu0 0
  %1488 = vmatprep.subr.bf16.mxu0 0
  %1489 = vmatpush1.bf16.xpose.msra.mxu0 0
  %1490 = vmatprep.subr.bf16.mxu0 0
  %1491 = vmatpush1.bf16.xpose.msra.mxu0 0
  %1492 = vmatprep.subr.bf16.mxu0 0
  %1493 = vmatpush1.bf16.xpose.msra.mxu0 0
  %1494 = vmatprep.subr.bf16.mxu0 0
  %1495 = vmatpush1.bf16.xpose.msra.mxu0 0
  %1496 = vmatprep.subr.bf16.mxu0 0
  %1497 = vmatpush1.bf16.xpose.msra.mxu0 0
  %1498 = vmatprep.subr.bf16.mxu0 0
  %1499 = vmatpush1.bf16.xpose.msra.mxu0 0
  %1500 = vmatprep.subr.bf16.mxu0 0
  %1501 = vmatpush1.bf16.xpose.msra.mxu0 0
  %1502 = vmatprep.subr.bf16.mxu0 0
  %1503 = vmatpush1.bf16.xpose.msra.mxu0 0
  %1504 = vmatprep.subr.bf16.mxu0 0
  %1505 = vmatpush1.bf16.xpose.msra.mxu0 0
  %1506 = vmatprep.subr.bf16.mxu0 0
  %1507 = vmatpush1.bf16.xpose.msra.mxu0 0
  %1508 = vmatprep.mubr.bf16.mxu0 0
  %1509 = vmatmul.mubr.bf16.gmra.mrb[0].mxu0 %v1453
  %v1510 = vpop.f32.mrb[0].mxu0
  %v1511 = vadd.f32 %v825, %v1510
  %v1512 = vpop.f32.mrb[0].mxu0
  %v1513 = vpop.f32.mrb[0].mxu0
  %v1514 = vadd.f32 %v826, %v1513
  %v1515 = vpop.f32.mrb[0].mxu0
  %1516 = vmatprep.mubr.bf16.mxu0 0
  %1517 = vmatmul.mubr.bf16.gmra.mrb[0].mxu0 %v1456
  %v1518 = vpop.f32.mrb[0].mxu0
  %v1519 = vadd.f32 %v827, %v1518
  %v1520 = vpop.f32.mrb[0].mxu0
  %v1521 = vpop.f32.mrb[0].mxu0
  %v1522 = vadd.f32 %v828, %v1521
  %v1523 = vpop.f32.mrb[0].mxu0
  %1524 = vmatprep.mubr.bf16.mxu0 0
  %1525 = vmatmul.mubr.bf16.gmra.mrb[0].mxu0 %v1459
  %v1526 = vpop.f32.mrb[0].mxu0
  %v1527 = vadd.f32 %v829, %v1526
  %v1528 = vpop.f32.mrb[0].mxu0
  %v1529 = vpop.f32.mrb[0].mxu0
  %v1530 = vadd.f32 %v830, %v1529
  %v1531 = vpop.f32.mrb[0].mxu0
  %1532 = vmatprep.mubr.bf16.mxu0 0
  %1533 = vmatmul.mubr.bf16.gmra.mrb[0].mxu0 %v1462
  %v1534 = vpop.f32.mrb[0].mxu0
  %v1535 = vadd.f32 %v831, %v1534
  %v1536 = vpop.f32.mrb[0].mxu0
  %v1537 = vpop.f32.mrb[0].mxu0
  %v1538 = vadd.f32 %v832, %v1537
  %v1539 = vpop.f32.mrb[0].mxu0
  %1540 = vdwg.mxu0
  %1545 = vrot.lane.b32.xlu0 %v821, 96
  %v1546 = vpop.permute.xlu0 %1545
  %1547 = vrot.lane.b32.xlu0 %v822, 96
  %v1548 = vpop.permute.xlu0 %1547
  %1549 = vrot.lane.b32.xlu0 %v823, 96
  %v1550 = vpop.permute.xlu0 %1549
  %1551 = vrot.lane.b32.xlu0 %v824, 96
  %v1552 = vpop.permute.xlu0 %1551
  %v1554 = vsel %vm845, %v821, 0
  %v1557 = vsel %vm845, %v822, 0
  %v1560 = vsel %vm845, %v823, 0
  %v1563 = vsel %vm845, %v824, 0
  %v1566 = vsel %vm845, %v1546, 0
  %v1569 = vsel %vm845, %v1548, 0
  %v1572 = vsel %vm845, %v1550, 0
  %v1575 = vsel %vm845, %v1552, 0
  %1577 = vmatprep.subr.bf16.mxu0 0
  %1578 = vmatpush1.bf16.xpose.msra.mxu0 %v1566
  %1579 = vmatprep.subr.bf16.mxu0 0
  %1580 = vmatpush1.bf16.xpose.msra.mxu0 %v1569
  %1581 = vmatprep.subr.bf16.mxu0 0
  %1582 = vmatpush1.bf16.xpose.msra.mxu0 %v1572
  %1583 = vmatprep.subr.bf16.mxu0 0
  %1584 = vmatpush1.bf16.xpose.msra.mxu0 %v1575
  %1585 = vmatprep.subr.bf16.mxu0 0
  %1586 = vmatpush1.bf16.xpose.msra.mxu0 0
  %1587 = vmatprep.subr.bf16.mxu0 0
  %1588 = vmatpush1.bf16.xpose.msra.mxu0 0
  %1589 = vmatprep.subr.bf16.mxu0 0
  %1590 = vmatpush1.bf16.xpose.msra.mxu0 0
  %1591 = vmatprep.subr.bf16.mxu0 0
  %1592 = vmatpush1.bf16.xpose.msra.mxu0 0
  %1593 = vmatprep.subr.bf16.mxu0 0
  %1594 = vmatpush1.bf16.xpose.msra.mxu0 0
  %1595 = vmatprep.subr.bf16.mxu0 0
  %1596 = vmatpush1.bf16.xpose.msra.mxu0 0
  %1597 = vmatprep.subr.bf16.mxu0 0
  %1598 = vmatpush1.bf16.xpose.msra.mxu0 0
  %1599 = vmatprep.subr.bf16.mxu0 0
  %1600 = vmatpush1.bf16.xpose.msra.mxu0 0
  %1601 = vmatprep.subr.bf16.mxu0 0
  %1602 = vmatpush1.bf16.xpose.msra.mxu0 0
  %1603 = vmatprep.subr.bf16.mxu0 0
  %1604 = vmatpush1.bf16.xpose.msra.mxu0 0
  %1605 = vmatprep.subr.bf16.mxu0 0
  %1606 = vmatpush1.bf16.xpose.msra.mxu0 0
  %1607 = vmatprep.subr.bf16.mxu0 0
  %1608 = vmatpush1.bf16.xpose.msra.mxu0 0
  %1609 = vmatprep.mubr.bf16.mxu0 0
  %1610 = vmatmul.mubr.bf16.gmra.mrb[0].mxu0 %v1554
  %v1611 = vpop.f32.mrb[0].mxu0
  %v1612 = vadd.f32 %v825, %v1611
  %v1613 = vpop.f32.mrb[0].mxu0
  %v1614 = vpop.f32.mrb[0].mxu0
  %v1615 = vadd.f32 %v826, %v1614
  %v1616 = vpop.f32.mrb[0].mxu0
  %1617 = vmatprep.mubr.bf16.mxu0 0
  %1618 = vmatmul.mubr.bf16.gmra.mrb[0].mxu0 %v1557
  %v1619 = vpop.f32.mrb[0].mxu0
  %v1620 = vadd.f32 %v827, %v1619
  %v1621 = vpop.f32.mrb[0].mxu0
  %v1622 = vpop.f32.mrb[0].mxu0
  %v1623 = vadd.f32 %v828, %v1622
  %v1624 = vpop.f32.mrb[0].mxu0
  %1625 = vmatprep.mubr.bf16.mxu0 0
  %1626 = vmatmul.mubr.bf16.gmra.mrb[0].mxu0 %v1560
  %v1627 = vpop.f32.mrb[0].mxu0
  %v1628 = vadd.f32 %v829, %v1627
  %v1629 = vpop.f32.mrb[0].mxu0
  %v1630 = vpop.f32.mrb[0].mxu0
  %v1631 = vadd.f32 %v830, %v1630
  %v1632 = vpop.f32.mrb[0].mxu0
  %1633 = vmatprep.mubr.bf16.mxu0 0
  %1634 = vmatmul.mubr.bf16.gmra.mrb[0].mxu0 %v1563
  %v1635 = vpop.f32.mrb[0].mxu0
  %v1636 = vadd.f32 %v831, %v1635
  %v1637 = vpop.f32.mrb[0].mxu0
  %v1638 = vpop.f32.mrb[0].mxu0
  %v1639 = vadd.f32 %v832, %v1638
  %v1640 = vpop.f32.mrb[0].mxu0
  %1641 = vdwg.mxu0
  %vm1642 = vcmask 523264
  %v1643 = vsel %vm1642, %v905, -inf
  %1644 = vmax.xlane.f32.xlu0 %v1643
  %v1645 = vpop.xlane.xlu0 %1644
  %v1646 = vsel %vm1642, %v908, -inf
  %1647 = vmax.xlane.f32.xlu0 %v1646
  %v1648 = vpop.xlane.xlu0 %1647
  %v1649 = vsel %vm1642, %v913, -inf
  %1650 = vmax.xlane.f32.xlu0 %v1649
  %v1651 = vpop.xlane.xlu0 %1650
  %v1652 = vsel %vm1642, %v916, -inf
  %1653 = vmax.xlane.f32.xlu0 %v1652
  %v1654 = vpop.xlane.xlu0 %1653
  %v1655 = vsel %vm1642, %v921, -inf
  %1656 = vmax.xlane.f32.xlu0 %v1655
  %v1657 = vpop.xlane.xlu0 %1656
  %v1658 = vsel %vm1642, %v924, -inf
  %1659 = vmax.xlane.f32.xlu0 %v1658
  %v1660 = vpop.xlane.xlu0 %1659
  %v1661 = vsel %vm1642, %v929, -inf
  %1662 = vmax.xlane.f32.xlu0 %v1661
  %v1663 = vpop.xlane.xlu0 %1662
  %v1664 = vsel %vm1642, %v932, -inf
  %1665 = vmax.xlane.f32.xlu0 %v1664
  %v1666 = vpop.xlane.xlu0 %1665
  %v1667 = vsel %vm1642, %v1006, -inf
  %1668 = vmax.xlane.f32.xlu0 %v1667
  %v1669 = vpop.xlane.xlu0 %1668
  %v1670 = vsel %vm1642, %v1009, -inf
  %1671 = vmax.xlane.f32.xlu0 %v1670
  %v1672 = vpop.xlane.xlu0 %1671
  %v1673 = vsel %vm1642, %v1014, -inf
  %1674 = vmax.xlane.f32.xlu0 %v1673
  %v1675 = vpop.xlane.xlu0 %1674
  %v1676 = vsel %vm1642, %v1017, -inf
  %1677 = vmax.xlane.f32.xlu0 %v1676
  %v1678 = vpop.xlane.xlu0 %1677
  %v1679 = vsel %vm1642, %v1022, -inf
  %1680 = vmax.xlane.f32.xlu0 %v1679
  %v1681 = vpop.xlane.xlu0 %1680
  %v1682 = vsel %vm1642, %v1025, -inf
  %1683 = vmax.xlane.f32.xlu0 %v1682
  %v1684 = vpop.xlane.xlu0 %1683
  %v1685 = vsel %vm1642, %v1030, -inf
  %1686 = vmax.xlane.f32.xlu0 %v1685
  %v1687 = vpop.xlane.xlu0 %1686
  %v1688 = vsel %vm1642, %v1033, -inf
  %1689 = vmax.xlane.f32.xlu0 %v1688
  %v1690 = vpop.xlane.xlu0 %1689
  %v1691 = vsel %vm1642, %v1107, -inf
  %1692 = vmax.xlane.f32.xlu0 %v1691
  %v1693 = vpop.xlane.xlu0 %1692
  %v1694 = vsel %vm1642, %v1110, -inf
  %1695 = vmax.xlane.f32.xlu0 %v1694
  %v1696 = vpop.xlane.xlu0 %1695
  %v1697 = vsel %vm1642, %v1115, -inf
  %1698 = vmax.xlane.f32.xlu0 %v1697
  %v1699 = vpop.xlane.xlu0 %1698
  %v1700 = vsel %vm1642, %v1118, -inf
  %1701 = vmax.xlane.f32.xlu0 %v1700
  %v1702 = vpop.xlane.xlu0 %1701
  %v1703 = vsel %vm1642, %v1123, -inf
  %1704 = vmax.xlane.f32.xlu0 %v1703
  %v1705 = vpop.xlane.xlu0 %1704
  %v1706 = vsel %vm1642, %v1126, -inf
  %1707 = vmax.xlane.f32.xlu0 %v1706
  %v1708 = vpop.xlane.xlu0 %1707
  %v1709 = vsel %vm1642, %v1131, -inf
  %1710 = vmax.xlane.f32.xlu0 %v1709
  %v1711 = vpop.xlane.xlu0 %1710
  %v1712 = vsel %vm1642, %v1134, -inf
  %1713 = vmax.xlane.f32.xlu0 %v1712
  %v1714 = vpop.xlane.xlu0 %1713
  %v1715 = vsel %vm1642, %v1208, -inf
  %1716 = vmax.xlane.f32.xlu0 %v1715
  %v1717 = vpop.xlane.xlu0 %1716
  %v1718 = vsel %vm1642, %v1211, -inf
  %1719 = vmax.xlane.f32.xlu0 %v1718
  %v1720 = vpop.xlane.xlu0 %1719
  %v1721 = vsel %vm1642, %v1216, -inf
  %1722 = vmax.xlane.f32.xlu0 %v1721
  %v1723 = vpop.xlane.xlu0 %1722
  %v1724 = vsel %vm1642, %v1219, -inf
  %1725 = vmax.xlane.f32.xlu0 %v1724
  %v1726 = vpop.xlane.xlu0 %1725
  %v1727 = vsel %vm1642, %v1224, -inf
  %1728 = vmax.xlane.f32.xlu0 %v1727
  %v1729 = vpop.xlane.xlu0 %1728
  %v1730 = vsel %vm1642, %v1227, -inf
  %1731 = vmax.xlane.f32.xlu0 %v1730
  %v1732 = vpop.xlane.xlu0 %1731
  %v1733 = vsel %vm1642, %v1232, -inf
  %1734 = vmax.xlane.f32.xlu0 %v1733
  %v1735 = vpop.xlane.xlu0 %1734
  %v1736 = vsel %vm1642, %v1235, -inf
  %1737 = vmax.xlane.f32.xlu0 %v1736
  %v1738 = vpop.xlane.xlu0 %1737
  %v1739 = vsel %vm1642, %v1309, -inf
  %1740 = vmax.xlane.f32.xlu0 %v1739
  %v1741 = vpop.xlane.xlu0 %1740
  %v1742 = vsel %vm1642, %v1312, -inf
  %1743 = vmax.xlane.f32.xlu0 %v1742
  %v1744 = vpop.xlane.xlu0 %1743
  %v1745 = vsel %vm1642, %v1317, -inf
  %1746 = vmax.xlane.f32.xlu0 %v1745
  %v1747 = vpop.xlane.xlu0 %1746
  %v1748 = vsel %vm1642, %v1320, -inf
  %1749 = vmax.xlane.f32.xlu0 %v1748
  %v1750 = vpop.xlane.xlu0 %1749
  %v1751 = vsel %vm1642, %v1325, -inf
  %1752 = vmax.xlane.f32.xlu0 %v1751
  %v1753 = vpop.xlane.xlu0 %1752
  %v1754 = vsel %vm1642, %v1328, -inf
  %1755 = vmax.xlane.f32.xlu0 %v1754
  %v1756 = vpop.xlane.xlu0 %1755
  %v1757 = vsel %vm1642, %v1333, -inf
  %1758 = vmax.xlane.f32.xlu0 %v1757
  %v1759 = vpop.xlane.xlu0 %1758
  %v1760 = vsel %vm1642, %v1336, -inf
  %1761 = vmax.xlane.f32.xlu0 %v1760
  %v1762 = vpop.xlane.xlu0 %1761
  %v1763 = vsel %vm1642, %v1410, -inf
  %1764 = vmax.xlane.f32.xlu0 %v1763
  %v1765 = vpop.xlane.xlu0 %1764
  %v1766 = vsel %vm1642, %v1413, -inf
  %1767 = vmax.xlane.f32.xlu0 %v1766
  %v1768 = vpop.xlane.xlu0 %1767
  %v1769 = vsel %vm1642, %v1418, -inf
  %1770 = vmax.xlane.f32.xlu0 %v1769
  %v1771 = vpop.xlane.xlu0 %1770
  %v1772 = vsel %vm1642, %v1421, -inf
  %1773 = vmax.xlane.f32.xlu0 %v1772
  %v1774 = vpop.xlane.xlu0 %1773
  %v1775 = vsel %vm1642, %v1426, -inf
  %1776 = vmax.xlane.f32.xlu0 %v1775
  %v1777 = vpop.xlane.xlu0 %1776
  %v1778 = vsel %vm1642, %v1429, -inf
  %1779 = vmax.xlane.f32.xlu0 %v1778
  %v1780 = vpop.xlane.xlu0 %1779
  %v1781 = vsel %vm1642, %v1434, -inf
  %1782 = vmax.xlane.f32.xlu0 %v1781
  %v1783 = vpop.xlane.xlu0 %1782
  %v1784 = vsel %vm1642, %v1437, -inf
  %1785 = vmax.xlane.f32.xlu0 %v1784
  %v1786 = vpop.xlane.xlu0 %1785
  %v1787 = vsel %vm1642, %v1511, -inf
  %1788 = vmax.xlane.f32.xlu0 %v1787
  %v1789 = vpop.xlane.xlu0 %1788
  %v1790 = vsel %vm1642, %v1514, -inf
  %1791 = vmax.xlane.f32.xlu0 %v1790
  %v1792 = vpop.xlane.xlu0 %1791
  %v1793 = vsel %vm1642, %v1519, -inf
  %1794 = vmax.xlane.f32.xlu0 %v1793
  %v1795 = vpop.xlane.xlu0 %1794
  %v1796 = vsel %vm1642, %v1522, -inf
  %1797 = vmax.xlane.f32.xlu0 %v1796
  %v1798 = vpop.xlane.xlu0 %1797
  %v1799 = vsel %vm1642, %v1527, -inf
  %1800 = vmax.xlane.f32.xlu0 %v1799
  %v1801 = vpop.xlane.xlu0 %1800
  %v1802 = vsel %vm1642, %v1530, -inf
  %1803 = vmax.xlane.f32.xlu0 %v1802
  %v1804 = vpop.xlane.xlu0 %1803
  %v1805 = vsel %vm1642, %v1535, -inf
  %1806 = vmax.xlane.f32.xlu0 %v1805
  %v1807 = vpop.xlane.xlu0 %1806
  %v1808 = vsel %vm1642, %v1538, -inf
  %1809 = vmax.xlane.f32.xlu0 %v1808
  %v1810 = vpop.xlane.xlu0 %1809
  %v1811 = vsel %vm1642, %v1612, -inf
  %1812 = vmax.xlane.f32.xlu0 %v1811
  %v1813 = vpop.xlane.xlu0 %1812
  %v1814 = vsel %vm1642, %v1615, -inf
  %1815 = vmax.xlane.f32.xlu0 %v1814
  %v1816 = vpop.xlane.xlu0 %1815
  %v1817 = vsel %vm1642, %v1620, -inf
  %1818 = vmax.xlane.f32.xlu0 %v1817
  %v1819 = vpop.xlane.xlu0 %1818
  %v1820 = vsel %vm1642, %v1623, -inf
  %1821 = vmax.xlane.f32.xlu0 %v1820
  %v1822 = vpop.xlane.xlu0 %1821
  %v1823 = vsel %vm1642, %v1628, -inf
  %1824 = vmax.xlane.f32.xlu0 %v1823
  %v1825 = vpop.xlane.xlu0 %1824
  %v1826 = vsel %vm1642, %v1631, -inf
  %1827 = vmax.xlane.f32.xlu0 %v1826
  %v1828 = vpop.xlane.xlu0 %1827
  %v1829 = vsel %vm1642, %v1636, -inf
  %1830 = vmax.xlane.f32.xlu0 %v1829
  %v1831 = vpop.xlane.xlu0 %1830
  %v1832 = vsel %vm1642, %v1639, -inf
  %1833 = vmax.xlane.f32.xlu0 %v1832
  %v1834 = vpop.xlane.xlu0 %1833
  %v1835 = vsub.f32 %v905, %v1645
  %v1836 = vsub.f32 %v908, %v1648
  %v1837 = vsub.f32 %v913, %v1651
  %v1838 = vsub.f32 %v916, %v1654
  %v1839 = vsub.f32 %v921, %v1657
  %v1840 = vsub.f32 %v924, %v1660
  %v1841 = vsub.f32 %v929, %v1663
  %v1842 = vsub.f32 %v932, %v1666
  %v1843 = vsub.f32 %v1006, %v1669
  %v1844 = vsub.f32 %v1009, %v1672
  %v1845 = vsub.f32 %v1014, %v1675
  %v1846 = vsub.f32 %v1017, %v1678
  %v1847 = vsub.f32 %v1022, %v1681
  %v1848 = vsub.f32 %v1025, %v1684
  %v1849 = vsub.f32 %v1030, %v1687
  %v1850 = vsub.f32 %v1033, %v1690
  %v1851 = vsub.f32 %v1107, %v1693
  %v1852 = vsub.f32 %v1110, %v1696
  %v1853 = vsub.f32 %v1115, %v1699
  %v1854 = vsub.f32 %v1118, %v1702
  %v1855 = vsub.f32 %v1123, %v1705
  %v1856 = vsub.f32 %v1126, %v1708
  %v1857 = vsub.f32 %v1131, %v1711
  %v1858 = vsub.f32 %v1134, %v1714
  %v1859 = vsub.f32 %v1208, %v1717
  %v1860 = vsub.f32 %v1211, %v1720
  %v1861 = vsub.f32 %v1216, %v1723
  %v1862 = vsub.f32 %v1219, %v1726
  %v1863 = vsub.f32 %v1224, %v1729
  %v1864 = vsub.f32 %v1227, %v1732
  %v1865 = vsub.f32 %v1232, %v1735
  %v1866 = vsub.f32 %v1235, %v1738
  %v1867 = vsub.f32 %v1309, %v1741
  %v1868 = vsub.f32 %v1312, %v1744
  %v1869 = vsub.f32 %v1317, %v1747
  %v1870 = vsub.f32 %v1320, %v1750
  %v1871 = vsub.f32 %v1325, %v1753
  %v1872 = vsub.f32 %v1328, %v1756
  %v1873 = vsub.f32 %v1333, %v1759
  %v1874 = vsub.f32 %v1336, %v1762
  %v1875 = vsub.f32 %v1410, %v1765
  %v1876 = vsub.f32 %v1413, %v1768
  %v1877 = vsub.f32 %v1418, %v1771
  %v1878 = vsub.f32 %v1421, %v1774
  %v1879 = vsub.f32 %v1426, %v1777
  %v1880 = vsub.f32 %v1429, %v1780
  %v1881 = vsub.f32 %v1434, %v1783
  %v1882 = vsub.f32 %v1437, %v1786
  %v1883 = vsub.f32 %v1511, %v1789
  %v1884 = vsub.f32 %v1514, %v1792
  %v1885 = vsub.f32 %v1519, %v1795
  %v1886 = vsub.f32 %v1522, %v1798
  %v1887 = vsub.f32 %v1527, %v1801
  %v1888 = vsub.f32 %v1530, %v1804
  %v1889 = vsub.f32 %v1535, %v1807
  %v1890 = vsub.f32 %v1538, %v1810
  %v1891 = vsub.f32 %v1612, %v1813
  %v1892 = vsub.f32 %v1615, %v1816
  %v1893 = vsub.f32 %v1620, %v1819
  %v1894 = vsub.f32 %v1623, %v1822
  %v1895 = vsub.f32 %v1628, %v1825
  %v1896 = vsub.f32 %v1631, %v1828
  %v1897 = vsub.f32 %v1636, %v1831
  %v1898 = vsub.f32 %v1639, %v1834
  %v1899 = vmul.f32 %v1835, 1.442695
  %v1900 = vpow.pop %v1899
  %v1901 = vmul.f32 %v1836, 1.442695
  %v1902 = vpow.pop %v1901
  %v1903 = vmul.f32 %v1837, 1.442695
  %v1904 = vpow.pop %v1903
  %v1905 = vmul.f32 %v1838, 1.442695
  %v1906 = vpow.pop %v1905
  %v1907 = vmul.f32 %v1839, 1.442695
  %v1908 = vpow.pop %v1907
  %v1909 = vmul.f32 %v1840, 1.442695
  %v1910 = vpow.pop %v1909
  %v1911 = vmul.f32 %v1841, 1.442695
  %v1912 = vpow.pop %v1911
  %v1913 = vmul.f32 %v1842, 1.442695
  %v1914 = vpow.pop %v1913
  %v1915 = vmul.f32 %v1843, 1.442695
  %v1916 = vpow.pop %v1915
  %v1917 = vmul.f32 %v1844, 1.442695
  %v1918 = vpow.pop %v1917
  %v1919 = vmul.f32 %v1845, 1.442695
  %v1920 = vpow.pop %v1919
  %v1921 = vmul.f32 %v1846, 1.442695
  %v1922 = vpow.pop %v1921
  %v1923 = vmul.f32 %v1847, 1.442695
  %v1924 = vpow.pop %v1923
  %v1925 = vmul.f32 %v1848, 1.442695
  %v1926 = vpow.pop %v1925
  %v1927 = vmul.f32 %v1849, 1.442695
  %v1928 = vpow.pop %v1927
  %v1929 = vmul.f32 %v1850, 1.442695
  %v1930 = vpow.pop %v1929
  %v1931 = vmul.f32 %v1851, 1.442695
  %v1932 = vpow.pop %v1931
  %v1933 = vmul.f32 %v1852, 1.442695
  %v1934 = vpow.pop %v1933
  %v1935 = vmul.f32 %v1853, 1.442695
  %v1936 = vpow.pop %v1935
  %v1937 = vmul.f32 %v1854, 1.442695
  %v1938 = vpow.pop %v1937
  %v1939 = vmul.f32 %v1855, 1.442695
  %v1940 = vpow.pop %v1939
  %v1941 = vmul.f32 %v1856, 1.442695
  %v1942 = vpow.pop %v1941
  %v1943 = vmul.f32 %v1857, 1.442695
  %v1944 = vpow.pop %v1943
  %v1945 = vmul.f32 %v1858, 1.442695
  %v1946 = vpow.pop %v1945
  %v1947 = vmul.f32 %v1859, 1.442695
  %v1948 = vpow.pop %v1947
  %v1949 = vmul.f32 %v1860, 1.442695
  %v1950 = vpow.pop %v1949
  %v1951 = vmul.f32 %v1861, 1.442695
  %v1952 = vpow.pop %v1951
  %v1953 = vmul.f32 %v1862, 1.442695
  %v1954 = vpow.pop %v1953
  %v1955 = vmul.f32 %v1863, 1.442695
  %v1956 = vpow.pop %v1955
  %v1957 = vmul.f32 %v1864, 1.442695
  %v1958 = vpow.pop %v1957
  %v1959 = vmul.f32 %v1865, 1.442695
  %v1960 = vpow.pop %v1959
  %v1961 = vmul.f32 %v1866, 1.442695
  %v1962 = vpow.pop %v1961
  %v1963 = vmul.f32 %v1867, 1.442695
  %v1964 = vpow.pop %v1963
  %v1965 = vmul.f32 %v1868, 1.442695
  %v1966 = vpow.pop %v1965
  %v1967 = vmul.f32 %v1869, 1.442695
  %v1968 = vpow.pop %v1967
  %v1969 = vmul.f32 %v1870, 1.442695
  %v1970 = vpow.pop %v1969
  %v1971 = vmul.f32 %v1871, 1.442695
  %v1972 = vpow.pop %v1971
  %v1973 = vmul.f32 %v1872, 1.442695
  %v1974 = vpow.pop %v1973
  %v1975 = vmul.f32 %v1873, 1.442695
  %v1976 = vpow.pop %v1975
  %v1977 = vmul.f32 %v1874, 1.442695
  %v1978 = vpow.pop %v1977
  %v1979 = vmul.f32 %v1875, 1.442695
  %v1980 = vpow.pop %v1979
  %v1981 = vmul.f32 %v1876, 1.442695
  %v1982 = vpow.pop %v1981
  %v1983 = vmul.f32 %v1877, 1.442695
  %v1984 = vpow.pop %v1983
  %v1985 = vmul.f32 %v1878, 1.442695
  %v1986 = vpow.pop %v1985
  %v1987 = vmul.f32 %v1879, 1.442695
  %v1988 = vpow.pop %v1987
  %v1989 = vmul.f32 %v1880, 1.442695
  %v1990 = vpow.pop %v1989
  %v1991 = vmul.f32 %v1881, 1.442695
  %v1992 = vpow.pop %v1991
  %v1993 = vmul.f32 %v1882, 1.442695
  %v1994 = vpow.pop %v1993
  %v1995 = vmul.f32 %v1883, 1.442695
  %v1996 = vpow.pop %v1995
  %v1997 = vmul.f32 %v1884, 1.442695
  %v1998 = vpow.pop %v1997
  %v1999 = vmul.f32 %v1885, 1.442695
  %v2000 = vpow.pop %v1999
  %v2001 = vmul.f32 %v1886, 1.442695
  %v2002 = vpow.pop %v2001
  %v2003 = vmul.f32 %v1887, 1.442695
  %v2004 = vpow.pop %v2003
  %v2005 = vmul.f32 %v1888, 1.442695
  %v2006 = vpow.pop %v2005
  %v2007 = vmul.f32 %v1889, 1.442695
  %v2008 = vpow.pop %v2007
  %v2009 = vmul.f32 %v1890, 1.442695
  %v2010 = vpow.pop %v2009
  %v2011 = vmul.f32 %v1891, 1.442695
  %v2012 = vpow.pop %v2011
  %v2013 = vmul.f32 %v1892, 1.442695
  %v2014 = vpow.pop %v2013
  %v2015 = vmul.f32 %v1893, 1.442695
  %v2016 = vpow.pop %v2015
  %v2017 = vmul.f32 %v1894, 1.442695
  %v2018 = vpow.pop %v2017
  %v2019 = vmul.f32 %v1895, 1.442695
  %v2020 = vpow.pop %v2019
  %v2021 = vmul.f32 %v1896, 1.442695
  %v2022 = vpow.pop %v2021
  %v2023 = vmul.f32 %v1897, 1.442695
  %v2024 = vpow.pop %v2023
  %v2025 = vmul.f32 %v1898, 1.442695
  %v2026 = vpow.pop %v2025
  %v2027 = vsel %vm1642, %v1900, 0.0
  %2028 = vadd.xlane.f32.xlu0 %v2027
  %v2029 = vpop.xlane.xlu0 %2028
  %v2030 = vsel %vm1642, %v1902, 0.0
  %2031 = vadd.xlane.f32.xlu0 %v2030
  %v2032 = vpop.xlane.xlu0 %2031
  %v2033 = vsel %vm1642, %v1904, 0.0
  %2034 = vadd.xlane.f32.xlu0 %v2033
  %v2035 = vpop.xlane.xlu0 %2034
  %v2036 = vsel %vm1642, %v1906, 0.0
  %2037 = vadd.xlane.f32.xlu0 %v2036
  %v2038 = vpop.xlane.xlu0 %2037
  %v2039 = vsel %vm1642, %v1908, 0.0
  %2040 = vadd.xlane.f32.xlu0 %v2039
  %v2041 = vpop.xlane.xlu0 %2040
  %v2042 = vsel %vm1642, %v1910, 0.0
  %2043 = vadd.xlane.f32.xlu0 %v2042
  %v2044 = vpop.xlane.xlu0 %2043
  %v2045 = vsel %vm1642, %v1912, 0.0
  %2046 = vadd.xlane.f32.xlu0 %v2045
  %v2047 = vpop.xlane.xlu0 %2046
  %v2048 = vsel %vm1642, %v1914, 0.0
  %2049 = vadd.xlane.f32.xlu0 %v2048
  %v2050 = vpop.xlane.xlu0 %2049
  %v2051 = vsel %vm1642, %v1916, 0.0
  %2052 = vadd.xlane.f32.xlu0 %v2051
  %v2053 = vpop.xlane.xlu0 %2052
  %v2054 = vsel %vm1642, %v1918, 0.0
  %2055 = vadd.xlane.f32.xlu0 %v2054
  %v2056 = vpop.xlane.xlu0 %2055
  %v2057 = vsel %vm1642, %v1920, 0.0
  %2058 = vadd.xlane.f32.xlu0 %v2057
  %v2059 = vpop.xlane.xlu0 %2058
  %v2060 = vsel %vm1642, %v1922, 0.0
  %2061 = vadd.xlane.f32.xlu0 %v2060
  %v2062 = vpop.xlane.xlu0 %2061
  %v2063 = vsel %vm1642, %v1924, 0.0
  %2064 = vadd.xlane.f32.xlu0 %v2063
  %v2065 = vpop.xlane.xlu0 %2064
  %v2066 = vsel %vm1642, %v1926, 0.0
  %2067 = vadd.xlane.f32.xlu0 %v2066
  %v2068 = vpop.xlane.xlu0 %2067
  %v2069 = vsel %vm1642, %v1928, 0.0
  %2070 = vadd.xlane.f32.xlu0 %v2069
  %v2071 = vpop.xlane.xlu0 %2070
  %v2072 = vsel %vm1642, %v1930, 0.0
  %2073 = vadd.xlane.f32.xlu0 %v2072
  %v2074 = vpop.xlane.xlu0 %2073
  %v2075 = vsel %vm1642, %v1932, 0.0
  %2076 = vadd.xlane.f32.xlu0 %v2075
  %v2077 = vpop.xlane.xlu0 %2076
  %v2078 = vsel %vm1642, %v1934, 0.0
  %2079 = vadd.xlane.f32.xlu0 %v2078
  %v2080 = vpop.xlane.xlu0 %2079
  %v2081 = vsel %vm1642, %v1936, 0.0
  %2082 = vadd.xlane.f32.xlu0 %v2081
  %v2083 = vpop.xlane.xlu0 %2082
  %v2084 = vsel %vm1642, %v1938, 0.0
  %2085 = vadd.xlane.f32.xlu0 %v2084
  %v2086 = vpop.xlane.xlu0 %2085
  %v2087 = vsel %vm1642, %v1940, 0.0
  %2088 = vadd.xlane.f32.xlu0 %v2087
  %v2089 = vpop.xlane.xlu0 %2088
  %v2090 = vsel %vm1642, %v1942, 0.0
  %2091 = vadd.xlane.f32.xlu0 %v2090
  %v2092 = vpop.xlane.xlu0 %2091
  %v2093 = vsel %vm1642, %v1944, 0.0
  %2094 = vadd.xlane.f32.xlu0 %v2093
  %v2095 = vpop.xlane.xlu0 %2094
  %v2096 = vsel %vm1642, %v1946, 0.0
  %2097 = vadd.xlane.f32.xlu0 %v2096
  %v2098 = vpop.xlane.xlu0 %2097
  %v2099 = vsel %vm1642, %v1948, 0.0
  %2100 = vadd.xlane.f32.xlu0 %v2099
  %v2101 = vpop.xlane.xlu0 %2100
  %v2102 = vsel %vm1642, %v1950, 0.0
  %2103 = vadd.xlane.f32.xlu0 %v2102
  %v2104 = vpop.xlane.xlu0 %2103
  %v2105 = vsel %vm1642, %v1952, 0.0
  %2106 = vadd.xlane.f32.xlu0 %v2105
  %v2107 = vpop.xlane.xlu0 %2106
  %v2108 = vsel %vm1642, %v1954, 0.0
  %2109 = vadd.xlane.f32.xlu0 %v2108
  %v2110 = vpop.xlane.xlu0 %2109
  %v2111 = vsel %vm1642, %v1956, 0.0
  %2112 = vadd.xlane.f32.xlu0 %v2111
  %v2113 = vpop.xlane.xlu0 %2112
  %v2114 = vsel %vm1642, %v1958, 0.0
  %2115 = vadd.xlane.f32.xlu0 %v2114
  %v2116 = vpop.xlane.xlu0 %2115
  %v2117 = vsel %vm1642, %v1960, 0.0
  %2118 = vadd.xlane.f32.xlu0 %v2117
  %v2119 = vpop.xlane.xlu0 %2118
  %v2120 = vsel %vm1642, %v1962, 0.0
  %2121 = vadd.xlane.f32.xlu0 %v2120
  %v2122 = vpop.xlane.xlu0 %2121
  %v2123 = vsel %vm1642, %v1964, 0.0
  %2124 = vadd.xlane.f32.xlu0 %v2123
  %v2125 = vpop.xlane.xlu0 %2124
  %v2126 = vsel %vm1642, %v1966, 0.0
  %2127 = vadd.xlane.f32.xlu0 %v2126
  %v2128 = vpop.xlane.xlu0 %2127
  %v2129 = vsel %vm1642, %v1968, 0.0
  %2130 = vadd.xlane.f32.xlu0 %v2129
  %v2131 = vpop.xlane.xlu0 %2130
  %v2132 = vsel %vm1642, %v1970, 0.0
  %2133 = vadd.xlane.f32.xlu0 %v2132
  %v2134 = vpop.xlane.xlu0 %2133
  %v2135 = vsel %vm1642, %v1972, 0.0
  %2136 = vadd.xlane.f32.xlu0 %v2135
  %v2137 = vpop.xlane.xlu0 %2136
  %v2138 = vsel %vm1642, %v1974, 0.0
  %2139 = vadd.xlane.f32.xlu0 %v2138
  %v2140 = vpop.xlane.xlu0 %2139
  %v2141 = vsel %vm1642, %v1976, 0.0
  %2142 = vadd.xlane.f32.xlu0 %v2141
  %v2143 = vpop.xlane.xlu0 %2142
  %v2144 = vsel %vm1642, %v1978, 0.0
  %2145 = vadd.xlane.f32.xlu0 %v2144
  %v2146 = vpop.xlane.xlu0 %2145
  %v2147 = vsel %vm1642, %v1980, 0.0
  %2148 = vadd.xlane.f32.xlu0 %v2147
  %v2149 = vpop.xlane.xlu0 %2148
  %v2150 = vsel %vm1642, %v1982, 0.0
  %2151 = vadd.xlane.f32.xlu0 %v2150
  %v2152 = vpop.xlane.xlu0 %2151
  %v2153 = vsel %vm1642, %v1984, 0.0
  %2154 = vadd.xlane.f32.xlu0 %v2153
  %v2155 = vpop.xlane.xlu0 %2154
  %v2156 = vsel %vm1642, %v1986, 0.0
  %2157 = vadd.xlane.f32.xlu0 %v2156
  %v2158 = vpop.xlane.xlu0 %2157
  %v2159 = vsel %vm1642, %v1988, 0.0
  %2160 = vadd.xlane.f32.xlu0 %v2159
  %v2161 = vpop.xlane.xlu0 %2160
  %v2162 = vsel %vm1642, %v1990, 0.0
  %2163 = vadd.xlane.f32.xlu0 %v2162
  %v2164 = vpop.xlane.xlu0 %2163
  %v2165 = vsel %vm1642, %v1992, 0.0
  %2166 = vadd.xlane.f32.xlu0 %v2165
  %v2167 = vpop.xlane.xlu0 %2166
  %v2168 = vsel %vm1642, %v1994, 0.0
  %2169 = vadd.xlane.f32.xlu0 %v2168
  %v2170 = vpop.xlane.xlu0 %2169
  %v2171 = vsel %vm1642, %v1996, 0.0
  %2172 = vadd.xlane.f32.xlu0 %v2171
  %v2173 = vpop.xlane.xlu0 %2172
  %v2174 = vsel %vm1642, %v1998, 0.0
  %2175 = vadd.xlane.f32.xlu0 %v2174
  %v2176 = vpop.xlane.xlu0 %2175
  %v2177 = vsel %vm1642, %v2000, 0.0
  %2178 = vadd.xlane.f32.xlu0 %v2177
  %v2179 = vpop.xlane.xlu0 %2178
  %v2180 = vsel %vm1642, %v2002, 0.0
  %2181 = vadd.xlane.f32.xlu0 %v2180
  %v2182 = vpop.xlane.xlu0 %2181
  %v2183 = vsel %vm1642, %v2004, 0.0
  %2184 = vadd.xlane.f32.xlu0 %v2183
  %v2185 = vpop.xlane.xlu0 %2184
  %v2186 = vsel %vm1642, %v2006, 0.0
  %2187 = vadd.xlane.f32.xlu0 %v2186
  %v2188 = vpop.xlane.xlu0 %2187
  %v2189 = vsel %vm1642, %v2008, 0.0
  %2190 = vadd.xlane.f32.xlu0 %v2189
  %v2191 = vpop.xlane.xlu0 %2190
  %v2192 = vsel %vm1642, %v2010, 0.0
  %2193 = vadd.xlane.f32.xlu0 %v2192
  %v2194 = vpop.xlane.xlu0 %2193
  %v2195 = vsel %vm1642, %v2012, 0.0
  %2196 = vadd.xlane.f32.xlu0 %v2195
  %v2197 = vpop.xlane.xlu0 %2196
  %v2198 = vsel %vm1642, %v2014, 0.0
  %2199 = vadd.xlane.f32.xlu0 %v2198
  %v2200 = vpop.xlane.xlu0 %2199
  %v2201 = vsel %vm1642, %v2016, 0.0
  %2202 = vadd.xlane.f32.xlu0 %v2201
  %v2203 = vpop.xlane.xlu0 %2202
  %v2204 = vsel %vm1642, %v2018, 0.0
  %2205 = vadd.xlane.f32.xlu0 %v2204
  %v2206 = vpop.xlane.xlu0 %2205
  %v2207 = vsel %vm1642, %v2020, 0.0
  %2208 = vadd.xlane.f32.xlu0 %v2207
  %v2209 = vpop.xlane.xlu0 %2208
  %v2210 = vsel %vm1642, %v2022, 0.0
  %2211 = vadd.xlane.f32.xlu0 %v2210
  %v2212 = vpop.xlane.xlu0 %2211
  %v2213 = vsel %vm1642, %v2024, 0.0
  %2214 = vadd.xlane.f32.xlu0 %v2213
  %v2215 = vpop.xlane.xlu0 %2214
  %v2216 = vsel %vm1642, %v2026, 0.0
  %2217 = vadd.xlane.f32.xlu0 %v2216
  %v2218 = vpop.xlane.xlu0 %2217
  %v2219 = vpack.c.bf16 %v1902, %v1900
  %v2220 = vpack.c.bf16 %v1906, %v1904
  %v2221 = vpack.c.bf16 %v1910, %v1908
  %v2222 = vpack.c.bf16 %v1914, %v1912
  %v2223 = vpack.c.bf16 %v1918, %v1916
  %v2224 = vpack.c.bf16 %v1922, %v1920
  %v2225 = vpack.c.bf16 %v1926, %v1924
  %v2226 = vpack.c.bf16 %v1930, %v1928
  %v2227 = vpack.c.bf16 %v1934, %v1932
  %v2228 = vpack.c.bf16 %v1938, %v1936
  %v2229 = vpack.c.bf16 %v1942, %v1940
  %v2230 = vpack.c.bf16 %v1946, %v1944
  %v2231 = vpack.c.bf16 %v1950, %v1948
  %v2232 = vpack.c.bf16 %v1954, %v1952
  %v2233 = vpack.c.bf16 %v1958, %v1956
  %v2234 = vpack.c.bf16 %v1962, %v1960
  %v2235 = vpack.c.bf16 %v1966, %v1964
  %v2236 = vpack.c.bf16 %v1970, %v1968
  %v2237 = vpack.c.bf16 %v1974, %v1972
  %v2238 = vpack.c.bf16 %v1978, %v1976
  %v2239 = vpack.c.bf16 %v1982, %v1980
  %v2240 = vpack.c.bf16 %v1986, %v1984
  %v2241 = vpack.c.bf16 %v1990, %v1988
  %v2242 = vpack.c.bf16 %v1994, %v1992
  %v2243 = vpack.c.bf16 %v1998, %v1996
  %v2244 = vpack.c.bf16 %v2002, %v2000
  %v2245 = vpack.c.bf16 %v2006, %v2004
  %v2246 = vpack.c.bf16 %v2010, %v2008
  %v2247 = vpack.c.bf16 %v2014, %v2012
  %v2248 = vpack.c.bf16 %v2018, %v2016
  %v2249 = vpack.c.bf16 %v2022, %v2020
  %v2250 = vpack.c.bf16 %v2026, %v2024
  %2251 = vrot.lane.b32.xlu0 %v793, 64
  %v2252 = vpop.permute.xlu0 %2251
  %2253 = vrot.lane.b32.xlu0 %v794, 64
  %v2254 = vpop.permute.xlu0 %2253
  %2255 = vrot.lane.b32.xlu0 %v795, 64
  %v2256 = vpop.permute.xlu0 %2255
  %2257 = vrot.lane.b32.xlu0 %v796, 64
  %v2258 = vpop.permute.xlu0 %2257
  %v2264 = vsel %vm1642, %v2219, 0
  %v2267 = vsel %vm1642, %v2220, 0
  %v2270 = vsel %vm1642, %v2221, 0
  %v2273 = vsel %vm1642, %v2222, 0
  %2275 = vmatprep.subr.bf16.mxu0 0
  %2276 = vmatpush1.bf16.msra.mxu0 %v2252
  %2277 = vmatprep.subr.bf16.mxu0 0
  %2278 = vmatpush1.bf16.msra.mxu0 %v2254
  %2279 = vmatprep.subr.bf16.mxu0 0
  %2280 = vmatpush1.bf16.msra.mxu0 %v2256
  %2281 = vmatprep.subr.bf16.mxu0 0
  %2282 = vmatpush1.bf16.msra.mxu0 %v2258
  %2283 = vmatprep.subr.bf16.mxu0 0
  %2284 = vmatpush1.bf16.msra.mxu0 0
  %2285 = vmatprep.subr.bf16.mxu0 0
  %2286 = vmatpush1.bf16.msra.mxu0 0
  %2287 = vmatprep.subr.bf16.mxu0 0
  %2288 = vmatpush1.bf16.msra.mxu0 0
  %2289 = vmatprep.subr.bf16.mxu0 0
  %2290 = vmatpush1.bf16.msra.mxu0 0
  %2291 = vmatprep.subr.bf16.mxu0 0
  %2292 = vmatpush1.bf16.msra.mxu0 0
  %2293 = vmatprep.subr.bf16.mxu0 0
  %2294 = vmatpush1.bf16.msra.mxu0 0
  %2295 = vmatprep.subr.bf16.mxu0 0
  %2296 = vmatpush1.bf16.msra.mxu0 0
  %2297 = vmatprep.subr.bf16.mxu0 0
  %2298 = vmatpush1.bf16.msra.mxu0 0
  %2299 = vmatprep.subr.bf16.mxu0 0
  %2300 = vmatpush1.bf16.msra.mxu0 0
  %2301 = vmatprep.subr.bf16.mxu0 0
  %2302 = vmatpush1.bf16.msra.mxu0 0
  %2303 = vmatprep.subr.bf16.mxu0 0
  %2304 = vmatpush1.bf16.msra.mxu0 0
  %2305 = vmatprep.subr.bf16.mxu0 0
  %2306 = vmatpush1.bf16.msra.mxu0 0
  %2307 = vmatprep.mubr.bf16.mxu0 0
  %2308 = vmatmul.mubr.bf16.gmra.mrb[0].mxu0 %v2264
  %v2309 = vpop.f32.mrb[0].mxu0
  %v2310 = vadd.f32 0.0, %v2309
  %v2311 = vpop.f32.mrb[0].mxu0
  %v2312 = vpop.f32.mrb[0].mxu0
  %v2313 = vadd.f32 0.0, %v2312
  %v2314 = vpop.f32.mrb[0].mxu0
  %2315 = vmatprep.mubr.bf16.mxu0 0
  %2316 = vmatmul.mubr.bf16.gmra.mrb[0].mxu0 %v2267
  %v2317 = vpop.f32.mrb[0].mxu0
  %v2318 = vadd.f32 0.0, %v2317
  %v2319 = vpop.f32.mrb[0].mxu0
  %v2320 = vpop.f32.mrb[0].mxu0
  %v2321 = vadd.f32 0.0, %v2320
  %v2322 = vpop.f32.mrb[0].mxu0
  %2323 = vmatprep.mubr.bf16.mxu0 0
  %2324 = vmatmul.mubr.bf16.gmra.mrb[0].mxu0 %v2270
  %v2325 = vpop.f32.mrb[0].mxu0
  %v2326 = vadd.f32 0.0, %v2325
  %v2327 = vpop.f32.mrb[0].mxu0
  %v2328 = vpop.f32.mrb[0].mxu0
  %v2329 = vadd.f32 0.0, %v2328
  %v2330 = vpop.f32.mrb[0].mxu0
  %2331 = vmatprep.mubr.bf16.mxu0 0
  %2332 = vmatmul.mubr.bf16.gmra.mrb[0].mxu0 %v2273
  %v2333 = vpop.f32.mrb[0].mxu0
  %v2334 = vadd.f32 0.0, %v2333
  %v2335 = vpop.f32.mrb[0].mxu0
  %v2336 = vpop.f32.mrb[0].mxu0
  %v2337 = vadd.f32 0.0, %v2336
  %v2338 = vpop.f32.mrb[0].mxu0
  %2339 = vdwg.mxu0
  %2340 = vrot.lane.b32.xlu0 %v797, 64
  %v2341 = vpop.permute.xlu0 %2340
  %2342 = vrot.lane.b32.xlu0 %v798, 64
  %v2343 = vpop.permute.xlu0 %2342
  %2344 = vrot.lane.b32.xlu0 %v799, 64
  %v2345 = vpop.permute.xlu0 %2344
  %2346 = vrot.lane.b32.xlu0 %v800, 64
  %v2347 = vpop.permute.xlu0 %2346
  %v2353 = vsel %vm1642, %v2223, 0
  %v2356 = vsel %vm1642, %v2224, 0
  %v2359 = vsel %vm1642, %v2225, 0
  %v2362 = vsel %vm1642, %v2226, 0
  %2364 = vmatprep.subr.bf16.mxu0 0
  %2365 = vmatpush1.bf16.msra.mxu0 %v2341
  %2366 = vmatprep.subr.bf16.mxu0 0
  %2367 = vmatpush1.bf16.msra.mxu0 %v2343
  %2368 = vmatprep.subr.bf16.mxu0 0
  %2369 = vmatpush1.bf16.msra.mxu0 %v2345
  %2370 = vmatprep.subr.bf16.mxu0 0
  %2371 = vmatpush1.bf16.msra.mxu0 %v2347
  %2372 = vmatprep.subr.bf16.mxu0 0
  %2373 = vmatpush1.bf16.msra.mxu0 0
  %2374 = vmatprep.subr.bf16.mxu0 0
  %2375 = vmatpush1.bf16.msra.mxu0 0
  %2376 = vmatprep.subr.bf16.mxu0 0
  %2377 = vmatpush1.bf16.msra.mxu0 0
  %2378 = vmatprep.subr.bf16.mxu0 0
  %2379 = vmatpush1.bf16.msra.mxu0 0
  %2380 = vmatprep.subr.bf16.mxu0 0
  %2381 = vmatpush1.bf16.msra.mxu0 0
  %2382 = vmatprep.subr.bf16.mxu0 0
  %2383 = vmatpush1.bf16.msra.mxu0 0
  %2384 = vmatprep.subr.bf16.mxu0 0
  %2385 = vmatpush1.bf16.msra.mxu0 0
  %2386 = vmatprep.subr.bf16.mxu0 0
  %2387 = vmatpush1.bf16.msra.mxu0 0
  %2388 = vmatprep.subr.bf16.mxu0 0
  %2389 = vmatpush1.bf16.msra.mxu0 0
  %2390 = vmatprep.subr.bf16.mxu0 0
  %2391 = vmatpush1.bf16.msra.mxu0 0
  %2392 = vmatprep.subr.bf16.mxu0 0
  %2393 = vmatpush1.bf16.msra.mxu0 0
  %2394 = vmatprep.subr.bf16.mxu0 0
  %2395 = vmatpush1.bf16.msra.mxu0 0
  %2396 = vmatprep.mubr.bf16.mxu0 0
  %2397 = vmatmul.mubr.bf16.gmra.mrb[0].mxu0 %v2353
  %v2398 = vpop.f32.mrb[0].mxu0
  %v2399 = vadd.f32 0.0, %v2398
  %v2400 = vpop.f32.mrb[0].mxu0
  %v2401 = vpop.f32.mrb[0].mxu0
  %v2402 = vadd.f32 0.0, %v2401
  %v2403 = vpop.f32.mrb[0].mxu0
  %2404 = vmatprep.mubr.bf16.mxu0 0
  %2405 = vmatmul.mubr.bf16.gmra.mrb[0].mxu0 %v2356
  %v2406 = vpop.f32.mrb[0].mxu0
  %v2407 = vadd.f32 0.0, %v2406
  %v2408 = vpop.f32.mrb[0].mxu0
  %v2409 = vpop.f32.mrb[0].mxu0
  %v2410 = vadd.f32 0.0, %v2409
  %v2411 = vpop.f32.mrb[0].mxu0
  %2412 = vmatprep.mubr.bf16.mxu0 0
  %2413 = vmatmul.mubr.bf16.gmra.mrb[0].mxu0 %v2359
  %v2414 = vpop.f32.mrb[0].mxu0
  %v2415 = vadd.f32 0.0, %v2414
  %v2416 = vpop.f32.mrb[0].mxu0
  %v2417 = vpop.f32.mrb[0].mxu0
  %v2418 = vadd.f32 0.0, %v2417
  %v2419 = vpop.f32.mrb[0].mxu0
  %2420 = vmatprep.mubr.bf16.mxu0 0
  %2421 = vmatmul.mubr.bf16.gmra.mrb[0].mxu0 %v2362
  %v2422 = vpop.f32.mrb[0].mxu0
  %v2423 = vadd.f32 0.0, %v2422
  %v2424 = vpop.f32.mrb[0].mxu0
  %v2425 = vpop.f32.mrb[0].mxu0
  %v2426 = vadd.f32 0.0, %v2425
  %v2427 = vpop.f32.mrb[0].mxu0
  %2428 = vdwg.mxu0
  %2429 = vrot.lane.b32.xlu0 %v801, 64
  %v2430 = vpop.permute.xlu0 %2429
  %2431 = vrot.lane.b32.xlu0 %v802, 64
  %v2432 = vpop.permute.xlu0 %2431
  %2433 = vrot.lane.b32.xlu0 %v803, 64
  %v2434 = vpop.permute.xlu0 %2433
  %2435 = vrot.lane.b32.xlu0 %v804, 64
  %v2436 = vpop.permute.xlu0 %2435
  %v2442 = vsel %vm1642, %v2227, 0
  %v2445 = vsel %vm1642, %v2228, 0
  %v2448 = vsel %vm1642, %v2229, 0
  %v2451 = vsel %vm1642, %v2230, 0
  %2453 = vmatprep.subr.bf16.mxu0 0
  %2454 = vmatpush1.bf16.msra.mxu0 %v2430
  %2455 = vmatprep.subr.bf16.mxu0 0
  %2456 = vmatpush1.bf16.msra.mxu0 %v2432
  %2457 = vmatprep.subr.bf16.mxu0 0
  %2458 = vmatpush1.bf16.msra.mxu0 %v2434
  %2459 = vmatprep.subr.bf16.mxu0 0
  %2460 = vmatpush1.bf16.msra.mxu0 %v2436
  %2461 = vmatprep.subr.bf16.mxu0 0
  %2462 = vmatpush1.bf16.msra.mxu0 0
  %2463 = vmatprep.subr.bf16.mxu0 0
  %2464 = vmatpush1.bf16.msra.mxu0 0
  %2465 = vmatprep.subr.bf16.mxu0 0
  %2466 = vmatpush1.bf16.msra.mxu0 0
  %2467 = vmatprep.subr.bf16.mxu0 0
  %2468 = vmatpush1.bf16.msra.mxu0 0
  %2469 = vmatprep.subr.bf16.mxu0 0
  %2470 = vmatpush1.bf16.msra.mxu0 0
  %2471 = vmatprep.subr.bf16.mxu0 0
  %2472 = vmatpush1.bf16.msra.mxu0 0
  %2473 = vmatprep.subr.bf16.mxu0 0
  %2474 = vmatpush1.bf16.msra.mxu0 0
  %2475 = vmatprep.subr.bf16.mxu0 0
  %2476 = vmatpush1.bf16.msra.mxu0 0
  %2477 = vmatprep.subr.bf16.mxu0 0
  %2478 = vmatpush1.bf16.msra.mxu0 0
  %2479 = vmatprep.subr.bf16.mxu0 0
  %2480 = vmatpush1.bf16.msra.mxu0 0
  %2481 = vmatprep.subr.bf16.mxu0 0
  %2482 = vmatpush1.bf16.msra.mxu0 0
  %2483 = vmatprep.subr.bf16.mxu0 0
  %2484 = vmatpush1.bf16.msra.mxu0 0
  %2485 = vmatprep.mubr.bf16.mxu0 0
  %2486 = vmatmul.mubr.bf16.gmra.mrb[0].mxu0 %v2442
  %v2487 = vpop.f32.mrb[0].mxu0
  %v2488 = vadd.f32 0.0, %v2487
  %v2489 = vpop.f32.mrb[0].mxu0
  %v2490 = vpop.f32.mrb[0].mxu0
  %v2491 = vadd.f32 0.0, %v2490
  %v2492 = vpop.f32.mrb[0].mxu0
  %2493 = vmatprep.mubr.bf16.mxu0 0
  %2494 = vmatmul.mubr.bf16.gmra.mrb[0].mxu0 %v2445
  %v2495 = vpop.f32.mrb[0].mxu0
  %v2496 = vadd.f32 0.0, %v2495
  %v2497 = vpop.f32.mrb[0].mxu0
  %v2498 = vpop.f32.mrb[0].mxu0
  %v2499 = vadd.f32 0.0, %v2498
  %v2500 = vpop.f32.mrb[0].mxu0
  %2501 = vmatprep.mubr.bf16.mxu0 0
  %2502 = vmatmul.mubr.bf16.gmra.mrb[0].mxu0 %v2448
  %v2503 = vpop.f32.mrb[0].mxu0
  %v2504 = vadd.f32 0.0, %v2503
  %v2505 = vpop.f32.mrb[0].mxu0
  %v2506 = vpop.f32.mrb[0].mxu0
  %v2507 = vadd.f32 0.0, %v2506
  %v2508 = vpop.f32.mrb[0].mxu0
  %2509 = vmatprep.mubr.bf16.mxu0 0
  %2510 = vmatmul.mubr.bf16.gmra.mrb[0].mxu0 %v2451
  %v2511 = vpop.f32.mrb[0].mxu0
  %v2512 = vadd.f32 0.0, %v2511
  %v2513 = vpop.f32.mrb[0].mxu0
  %v2514 = vpop.f32.mrb[0].mxu0
  %v2515 = vadd.f32 0.0, %v2514
  %v2516 = vpop.f32.mrb[0].mxu0
  %2517 = vdwg.mxu0
  %2518 = vrot.lane.b32.xlu0 %v805, 64
  %v2519 = vpop.permute.xlu0 %2518
  %2520 = vrot.lane.b32.xlu0 %v806, 64
  %v2521 = vpop.permute.xlu0 %2520
  %2522 = vrot.lane.b32.xlu0 %v807, 64
  %v2523 = vpop.permute.xlu0 %2522
  %2524 = vrot.lane.b32.xlu0 %v808, 64
  %v2525 = vpop.permute.xlu0 %2524
  %v2531 = vsel %vm1642, %v2231, 0
  %v2534 = vsel %vm1642, %v2232, 0
  %v2537 = vsel %vm1642, %v2233, 0
  %v2540 = vsel %vm1642, %v2234, 0
  %2542 = vmatprep.subr.bf16.mxu0 0
  %2543 = vmatpush1.bf16.msra.mxu0 %v2519
  %2544 = vmatprep.subr.bf16.mxu0 0
  %2545 = vmatpush1.bf16.msra.mxu0 %v2521
  %2546 = vmatprep.subr.bf16.mxu0 0
  %2547 = vmatpush1.bf16.msra.mxu0 %v2523
  %2548 = vmatprep.subr.bf16.mxu0 0
  %2549 = vmatpush1.bf16.msra.mxu0 %v2525
  %2550 = vmatprep.subr.bf16.mxu0 0
  %2551 = vmatpush1.bf16.msra.mxu0 0
  %2552 = vmatprep.subr.bf16.mxu0 0
  %2553 = vmatpush1.bf16.msra.mxu0 0
  %2554 = vmatprep.subr.bf16.mxu0 0
  %2555 = vmatpush1.bf16.msra.mxu0 0
  %2556 = vmatprep.subr.bf16.mxu0 0
  %2557 = vmatpush1.bf16.msra.mxu0 0
  %2558 = vmatprep.subr.bf16.mxu0 0
  %2559 = vmatpush1.bf16.msra.mxu0 0
  %2560 = vmatprep.subr.bf16.mxu0 0
  %2561 = vmatpush1.bf16.msra.mxu0 0
  %2562 = vmatprep.subr.bf16.mxu0 0
  %2563 = vmatpush1.bf16.msra.mxu0 0
  %2564 = vmatprep.subr.bf16.mxu0 0
  %2565 = vmatpush1.bf16.msra.mxu0 0
  %2566 = vmatprep.subr.bf16.mxu0 0
  %2567 = vmatpush1.bf16.msra.mxu0 0
  %2568 = vmatprep.subr.bf16.mxu0 0
  %2569 = vmatpush1.bf16.msra.mxu0 0
  %2570 = vmatprep.subr.bf16.mxu0 0
  %2571 = vmatpush1.bf16.msra.mxu0 0
  %2572 = vmatprep.subr.bf16.mxu0 0
  %2573 = vmatpush1.bf16.msra.mxu0 0
  %2574 = vmatprep.mubr.bf16.mxu0 0
  %2575 = vmatmul.mubr.bf16.gmra.mrb[0].mxu0 %v2531
  %v2576 = vpop.f32.mrb[0].mxu0
  %v2577 = vadd.f32 0.0, %v2576
  %v2578 = vpop.f32.mrb[0].mxu0
  %v2579 = vpop.f32.mrb[0].mxu0
  %v2580 = vadd.f32 0.0, %v2579
  %v2581 = vpop.f32.mrb[0].mxu0
  %2582 = vmatprep.mubr.bf16.mxu0 0
  %2583 = vmatmul.mubr.bf16.gmra.mrb[0].mxu0 %v2534
  %v2584 = vpop.f32.mrb[0].mxu0
  %v2585 = vadd.f32 0.0, %v2584
  %v2586 = vpop.f32.mrb[0].mxu0
  %v2587 = vpop.f32.mrb[0].mxu0
  %v2588 = vadd.f32 0.0, %v2587
  %v2589 = vpop.f32.mrb[0].mxu0
  %2590 = vmatprep.mubr.bf16.mxu0 0
  %2591 = vmatmul.mubr.bf16.gmra.mrb[0].mxu0 %v2537
  %v2592 = vpop.f32.mrb[0].mxu0
  %v2593 = vadd.f32 0.0, %v2592
  %v2594 = vpop.f32.mrb[0].mxu0
  %v2595 = vpop.f32.mrb[0].mxu0
  %v2596 = vadd.f32 0.0, %v2595
  %v2597 = vpop.f32.mrb[0].mxu0
  %2598 = vmatprep.mubr.bf16.mxu0 0
  %2599 = vmatmul.mubr.bf16.gmra.mrb[0].mxu0 %v2540
  %v2600 = vpop.f32.mrb[0].mxu0
  %v2601 = vadd.f32 0.0, %v2600
  %v2602 = vpop.f32.mrb[0].mxu0
  %v2603 = vpop.f32.mrb[0].mxu0
  %v2604 = vadd.f32 0.0, %v2603
  %v2605 = vpop.f32.mrb[0].mxu0
  %2606 = vdwg.mxu0
  %2607 = vrot.lane.b32.xlu0 %v809, 64
  %v2608 = vpop.permute.xlu0 %2607
  %2609 = vrot.lane.b32.xlu0 %v810, 64
  %v2610 = vpop.permute.xlu0 %2609
  %2611 = vrot.lane.b32.xlu0 %v811, 64
  %v2612 = vpop.permute.xlu0 %2611
  %2613 = vrot.lane.b32.xlu0 %v812, 64
  %v2614 = vpop.permute.xlu0 %2613
  %v2620 = vsel %vm1642, %v2235, 0
  %v2623 = vsel %vm1642, %v2236, 0
  %v2626 = vsel %vm1642, %v2237, 0
  %v2629 = vsel %vm1642, %v2238, 0
  %2631 = vmatprep.subr.bf16.mxu0 0
  %2632 = vmatpush1.bf16.msra.mxu0 %v2608
  %2633 = vmatprep.subr.bf16.mxu0 0
  %2634 = vmatpush1.bf16.msra.mxu0 %v2610
  %2635 = vmatprep.subr.bf16.mxu0 0
  %2636 = vmatpush1.bf16.msra.mxu0 %v2612
  %2637 = vmatprep.subr.bf16.mxu0 0
  %2638 = vmatpush1.bf16.msra.mxu0 %v2614
  %2639 = vmatprep.subr.bf16.mxu0 0
  %2640 = vmatpush1.bf16.msra.mxu0 0
  %2641 = vmatprep.subr.bf16.mxu0 0
  %2642 = vmatpush1.bf16.msra.mxu0 0
  %2643 = vmatprep.subr.bf16.mxu0 0
  %2644 = vmatpush1.bf16.msra.mxu0 0
  %2645 = vmatprep.subr.bf16.mxu0 0
  %2646 = vmatpush1.bf16.msra.mxu0 0
  %2647 = vmatprep.subr.bf16.mxu0 0
  %2648 = vmatpush1.bf16.msra.mxu0 0
  %2649 = vmatprep.subr.bf16.mxu0 0
  %2650 = vmatpush1.bf16.msra.mxu0 0
  %2651 = vmatprep.subr.bf16.mxu0 0
  %2652 = vmatpush1.bf16.msra.mxu0 0
  %2653 = vmatprep.subr.bf16.mxu0 0
  %2654 = vmatpush1.bf16.msra.mxu0 0
  %2655 = vmatprep.subr.bf16.mxu0 0
  %2656 = vmatpush1.bf16.msra.mxu0 0
  %2657 = vmatprep.subr.bf16.mxu0 0
  %2658 = vmatpush1.bf16.msra.mxu0 0
  %2659 = vmatprep.subr.bf16.mxu0 0
  %2660 = vmatpush1.bf16.msra.mxu0 0
  %2661 = vmatprep.subr.bf16.mxu0 0
  %2662 = vmatpush1.bf16.msra.mxu0 0
  %2663 = vmatprep.mubr.bf16.mxu0 0
  %2664 = vmatmul.mubr.bf16.gmra.mrb[0].mxu0 %v2620
  %v2665 = vpop.f32.mrb[0].mxu0
  %v2666 = vadd.f32 0.0, %v2665
  %v2667 = vpop.f32.mrb[0].mxu0
  %v2668 = vpop.f32.mrb[0].mxu0
  %v2669 = vadd.f32 0.0, %v2668
  %v2670 = vpop.f32.mrb[0].mxu0
  %2671 = vmatprep.mubr.bf16.mxu0 0
  %2672 = vmatmul.mubr.bf16.gmra.mrb[0].mxu0 %v2623
  %v2673 = vpop.f32.mrb[0].mxu0
  %v2674 = vadd.f32 0.0, %v2673
  %v2675 = vpop.f32.mrb[0].mxu0
  %v2676 = vpop.f32.mrb[0].mxu0
  %v2677 = vadd.f32 0.0, %v2676
  %v2678 = vpop.f32.mrb[0].mxu0
  %2679 = vmatprep.mubr.bf16.mxu0 0
  %2680 = vmatmul.mubr.bf16.gmra.mrb[0].mxu0 %v2626
  %v2681 = vpop.f32.mrb[0].mxu0
  %v2682 = vadd.f32 0.0, %v2681
  %v2683 = vpop.f32.mrb[0].mxu0
  %v2684 = vpop.f32.mrb[0].mxu0
  %v2685 = vadd.f32 0.0, %v2684
  %v2686 = vpop.f32.mrb[0].mxu0
  %2687 = vmatprep.mubr.bf16.mxu0 0
  %2688 = vmatmul.mubr.bf16.gmra.mrb[0].mxu0 %v2629
  %v2689 = vpop.f32.mrb[0].mxu0
  %v2690 = vadd.f32 0.0, %v2689
  %v2691 = vpop.f32.mrb[0].mxu0
  %v2692 = vpop.f32.mrb[0].mxu0
  %v2693 = vadd.f32 0.0, %v2692
  %v2694 = vpop.f32.mrb[0].mxu0
  %2695 = vdwg.mxu0
  %2696 = vrot.lane.b32.xlu0 %v813, 64
  %v2697 = vpop.permute.xlu0 %2696
  %2698 = vrot.lane.b32.xlu0 %v814, 64
  %v2699 = vpop.permute.xlu0 %2698
  %2700 = vrot.lane.b32.xlu0 %v815, 64
  %v2701 = vpop.permute.xlu0 %2700
  %2702 = vrot.lane.b32.xlu0 %v816, 64
  %v2703 = vpop.permute.xlu0 %2702
  %v2709 = vsel %vm1642, %v2239, 0
  %v2712 = vsel %vm1642, %v2240, 0
  %v2715 = vsel %vm1642, %v2241, 0
  %v2718 = vsel %vm1642, %v2242, 0
  %2720 = vmatprep.subr.bf16.mxu0 0
  %2721 = vmatpush1.bf16.msra.mxu0 %v2697
  %2722 = vmatprep.subr.bf16.mxu0 0
  %2723 = vmatpush1.bf16.msra.mxu0 %v2699
  %2724 = vmatprep.subr.bf16.mxu0 0
  %2725 = vmatpush1.bf16.msra.mxu0 %v2701
  %2726 = vmatprep.subr.bf16.mxu0 0
  %2727 = vmatpush1.bf16.msra.mxu0 %v2703
  %2728 = vmatprep.subr.bf16.mxu0 0
  %2729 = vmatpush1.bf16.msra.mxu0 0
  %2730 = vmatprep.subr.bf16.mxu0 0
  %2731 = vmatpush1.bf16.msra.mxu0 0
  %2732 = vmatprep.subr.bf16.mxu0 0
  %2733 = vmatpush1.bf16.msra.mxu0 0
  %2734 = vmatprep.subr.bf16.mxu0 0
  %2735 = vmatpush1.bf16.msra.mxu0 0
  %2736 = vmatprep.subr.bf16.mxu0 0
  %2737 = vmatpush1.bf16.msra.mxu0 0
  %2738 = vmatprep.subr.bf16.mxu0 0
  %2739 = vmatpush1.bf16.msra.mxu0 0
  %2740 = vmatprep.subr.bf16.mxu0 0
  %2741 = vmatpush1.bf16.msra.mxu0 0
  %2742 = vmatprep.subr.bf16.mxu0 0
  %2743 = vmatpush1.bf16.msra.mxu0 0
  %2744 = vmatprep.subr.bf16.mxu0 0
  %2745 = vmatpush1.bf16.msra.mxu0 0
  %2746 = vmatprep.subr.bf16.mxu0 0
  %2747 = vmatpush1.bf16.msra.mxu0 0
  %2748 = vmatprep.subr.bf16.mxu0 0
  %2749 = vmatpush1.bf16.msra.mxu0 0
  %2750 = vmatprep.subr.bf16.mxu0 0
  %2751 = vmatpush1.bf16.msra.mxu0 0
  %2752 = vmatprep.mubr.bf16.mxu0 0
  %2753 = vmatmul.mubr.bf16.gmra.mrb[0].mxu0 %v2709
  %v2754 = vpop.f32.mrb[0].mxu0
  %v2755 = vadd.f32 0.0, %v2754
  %v2756 = vpop.f32.mrb[0].mxu0
  %v2757 = vpop.f32.mrb[0].mxu0
  %v2758 = vadd.f32 0.0, %v2757
  %v2759 = vpop.f32.mrb[0].mxu0
  %2760 = vmatprep.mubr.bf16.mxu0 0
  %2761 = vmatmul.mubr.bf16.gmra.mrb[0].mxu0 %v2712
  %v2762 = vpop.f32.mrb[0].mxu0
  %v2763 = vadd.f32 0.0, %v2762
  %v2764 = vpop.f32.mrb[0].mxu0
  %v2765 = vpop.f32.mrb[0].mxu0
  %v2766 = vadd.f32 0.0, %v2765
  %v2767 = vpop.f32.mrb[0].mxu0
  %2768 = vmatprep.mubr.bf16.mxu0 0
  %2769 = vmatmul.mubr.bf16.gmra.mrb[0].mxu0 %v2715
  %v2770 = vpop.f32.mrb[0].mxu0
  %v2771 = vadd.f32 0.0, %v2770
  %v2772 = vpop.f32.mrb[0].mxu0
  %v2773 = vpop.f32.mrb[0].mxu0
  %v2774 = vadd.f32 0.0, %v2773
  %v2775 = vpop.f32.mrb[0].mxu0
  %2776 = vmatprep.mubr.bf16.mxu0 0
  %2777 = vmatmul.mubr.bf16.gmra.mrb[0].mxu0 %v2718
  %v2778 = vpop.f32.mrb[0].mxu0
  %v2779 = vadd.f32 0.0, %v2778
  %v2780 = vpop.f32.mrb[0].mxu0
  %v2781 = vpop.f32.mrb[0].mxu0
  %v2782 = vadd.f32 0.0, %v2781
  %v2783 = vpop.f32.mrb[0].mxu0
  %2784 = vdwg.mxu0
  %2785 = vrot.lane.b32.xlu0 %v817, 64
  %v2786 = vpop.permute.xlu0 %2785
  %2787 = vrot.lane.b32.xlu0 %v818, 64
  %v2788 = vpop.permute.xlu0 %2787
  %2789 = vrot.lane.b32.xlu0 %v819, 64
  %v2790 = vpop.permute.xlu0 %2789
  %2791 = vrot.lane.b32.xlu0 %v820, 64
  %v2792 = vpop.permute.xlu0 %2791
  %v2798 = vsel %vm1642, %v2243, 0
  %v2801 = vsel %vm1642, %v2244, 0
  %v2804 = vsel %vm1642, %v2245, 0
  %v2807 = vsel %vm1642, %v2246, 0
  %2809 = vmatprep.subr.bf16.mxu0 0
  %2810 = vmatpush1.bf16.msra.mxu0 %v2786
  %2811 = vmatprep.subr.bf16.mxu0 0
  %2812 = vmatpush1.bf16.msra.mxu0 %v2788
  %2813 = vmatprep.subr.bf16.mxu0 0
  %2814 = vmatpush1.bf16.msra.mxu0 %v2790
  %2815 = vmatprep.subr.bf16.mxu0 0
  %2816 = vmatpush1.bf16.msra.mxu0 %v2792
  %2817 = vmatprep.subr.bf16.mxu0 0
  %2818 = vmatpush1.bf16.msra.mxu0 0
  %2819 = vmatprep.subr.bf16.mxu0 0
  %2820 = vmatpush1.bf16.msra.mxu0 0
  %2821 = vmatprep.subr.bf16.mxu0 0
  %2822 = vmatpush1.bf16.msra.mxu0 0
  %2823 = vmatprep.subr.bf16.mxu0 0
  %2824 = vmatpush1.bf16.msra.mxu0 0
  %2825 = vmatprep.subr.bf16.mxu0 0
  %2826 = vmatpush1.bf16.msra.mxu0 0
  %2827 = vmatprep.subr.bf16.mxu0 0
  %2828 = vmatpush1.bf16.msra.mxu0 0
  %2829 = vmatprep.subr.bf16.mxu0 0
  %2830 = vmatpush1.bf16.msra.mxu0 0
  %2831 = vmatprep.subr.bf16.mxu0 0
  %2832 = vmatpush1.bf16.msra.mxu0 0
  %2833 = vmatprep.subr.bf16.mxu0 0
  %2834 = vmatpush1.bf16.msra.mxu0 0
  %2835 = vmatprep.subr.bf16.mxu0 0
  %2836 = vmatpush1.bf16.msra.mxu0 0
  %2837 = vmatprep.subr.bf16.mxu0 0
  %2838 = vmatpush1.bf16.msra.mxu0 0
  %2839 = vmatprep.subr.bf16.mxu0 0
  %2840 = vmatpush1.bf16.msra.mxu0 0
  %2841 = vmatprep.mubr.bf16.mxu0 0
  %2842 = vmatmul.mubr.bf16.gmra.mrb[0].mxu0 %v2798
  %v2843 = vpop.f32.mrb[0].mxu0
  %v2844 = vadd.f32 0.0, %v2843
  %v2845 = vpop.f32.mrb[0].mxu0
  %v2846 = vpop.f32.mrb[0].mxu0
  %v2847 = vadd.f32 0.0, %v2846
  %v2848 = vpop.f32.mrb[0].mxu0
  %2849 = vmatprep.mubr.bf16.mxu0 0
  %2850 = vmatmul.mubr.bf16.gmra.mrb[0].mxu0 %v2801
  %v2851 = vpop.f32.mrb[0].mxu0
  %v2852 = vadd.f32 0.0, %v2851
  %v2853 = vpop.f32.mrb[0].mxu0
  %v2854 = vpop.f32.mrb[0].mxu0
  %v2855 = vadd.f32 0.0, %v2854
  %v2856 = vpop.f32.mrb[0].mxu0
  %2857 = vmatprep.mubr.bf16.mxu0 0
  %2858 = vmatmul.mubr.bf16.gmra.mrb[0].mxu0 %v2804
  %v2859 = vpop.f32.mrb[0].mxu0
  %v2860 = vadd.f32 0.0, %v2859
  %v2861 = vpop.f32.mrb[0].mxu0
  %v2862 = vpop.f32.mrb[0].mxu0
  %v2863 = vadd.f32 0.0, %v2862
  %v2864 = vpop.f32.mrb[0].mxu0
  %2865 = vmatprep.mubr.bf16.mxu0 0
  %2866 = vmatmul.mubr.bf16.gmra.mrb[0].mxu0 %v2807
  %v2867 = vpop.f32.mrb[0].mxu0
  %v2868 = vadd.f32 0.0, %v2867
  %v2869 = vpop.f32.mrb[0].mxu0
  %v2870 = vpop.f32.mrb[0].mxu0
  %v2871 = vadd.f32 0.0, %v2870
  %v2872 = vpop.f32.mrb[0].mxu0
  %2873 = vdwg.mxu0
  %2874 = vrot.lane.b32.xlu0 %v821, 64
  %v2875 = vpop.permute.xlu0 %2874
  %2876 = vrot.lane.b32.xlu0 %v822, 64
  %v2877 = vpop.permute.xlu0 %2876
  %2878 = vrot.lane.b32.xlu0 %v823, 64
  %v2879 = vpop.permute.xlu0 %2878
  %2880 = vrot.lane.b32.xlu0 %v824, 64
  %v2881 = vpop.permute.xlu0 %2880
  %v2887 = vsel %vm1642, %v2247, 0
  %v2890 = vsel %vm1642, %v2248, 0
  %v2893 = vsel %vm1642, %v2249, 0
  %v2896 = vsel %vm1642, %v2250, 0
  %2898 = vmatprep.subr.bf16.mxu0 0
  %2899 = vmatpush1.bf16.msra.mxu0 %v2875
  %2900 = vmatprep.subr.bf16.mxu0 0
  %2901 = vmatpush1.bf16.msra.mxu0 %v2877
  %2902 = vmatprep.subr.bf16.mxu0 0
  %2903 = vmatpush1.bf16.msra.mxu0 %v2879
  %2904 = vmatprep.subr.bf16.mxu0 0
  %2905 = vmatpush1.bf16.msra.mxu0 %v2881
  %2906 = vmatprep.subr.bf16.mxu0 0
  %2907 = vmatpush1.bf16.msra.mxu0 0
  %2908 = vmatprep.subr.bf16.mxu0 0
  %2909 = vmatpush1.bf16.msra.mxu0 0
  %2910 = vmatprep.subr.bf16.mxu0 0
  %2911 = vmatpush1.bf16.msra.mxu0 0
  %2912 = vmatprep.subr.bf16.mxu0 0
  %2913 = vmatpush1.bf16.msra.mxu0 0
  %2914 = vmatprep.subr.bf16.mxu0 0
  %2915 = vmatpush1.bf16.msra.mxu0 0
  %2916 = vmatprep.subr.bf16.mxu0 0
  %2917 = vmatpush1.bf16.msra.mxu0 0
  %2918 = vmatprep.subr.bf16.mxu0 0
  %2919 = vmatpush1.bf16.msra.mxu0 0
  %2920 = vmatprep.subr.bf16.mxu0 0
  %2921 = vmatpush1.bf16.msra.mxu0 0
  %2922 = vmatprep.subr.bf16.mxu0 0
  %2923 = vmatpush1.bf16.msra.mxu0 0
  %2924 = vmatprep.subr.bf16.mxu0 0
  %2925 = vmatpush1.bf16.msra.mxu0 0
  %2926 = vmatprep.subr.bf16.mxu0 0
  %2927 = vmatpush1.bf16.msra.mxu0 0
  %2928 = vmatprep.subr.bf16.mxu0 0
  %2929 = vmatpush1.bf16.msra.mxu0 0
  %2930 = vmatprep.mubr.bf16.mxu0 0
  %2931 = vmatmul.mubr.bf16.gmra.mrb[0].mxu0 %v2887
  %v2932 = vpop.f32.mrb[0].mxu0
  %v2933 = vadd.f32 0.0, %v2932
  %v2934 = vpop.f32.mrb[0].mxu0
  %v2935 = vpop.f32.mrb[0].mxu0
  %v2936 = vadd.f32 0.0, %v2935
  %v2937 = vpop.f32.mrb[0].mxu0
  %2938 = vmatprep.mubr.bf16.mxu0 0
  %2939 = vmatmul.mubr.bf16.gmra.mrb[0].mxu0 %v2890
  %v2940 = vpop.f32.mrb[0].mxu0
  %v2941 = vadd.f32 0.0, %v2940
  %v2942 = vpop.f32.mrb[0].mxu0
  %v2943 = vpop.f32.mrb[0].mxu0
  %v2944 = vadd.f32 0.0, %v2943
  %v2945 = vpop.f32.mrb[0].mxu0
  %2946 = vmatprep.mubr.bf16.mxu0 0
  %2947 = vmatmul.mubr.bf16.gmra.mrb[0].mxu0 %v2893
  %v2948 = vpop.f32.mrb[0].mxu0
  %v2949 = vadd.f32 0.0, %v2948
  %v2950 = vpop.f32.mrb[0].mxu0
  %v2951 = vpop.f32.mrb[0].mxu0
  %v2952 = vadd.f32 0.0, %v2951
  %v2953 = vpop.f32.mrb[0].mxu0
  %2954 = vmatprep.mubr.bf16.mxu0 0
  %2955 = vmatmul.mubr.bf16.gmra.mrb[0].mxu0 %v2896
  %v2956 = vpop.f32.mrb[0].mxu0
  %v2957 = vadd.f32 0.0, %v2956
  %v2958 = vpop.f32.mrb[0].mxu0
  %v2959 = vpop.f32.mrb[0].mxu0
  %v2960 = vadd.f32 0.0, %v2959
  %v2961 = vpop.f32.mrb[0].mxu0
  %2962 = vdwg.mxu0
  %v2963 = vrcp.pop %v2029
  %v2964 = vrcp.pop %v2032
  %v2965 = vrcp.pop %v2035
  %v2966 = vrcp.pop %v2038
  %v2967 = vrcp.pop %v2041
  %v2968 = vrcp.pop %v2044
  %v2969 = vrcp.pop %v2047
  %v2970 = vrcp.pop %v2050
  %v2971 = vrcp.pop %v2053
  %v2972 = vrcp.pop %v2056
  %v2973 = vrcp.pop %v2059
  %v2974 = vrcp.pop %v2062
  %v2975 = vrcp.pop %v2065
  %v2976 = vrcp.pop %v2068
  %v2977 = vrcp.pop %v2071
  %v2978 = vrcp.pop %v2074
  %v2979 = vrcp.pop %v2077
  %v2980 = vrcp.pop %v2080
  %v2981 = vrcp.pop %v2083
  %v2982 = vrcp.pop %v2086
  %v2983 = vrcp.pop %v2089
  %v2984 = vrcp.pop %v2092
  %v2985 = vrcp.pop %v2095
  %v2986 = vrcp.pop %v2098
  %v2987 = vrcp.pop %v2101
  %v2988 = vrcp.pop %v2104
  %v2989 = vrcp.pop %v2107
  %v2990 = vrcp.pop %v2110
  %v2991 = vrcp.pop %v2113
  %v2992 = vrcp.pop %v2116
  %v2993 = vrcp.pop %v2119
  %v2994 = vrcp.pop %v2122
  %v2995 = vrcp.pop %v2125
  %v2996 = vrcp.pop %v2128
  %v2997 = vrcp.pop %v2131
  %v2998 = vrcp.pop %v2134
  %v2999 = vrcp.pop %v2137
  %v3000 = vrcp.pop %v2140
  %v3001 = vrcp.pop %v2143
  %v3002 = vrcp.pop %v2146
  %v3003 = vrcp.pop %v2149
  %v3004 = vrcp.pop %v2152
  %v3005 = vrcp.pop %v2155
  %v3006 = vrcp.pop %v2158
  %v3007 = vrcp.pop %v2161
  %v3008 = vrcp.pop %v2164
  %v3009 = vrcp.pop %v2167
  %v3010 = vrcp.pop %v2170
  %v3011 = vrcp.pop %v2173
  %v3012 = vrcp.pop %v2176
  %v3013 = vrcp.pop %v2179
  %v3014 = vrcp.pop %v2182
  %v3015 = vrcp.pop %v2185
  %v3016 = vrcp.pop %v2188
  %v3017 = vrcp.pop %v2191
  %v3018 = vrcp.pop %v2194
  %v3019 = vrcp.pop %v2197
  %v3020 = vrcp.pop %v2200
  %v3021 = vrcp.pop %v2203
  %v3022 = vrcp.pop %v2206
  %v3023 = vrcp.pop %v2209
  %v3024 = vrcp.pop %v2212
  %v3025 = vrcp.pop %v2215
  %v3026 = vrcp.pop %v2218
  %v3027 = vmul.f32 %v2310, %v2963
  %v3028 = vmul.f32 %v2313, %v2964
  %v3029 = vmul.f32 %v2318, %v2965
  %v3030 = vmul.f32 %v2321, %v2966
  %v3031 = vmul.f32 %v2326, %v2967
  %v3032 = vmul.f32 %v2329, %v2968
  %v3033 = vmul.f32 %v2334, %v2969
  %v3034 = vmul.f32 %v2337, %v2970
  %v3035 = vmul.f32 %v2399, %v2971
  %v3036 = vmul.f32 %v2402, %v2972
  %v3037 = vmul.f32 %v2407, %v2973
  %v3038 = vmul.f32 %v2410, %v2974
  %v3039 = vmul.f32 %v2415, %v2975
  %v3040 = vmul.f32 %v2418, %v2976
  %v3041 = vmul.f32 %v2423, %v2977
  %v3042 = vmul.f32 %v2426, %v2978
  %v3043 = vmul.f32 %v2488, %v2979
  %v3044 = vmul.f32 %v2491, %v2980
  %v3045 = vmul.f32 %v2496, %v2981
  %v3046 = vmul.f32 %v2499, %v2982
  %v3047 = vmul.f32 %v2504, %v2983
  %v3048 = vmul.f32 %v2507, %v2984
  %v3049 = vmul.f32 %v2512, %v2985
  %v3050 = vmul.f32 %v2515, %v2986
  %v3051 = vmul.f32 %v2577, %v2987
  %v3052 = vmul.f32 %v2580, %v2988
  %v3053 = vmul.f32 %v2585, %v2989
  %v3054 = vmul.f32 %v2588, %v2990
  %v3055 = vmul.f32 %v2593, %v2991
  %v3056 = vmul.f32 %v2596, %v2992
  %v3057 = vmul.f32 %v2601, %v2993
  %v3058 = vmul.f32 %v2604, %v2994
  %v3059 = vmul.f32 %v2666, %v2995
  %v3060 = vmul.f32 %v2669, %v2996
  %v3061 = vmul.f32 %v2674, %v2997
  %v3062 = vmul.f32 %v2677, %v2998
  %v3063 = vmul.f32 %v2682, %v2999
  %v3064 = vmul.f32 %v2685, %v3000
  %v3065 = vmul.f32 %v2690, %v3001
  %v3066 = vmul.f32 %v2693, %v3002
  %v3067 = vmul.f32 %v2755, %v3003
  %v3068 = vmul.f32 %v2758, %v3004
  %v3069 = vmul.f32 %v2763, %v3005
  %v3070 = vmul.f32 %v2766, %v3006
  %v3071 = vmul.f32 %v2771, %v3007
  %v3072 = vmul.f32 %v2774, %v3008
  %v3073 = vmul.f32 %v2779, %v3009
  %v3074 = vmul.f32 %v2782, %v3010
  %v3075 = vmul.f32 %v2844, %v3011
  %v3076 = vmul.f32 %v2847, %v3012
  %v3077 = vmul.f32 %v2852, %v3013
  %v3078 = vmul.f32 %v2855, %v3014
  %v3079 = vmul.f32 %v2860, %v3015
  %v3080 = vmul.f32 %v2863, %v3016
  %v3081 = vmul.f32 %v2868, %v3017
  %v3082 = vmul.f32 %v2871, %v3018
  %v3083 = vmul.f32 %v2933, %v3019
  %v3084 = vmul.f32 %v2936, %v3020
  %v3085 = vmul.f32 %v2941, %v3021
  %v3086 = vmul.f32 %v2944, %v3022
  %v3087 = vmul.f32 %v2949, %v3023
  %v3088 = vmul.f32 %v2952, %v3024
  %v3089 = vmul.f32 %v2957, %v3025
  %v3090 = vmul.f32 %v2960, %v3026
  %v3091 = vld [vmem:[#allocation3] sm:$0xff]
  %v3092 = vld [vmem:[#allocation3 + $0x8] sm:$0xff]
  %v3093 = vld [vmem:[#allocation3 + $0x10] sm:$0xff]
  %v3094 = vld [vmem:[#allocation3 + $0x18] sm:$0xff]
  %v3095 = vld [vmem:[#allocation3 + $0x20] sm:$0xff]
  %v3096 = vld [vmem:[#allocation3 + $0x28] sm:$0xff]
  %v3097 = vld [vmem:[#allocation3 + $0x30] sm:$0xff]
  %v3098 = vld [vmem:[#allocation3 + $0x38] sm:$0xff]
  %v3099 = vld [vmem:[#allocation3 + $0x40] sm:$0xff]
  %v3100 = vld [vmem:[#allocation3 + $0x48] sm:$0xff]
  %v3101 = vld [vmem:[#allocation3 + $0x50] sm:$0xff]
  %v3102 = vld [vmem:[#allocation3 + $0x58] sm:$0xff]
  %v3103 = vld [vmem:[#allocation3 + $0x60] sm:$0xff]
  %v3104 = vld [vmem:[#allocation3 + $0x68] sm:$0xff]
  %v3105 = vld [vmem:[#allocation3 + $0x70] sm:$0xff]
  %v3106 = vld [vmem:[#allocation3 + $0x78] sm:$0xff]
  %v3107 = vld [vmem:[#allocation3 + $0x80] sm:$0xff]
  %v3108 = vld [vmem:[#allocation3 + $0x88] sm:$0xff]
  %v3109 = vld [vmem:[#allocation3 + $0x90] sm:$0xff]
  %v3110 = vld [vmem:[#allocation3 + $0x98] sm:$0xff]
  %v3111 = vld [vmem:[#allocation3 + $0xa0] sm:$0xff]
  %v3112 = vld [vmem:[#allocation3 + $0xa8] sm:$0xff]
  %v3113 = vld [vmem:[#allocation3 + $0xb0] sm:$0xff]
  %v3114 = vld [vmem:[#allocation3 + $0xb8] sm:$0xff]
  %v3115 = vld [vmem:[#allocation3 + $0xc0] sm:$0xff]
  %v3116 = vld [vmem:[#allocation3 + $0xc8] sm:$0xff]
  %v3117 = vld [vmem:[#allocation3 + $0xd0] sm:$0xff]
  %v3118 = vld [vmem:[#allocation3 + $0xd8] sm:$0xff]
  %v3119 = vld [vmem:[#allocation3 + $0xe0] sm:$0xff]
  %v3120 = vld [vmem:[#allocation3 + $0xe8] sm:$0xff]
  %v3121 = vld [vmem:[#allocation3 + $0xf0] sm:$0xff]
  %v3122 = vld [vmem:[#allocation3 + $0xf8] sm:$0xff]
  %v3123 = vld [vmem:[#allocation3 + $0x100] sm:$0xff]
  %v3124 = vld [vmem:[#allocation3 + $0x108] sm:$0xff]
  %v3125 = vld [vmem:[#allocation3 + $0x110] sm:$0xff]
  %v3126 = vld [vmem:[#allocation3 + $0x118] sm:$0xff]
  %v3127 = vld [vmem:[#allocation3 + $0x120] sm:$0xff]
  %v3128 = vld [vmem:[#allocation3 + $0x128] sm:$0xff]
  %v3129 = vld [vmem:[#allocation3 + $0x130] sm:$0xff]
  %v3130 = vld [vmem:[#allocation3 + $0x138] sm:$0xff]
  %v3131 = vld [vmem:[#allocation3 + $0x140] sm:$0xff]
  %v3132 = vld [vmem:[#allocation3 + $0x148] sm:$0xff]
  %v3133 = vld [vmem:[#allocation3 + $0x150] sm:$0xff]
  %v3134 = vld [vmem:[#allocation3 + $0x158] sm:$0xff]
  %v3135 = vld [vmem:[#allocation3 + $0x160] sm:$0xff]
  %v3136 = vld [vmem:[#allocation3 + $0x168] sm:$0xff]
  %v3137 = vld [vmem:[#allocation3 + $0x170] sm:$0xff]
  %v3138 = vld [vmem:[#allocation3 + $0x178] sm:$0xff]
  %v3139 = vld [vmem:[#allocation3 + $0x180] sm:$0xff]
  %v3140 = vld [vmem:[#allocation3 + $0x188] sm:$0xff]
  %v3141 = vld [vmem:[#allocation3 + $0x190] sm:$0xff]
  %v3142 = vld [vmem:[#allocation3 + $0x198] sm:$0xff]
  %v3143 = vld [vmem:[#allocation3 + $0x1a0] sm:$0xff]
  %v3144 = vld [vmem:[#allocation3 + $0x1a8] sm:$0xff]
  %v3145 = vld [vmem:[#allocation3 + $0x1b0] sm:$0xff]
  %v3146 = vld [vmem:[#allocation3 + $0x1b8] sm:$0xff]
  %v3147 = vld [vmem:[#allocation3 + $0x1c0] sm:$0xff]
  %v3148 = vld [vmem:[#allocation3 + $0x1c8] sm:$0xff]
  %v3149 = vld [vmem:[#allocation3 + $0x1d0] sm:$0xff]
  %v3150 = vld [vmem:[#allocation3 + $0x1d8] sm:$0xff]
  %v3151 = vld [vmem:[#allocation3 + $0x1e0] sm:$0xff]
  %v3152 = vld [vmem:[#allocation3 + $0x1e8] sm:$0xff]
  %v3153 = vld [vmem:[#allocation3 + $0x1f0] sm:$0xff]
  %v3154 = vld [vmem:[#allocation3 + $0x1f8] sm:$0xff]
  %v3155 = vpack.c.bf16 %v3028, %v3027
  %v3156 = vpack.c.bf16 %v3030, %v3029
  %v3157 = vpack.c.bf16 %v3032, %v3031
  %v3158 = vpack.c.bf16 %v3034, %v3033
  %v3159 = vpack.c.bf16 %v3036, %v3035
  %v3160 = vpack.c.bf16 %v3038, %v3037
  %v3161 = vpack.c.bf16 %v3040, %v3039
  %v3162 = vpack.c.bf16 %v3042, %v3041
  %v3163 = vpack.c.bf16 %v3044, %v3043
  %v3164 = vpack.c.bf16 %v3046, %v3045
  %v3165 = vpack.c.bf16 %v3048, %v3047
  %v3166 = vpack.c.bf16 %v3050, %v3049
  %v3167 = vpack.c.bf16 %v3052, %v3051
  %v3168 = vpack.c.bf16 %v3054, %v3053
  %v3169 = vpack.c.bf16 %v3056, %v3055
  %v3170 = vpack.c.bf16 %v3058, %v3057
  %v3171 = vpack.c.bf16 %v3060, %v3059
  %v3172 = vpack.c.bf16 %v3062, %v3061
  %v3173 = vpack.c.bf16 %v3064, %v3063
  %v3174 = vpack.c.bf16 %v3066, %v3065
  %v3175 = vpack.c.bf16 %v3068, %v3067
  %v3176 = vpack.c.bf16 %v3070, %v3069
  %v3177 = vpack.c.bf16 %v3072, %v3071
  %v3178 = vpack.c.bf16 %v3074, %v3073
  %v3179 = vpack.c.bf16 %v3076, %v3075
  %v3180 = vpack.c.bf16 %v3078, %v3077
  %v3181 = vpack.c.bf16 %v3080, %v3079
  %v3182 = vpack.c.bf16 %v3082, %v3081
  %v3183 = vpack.c.bf16 %v3084, %v3083
  %v3184 = vpack.c.bf16 %v3086, %v3085
  %v3185 = vpack.c.bf16 %v3088, %v3087
  %v3186 = vpack.c.bf16 %v3090, %v3089
  %v3187 = vld [vmem:[%s3] sm:$0xf]
  %v3189 = vsel %vm845, %v3155, 0
  %v3192 = vsel %vm845, %v3156, 0
  %v3195 = vsel %vm845, %v3157, 0
  %v3198 = vsel %vm845, %v3158, 0
  %v3201 = vsel %vm845, %v3159, 0
  %v3204 = vsel %vm845, %v3160, 0
  %v3207 = vsel %vm845, %v3161, 0
  %v3210 = vsel %vm845, %v3162, 0
  %v3213 = vsel %vm845, %v3163, 0
  %v3216 = vsel %vm845, %v3164, 0
  %v3219 = vsel %vm845, %v3165, 0
  %v3222 = vsel %vm845, %v3166, 0
  %v3225 = vsel %vm845, %v3167, 0
  %v3228 = vsel %vm845, %v3168, 0
  %v3231 = vsel %vm845, %v3169, 0
  %v3234 = vsel %vm845, %v3170, 0
  %v3237 = vsel %vm845, %v3171, 0
  %v3240 = vsel %vm845, %v3172, 0
  %v3243 = vsel %vm845, %v3173, 0
  %v3246 = vsel %vm845, %v3174, 0
  %v3249 = vsel %vm845, %v3175, 0
  %v3252 = vsel %vm845, %v3176, 0
  %v3255 = vsel %vm845, %v3177, 0
  %v3258 = vsel %vm845, %v3178, 0
  %v3261 = vsel %vm845, %v3179, 0
  %v3264 = vsel %vm845, %v3180, 0
  %v3267 = vsel %vm845, %v3181, 0
  %v3270 = vsel %vm845, %v3182, 0
  %v3273 = vsel %vm845, %v3183, 0
  %v3276 = vsel %vm845, %v3184, 0
  %v3279 = vsel %vm845, %v3185, 0
  %v3282 = vsel %vm845, %v3186, 0
  %vm3284 = vcmask 1043456
  %v3286 = vsel %vm3284, %v3187, 0
  %3288 = vmatprep.subr.bf16.mxu0 0
  %3289 = vmatpush1.bf16.msra.mxu0 %v3286
  %3290 = vmatprep.subr.bf16.mxu0 0
  %3291 = vmatpush1.bf16.msra.mxu0 0
  %3292 = vmatprep.subr.bf16.mxu0 0
  %3293 = vmatpush1.bf16.msra.mxu0 0
  %3294 = vmatprep.subr.bf16.mxu0 0
  %3295 = vmatpush1.bf16.msra.mxu0 0
  %3296 = vmatprep.subr.bf16.mxu0 0
  %3297 = vmatpush1.bf16.msra.mxu0 0
  %3298 = vmatprep.subr.bf16.mxu0 0
  %3299 = vmatpush1.bf16.msra.mxu0 0
  %3300 = vmatprep.subr.bf16.mxu0 0
  %3301 = vmatpush1.bf16.msra.mxu0 0
  %3302 = vmatprep.subr.bf16.mxu0 0
  %3303 = vmatpush1.bf16.msra.mxu0 0
  %3304 = vmatprep.subr.bf16.mxu0 0
  %3305 = vmatpush1.bf16.msra.mxu0 0
  %3306 = vmatprep.subr.bf16.mxu0 0
  %3307 = vmatpush1.bf16.msra.mxu0 0
  %3308 = vmatprep.subr.bf16.mxu0 0
  %3309 = vmatpush1.bf16.msra.mxu0 0
  %3310 = vmatprep.subr.bf16.mxu0 0
  %3311 = vmatpush1.bf16.msra.mxu0 0
  %3312 = vmatprep.subr.bf16.mxu0 0
  %3313 = vmatpush1.bf16.msra.mxu0 0
  %3314 = vmatprep.subr.bf16.mxu0 0
  %3315 = vmatpush1.bf16.msra.mxu0 0
  %3316 = vmatprep.subr.bf16.mxu0 0
  %3317 = vmatpush1.bf16.msra.mxu0 0
  %3318 = vmatprep.subr.bf16.mxu0 0
  %3319 = vmatpush1.bf16.msra.mxu0 0
  %3320 = vmatprep.mubr.bf16.mxu0 0
  %3321 = vmatmul.mubr.bf16.gmra.mrb[0].mxu0 %v3189
  %v3322 = vpop.f32.mrb[0].mxu0
  %v3323 = vadd.f32 0.0, %v3322
  %v3324 = vpop.f32.mrb[0].mxu0
  %v3325 = vpop.f32.mrb[0].mxu0
  %v3326 = vadd.f32 0.0, %v3325
  %v3327 = vpop.f32.mrb[0].mxu0
  %3328 = vmatprep.mubr.bf16.mxu0 0
  %3329 = vmatmul.mubr.bf16.gmra.mrb[0].mxu0 %v3192
  %v3330 = vpop.f32.mrb[0].mxu0
  %v3331 = vadd.f32 0.0, %v3330
  %v3332 = vpop.f32.mrb[0].mxu0
  %v3333 = vpop.f32.mrb[0].mxu0
  %v3334 = vadd.f32 0.0, %v3333
  %v3335 = vpop.f32.mrb[0].mxu0
  %3336 = vmatprep.mubr.bf16.mxu0 0
  %3337 = vmatmul.mubr.bf16.gmra.mrb[0].mxu0 %v3195
  %v3338 = vpop.f32.mrb[0].mxu0
  %v3339 = vadd.f32 0.0, %v3338
  %v3340 = vpop.f32.mrb[0].mxu0
  %v3341 = vpop.f32.mrb[0].mxu0
  %v3342 = vadd.f32 0.0, %v3341
  %v3343 = vpop.f32.mrb[0].mxu0
  %3344 = vmatprep.mubr.bf16.mxu0 0
  %3345 = vmatmul.mubr.bf16.gmra.mrb[0].mxu0 %v3198
  %v3346 = vpop.f32.mrb[0].mxu0
  %v3347 = vadd.f32 0.0, %v3346
  %v3348 = vpop.f32.mrb[0].mxu0
  %v3349 = vpop.f32.mrb[0].mxu0
  %v3350 = vadd.f32 0.0, %v3349
  %v3351 = vpop.f32.mrb[0].mxu0
  %3352 = vmatprep.mubr.bf16.mxu0 0
  %3353 = vmatmul.mubr.bf16.gmra.mrb[0].mxu0 %v3201
  %v3354 = vpop.f32.mrb[0].mxu0
  %v3355 = vadd.f32 0.0, %v3354
  %v3356 = vpop.f32.mrb[0].mxu0
  %v3357 = vpop.f32.mrb[0].mxu0
  %v3358 = vadd.f32 0.0, %v3357
  %v3359 = vpop.f32.mrb[0].mxu0
  %3360 = vmatprep.mubr.bf16.mxu0 0
  %3361 = vmatmul.mubr.bf16.gmra.mrb[0].mxu0 %v3204
  %v3362 = vpop.f32.mrb[0].mxu0
  %v3363 = vadd.f32 0.0, %v3362
  %v3364 = vpop.f32.mrb[0].mxu0
  %v3365 = vpop.f32.mrb[0].mxu0
  %v3366 = vadd.f32 0.0, %v3365
  %v3367 = vpop.f32.mrb[0].mxu0
  %3368 = vmatprep.mubr.bf16.mxu0 0
  %3369 = vmatmul.mubr.bf16.gmra.mrb[0].mxu0 %v3207
  %v3370 = vpop.f32.mrb[0].mxu0
  %v3371 = vadd.f32 0.0, %v3370
  %v3372 = vpop.f32.mrb[0].mxu0
  %v3373 = vpop.f32.mrb[0].mxu0
  %v3374 = vadd.f32 0.0, %v3373
  %v3375 = vpop.f32.mrb[0].mxu0
  %3376 = vmatprep.mubr.bf16.mxu0 0
  %3377 = vmatmul.mubr.bf16.gmra.mrb[0].mxu0 %v3210
  %v3378 = vpop.f32.mrb[0].mxu0
  %v3379 = vadd.f32 0.0, %v3378
  %v3380 = vpop.f32.mrb[0].mxu0
  %v3381 = vpop.f32.mrb[0].mxu0
  %v3382 = vadd.f32 0.0, %v3381
  %v3383 = vpop.f32.mrb[0].mxu0
  %3384 = vmatprep.mubr.bf16.mxu0 0
  %3385 = vmatmul.mubr.bf16.gmra.mrb[0].mxu0 %v3213
  %v3386 = vpop.f32.mrb[0].mxu0
  %v3387 = vadd.f32 0.0, %v3386
  %v3388 = vpop.f32.mrb[0].mxu0
  %v3389 = vpop.f32.mrb[0].mxu0
  %v3390 = vadd.f32 0.0, %v3389
  %v3391 = vpop.f32.mrb[0].mxu0
  %3392 = vmatprep.mubr.bf16.mxu0 0
  %3393 = vmatmul.mubr.bf16.gmra.mrb[0].mxu0 %v3216
  %v3394 = vpop.f32.mrb[0].mxu0
  %v3395 = vadd.f32 0.0, %v3394
  %v3396 = vpop.f32.mrb[0].mxu0
  %v3397 = vpop.f32.mrb[0].mxu0
  %v3398 = vadd.f32 0.0, %v3397
  %v3399 = vpop.f32.mrb[0].mxu0
  %3400 = vmatprep.mubr.bf16.mxu0 0
  %3401 = vmatmul.mubr.bf16.gmra.mrb[0].mxu0 %v3219
  %v3402 = vpop.f32.mrb[0].mxu0
  %v3403 = vadd.f32 0.0, %v3402
  %v3404 = vpop.f32.mrb[0].mxu0
  %v3405 = vpop.f32.mrb[0].mxu0
  %v3406 = vadd.f32 0.0, %v3405
  %v3407 = vpop.f32.mrb[0].mxu0
  %3408 = vmatprep.mubr.bf16.mxu0 0
  %3409 = vmatmul.mubr.bf16.gmra.mrb[0].mxu0 %v3222
  %v3410 = vpop.f32.mrb[0].mxu0
  %v3411 = vadd.f32 0.0, %v3410
  %v3412 = vpop.f32.mrb[0].mxu0
  %v3413 = vpop.f32.mrb[0].mxu0
  %v3414 = vadd.f32 0.0, %v3413
  %v3415 = vpop.f32.mrb[0].mxu0
  %3416 = vmatprep.mubr.bf16.mxu0 0
  %3417 = vmatmul.mubr.bf16.gmra.mrb[0].mxu0 %v3225
  %v3418 = vpop.f32.mrb[0].mxu0
  %v3419 = vadd.f32 0.0, %v3418
  %v3420 = vpop.f32.mrb[0].mxu0
  %v3421 = vpop.f32.mrb[0].mxu0
  %v3422 = vadd.f32 0.0, %v3421
  %v3423 = vpop.f32.mrb[0].mxu0
  %3424 = vmatprep.mubr.bf16.mxu0 0
  %3425 = vmatmul.mubr.bf16.gmra.mrb[0].mxu0 %v3228
  %v3426 = vpop.f32.mrb[0].mxu0
  %v3427 = vadd.f32 0.0, %v3426
  %v3428 = vpop.f32.mrb[0].mxu0
  %v3429 = vpop.f32.mrb[0].mxu0
  %v3430 = vadd.f32 0.0, %v3429
  %v3431 = vpop.f32.mrb[0].mxu0
  %3432 = vmatprep.mubr.bf16.mxu0 0
  %3433 = vmatmul.mubr.bf16.gmra.mrb[0].mxu0 %v3231
  %v3434 = vpop.f32.mrb[0].mxu0
  %v3435 = vadd.f32 0.0, %v3434
  %v3436 = vpop.f32.mrb[0].mxu0
  %v3437 = vpop.f32.mrb[0].mxu0
  %v3438 = vadd.f32 0.0, %v3437
  %v3439 = vpop.f32.mrb[0].mxu0
  %3440 = vmatprep.mubr.bf16.mxu0 0
  %3441 = vmatmul.mubr.bf16.gmra.mrb[0].mxu0 %v3234
  %v3442 = vpop.f32.mrb[0].mxu0
  %v3443 = vadd.f32 0.0, %v3442
  %v3444 = vpop.f32.mrb[0].mxu0
  %v3445 = vpop.f32.mrb[0].mxu0
  %v3446 = vadd.f32 0.0, %v3445
  %v3447 = vpop.f32.mrb[0].mxu0
  %3448 = vmatprep.mubr.bf16.mxu0 0
  %3449 = vmatmul.mubr.bf16.gmra.mrb[0].mxu0 %v3237
  %v3450 = vpop.f32.mrb[0].mxu0
  %v3451 = vadd.f32 0.0, %v3450
  %v3452 = vpop.f32.mrb[0].mxu0
  %v3453 = vpop.f32.mrb[0].mxu0
  %v3454 = vadd.f32 0.0, %v3453
  %v3455 = vpop.f32.mrb[0].mxu0
  %3456 = vmatprep.mubr.bf16.mxu0 0
  %3457 = vmatmul.mubr.bf16.gmra.mrb[0].mxu0 %v3240
  %v3458 = vpop.f32.mrb[0].mxu0
  %v3459 = vadd.f32 0.0, %v3458
  %v3460 = vpop.f32.mrb[0].mxu0
  %v3461 = vpop.f32.mrb[0].mxu0
  %v3462 = vadd.f32 0.0, %v3461
  %v3463 = vpop.f32.mrb[0].mxu0
  %3464 = vmatprep.mubr.bf16.mxu0 0
  %3465 = vmatmul.mubr.bf16.gmra.mrb[0].mxu0 %v3243
  %v3466 = vpop.f32.mrb[0].mxu0
  %v3467 = vadd.f32 0.0, %v3466
  %v3468 = vpop.f32.mrb[0].mxu0
  %v3469 = vpop.f32.mrb[0].mxu0
  %v3470 = vadd.f32 0.0, %v3469
  %v3471 = vpop.f32.mrb[0].mxu0
  %3472 = vmatprep.mubr.bf16.mxu0 0
  %3473 = vmatmul.mubr.bf16.gmra.mrb[0].mxu0 %v3246
  %v3474 = vpop.f32.mrb[0].mxu0
  %v3475 = vadd.f32 0.0, %v3474
  %v3476 = vpop.f32.mrb[0].mxu0
  %v3477 = vpop.f32.mrb[0].mxu0
  %v3478 = vadd.f32 0.0, %v3477
  %v3479 = vpop.f32.mrb[0].mxu0
  %3480 = vmatprep.mubr.bf16.mxu0 0
  %3481 = vmatmul.mubr.bf16.gmra.mrb[0].mxu0 %v3249
  %v3482 = vpop.f32.mrb[0].mxu0
  %v3483 = vadd.f32 0.0, %v3482
  %v3484 = vpop.f32.mrb[0].mxu0
  %v3485 = vpop.f32.mrb[0].mxu0
  %v3486 = vadd.f32 0.0, %v3485
  %v3487 = vpop.f32.mrb[0].mxu0
  %3488 = vmatprep.mubr.bf16.mxu0 0
  %3489 = vmatmul.mubr.bf16.gmra.mrb[0].mxu0 %v3252
  %v3490 = vpop.f32.mrb[0].mxu0
  %v3491 = vadd.f32 0.0, %v3490
  %v3492 = vpop.f32.mrb[0].mxu0
  %v3493 = vpop.f32.mrb[0].mxu0
  %v3494 = vadd.f32 0.0, %v3493
  %v3495 = vpop.f32.mrb[0].mxu0
  %3496 = vmatprep.mubr.bf16.mxu0 0
  %3497 = vmatmul.mubr.bf16.gmra.mrb[0].mxu0 %v3255
  %v3498 = vpop.f32.mrb[0].mxu0
  %v3499 = vadd.f32 0.0, %v3498
  %v3500 = vpop.f32.mrb[0].mxu0
  %v3501 = vpop.f32.mrb[0].mxu0
  %v3502 = vadd.f32 0.0, %v3501
  %v3503 = vpop.f32.mrb[0].mxu0
  %3504 = vmatprep.mubr.bf16.mxu0 0
  %3505 = vmatmul.mubr.bf16.gmra.mrb[0].mxu0 %v3258
  %v3506 = vpop.f32.mrb[0].mxu0
  %v3507 = vadd.f32 0.0, %v3506
  %v3508 = vpop.f32.mrb[0].mxu0
  %v3509 = vpop.f32.mrb[0].mxu0
  %v3510 = vadd.f32 0.0, %v3509
  %v3511 = vpop.f32.mrb[0].mxu0
  %3512 = vmatprep.mubr.bf16.mxu0 0
  %3513 = vmatmul.mubr.bf16.gmra.mrb[0].mxu0 %v3261
  %v3514 = vpop.f32.mrb[0].mxu0
  %v3515 = vadd.f32 0.0, %v3514
  %v3516 = vpop.f32.mrb[0].mxu0
  %v3517 = vpop.f32.mrb[0].mxu0
  %v3518 = vadd.f32 0.0, %v3517
  %v3519 = vpop.f32.mrb[0].mxu0
  %3520 = vmatprep.mubr.bf16.mxu0 0
  %3521 = vmatmul.mubr.bf16.gmra.mrb[0].mxu0 %v3264
  %v3522 = vpop.f32.mrb[0].mxu0
  %v3523 = vadd.f32 0.0, %v3522
  %v3524 = vpop.f32.mrb[0].mxu0
  %v3525 = vpop.f32.mrb[0].mxu0
  %v3526 = vadd.f32 0.0, %v3525
  %v3527 = vpop.f32.mrb[0].mxu0
  %3528 = vmatprep.mubr.bf16.mxu0 0
  %3529 = vmatmul.mubr.bf16.gmra.mrb[0].mxu0 %v3267
  %v3530 = vpop.f32.mrb[0].mxu0
  %v3531 = vadd.f32 0.0, %v3530
  %v3532 = vpop.f32.mrb[0].mxu0
  %v3533 = vpop.f32.mrb[0].mxu0
  %v3534 = vadd.f32 0.0, %v3533
  %v3535 = vpop.f32.mrb[0].mxu0
  %3536 = vmatprep.mubr.bf16.mxu0 0
  %3537 = vmatmul.mubr.bf16.gmra.mrb[0].mxu0 %v3270
  %v3538 = vpop.f32.mrb[0].mxu0
  %v3539 = vadd.f32 0.0, %v3538
  %v3540 = vpop.f32.mrb[0].mxu0
  %v3541 = vpop.f32.mrb[0].mxu0
  %v3542 = vadd.f32 0.0, %v3541
  %v3543 = vpop.f32.mrb[0].mxu0
  %3544 = vmatprep.mubr.bf16.mxu0 0
  %3545 = vmatmul.mubr.bf16.gmra.mrb[0].mxu0 %v3273
  %v3546 = vpop.f32.mrb[0].mxu0
  %v3547 = vadd.f32 0.0, %v3546
  %v3548 = vpop.f32.mrb[0].mxu0
  %v3549 = vpop.f32.mrb[0].mxu0
  %v3550 = vadd.f32 0.0, %v3549
  %v3551 = vpop.f32.mrb[0].mxu0
  %3552 = vmatprep.mubr.bf16.mxu0 0
  %3553 = vmatmul.mubr.bf16.gmra.mrb[0].mxu0 %v3276
  %v3554 = vpop.f32.mrb[0].mxu0
  %v3555 = vadd.f32 0.0, %v3554
  %v3556 = vpop.f32.mrb[0].mxu0
  %v3557 = vpop.f32.mrb[0].mxu0
  %v3558 = vadd.f32 0.0, %v3557
  %v3559 = vpop.f32.mrb[0].mxu0
  %3560 = vmatprep.mubr.bf16.mxu0 0
  %3561 = vmatmul.mubr.bf16.gmra.mrb[0].mxu0 %v3279
  %v3562 = vpop.f32.mrb[0].mxu0
  %v3563 = vadd.f32 0.0, %v3562
  %v3564 = vpop.f32.mrb[0].mxu0
  %v3565 = vpop.f32.mrb[0].mxu0
  %v3566 = vadd.f32 0.0, %v3565
  %v3567 = vpop.f32.mrb[0].mxu0
  %3568 = vmatprep.mubr.bf16.mxu0 0
  %3569 = vmatmul.mubr.bf16.gmra.mrb[0].mxu0 %v3282
  %v3570 = vpop.f32.mrb[0].mxu0
  %v3571 = vadd.f32 0.0, %v3570
  %v3572 = vpop.f32.mrb[0].mxu0
  %v3573 = vpop.f32.mrb[0].mxu0
  %v3574 = vadd.f32 0.0, %v3573
  %v3575 = vpop.f32.mrb[0].mxu0
  %3576 = vdwg.mxu0
  %v3577 = vadd.f32 %v3091, %v3323
  %v3578 = vadd.f32 %v3092, %v3326
  %v3579 = vadd.f32 %v3093, %v3331
  %v3580 = vadd.f32 %v3094, %v3334
  %v3581 = vadd.f32 %v3095, %v3339
  %v3582 = vadd.f32 %v3096, %v3342
  %v3583 = vadd.f32 %v3097, %v3347
  %v3584 = vadd.f32 %v3098, %v3350
  %v3585 = vadd.f32 %v3099, %v3355
  %v3586 = vadd.f32 %v3100, %v3358
  %v3587 = vadd.f32 %v3101, %v3363
  %v3588 = vadd.f32 %v3102, %v3366
  %v3589 = vadd.f32 %v3103, %v3371
  %v3590 = vadd.f32 %v3104, %v3374
  %v3591 = vadd.f32 %v3105, %v3379
  %v3592 = vadd.f32 %v3106, %v3382
  %v3593 = vadd.f32 %v3107, %v3387
  %v3594 = vadd.f32 %v3108, %v3390
  %v3595 = vadd.f32 %v3109, %v3395
  %v3596 = vadd.f32 %v3110, %v3398
  %v3597 = vadd.f32 %v3111, %v3403
  %v3598 = vadd.f32 %v3112, %v3406
  %v3599 = vadd.f32 %v3113, %v3411
  %v3600 = vadd.f32 %v3114, %v3414
  %v3601 = vadd.f32 %v3115, %v3419
  %v3602 = vadd.f32 %v3116, %v3422
  %v3603 = vadd.f32 %v3117, %v3427
  %v3604 = vadd.f32 %v3118, %v3430
  %v3605 = vadd.f32 %v3119, %v3435
  %v3606 = vadd.f32 %v3120, %v3438
  %v3607 = vadd.f32 %v3121, %v3443
  %v3608 = vadd.f32 %v3122, %v3446
  %v3609 = vadd.f32 %v3123, %v3451
  %v3610 = vadd.f32 %v3124, %v3454
  %v3611 = vadd.f32 %v3125, %v3459
  %v3612 = vadd.f32 %v3126, %v3462
  %v3613 = vadd.f32 %v3127, %v3467
  %v3614 = vadd.f32 %v3128, %v3470
  %v3615 = vadd.f32 %v3129, %v3475
  %v3616 = vadd.f32 %v3130, %v3478
  %v3617 = vadd.f32 %v3131, %v3483
  %v3618 = vadd.f32 %v3132, %v3486
  %v3619 = vadd.f32 %v3133, %v3491
  %v3620 = vadd.f32 %v3134, %v3494
  %v3621 = vadd.f32 %v3135, %v3499
  %v3622 = vadd.f32 %v3136, %v3502
  %v3623 = vadd.f32 %v3137, %v3507
  %v3624 = vadd.f32 %v3138, %v3510
  %v3625 = vadd.f32 %v3139, %v3515
  %v3626 = vadd.f32 %v3140, %v3518
  %v3627 = vadd.f32 %v3141, %v3523
  %v3628 = vadd.f32 %v3142, %v3526
  %v3629 = vadd.f32 %v3143, %v3531
  %v3630 = vadd.f32 %v3144, %v3534
  %v3631 = vadd.f32 %v3145, %v3539
  %v3632 = vadd.f32 %v3146, %v3542
  %v3633 = vadd.f32 %v3147, %v3547
  %v3634 = vadd.f32 %v3148, %v3550
  %v3635 = vadd.f32 %v3149, %v3555
  %v3636 = vadd.f32 %v3150, %v3558
  %v3637 = vadd.f32 %v3151, %v3563
  %v3638 = vadd.f32 %v3152, %v3566
  %v3639 = vadd.f32 %v3153, %v3571
  %v3640 = vadd.f32 %v3154, %v3574
  %3641 = vst.msk [vmem:[#allocation3] sm:$0xff] %vm271, %v3577
  %3642 = vst.msk [vmem:[#allocation3 + $0x8] sm:$0xff] %vm271, %v3578
  %3643 = vst.msk [vmem:[#allocation3 + $0x10] sm:$0xff] %vm271, %v3579
  %3644 = vst.msk [vmem:[#allocation3 + $0x18] sm:$0xff] %vm271, %v3580
  %3645 = vst.msk [vmem:[#allocation3 + $0x20] sm:$0xff] %vm271, %v3581
  %3646 = vst.msk [vmem:[#allocation3 + $0x28] sm:$0xff] %vm271, %v3582
  %3647 = vst.msk [vmem:[#allocation3 + $0x30] sm:$0xff] %vm271, %v3583
  %3648 = vst.msk [vmem:[#allocation3 + $0x38] sm:$0xff] %vm271, %v3584
  %3649 = vst.msk [vmem:[#allocation3 + $0x40] sm:$0xff] %vm271, %v3585
  %3650 = vst.msk [vmem:[#allocation3 + $0x48] sm:$0xff] %vm271, %v3586
  %3651 = vst.msk [vmem:[#allocation3 + $0x50] sm:$0xff] %vm271, %v3587
  %3652 = vst.msk [vmem:[#allocation3 + $0x58] sm:$0xff] %vm271, %v3588
  %3653 = vst.msk [vmem:[#allocation3 + $0x60] sm:$0xff] %vm271, %v3589
  %3654 = vst.msk [vmem:[#allocation3 + $0x68] sm:$0xff] %vm271, %v3590
  %3655 = vst.msk [vmem:[#allocation3 + $0x70] sm:$0xff] %vm271, %v3591
  %3656 = vst.msk [vmem:[#allocation3 + $0x78] sm:$0xff] %vm271, %v3592
  %3657 = vst.msk [vmem:[#allocation3 + $0x80] sm:$0xff] %vm271, %v3593
  %3658 = vst.msk [vmem:[#allocation3 + $0x88] sm:$0xff] %vm271, %v3594
  %3659 = vst.msk [vmem:[#allocation3 + $0x90] sm:$0xff] %vm271, %v3595
  %3660 = vst.msk [vmem:[#allocation3 + $0x98] sm:$0xff] %vm271, %v3596
  %3661 = vst.msk [vmem:[#allocation3 + $0xa0] sm:$0xff] %vm271, %v3597
  %3662 = vst.msk [vmem:[#allocation3 + $0xa8] sm:$0xff] %vm271, %v3598
  %3663 = vst.msk [vmem:[#allocation3 + $0xb0] sm:$0xff] %vm271, %v3599
  %3664 = vst.msk [vmem:[#allocation3 + $0xb8] sm:$0xff] %vm271, %v3600
  %3665 = vst.msk [vmem:[#allocation3 + $0xc0] sm:$0xff] %vm271, %v3601
  %3666 = vst.msk [vmem:[#allocation3 + $0xc8] sm:$0xff] %vm271, %v3602
  %3667 = vst.msk [vmem:[#allocation3 + $0xd0] sm:$0xff] %vm271, %v3603
  %3668 = vst.msk [vmem:[#allocation3 + $0xd8] sm:$0xff] %vm271, %v3604
  %3669 = vst.msk [vmem:[#allocation3 + $0xe0] sm:$0xff] %vm271, %v3605
  %3670 = vst.msk [vmem:[#allocation3 + $0xe8] sm:$0xff] %vm271, %v3606
  %3671 = vst.msk [vmem:[#allocation3 + $0xf0] sm:$0xff] %vm271, %v3607
  %3672 = vst.msk [vmem:[#allocation3 + $0xf8] sm:$0xff] %vm271, %v3608
  %3673 = vst.msk [vmem:[#allocation3 + $0x100] sm:$0xff] %vm271, %v3609
  %3674 = vst.msk [vmem:[#allocation3 + $0x108] sm:$0xff] %vm271, %v3610
  %3675 = vst.msk [vmem:[#allocation3 + $0x110] sm:$0xff] %vm271, %v3611
  %3676 = vst.msk [vmem:[#allocation3 + $0x118] sm:$0xff] %vm271, %v3612
  %3677 = vst.msk [vmem:[#allocation3 + $0x120] sm:$0xff] %vm271, %v3613
  %3678 = vst.msk [vmem:[#allocation3 + $0x128] sm:$0xff] %vm271, %v3614
  %3679 = vst.msk [vmem:[#allocation3 + $0x130] sm:$0xff] %vm271, %v3615
  %3680 = vst.msk [vmem:[#allocation3 + $0x138] sm:$0xff] %vm271, %v3616
  %3681 = vst.msk [vmem:[#allocation3 + $0x140] sm:$0xff] %vm271, %v3617
  %3682 = vst.msk [vmem:[#allocation3 + $0x148] sm:$0xff] %vm271, %v3618
  %3683 = vst.msk [vmem:[#allocation3 + $0x150] sm:$0xff] %vm271, %v3619
  %3684 = vst.msk [vmem:[#allocation3 + $0x158] sm:$0xff] %vm271, %v3620
  %3685 = vst.msk [vmem:[#allocation3 + $0x160] sm:$0xff] %vm271, %v3621
  %3686 = vst.msk [vmem:[#allocation3 + $0x168] sm:$0xff] %vm271, %v3622
  %3687 = vst.msk [vmem:[#allocation3 + $0x170] sm:$0xff] %vm271, %v3623
  %3688 = vst.msk [vmem:[#allocation3 + $0x178] sm:$0xff] %vm271, %v3624
  %3689 = vst.msk [vmem:[#allocation3 + $0x180] sm:$0xff] %vm271, %v3625
  %3690 = vst.msk [vmem:[#allocation3 + $0x188] sm:$0xff] %vm271, %v3626
  %3691 = vst.msk [vmem:[#allocation3 + $0x190] sm:$0xff] %vm271, %v3627
  %3692 = vst.msk [vmem:[#allocation3 + $0x198] sm:$0xff] %vm271, %v3628
  %3693 = vst.msk [vmem:[#allocation3 + $0x1a0] sm:$0xff] %vm271, %v3629
  %3694 = vst.msk [vmem:[#allocation3 + $0x1a8] sm:$0xff] %vm271, %v3630
  %3695 = vst.msk [vmem:[#allocation3 + $0x1b0] sm:$0xff] %vm271, %v3631
  %3696 = vst.msk [vmem:[#allocation3 + $0x1b8] sm:$0xff] %vm271, %v3632
  %3697 = vst.msk [vmem:[#allocation3 + $0x1c0] sm:$0xff] %vm271, %v3633
  %3698 = vst.msk [vmem:[#allocation3 + $0x1c8] sm:$0xff] %vm271, %v3634
  %3699 = vst.msk [vmem:[#allocation3 + $0x1d0] sm:$0xff] %vm271, %v3635
  %3700 = vst.msk [vmem:[#allocation3 + $0x1d8] sm:$0xff] %vm271, %v3636
  %3701 = vst.msk [vmem:[#allocation3 + $0x1e0] sm:$0xff] %vm271, %v3637
  %3702 = vst.msk [vmem:[#allocation3 + $0x1e8] sm:$0xff] %vm271, %v3638
  %3703 = vst.msk [vmem:[#allocation3 + $0x1f0] sm:$0xff] %vm271, %v3639
  %3704 = vst.msk [vmem:[#allocation3 + $0x1f8] sm:$0xff] %vm271, %v3640
  %v3705 = vld [vmem:[#allocation2] sm:$0xff]
  %v3706 = vld [vmem:[#allocation2 + $0x8] sm:$0xff]
  %v3707 = vld [vmem:[#allocation2 + $0x10] sm:$0xff]
  %v3708 = vld [vmem:[#allocation2 + $0x18] sm:$0xff]
  %v3709 = vld [vmem:[#allocation2 + $0x20] sm:$0xff]
  %v3710 = vld [vmem:[#allocation2 + $0x28] sm:$0xff]
  %v3711 = vld [vmem:[#allocation2 + $0x30] sm:$0xff]
  %v3712 = vld [vmem:[#allocation2 + $0x38] sm:$0xff]
  %v3713 = vld [vmem:[#allocation2 + $0x40] sm:$0xff]
  %v3714 = vld [vmem:[#allocation2 + $0x48] sm:$0xff]
  %v3715 = vld [vmem:[#allocation2 + $0x50] sm:$0xff]
  %v3716 = vld [vmem:[#allocation2 + $0x58] sm:$0xff]
  %v3717 = vld [vmem:[#allocation2 + $0x60] sm:$0xff]
  %v3718 = vld [vmem:[#allocation2 + $0x68] sm:$0xff]
  %v3719 = vld [vmem:[#allocation2 + $0x70] sm:$0xff]
  %v3720 = vld [vmem:[#allocation2 + $0x78] sm:$0xff]
  %v3721 = vld [vmem:[#allocation2 + $0x80] sm:$0xff]
  %v3722 = vld [vmem:[#allocation2 + $0x88] sm:$0xff]
  %v3723 = vld [vmem:[#allocation2 + $0x90] sm:$0xff]
  %v3724 = vld [vmem:[#allocation2 + $0x98] sm:$0xff]
  %v3725 = vld [vmem:[#allocation2 + $0xa0] sm:$0xff]
  %v3726 = vld [vmem:[#allocation2 + $0xa8] sm:$0xff]
  %v3727 = vld [vmem:[#allocation2 + $0xb0] sm:$0xff]
  %v3728 = vld [vmem:[#allocation2 + $0xb8] sm:$0xff]
  %v3729 = vld [vmem:[#allocation2 + $0xc0] sm:$0xff]
  %v3730 = vld [vmem:[#allocation2 + $0xc8] sm:$0xff]
  %v3731 = vld [vmem:[#allocation2 + $0xd0] sm:$0xff]
  %v3732 = vld [vmem:[#allocation2 + $0xd8] sm:$0xff]
  %v3733 = vld [vmem:[#allocation2 + $0xe0] sm:$0xff]
  %v3734 = vld [vmem:[#allocation2 + $0xe8] sm:$0xff]
  %v3735 = vld [vmem:[#allocation2 + $0xf0] sm:$0xff]
  %v3736 = vld [vmem:[#allocation2 + $0xf8] sm:$0xff]
  %s3737 = scalar_lea.vmem %s5, 64
  %v3738 = vld [vmem:[%s3737] sm:$0xff]
  %v3739 = vld [vmem:[%s3737 + $0x8] sm:$0xff]
  %v3740 = vld [vmem:[%s3737 + $0x10] sm:$0xff]
  %v3741 = vld [vmem:[%s3737 + $0x18] sm:$0xff]
  %v3742 = vld [vmem:[%s3737 + $0x20] sm:$0xff]
  %v3743 = vld [vmem:[%s3737 + $0x28] sm:$0xff]
  %v3744 = vld [vmem:[%s3737 + $0x30] sm:$0xff]
  %v3745 = vld [vmem:[%s3737 + $0x38] sm:$0xff]
  %3750 = vrot.lane.b32.xlu0 %v3705, 120
  %v3751 = vpop.permute.xlu0 %3750
  %3752 = vrot.lane.b32.xlu0 %v3706, 120
  %v3753 = vpop.permute.xlu0 %3752
  %3754 = vrot.lane.b32.xlu0 %v3707, 120
  %v3755 = vpop.permute.xlu0 %3754
  %3756 = vrot.lane.b32.xlu0 %v3708, 120
  %v3757 = vpop.permute.xlu0 %3756
  %3758 = vrot.lane.b32.xlu0 %v3705, 88
  %v3759 = vpop.permute.xlu0 %3758
  %3760 = vrot.lane.b32.xlu0 %v3706, 88
  %v3761 = vpop.permute.xlu0 %3760
  %3762 = vrot.lane.b32.xlu0 %v3707, 88
  %v3763 = vpop.permute.xlu0 %3762
  %3764 = vrot.lane.b32.xlu0 %v3708, 88
  %v3765 = vpop.permute.xlu0 %3764
  %v3767 = vsel %vm845, %v3751, 0
  %v3770 = vsel %vm845, %v3753, 0
  %v3773 = vsel %vm845, %v3755, 0
  %v3776 = vsel %vm845, %v3757, 0
  %v3779 = vsel %vm845, %v3759, 0
  %v3782 = vsel %vm845, %v3761, 0
  %v3785 = vsel %vm845, %v3763, 0
  %v3788 = vsel %vm845, %v3765, 0
  %3790 = vmatprep.subr.bf16.mxu0 0
  %3791 = vmatpush1.bf16.xpose.msra.mxu0 %v3779
  %3792 = vmatprep.subr.bf16.mxu0 0
  %3793 = vmatpush1.bf16.xpose.msra.mxu0 %v3782
  %3794 = vmatprep.subr.bf16.mxu0 0
  %3795 = vmatpush1.bf16.xpose.msra.mxu0 %v3785
  %3796 = vmatprep.subr.bf16.mxu0 0
  %3797 = vmatpush1.bf16.xpose.msra.mxu0 %v3788
  %3798 = vmatprep.subr.bf16.mxu0 0
  %3799 = vmatpush1.bf16.xpose.msra.mxu0 0
  %3800 = vmatprep.subr.bf16.mxu0 0
  %3801 = vmatpush1.bf16.xpose.msra.mxu0 0
  %3802 = vmatprep.subr.bf16.mxu0 0
  %3803 = vmatpush1.bf16.xpose.msra.mxu0 0
  %3804 = vmatprep.subr.bf16.mxu0 0
  %3805 = vmatpush1.bf16.xpose.msra.mxu0 0
  %3806 = vmatprep.subr.bf16.mxu0 0
  %3807 = vmatpush1.bf16.xpose.msra.mxu0 0
  %3808 = vmatprep.subr.bf16.mxu0 0
  %3809 = vmatpush1.bf16.xpose.msra.mxu0 0
  %3810 = vmatprep.subr.bf16.mxu0 0
  %3811 = vmatpush1.bf16.xpose.msra.mxu0 0
  %3812 = vmatprep.subr.bf16.mxu0 0
  %3813 = vmatpush1.bf16.xpose.msra.mxu0 0
  %3814 = vmatprep.subr.bf16.mxu0 0
  %3815 = vmatpush1.bf16.xpose.msra.mxu0 0
  %3816 = vmatprep.subr.bf16.mxu0 0
  %3817 = vmatpush1.bf16.xpose.msra.mxu0 0
  %3818 = vmatprep.subr.bf16.mxu0 0
  %3819 = vmatpush1.bf16.xpose.msra.mxu0 0
  %3820 = vmatprep.subr.bf16.mxu0 0
  %3821 = vmatpush1.bf16.xpose.msra.mxu0 0
  %3822 = vmatprep.mubr.bf16.mxu0 0
  %3823 = vmatmul.mubr.bf16.gmra.mrb[0].mxu0 %v3767
  %v3824 = vpop.f32.mrb[0].mxu0
  %v3825 = vadd.f32 %v3738, %v3824
  %v3826 = vpop.f32.mrb[0].mxu0
  %v3827 = vpop.f32.mrb[0].mxu0
  %v3828 = vadd.f32 %v3739, %v3827
  %v3829 = vpop.f32.mrb[0].mxu0
  %3830 = vmatprep.mubr.bf16.mxu0 0
  %3831 = vmatmul.mubr.bf16.gmra.mrb[0].mxu0 %v3770
  %v3832 = vpop.f32.mrb[0].mxu0
  %v3833 = vadd.f32 %v3740, %v3832
  %v3834 = vpop.f32.mrb[0].mxu0
  %v3835 = vpop.f32.mrb[0].mxu0
  %v3836 = vadd.f32 %v3741, %v3835
  %v3837 = vpop.f32.mrb[0].mxu0
  %3838 = vmatprep.mubr.bf16.mxu0 0
  %3839 = vmatmul.mubr.bf16.gmra.mrb[0].mxu0 %v3773
  %v3840 = vpop.f32.mrb[0].mxu0
  %v3841 = vadd.f32 %v3742, %v3840
  %v3842 = vpop.f32.mrb[0].mxu0
  %v3843 = vpop.f32.mrb[0].mxu0
  %v3844 = vadd.f32 %v3743, %v3843
  %v3845 = vpop.f32.mrb[0].mxu0
  %3846 = vmatprep.mubr.bf16.mxu0 0
  %3847 = vmatmul.mubr.bf16.gmra.mrb[0].mxu0 %v3776
  %v3848 = vpop.f32.mrb[0].mxu0
  %v3849 = vadd.f32 %v3744, %v3848
  %v3850 = vpop.f32.mrb[0].mxu0
  %v3851 = vpop.f32.mrb[0].mxu0
  %v3852 = vadd.f32 %v3745, %v3851
  %v3853 = vpop.f32.mrb[0].mxu0
  %3854 = vdwg.mxu0
  %3859 = vrot.lane.b32.xlu0 %v3709, 120
  %v3860 = vpop.permute.xlu0 %3859
  %3861 = vrot.lane.b32.xlu0 %v3710, 120
  %v3862 = vpop.permute.xlu0 %3861
  %3863 = vrot.lane.b32.xlu0 %v3711, 120
  %v3864 = vpop.permute.xlu0 %3863
  %3865 = vrot.lane.b32.xlu0 %v3712, 120
  %v3866 = vpop.permute.xlu0 %3865
  %3867 = vrot.lane.b32.xlu0 %v3709, 88
  %v3868 = vpop.permute.xlu0 %3867
  %3869 = vrot.lane.b32.xlu0 %v3710, 88
  %v3870 = vpop.permute.xlu0 %3869
  %3871 = vrot.lane.b32.xlu0 %v3711, 88
  %v3872 = vpop.permute.xlu0 %3871
  %3873 = vrot.lane.b32.xlu0 %v3712, 88
  %v3874 = vpop.permute.xlu0 %3873
  %v3876 = vsel %vm845, %v3860, 0
  %v3879 = vsel %vm845, %v3862, 0
  %v3882 = vsel %vm845, %v3864, 0
  %v3885 = vsel %vm845, %v3866, 0
  %v3888 = vsel %vm845, %v3868, 0
  %v3891 = vsel %vm845, %v3870, 0
  %v3894 = vsel %vm845, %v3872, 0
  %v3897 = vsel %vm845, %v3874, 0
  %3899 = vmatprep.subr.bf16.mxu0 0
  %3900 = vmatpush1.bf16.xpose.msra.mxu0 %v3888
  %3901 = vmatprep.subr.bf16.mxu0 0
  %3902 = vmatpush1.bf16.xpose.msra.mxu0 %v3891
  %3903 = vmatprep.subr.bf16.mxu0 0
  %3904 = vmatpush1.bf16.xpose.msra.mxu0 %v3894
  %3905 = vmatprep.subr.bf16.mxu0 0
  %3906 = vmatpush1.bf16.xpose.msra.mxu0 %v3897
  %3907 = vmatprep.subr.bf16.mxu0 0
  %3908 = vmatpush1.bf16.xpose.msra.mxu0 0
  %3909 = vmatprep.subr.bf16.mxu0 0
  %3910 = vmatpush1.bf16.xpose.msra.mxu0 0
  %3911 = vmatprep.subr.bf16.mxu0 0
  %3912 = vmatpush1.bf16.xpose.msra.mxu0 0
  %3913 = vmatprep.subr.bf16.mxu0 0
  %3914 = vmatpush1.bf16.xpose.msra.mxu0 0
  %3915 = vmatprep.subr.bf16.mxu0 0
  %3916 = vmatpush1.bf16.xpose.msra.mxu0 0
  %3917 = vmatprep.subr.bf16.mxu0 0
  %3918 = vmatpush1.bf16.xpose.msra.mxu0 0
  %3919 = vmatprep.subr.bf16.mxu0 0
  %3920 = vmatpush1.bf16.xpose.msra.mxu0 0
  %3921 = vmatprep.subr.bf16.mxu0 0
  %3922 = vmatpush1.bf16.xpose.msra.mxu0 0
  %3923 = vmatprep.subr.bf16.mxu0 0
  %3924 = vmatpush1.bf16.xpose.msra.mxu0 0
  %3925 = vmatprep.subr.bf16.mxu0 0
  %3926 = vmatpush1.bf16.xpose.msra.mxu0 0
  %3927 = vmatprep.subr.bf16.mxu0 0
  %3928 = vmatpush1.bf16.xpose.msra.mxu0 0
  %3929 = vmatprep.subr.bf16.mxu0 0
  %3930 = vmatpush1.bf16.xpose.msra.mxu0 0
  %3931 = vmatprep.mubr.bf16.mxu0 0
  %3932 = vmatmul.mubr.bf16.gmra.mrb[0].mxu0 %v3876
  %v3933 = vpop.f32.mrb[0].mxu0
  %v3934 = vadd.f32 %v3738, %v3933
  %v3935 = vpop.f32.mrb[0].mxu0
  %v3936 = vpop.f32.mrb[0].mxu0
  %v3937 = vadd.f32 %v3739, %v3936
  %v3938 = vpop.f32.mrb[0].mxu0
  %3939 = vmatprep.mubr.bf16.mxu0 0
  %3940 = vmatmul.mubr.bf16.gmra.mrb[0].mxu0 %v3879
  %v3941 = vpop.f32.mrb[0].mxu0
  %v3942 = vadd.f32 %v3740, %v3941
  %v3943 = vpop.f32.mrb[0].mxu0
  %v3944 = vpop.f32.mrb[0].mxu0
  %v3945 = vadd.f32 %v3741, %v3944
  %v3946 = vpop.f32.mrb[0].mxu0
  %3947 = vmatprep.mubr.bf16.mxu0 0
  %3948 = vmatmul.mubr.bf16.gmra.mrb[0].mxu0 %v3882
  %v3949 = vpop.f32.mrb[0].mxu0
  %v3950 = vadd.f32 %v3742, %v3949
  %v3951 = vpop.f32.mrb[0].mxu0
  %v3952 = vpop.f32.mrb[0].mxu0
  %v3953 = vadd.f32 %v3743, %v3952
  %v3954 = vpop.f32.mrb[0].mxu0
  %3955 = vmatprep.mubr.bf16.mxu0 0
  %3956 = vmatmul.mubr.bf16.gmra.mrb[0].mxu0 %v3885
  %v3957 = vpop.f32.mrb[0].mxu0
  %v3958 = vadd.f32 %v3744, %v3957
  %v3959 = vpop.f32.mrb[0].mxu0
  %v3960 = vpop.f32.mrb[0].mxu0
  %v3961 = vadd.f32 %v3745, %v3960
  %v3962 = vpop.f32.mrb[0].mxu0
  %3963 = vdwg.mxu0
  %3968 = vrot.lane.b32.xlu0 %v3713, 120
  %v3969 = vpop.permute.xlu0 %3968
  %3970 = vrot.lane.b32.xlu0 %v3714, 120
  %v3971 = vpop.permute.xlu0 %3970
  %3972 = vrot.lane.b32.xlu0 %v3715, 120
  %v3973 = vpop.permute.xlu0 %3972
  %3974 = vrot.lane.b32.xlu0 %v3716, 120
  %v3975 = vpop.permute.xlu0 %3974
  %3976 = vrot.lane.b32.xlu0 %v3713, 88
  %v3977 = vpop.permute.xlu0 %3976
  %3978 = vrot.lane.b32.xlu0 %v3714, 88
  %v3979 = vpop.permute.xlu0 %3978
  %3980 = vrot.lane.b32.xlu0 %v3715, 88
  %v3981 = vpop.permute.xlu0 %3980
  %3982 = vrot.lane.b32.xlu0 %v3716, 88
  %v3983 = vpop.permute.xlu0 %3982
  %v3985 = vsel %vm845, %v3969, 0
  %v3988 = vsel %vm845, %v3971, 0
  %v3991 = vsel %vm845, %v3973, 0
  %v3994 = vsel %vm845, %v3975, 0
  %v3997 = vsel %vm845, %v3977, 0
  %v4000 = vsel %vm845, %v3979, 0
  %v4003 = vsel %vm845, %v3981, 0
  %v4006 = vsel %vm845, %v3983, 0
  %4008 = vmatprep.subr.bf16.mxu0 0
  %4009 = vmatpush1.bf16.xpose.msra.mxu0 %v3997
  %4010 = vmatprep.subr.bf16.mxu0 0
  %4011 = vmatpush1.bf16.xpose.msra.mxu0 %v4000
  %4012 = vmatprep.subr.bf16.mxu0 0
  %4013 = vmatpush1.bf16.xpose.msra.mxu0 %v4003
  %4014 = vmatprep.subr.bf16.mxu0 0
  %4015 = vmatpush1.bf16.xpose.msra.mxu0 %v4006
  %4016 = vmatprep.subr.bf16.mxu0 0
  %4017 = vmatpush1.bf16.xpose.msra.mxu0 0
  %4018 = vmatprep.subr.bf16.mxu0 0
  %4019 = vmatpush1.bf16.xpose.msra.mxu0 0
  %4020 = vmatprep.subr.bf16.mxu0 0
  %4021 = vmatpush1.bf16.xpose.msra.mxu0 0
  %4022 = vmatprep.subr.bf16.mxu0 0
  %4023 = vmatpush1.bf16.xpose.msra.mxu0 0
  %4024 = vmatprep.subr.bf16.mxu0 0
  %4025 = vmatpush1.bf16.xpose.msra.mxu0 0
  %4026 = vmatprep.subr.bf16.mxu0 0
  %4027 = vmatpush1.bf16.xpose.msra.mxu0 0
  %4028 = vmatprep.subr.bf16.mxu0 0
  %4029 = vmatpush1.bf16.xpose.msra.mxu0 0
  %4030 = vmatprep.subr.bf16.mxu0 0
  %4031 = vmatpush1.bf16.xpose.msra.mxu0 0
  %4032 = vmatprep.subr.bf16.mxu0 0
  %4033 = vmatpush1.bf16.xpose.msra.mxu0 0
  %4034 = vmatprep.subr.bf16.mxu0 0
  %4035 = vmatpush1.bf16.xpose.msra.mxu0 0
  %4036 = vmatprep.subr.bf16.mxu0 0
  %4037 = vmatpush1.bf16.xpose.msra.mxu0 0
  %4038 = vmatprep.subr.bf16.mxu0 0
  %4039 = vmatpush1.bf16.xpose.msra.mxu0 0
  %4040 = vmatprep.mubr.bf16.mxu0 0
  %4041 = vmatmul.mubr.bf16.gmra.mrb[0].mxu0 %v3985
  %v4042 = vpop.f32.mrb[0].mxu0
  %v4043 = vadd.f32 %v3738, %v4042
  %v4044 = vpop.f32.mrb[0].mxu0
  %v4045 = vpop.f32.mrb[0].mxu0
  %v4046 = vadd.f32 %v3739, %v4045
  %v4047 = vpop.f32.mrb[0].mxu0
  %4048 = vmatprep.mubr.bf16.mxu0 0
  %4049 = vmatmul.mubr.bf16.gmra.mrb[0].mxu0 %v3988
  %v4050 = vpop.f32.mrb[0].mxu0
  %v4051 = vadd.f32 %v3740, %v4050
  %v4052 = vpop.f32.mrb[0].mxu0
  %v4053 = vpop.f32.mrb[0].mxu0
  %v4054 = vadd.f32 %v3741, %v4053
  %v4055 = vpop.f32.mrb[0].mxu0
  %4056 = vmatprep.mubr.bf16.mxu0 0
  %4057 = vmatmul.mubr.bf16.gmra.mrb[0].mxu0 %v3991
  %v4058 = vpop.f32.mrb[0].mxu0
  %v4059 = vadd.f32 %v3742, %v4058
  %v4060 = vpop.f32.mrb[0].mxu0
  %v4061 = vpop.f32.mrb[0].mxu0
  %v4062 = vadd.f32 %v3743, %v4061
  %v4063 = vpop.f32.mrb[0].mxu0
  %4064 = vmatprep.mubr.bf16.mxu0 0
  %4065 = vmatmul.mubr.bf16.gmra.mrb[0].mxu0 %v3994
  %v4066 = vpop.f32.mrb[0].mxu0
  %v4067 = vadd.f32 %v3744, %v4066
  %v4068 = vpop.f32.mrb[0].mxu0
  %v4069 = vpop.f32.mrb[0].mxu0
  %v4070 = vadd.f32 %v3745, %v4069
  %v4071 = vpop.f32.mrb[0].mxu0
  %4072 = vdwg.mxu0
  %4077 = vrot.lane.b32.xlu0 %v3717, 120
  %v4078 = vpop.permute.xlu0 %4077
  %4079 = vrot.lane.b32.xlu0 %v3718, 120
  %v4080 = vpop.permute.xlu0 %4079
  %4081 = vrot.lane.b32.xlu0 %v3719, 120
  %v4082 = vpop.permute.xlu0 %4081
  %4083 = vrot.lane.b32.xlu0 %v3720, 120
  %v4084 = vpop.permute.xlu0 %4083
  %4085 = vrot.lane.b32.xlu0 %v3717, 88
  %v4086 = vpop.permute.xlu0 %4085
  %4087 = vrot.lane.b32.xlu0 %v3718, 88
  %v4088 = vpop.permute.xlu0 %4087
  %4089 = vrot.lane.b32.xlu0 %v3719, 88
  %v4090 = vpop.permute.xlu0 %4089
  %4091 = vrot.lane.b32.xlu0 %v3720, 88
  %v4092 = vpop.permute.xlu0 %4091
  %v4094 = vsel %vm845, %v4078, 0
  %v4097 = vsel %vm845, %v4080, 0
  %v4100 = vsel %vm845, %v4082, 0
  %v4103 = vsel %vm845, %v4084, 0
  %v4106 = vsel %vm845, %v4086, 0
  %v4109 = vsel %vm845, %v4088, 0
  %v4112 = vsel %vm845, %v4090, 0
  %v4115 = vsel %vm845, %v4092, 0
  %4117 = vmatprep.subr.bf16.mxu0 0
  %4118 = vmatpush1.bf16.xpose.msra.mxu0 %v4106
  %4119 = vmatprep.subr.bf16.mxu0 0
  %4120 = vmatpush1.bf16.xpose.msra.mxu0 %v4109
  %4121 = vmatprep.subr.bf16.mxu0 0
  %4122 = vmatpush1.bf16.xpose.msra.mxu0 %v4112
  %4123 = vmatprep.subr.bf16.mxu0 0
  %4124 = vmatpush1.bf16.xpose.msra.mxu0 %v4115
  %4125 = vmatprep.subr.bf16.mxu0 0
  %4126 = vmatpush1.bf16.xpose.msra.mxu0 0
  %4127 = vmatprep.subr.bf16.mxu0 0
  %4128 = vmatpush1.bf16.xpose.msra.mxu0 0
  %4129 = vmatprep.subr.bf16.mxu0 0
  %4130 = vmatpush1.bf16.xpose.msra.mxu0 0
  %4131 = vmatprep.subr.bf16.mxu0 0
  %4132 = vmatpush1.bf16.xpose.msra.mxu0 0
  %4133 = vmatprep.subr.bf16.mxu0 0
  %4134 = vmatpush1.bf16.xpose.msra.mxu0 0
  %4135 = vmatprep.subr.bf16.mxu0 0
  %4136 = vmatpush1.bf16.xpose.msra.mxu0 0
  %4137 = vmatprep.subr.bf16.mxu0 0
  %4138 = vmatpush1.bf16.xpose.msra.mxu0 0
  %4139 = vmatprep.subr.bf16.mxu0 0
  %4140 = vmatpush1.bf16.xpose.msra.mxu0 0
  %4141 = vmatprep.subr.bf16.mxu0 0
  %4142 = vmatpush1.bf16.xpose.msra.mxu0 0
  %4143 = vmatprep.subr.bf16.mxu0 0
  %4144 = vmatpush1.bf16.xpose.msra.mxu0 0
  %4145 = vmatprep.subr.bf16.mxu0 0
  %4146 = vmatpush1.bf16.xpose.msra.mxu0 0
  %4147 = vmatprep.subr.bf16.mxu0 0
  %4148 = vmatpush1.bf16.xpose.msra.mxu0 0
  %4149 = vmatprep.mubr.bf16.mxu0 0
  %4150 = vmatmul.mubr.bf16.gmra.mrb[0].mxu0 %v4094
  %v4151 = vpop.f32.mrb[0].mxu0
  %v4152 = vadd.f32 %v3738, %v4151
  %v4153 = vpop.f32.mrb[0].mxu0
  %v4154 = vpop.f32.mrb[0].mxu0
  %v4155 = vadd.f32 %v3739, %v4154
  %v4156 = vpop.f32.mrb[0].mxu0
  %4157 = vmatprep.mubr.bf16.mxu0 0
  %4158 = vmatmul.mubr.bf16.gmra.mrb[0].mxu0 %v4097
  %v4159 = vpop.f32.mrb[0].mxu0
  %v4160 = vadd.f32 %v3740, %v4159
  %v4161 = vpop.f32.mrb[0].mxu0
  %v4162 = vpop.f32.mrb[0].mxu0
  %v4163 = vadd.f32 %v3741, %v4162
  %v4164 = vpop.f32.mrb[0].mxu0
  %4165 = vmatprep.mubr.bf16.mxu0 0
  %4166 = vmatmul.mubr.bf16.gmra.mrb[0].mxu0 %v4100
  %v4167 = vpop.f32.mrb[0].mxu0
  %v4168 = vadd.f32 %v3742, %v4167
  %v4169 = vpop.f32.mrb[0].mxu0
  %v4170 = vpop.f32.mrb[0].mxu0
  %v4171 = vadd.f32 %v3743, %v4170
  %v4172 = vpop.f32.mrb[0].mxu0
  %4173 = vmatprep.mubr.bf16.mxu0 0
  %4174 = vmatmul.mubr.bf16.gmra.mrb[0].mxu0 %v4103
  %v4175 = vpop.f32.mrb[0].mxu0
  %v4176 = vadd.f32 %v3744, %v4175
  %v4177 = vpop.f32.mrb[0].mxu0
  %v4178 = vpop.f32.mrb[0].mxu0
  %v4179 = vadd.f32 %v3745, %v4178
  %v4180 = vpop.f32.mrb[0].mxu0
  %4181 = vdwg.mxu0
  %4186 = vrot.lane.b32.xlu0 %v3721, 120
  %v4187 = vpop.permute.xlu0 %4186
  %4188 = vrot.lane.b32.xlu0 %v3722, 120
  %v4189 = vpop.permute.xlu0 %4188
  %4190 = vrot.lane.b32.xlu0 %v3723, 120
  %v4191 = vpop.permute.xlu0 %4190
  %4192 = vrot.lane.b32.xlu0 %v3724, 120
  %v4193 = vpop.permute.xlu0 %4192
  %4194 = vrot.lane.b32.xlu0 %v3721, 88
  %v4195 = vpop.permute.xlu0 %4194
  %4196 = vrot.lane.b32.xlu0 %v3722, 88
  %v4197 = vpop.permute.xlu0 %4196
  %4198 = vrot.lane.b32.xlu0 %v3723, 88
  %v4199 = vpop.permute.xlu0 %4198
  %4200 = vrot.lane.b32.xlu0 %v3724, 88
  %v4201 = vpop.permute.xlu0 %4200
  %v4203 = vsel %vm845, %v4187, 0
  %v4206 = vsel %vm845, %v4189, 0
  %v4209 = vsel %vm845, %v4191, 0
  %v4212 = vsel %vm845, %v4193, 0
  %v4215 = vsel %vm845, %v4195, 0
  %v4218 = vsel %vm845, %v4197, 0
  %v4221 = vsel %vm845, %v4199, 0
  %v4224 = vsel %vm845, %v4201, 0
  %4226 = vmatprep.subr.bf16.mxu0 0
  %4227 = vmatpush1.bf16.xpose.msra.mxu0 %v4215
  %4228 = vmatprep.subr.bf16.mxu0 0
  %4229 = vmatpush1.bf16.xpose.msra.mxu0 %v4218
  %4230 = vmatprep.subr.bf16.mxu0 0
  %4231 = vmatpush1.bf16.xpose.msra.mxu0 %v4221
  %4232 = vmatprep.subr.bf16.mxu0 0
  %4233 = vmatpush1.bf16.xpose.msra.mxu0 %v4224
  %4234 = vmatprep.subr.bf16.mxu0 0
  %4235 = vmatpush1.bf16.xpose.msra.mxu0 0
  %4236 = vmatprep.subr.bf16.mxu0 0
  %4237 = vmatpush1.bf16.xpose.msra.mxu0 0
  %4238 = vmatprep.subr.bf16.mxu0 0
  %4239 = vmatpush1.bf16.xpose.msra.mxu0 0
  %4240 = vmatprep.subr.bf16.mxu0 0
  %4241 = vmatpush1.bf16.xpose.msra.mxu0 0
  %4242 = vmatprep.subr.bf16.mxu0 0
  %4243 = vmatpush1.bf16.xpose.msra.mxu0 0
  %4244 = vmatprep.subr.bf16.mxu0 0
  %4245 = vmatpush1.bf16.xpose.msra.mxu0 0
  %4246 = vmatprep.subr.bf16.mxu0 0
  %4247 = vmatpush1.bf16.xpose.msra.mxu0 0
  %4248 = vmatprep.subr.bf16.mxu0 0
  %4249 = vmatpush1.bf16.xpose.msra.mxu0 0
  %4250 = vmatprep.subr.bf16.mxu0 0
  %4251 = vmatpush1.bf16.xpose.msra.mxu0 0
  %4252 = vmatprep.subr.bf16.mxu0 0
  %4253 = vmatpush1.bf16.xpose.msra.mxu0 0
  %4254 = vmatprep.subr.bf16.mxu0 0
  %4255 = vmatpush1.bf16.xpose.msra.mxu0 0
  %4256 = vmatprep.subr.bf16.mxu0 0
  %4257 = vmatpush1.bf16.xpose.msra.mxu0 0
  %4258 = vmatprep.mubr.bf16.mxu0 0
  %4259 = vmatmul.mubr.bf16.gmra.mrb[0].mxu0 %v4203
  %v4260 = vpop.f32.mrb[0].mxu0
  %v4261 = vadd.f32 %v3738, %v4260
  %v4262 = vpop.f32.mrb[0].mxu0
  %v4263 = vpop.f32.mrb[0].mxu0
  %v4264 = vadd.f32 %v3739, %v4263
  %v4265 = vpop.f32.mrb[0].mxu0
  %4266 = vmatprep.mubr.bf16.mxu0 0
  %4267 = vmatmul.mubr.bf16.gmra.mrb[0].mxu0 %v4206
  %v4268 = vpop.f32.mrb[0].mxu0
  %v4269 = vadd.f32 %v3740, %v4268
  %v4270 = vpop.f32.mrb[0].mxu0
  %v4271 = vpop.f32.mrb[0].mxu0
  %v4272 = vadd.f32 %v3741, %v4271
  %v4273 = vpop.f32.mrb[0].mxu0
  %4274 = vmatprep.mubr.bf16.mxu0 0
  %4275 = vmatmul.mubr.bf16.gmra.mrb[0].mxu0 %v4209
  %v4276 = vpop.f32.mrb[0].mxu0
  %v4277 = vadd.f32 %v3742, %v4276
  %v4278 = vpop.f32.mrb[0].mxu0
  %v4279 = vpop.f32.mrb[0].mxu0
  %v4280 = vadd.f32 %v3743, %v4279
  %v4281 = vpop.f32.mrb[0].mxu0
  %4282 = vmatprep.mubr.bf16.mxu0 0
  %4283 = vmatmul.mubr.bf16.gmra.mrb[0].mxu0 %v4212
  %v4284 = vpop.f32.mrb[0].mxu0
  %v4285 = vadd.f32 %v3744, %v4284
  %v4286 = vpop.f32.mrb[0].mxu0
  %v4287 = vpop.f32.mrb[0].mxu0
  %v4288 = vadd.f32 %v3745, %v4287
  %v4289 = vpop.f32.mrb[0].mxu0
  %4290 = vdwg.mxu0
  %4295 = vrot.lane.b32.xlu0 %v3725, 120
  %v4296 = vpop.permute.xlu0 %4295
  %4297 = vrot.lane.b32.xlu0 %v3726, 120
  %v4298 = vpop.permute.xlu0 %4297
  %4299 = vrot.lane.b32.xlu0 %v3727, 120
  %v4300 = vpop.permute.xlu0 %4299
  %4301 = vrot.lane.b32.xlu0 %v3728, 120
  %v4302 = vpop.permute.xlu0 %4301
  %4303 = vrot.lane.b32.xlu0 %v3725, 88
  %v4304 = vpop.permute.xlu0 %4303
  %4305 = vrot.lane.b32.xlu0 %v3726, 88
  %v4306 = vpop.permute.xlu0 %4305
  %4307 = vrot.lane.b32.xlu0 %v3727, 88
  %v4308 = vpop.permute.xlu0 %4307
  %4309 = vrot.lane.b32.xlu0 %v3728, 88
  %v4310 = vpop.permute.xlu0 %4309
  %v4312 = vsel %vm845, %v4296, 0
  %v4315 = vsel %vm845, %v4298, 0
  %v4318 = vsel %vm845, %v4300, 0
  %v4321 = vsel %vm845, %v4302, 0
  %v4324 = vsel %vm845, %v4304, 0
  %v4327 = vsel %vm845, %v4306, 0
  %v4330 = vsel %vm845, %v4308, 0
  %v4333 = vsel %vm845, %v4310, 0
  %4335 = vmatprep.subr.bf16.mxu0 0
  %4336 = vmatpush1.bf16.xpose.msra.mxu0 %v4324
  %4337 = vmatprep.subr.bf16.mxu0 0
  %4338 = vmatpush1.bf16.xpose.msra.mxu0 %v4327
  %4339 = vmatprep.subr.bf16.mxu0 0
  %4340 = vmatpush1.bf16.xpose.msra.mxu0 %v4330
  %4341 = vmatprep.subr.bf16.mxu0 0
  %4342 = vmatpush1.bf16.xpose.msra.mxu0 %v4333
  %4343 = vmatprep.subr.bf16.mxu0 0
  %4344 = vmatpush1.bf16.xpose.msra.mxu0 0
  %4345 = vmatprep.subr.bf16.mxu0 0
  %4346 = vmatpush1.bf16.xpose.msra.mxu0 0
  %4347 = vmatprep.subr.bf16.mxu0 0
  %4348 = vmatpush1.bf16.xpose.msra.mxu0 0
  %4349 = vmatprep.subr.bf16.mxu0 0
  %4350 = vmatpush1.bf16.xpose.msra.mxu0 0
  %4351 = vmatprep.subr.bf16.mxu0 0
  %4352 = vmatpush1.bf16.xpose.msra.mxu0 0
  %4353 = vmatprep.subr.bf16.mxu0 0
  %4354 = vmatpush1.bf16.xpose.msra.mxu0 0
  %4355 = vmatprep.subr.bf16.mxu0 0
  %4356 = vmatpush1.bf16.xpose.msra.mxu0 0
  %4357 = vmatprep.subr.bf16.mxu0 0
  %4358 = vmatpush1.bf16.xpose.msra.mxu0 0
  %4359 = vmatprep.subr.bf16.mxu0 0
  %4360 = vmatpush1.bf16.xpose.msra.mxu0 0
  %4361 = vmatprep.subr.bf16.mxu0 0
  %4362 = vmatpush1.bf16.xpose.msra.mxu0 0
  %4363 = vmatprep.subr.bf16.mxu0 0
  %4364 = vmatpush1.bf16.xpose.msra.mxu0 0
  %4365 = vmatprep.subr.bf16.mxu0 0
  %4366 = vmatpush1.bf16.xpose.msra.mxu0 0
  %4367 = vmatprep.mubr.bf16.mxu0 0
  %4368 = vmatmul.mubr.bf16.gmra.mrb[0].mxu0 %v4312
  %v4369 = vpop.f32.mrb[0].mxu0
  %v4370 = vadd.f32 %v3738, %v4369
  %v4371 = vpop.f32.mrb[0].mxu0
  %v4372 = vpop.f32.mrb[0].mxu0
  %v4373 = vadd.f32 %v3739, %v4372
  %v4374 = vpop.f32.mrb[0].mxu0
  %4375 = vmatprep.mubr.bf16.mxu0 0
  %4376 = vmatmul.mubr.bf16.gmra.mrb[0].mxu0 %v4315
  %v4377 = vpop.f32.mrb[0].mxu0
  %v4378 = vadd.f32 %v3740, %v4377
  %v4379 = vpop.f32.mrb[0].mxu0
  %v4380 = vpop.f32.mrb[0].mxu0
  %v4381 = vadd.f32 %v3741, %v4380
  %v4382 = vpop.f32.mrb[0].mxu0
  %4383 = vmatprep.mubr.bf16.mxu0 0
  %4384 = vmatmul.mubr.bf16.gmra.mrb[0].mxu0 %v4318
  %v4385 = vpop.f32.mrb[0].mxu0
  %v4386 = vadd.f32 %v3742, %v4385
  %v4387 = vpop.f32.mrb[0].mxu0
  %v4388 = vpop.f32.mrb[0].mxu0
  %v4389 = vadd.f32 %v3743, %v4388
  %v4390 = vpop.f32.mrb[0].mxu0
  %4391 = vmatprep.mubr.bf16.mxu0 0
  %4392 = vmatmul.mubr.bf16.gmra.mrb[0].mxu0 %v4321
  %v4393 = vpop.f32.mrb[0].mxu0
  %v4394 = vadd.f32 %v3744, %v4393
  %v4395 = vpop.f32.mrb[0].mxu0
  %v4396 = vpop.f32.mrb[0].mxu0
  %v4397 = vadd.f32 %v3745, %v4396
  %v4398 = vpop.f32.mrb[0].mxu0
  %4399 = vdwg.mxu0
  %4404 = vrot.lane.b32.xlu0 %v3729, 120
  %v4405 = vpop.permute.xlu0 %4404
  %4406 = vrot.lane.b32.xlu0 %v3730, 120
  %v4407 = vpop.permute.xlu0 %4406
  %4408 = vrot.lane.b32.xlu0 %v3731, 120
  %v4409 = vpop.permute.xlu0 %4408
  %4410 = vrot.lane.b32.xlu0 %v3732, 120
  %v4411 = vpop.permute.xlu0 %4410
  %4412 = vrot.lane.b32.xlu0 %v3729, 88
  %v4413 = vpop.permute.xlu0 %4412
  %4414 = vrot.lane.b32.xlu0 %v3730, 88
  %v4415 = vpop.permute.xlu0 %4414
  %4416 = vrot.lane.b32.xlu0 %v3731, 88
  %v4417 = vpop.permute.xlu0 %4416
  %4418 = vrot.lane.b32.xlu0 %v3732, 88
  %v4419 = vpop.permute.xlu0 %4418
  %v4421 = vsel %vm845, %v4405, 0
  %v4424 = vsel %vm845, %v4407, 0
  %v4427 = vsel %vm845, %v4409, 0
  %v4430 = vsel %vm845, %v4411, 0
  %v4433 = vsel %vm845, %v4413, 0
  %v4436 = vsel %vm845, %v4415, 0
  %v4439 = vsel %vm845, %v4417, 0
  %v4442 = vsel %vm845, %v4419, 0
  %4444 = vmatprep.subr.bf16.mxu0 0
  %4445 = vmatpush1.bf16.xpose.msra.mxu0 %v4433
  %4446 = vmatprep.subr.bf16.mxu0 0
  %4447 = vmatpush1.bf16.xpose.msra.mxu0 %v4436
  %4448 = vmatprep.subr.bf16.mxu0 0
  %4449 = vmatpush1.bf16.xpose.msra.mxu0 %v4439
  %4450 = vmatprep.subr.bf16.mxu0 0
  %4451 = vmatpush1.bf16.xpose.msra.mxu0 %v4442
  %4452 = vmatprep.subr.bf16.mxu0 0
  %4453 = vmatpush1.bf16.xpose.msra.mxu0 0
  %4454 = vmatprep.subr.bf16.mxu0 0
  %4455 = vmatpush1.bf16.xpose.msra.mxu0 0
  %4456 = vmatprep.subr.bf16.mxu0 0
  %4457 = vmatpush1.bf16.xpose.msra.mxu0 0
  %4458 = vmatprep.subr.bf16.mxu0 0
  %4459 = vmatpush1.bf16.xpose.msra.mxu0 0
  %4460 = vmatprep.subr.bf16.mxu0 0
  %4461 = vmatpush1.bf16.xpose.msra.mxu0 0
  %4462 = vmatprep.subr.bf16.mxu0 0
  %4463 = vmatpush1.bf16.xpose.msra.mxu0 0
  %4464 = vmatprep.subr.bf16.mxu0 0
  %4465 = vmatpush1.bf16.xpose.msra.mxu0 0
  %4466 = vmatprep.subr.bf16.mxu0 0
  %4467 = vmatpush1.bf16.xpose.msra.mxu0 0
  %4468 = vmatprep.subr.bf16.mxu0 0
  %4469 = vmatpush1.bf16.xpose.msra.mxu0 0
  %4470 = vmatprep.subr.bf16.mxu0 0
  %4471 = vmatpush1.bf16.xpose.msra.mxu0 0
  %4472 = vmatprep.subr.bf16.mxu0 0
  %4473 = vmatpush1.bf16.xpose.msra.mxu0 0
  %4474 = vmatprep.subr.bf16.mxu0 0
  %4475 = vmatpush1.bf16.xpose.msra.mxu0 0
  %4476 = vmatprep.mubr.bf16.mxu0 0
  %4477 = vmatmul.mubr.bf16.gmra.mrb[0].mxu0 %v4421
  %v4478 = vpop.f32.mrb[0].mxu0
  %v4479 = vadd.f32 %v3738, %v4478
  %v4480 = vpop.f32.mrb[0].mxu0
  %v4481 = vpop.f32.mrb[0].mxu0
  %v4482 = vadd.f32 %v3739, %v4481
  %v4483 = vpop.f32.mrb[0].mxu0
  %4484 = vmatprep.mubr.bf16.mxu0 0
  %4485 = vmatmul.mubr.bf16.gmra.mrb[0].mxu0 %v4424
  %v4486 = vpop.f32.mrb[0].mxu0
  %v4487 = vadd.f32 %v3740, %v4486
  %v4488 = vpop.f32.mrb[0].mxu0
  %v4489 = vpop.f32.mrb[0].mxu0
  %v4490 = vadd.f32 %v3741, %v4489
  %v4491 = vpop.f32.mrb[0].mxu0
  %4492 = vmatprep.mubr.bf16.mxu0 0
  %4493 = vmatmul.mubr.bf16.gmra.mrb[0].mxu0 %v4427
  %v4494 = vpop.f32.mrb[0].mxu0
  %v4495 = vadd.f32 %v3742, %v4494
  %v4496 = vpop.f32.mrb[0].mxu0
  %v4497 = vpop.f32.mrb[0].mxu0
  %v4498 = vadd.f32 %v3743, %v4497
  %v4499 = vpop.f32.mrb[0].mxu0
  %4500 = vmatprep.mubr.bf16.mxu0 0
  %4501 = vmatmul.mubr.bf16.gmra.mrb[0].mxu0 %v4430
  %v4502 = vpop.f32.mrb[0].mxu0
  %v4503 = vadd.f32 %v3744, %v4502
  %v4504 = vpop.f32.mrb[0].mxu0
  %v4505 = vpop.f32.mrb[0].mxu0
  %v4506 = vadd.f32 %v3745, %v4505
  %v4507 = vpop.f32.mrb[0].mxu0
  %4508 = vdwg.mxu0
  %4513 = vrot.lane.b32.xlu0 %v3733, 120
  %v4514 = vpop.permute.xlu0 %4513
  %4515 = vrot.lane.b32.xlu0 %v3734, 120
  %v4516 = vpop.permute.xlu0 %4515
  %4517 = vrot.lane.b32.xlu0 %v3735, 120
  %v4518 = vpop.permute.xlu0 %4517
  %4519 = vrot.lane.b32.xlu0 %v3736, 120
  %v4520 = vpop.permute.xlu0 %4519
  %4521 = vrot.lane.b32.xlu0 %v3733, 88
  %v4522 = vpop.permute.xlu0 %4521
  %4523 = vrot.lane.b32.xlu0 %v3734, 88
  %v4524 = vpop.permute.xlu0 %4523
  %4525 = vrot.lane.b32.xlu0 %v3735, 88
  %v4526 = vpop.permute.xlu0 %4525
  %4527 = vrot.lane.b32.xlu0 %v3736, 88
  %v4528 = vpop.permute.xlu0 %4527
  %v4530 = vsel %vm845, %v4514, 0
  %v4533 = vsel %vm845, %v4516, 0
  %v4536 = vsel %vm845, %v4518, 0
  %v4539 = vsel %vm845, %v4520, 0
  %v4542 = vsel %vm845, %v4522, 0
  %v4545 = vsel %vm845, %v4524, 0
  %v4548 = vsel %vm845, %v4526, 0
  %v4551 = vsel %vm845, %v4528, 0
  %4553 = vmatprep.subr.bf16.mxu0 0
  %4554 = vmatpush1.bf16.xpose.msra.mxu0 %v4542
  %4555 = vmatprep.subr.bf16.mxu0 0
  %4556 = vmatpush1.bf16.xpose.msra.mxu0 %v4545
  %4557 = vmatprep.subr.bf16.mxu0 0
  %4558 = vmatpush1.bf16.xpose.msra.mxu0 %v4548
  %4559 = vmatprep.subr.bf16.mxu0 0
  %4560 = vmatpush1.bf16.xpose.msra.mxu0 %v4551
  %4561 = vmatprep.subr.bf16.mxu0 0
  %4562 = vmatpush1.bf16.xpose.msra.mxu0 0
  %4563 = vmatprep.subr.bf16.mxu0 0
  %4564 = vmatpush1.bf16.xpose.msra.mxu0 0
  %4565 = vmatprep.subr.bf16.mxu0 0
  %4566 = vmatpush1.bf16.xpose.msra.mxu0 0
  %4567 = vmatprep.subr.bf16.mxu0 0
  %4568 = vmatpush1.bf16.xpose.msra.mxu0 0
  %4569 = vmatprep.subr.bf16.mxu0 0
  %4570 = vmatpush1.bf16.xpose.msra.mxu0 0
  %4571 = vmatprep.subr.bf16.mxu0 0
  %4572 = vmatpush1.bf16.xpose.msra.mxu0 0
  %4573 = vmatprep.subr.bf16.mxu0 0
  %4574 = vmatpush1.bf16.xpose.msra.mxu0 0
  %4575 = vmatprep.subr.bf16.mxu0 0
  %4576 = vmatpush1.bf16.xpose.msra.mxu0 0
  %4577 = vmatprep.subr.bf16.mxu0 0
  %4578 = vmatpush1.bf16.xpose.msra.mxu0 0
  %4579 = vmatprep.subr.bf16.mxu0 0
  %4580 = vmatpush1.bf16.xpose.msra.mxu0 0
  %4581 = vmatprep.subr.bf16.mxu0 0
  %4582 = vmatpush1.bf16.xpose.msra.mxu0 0
  %4583 = vmatprep.subr.bf16.mxu0 0
  %4584 = vmatpush1.bf16.xpose.msra.mxu0 0
  %4585 = vmatprep.mubr.bf16.mxu0 0
  %4586 = vmatmul.mubr.bf16.gmra.mrb[0].mxu0 %v4530
  %v4587 = vpop.f32.mrb[0].mxu0
  %v4588 = vadd.f32 %v3738, %v4587
  %v4589 = vpop.f32.mrb[0].mxu0
  %v4590 = vpop.f32.mrb[0].mxu0
  %v4591 = vadd.f32 %v3739, %v4590
  %v4592 = vpop.f32.mrb[0].mxu0
  %4593 = vmatprep.mubr.bf16.mxu0 0
  %4594 = vmatmul.mubr.bf16.gmra.mrb[0].mxu0 %v4533
  %v4595 = vpop.f32.mrb[0].mxu0
  %v4596 = vadd.f32 %v3740, %v4595
  %v4597 = vpop.f32.mrb[0].mxu0
  %v4598 = vpop.f32.mrb[0].mxu0
  %v4599 = vadd.f32 %v3741, %v4598
  %v4600 = vpop.f32.mrb[0].mxu0
  %4601 = vmatprep.mubr.bf16.mxu0 0
  %4602 = vmatmul.mubr.bf16.gmra.mrb[0].mxu0 %v4536
  %v4603 = vpop.f32.mrb[0].mxu0
  %v4604 = vadd.f32 %v3742, %v4603
  %v4605 = vpop.f32.mrb[0].mxu0
  %v4606 = vpop.f32.mrb[0].mxu0
  %v4607 = vadd.f32 %v3743, %v4606
  %v4608 = vpop.f32.mrb[0].mxu0
  %4609 = vmatprep.mubr.bf16.mxu0 0
  %4610 = vmatmul.mubr.bf16.gmra.mrb[0].mxu0 %v4539
  %v4611 = vpop.f32.mrb[0].mxu0
  %v4612 = vadd.f32 %v3744, %v4611
  %v4613 = vpop.f32.mrb[0].mxu0
  %v4614 = vpop.f32.mrb[0].mxu0
  %v4615 = vadd.f32 %v3745, %v4614
  %v4616 = vpop.f32.mrb[0].mxu0
  %4617 = vdwg.mxu0
  %v4618 = vsel %vm1642, %v3825, -inf
  %4619 = vmax.xlane.f32.xlu0 %v4618
  %v4620 = vpop.xlane.xlu0 %4619
  %v4621 = vsel %vm1642, %v3828, -inf
  %4622 = vmax.xlane.f32.xlu0 %v4621
  %v4623 = vpop.xlane.xlu0 %4622
  %v4624 = vsel %vm1642, %v3833, -inf
  %4625 = vmax.xlane.f32.xlu0 %v4624
  %v4626 = vpop.xlane.xlu0 %4625
  %v4627 = vsel %vm1642, %v3836, -inf
  %4628 = vmax.xlane.f32.xlu0 %v4627
  %v4629 = vpop.xlane.xlu0 %4628
  %v4630 = vsel %vm1642, %v3841, -inf
  %4631 = vmax.xlane.f32.xlu0 %v4630
  %v4632 = vpop.xlane.xlu0 %4631
  %v4633 = vsel %vm1642, %v3844, -inf
  %4634 = vmax.xlane.f32.xlu0 %v4633
  %v4635 = vpop.xlane.xlu0 %4634
  %v4636 = vsel %vm1642, %v3849, -inf
  %4637 = vmax.xlane.f32.xlu0 %v4636
  %v4638 = vpop.xlane.xlu0 %4637
  %v4639 = vsel %vm1642, %v3852, -inf
  %4640 = vmax.xlane.f32.xlu0 %v4639
  %v4641 = vpop.xlane.xlu0 %4640
  %v4642 = vsel %vm1642, %v3934, -inf
  %4643 = vmax.xlane.f32.xlu0 %v4642
  %v4644 = vpop.xlane.xlu0 %4643
  %v4645 = vsel %vm1642, %v3937, -inf
  %4646 = vmax.xlane.f32.xlu0 %v4645
  %v4647 = vpop.xlane.xlu0 %4646
  %v4648 = vsel %vm1642, %v3942, -inf
  %4649 = vmax.xlane.f32.xlu0 %v4648
  %v4650 = vpop.xlane.xlu0 %4649
  %v4651 = vsel %vm1642, %v3945, -inf
  %4652 = vmax.xlane.f32.xlu0 %v4651
  %v4653 = vpop.xlane.xlu0 %4652
  %v4654 = vsel %vm1642, %v3950, -inf
  %4655 = vmax.xlane.f32.xlu0 %v4654
  %v4656 = vpop.xlane.xlu0 %4655
  %v4657 = vsel %vm1642, %v3953, -inf
  %4658 = vmax.xlane.f32.xlu0 %v4657
  %v4659 = vpop.xlane.xlu0 %4658
  %v4660 = vsel %vm1642, %v3958, -inf
  %4661 = vmax.xlane.f32.xlu0 %v4660
  %v4662 = vpop.xlane.xlu0 %4661
  %v4663 = vsel %vm1642, %v3961, -inf
  %4664 = vmax.xlane.f32.xlu0 %v4663
  %v4665 = vpop.xlane.xlu0 %4664
  %v4666 = vsel %vm1642, %v4043, -inf
  %4667 = vmax.xlane.f32.xlu0 %v4666
  %v4668 = vpop.xlane.xlu0 %4667
  %v4669 = vsel %vm1642, %v4046, -inf
  %4670 = vmax.xlane.f32.xlu0 %v4669
  %v4671 = vpop.xlane.xlu0 %4670
  %v4672 = vsel %vm1642, %v4051, -inf
  %4673 = vmax.xlane.f32.xlu0 %v4672
  %v4674 = vpop.xlane.xlu0 %4673
  %v4675 = vsel %vm1642, %v4054, -inf
  %4676 = vmax.xlane.f32.xlu0 %v4675
  %v4677 = vpop.xlane.xlu0 %4676
  %v4678 = vsel %vm1642, %v4059, -inf
  %4679 = vmax.xlane.f32.xlu0 %v4678
  %v4680 = vpop.xlane.xlu0 %4679
  %v4681 = vsel %vm1642, %v4062, -inf
  %4682 = vmax.xlane.f32.xlu0 %v4681
  %v4683 = vpop.xlane.xlu0 %4682
  %v4684 = vsel %vm1642, %v4067, -inf
  %4685 = vmax.xlane.f32.xlu0 %v4684
  %v4686 = vpop.xlane.xlu0 %4685
  %v4687 = vsel %vm1642, %v4070, -inf
  %4688 = vmax.xlane.f32.xlu0 %v4687
  %v4689 = vpop.xlane.xlu0 %4688
  %v4690 = vsel %vm1642, %v4152, -inf
  %4691 = vmax.xlane.f32.xlu0 %v4690
  %v4692 = vpop.xlane.xlu0 %4691
  %v4693 = vsel %vm1642, %v4155, -inf
  %4694 = vmax.xlane.f32.xlu0 %v4693
  %v4695 = vpop.xlane.xlu0 %4694
  %v4696 = vsel %vm1642, %v4160, -inf
  %4697 = vmax.xlane.f32.xlu0 %v4696
  %v4698 = vpop.xlane.xlu0 %4697
  %v4699 = vsel %vm1642, %v4163, -inf
  %4700 = vmax.xlane.f32.xlu0 %v4699
  %v4701 = vpop.xlane.xlu0 %4700
  %v4702 = vsel %vm1642, %v4168, -inf
  %4703 = vmax.xlane.f32.xlu0 %v4702
  %v4704 = vpop.xlane.xlu0 %4703
  %v4705 = vsel %vm1642, %v4171, -inf
  %4706 = vmax.xlane.f32.xlu0 %v4705
  %v4707 = vpop.xlane.xlu0 %4706
  %v4708 = vsel %vm1642, %v4176, -inf
  %4709 = vmax.xlane.f32.xlu0 %v4708
  %v4710 = vpop.xlane.xlu0 %4709
  %v4711 = vsel %vm1642, %v4179, -inf
  %4712 = vmax.xlane.f32.xlu0 %v4711
  %v4713 = vpop.xlane.xlu0 %4712
  %v4714 = vsel %vm1642, %v4261, -inf
  %4715 = vmax.xlane.f32.xlu0 %v4714
  %v4716 = vpop.xlane.xlu0 %4715
  %v4717 = vsel %vm1642, %v4264, -inf
  %4718 = vmax.xlane.f32.xlu0 %v4717
  %v4719 = vpop.xlane.xlu0 %4718
  %v4720 = vsel %vm1642, %v4269, -inf
  %4721 = vmax.xlane.f32.xlu0 %v4720
  %v4722 = vpop.xlane.xlu0 %4721
  %v4723 = vsel %vm1642, %v4272, -inf
  %4724 = vmax.xlane.f32.xlu0 %v4723
  %v4725 = vpop.xlane.xlu0 %4724
  %v4726 = vsel %vm1642, %v4277, -inf
  %4727 = vmax.xlane.f32.xlu0 %v4726
  %v4728 = vpop.xlane.xlu0 %4727
  %v4729 = vsel %vm1642, %v4280, -inf
  %4730 = vmax.xlane.f32.xlu0 %v4729
  %v4731 = vpop.xlane.xlu0 %4730
  %v4732 = vsel %vm1642, %v4285, -inf
  %4733 = vmax.xlane.f32.xlu0 %v4732
  %v4734 = vpop.xlane.xlu0 %4733
  %v4735 = vsel %vm1642, %v4288, -inf
  %4736 = vmax.xlane.f32.xlu0 %v4735
  %v4737 = vpop.xlane.xlu0 %4736
  %v4738 = vsel %vm1642, %v4370, -inf
  %4739 = vmax.xlane.f32.xlu0 %v4738
  %v4740 = vpop.xlane.xlu0 %4739
  %v4741 = vsel %vm1642, %v4373, -inf
  %4742 = vmax.xlane.f32.xlu0 %v4741
  %v4743 = vpop.xlane.xlu0 %4742
  %v4744 = vsel %vm1642, %v4378, -inf
  %4745 = vmax.xlane.f32.xlu0 %v4744
  %v4746 = vpop.xlane.xlu0 %4745
  %v4747 = vsel %vm1642, %v4381, -inf
  %4748 = vmax.xlane.f32.xlu0 %v4747
  %v4749 = vpop.xlane.xlu0 %4748
  %v4750 = vsel %vm1642, %v4386, -inf
  %4751 = vmax.xlane.f32.xlu0 %v4750
  %v4752 = vpop.xlane.xlu0 %4751
  %v4753 = vsel %vm1642, %v4389, -inf
  %4754 = vmax.xlane.f32.xlu0 %v4753
  %v4755 = vpop.xlane.xlu0 %4754
  %v4756 = vsel %vm1642, %v4394, -inf
  %4757 = vmax.xlane.f32.xlu0 %v4756
  %v4758 = vpop.xlane.xlu0 %4757
  %v4759 = vsel %vm1642, %v4397, -inf
  %4760 = vmax.xlane.f32.xlu0 %v4759
  %v4761 = vpop.xlane.xlu0 %4760
  %v4762 = vsel %vm1642, %v4479, -inf
  %4763 = vmax.xlane.f32.xlu0 %v4762
  %v4764 = vpop.xlane.xlu0 %4763
  %v4765 = vsel %vm1642, %v4482, -inf
  %4766 = vmax.xlane.f32.xlu0 %v4765
  %v4767 = vpop.xlane.xlu0 %4766
  %v4768 = vsel %vm1642, %v4487, -inf
  %4769 = vmax.xlane.f32.xlu0 %v4768
  %v4770 = vpop.xlane.xlu0 %4769
  %v4771 = vsel %vm1642, %v4490, -inf
  %4772 = vmax.xlane.f32.xlu0 %v4771
  %v4773 = vpop.xlane.xlu0 %4772
  %v4774 = vsel %vm1642, %v4495, -inf
  %4775 = vmax.xlane.f32.xlu0 %v4774
  %v4776 = vpop.xlane.xlu0 %4775
  %v4777 = vsel %vm1642, %v4498, -inf
  %4778 = vmax.xlane.f32.xlu0 %v4777
  %v4779 = vpop.xlane.xlu0 %4778
  %v4780 = vsel %vm1642, %v4503, -inf
  %4781 = vmax.xlane.f32.xlu0 %v4780
  %v4782 = vpop.xlane.xlu0 %4781
  %v4783 = vsel %vm1642, %v4506, -inf
  %4784 = vmax.xlane.f32.xlu0 %v4783
  %v4785 = vpop.xlane.xlu0 %4784
  %v4786 = vsel %vm1642, %v4588, -inf
  %4787 = vmax.xlane.f32.xlu0 %v4786
  %v4788 = vpop.xlane.xlu0 %4787
  %v4789 = vsel %vm1642, %v4591, -inf
  %4790 = vmax.xlane.f32.xlu0 %v4789
  %v4791 = vpop.xlane.xlu0 %4790
  %v4792 = vsel %vm1642, %v4596, -inf
  %4793 = vmax.xlane.f32.xlu0 %v4792
  %v4794 = vpop.xlane.xlu0 %4793
  %v4795 = vsel %vm1642, %v4599, -inf
  %4796 = vmax.xlane.f32.xlu0 %v4795
  %v4797 = vpop.xlane.xlu0 %4796
  %v4798 = vsel %vm1642, %v4604, -inf
  %4799 = vmax.xlane.f32.xlu0 %v4798
  %v4800 = vpop.xlane.xlu0 %4799
  %v4801 = vsel %vm1642, %v4607, -inf
  %4802 = vmax.xlane.f32.xlu0 %v4801
  %v4803 = vpop.xlane.xlu0 %4802
  %v4804 = vsel %vm1642, %v4612, -inf
  %4805 = vmax.xlane.f32.xlu0 %v4804
  %v4806 = vpop.xlane.xlu0 %4805
  %v4807 = vsel %vm1642, %v4615, -inf
  %4808 = vmax.xlane.f32.xlu0 %v4807
  %v4809 = vpop.xlane.xlu0 %4808
  %v4810 = vsub.f32 %v3825, %v4620
  %v4811 = vsub.f32 %v3828, %v4623
  %v4812 = vsub.f32 %v3833, %v4626
  %v4813 = vsub.f32 %v3836, %v4629
  %v4814 = vsub.f32 %v3841, %v4632
  %v4815 = vsub.f32 %v3844, %v4635
  %v4816 = vsub.f32 %v3849, %v4638
  %v4817 = vsub.f32 %v3852, %v4641
  %v4818 = vsub.f32 %v3934, %v4644
  %v4819 = vsub.f32 %v3937, %v4647
  %v4820 = vsub.f32 %v3942, %v4650
  %v4821 = vsub.f32 %v3945, %v4653
  %v4822 = vsub.f32 %v3950, %v4656
  %v4823 = vsub.f32 %v3953, %v4659
  %v4824 = vsub.f32 %v3958, %v4662
  %v4825 = vsub.f32 %v3961, %v4665
  %v4826 = vsub.f32 %v4043, %v4668
  %v4827 = vsub.f32 %v4046, %v4671
  %v4828 = vsub.f32 %v4051, %v4674
  %v4829 = vsub.f32 %v4054, %v4677
  %v4830 = vsub.f32 %v4059, %v4680
  %v4831 = vsub.f32 %v4062, %v4683
  %v4832 = vsub.f32 %v4067, %v4686
  %v4833 = vsub.f32 %v4070, %v4689
  %v4834 = vsub.f32 %v4152, %v4692
  %v4835 = vsub.f32 %v4155, %v4695
  %v4836 = vsub.f32 %v4160, %v4698
  %v4837 = vsub.f32 %v4163, %v4701
  %v4838 = vsub.f32 %v4168, %v4704
  %v4839 = vsub.f32 %v4171, %v4707
  %v4840 = vsub.f32 %v4176, %v4710
  %v4841 = vsub.f32 %v4179, %v4713
  %v4842 = vsub.f32 %v4261, %v4716
  %v4843 = vsub.f32 %v4264, %v4719
  %v4844 = vsub.f32 %v4269, %v4722
  %v4845 = vsub.f32 %v4272, %v4725
  %v4846 = vsub.f32 %v4277, %v4728
  %v4847 = vsub.f32 %v4280, %v4731
  %v4848 = vsub.f32 %v4285, %v4734
  %v4849 = vsub.f32 %v4288, %v4737
  %v4850 = vsub.f32 %v4370, %v4740
  %v4851 = vsub.f32 %v4373, %v4743
  %v4852 = vsub.f32 %v4378, %v4746
  %v4853 = vsub.f32 %v4381, %v4749
  %v4854 = vsub.f32 %v4386, %v4752
  %v4855 = vsub.f32 %v4389, %v4755
  %v4856 = vsub.f32 %v4394, %v4758
  %v4857 = vsub.f32 %v4397, %v4761
  %v4858 = vsub.f32 %v4479, %v4764
  %v4859 = vsub.f32 %v4482, %v4767
  %v4860 = vsub.f32 %v4487, %v4770
  %v4861 = vsub.f32 %v4490, %v4773
  %v4862 = vsub.f32 %v4495, %v4776
  %v4863 = vsub.f32 %v4498, %v4779
  %v4864 = vsub.f32 %v4503, %v4782
  %v4865 = vsub.f32 %v4506, %v4785
  %v4866 = vsub.f32 %v4588, %v4788
  %v4867 = vsub.f32 %v4591, %v4791
  %v4868 = vsub.f32 %v4596, %v4794
  %v4869 = vsub.f32 %v4599, %v4797
  %v4870 = vsub.f32 %v4604, %v4800
  %v4871 = vsub.f32 %v4607, %v4803
  %v4872 = vsub.f32 %v4612, %v4806
  %v4873 = vsub.f32 %v4615, %v4809
  %v4874 = vmul.f32 %v4810, 1.442695
  %v4875 = vpow.pop %v4874
  %v4876 = vmul.f32 %v4811, 1.442695
  %v4877 = vpow.pop %v4876
  %v4878 = vmul.f32 %v4812, 1.442695
  %v4879 = vpow.pop %v4878
  %v4880 = vmul.f32 %v4813, 1.442695
  %v4881 = vpow.pop %v4880
  %v4882 = vmul.f32 %v4814, 1.442695
  %v4883 = vpow.pop %v4882
  %v4884 = vmul.f32 %v4815, 1.442695
  %v4885 = vpow.pop %v4884
  %v4886 = vmul.f32 %v4816, 1.442695
  %v4887 = vpow.pop %v4886
  %v4888 = vmul.f32 %v4817, 1.442695
  %v4889 = vpow.pop %v4888
  %v4890 = vmul.f32 %v4818, 1.442695
  %v4891 = vpow.pop %v4890
  %v4892 = vmul.f32 %v4819, 1.442695
  %v4893 = vpow.pop %v4892
  %v4894 = vmul.f32 %v4820, 1.442695
  %v4895 = vpow.pop %v4894
  %v4896 = vmul.f32 %v4821, 1.442695
  %v4897 = vpow.pop %v4896
  %v4898 = vmul.f32 %v4822, 1.442695
  %v4899 = vpow.pop %v4898
  %v4900 = vmul.f32 %v4823, 1.442695
  %v4901 = vpow.pop %v4900
  %v4902 = vmul.f32 %v4824, 1.442695
  %v4903 = vpow.pop %v4902
  %v4904 = vmul.f32 %v4825, 1.442695
  %v4905 = vpow.pop %v4904
  %v4906 = vmul.f32 %v4826, 1.442695
  %v4907 = vpow.pop %v4906
  %v4908 = vmul.f32 %v4827, 1.442695
  %v4909 = vpow.pop %v4908
  %v4910 = vmul.f32 %v4828, 1.442695
  %v4911 = vpow.pop %v4910
  %v4912 = vmul.f32 %v4829, 1.442695
  %v4913 = vpow.pop %v4912
  %v4914 = vmul.f32 %v4830, 1.442695
  %v4915 = vpow.pop %v4914
  %v4916 = vmul.f32 %v4831, 1.442695
  %v4917 = vpow.pop %v4916
  %v4918 = vmul.f32 %v4832, 1.442695
  %v4919 = vpow.pop %v4918
  %v4920 = vmul.f32 %v4833, 1.442695
  %v4921 = vpow.pop %v4920
  %v4922 = vmul.f32 %v4834, 1.442695
  %v4923 = vpow.pop %v4922
  %v4924 = vmul.f32 %v4835, 1.442695
  %v4925 = vpow.pop %v4924
  %v4926 = vmul.f32 %v4836, 1.442695
  %v4927 = vpow.pop %v4926
  %v4928 = vmul.f32 %v4837, 1.442695
  %v4929 = vpow.pop %v4928
  %v4930 = vmul.f32 %v4838, 1.442695
  %v4931 = vpow.pop %v4930
  %v4932 = vmul.f32 %v4839, 1.442695
  %v4933 = vpow.pop %v4932
  %v4934 = vmul.f32 %v4840, 1.442695
  %v4935 = vpow.pop %v4934
  %v4936 = vmul.f32 %v4841, 1.442695
  %v4937 = vpow.pop %v4936
  %v4938 = vmul.f32 %v4842, 1.442695
  %v4939 = vpow.pop %v4938
  %v4940 = vmul.f32 %v4843, 1.442695
  %v4941 = vpow.pop %v4940
  %v4942 = vmul.f32 %v4844, 1.442695
  %v4943 = vpow.pop %v4942
  %v4944 = vmul.f32 %v4845, 1.442695
  %v4945 = vpow.pop %v4944
  %v4946 = vmul.f32 %v4846, 1.442695
  %v4947 = vpow.pop %v4946
  %v4948 = vmul.f32 %v4847, 1.442695
  %v4949 = vpow.pop %v4948
  %v4950 = vmul.f32 %v4848, 1.442695
  %v4951 = vpow.pop %v4950
  %v4952 = vmul.f32 %v4849, 1.442695
  %v4953 = vpow.pop %v4952
  %v4954 = vmul.f32 %v4850, 1.442695
  %v4955 = vpow.pop %v4954
  %v4956 = vmul.f32 %v4851, 1.442695
  %v4957 = vpow.pop %v4956
  %v4958 = vmul.f32 %v4852, 1.442695
  %v4959 = vpow.pop %v4958
  %v4960 = vmul.f32 %v4853, 1.442695
  %v4961 = vpow.pop %v4960
  %v4962 = vmul.f32 %v4854, 1.442695
  %v4963 = vpow.pop %v4962
  %v4964 = vmul.f32 %v4855, 1.442695
  %v4965 = vpow.pop %v4964
  %v4966 = vmul.f32 %v4856, 1.442695
  %v4967 = vpow.pop %v4966
  %v4968 = vmul.f32 %v4857, 1.442695
  %v4969 = vpow.pop %v4968
  %v4970 = vmul.f32 %v4858, 1.442695
  %v4971 = vpow.pop %v4970
  %v4972 = vmul.f32 %v4859, 1.442695
  %v4973 = vpow.pop %v4972
  %v4974 = vmul.f32 %v4860, 1.442695
  %v4975 = vpow.pop %v4974
  %v4976 = vmul.f32 %v4861, 1.442695
  %v4977 = vpow.pop %v4976
  %v4978 = vmul.f32 %v4862, 1.442695
  %v4979 = vpow.pop %v4978
  %v4980 = vmul.f32 %v4863, 1.442695
  %v4981 = vpow.pop %v4980
  %v4982 = vmul.f32 %v4864, 1.442695
  %v4983 = vpow.pop %v4982
  %v4984 = vmul.f32 %v4865, 1.442695
  %v4985 = vpow.pop %v4984
  %v4986 = vmul.f32 %v4866, 1.442695
  %v4987 = vpow.pop %v4986
  %v4988 = vmul.f32 %v4867, 1.442695
  %v4989 = vpow.pop %v4988
  %v4990 = vmul.f32 %v4868, 1.442695
  %v4991 = vpow.pop %v4990
  %v4992 = vmul.f32 %v4869, 1.442695
  %v4993 = vpow.pop %v4992
  %v4994 = vmul.f32 %v4870, 1.442695
  %v4995 = vpow.pop %v4994
  %v4996 = vmul.f32 %v4871, 1.442695
  %v4997 = vpow.pop %v4996
  %v4998 = vmul.f32 %v4872, 1.442695
  %v4999 = vpow.pop %v4998
  %v5000 = vmul.f32 %v4873, 1.442695
  %v5001 = vpow.pop %v5000
  %v5002 = vsel %vm1642, %v4875, 0.0
  %5003 = vadd.xlane.f32.xlu0 %v5002
  %v5004 = vpop.xlane.xlu0 %5003
  %v5005 = vsel %vm1642, %v4877, 0.0
  %5006 = vadd.xlane.f32.xlu0 %v5005
  %v5007 = vpop.xlane.xlu0 %5006
  %v5008 = vsel %vm1642, %v4879, 0.0
  %5009 = vadd.xlane.f32.xlu0 %v5008
  %v5010 = vpop.xlane.xlu0 %5009
  %v5011 = vsel %vm1642, %v4881, 0.0
  %5012 = vadd.xlane.f32.xlu0 %v5011
  %v5013 = vpop.xlane.xlu0 %5012
  %v5014 = vsel %vm1642, %v4883, 0.0
  %5015 = vadd.xlane.f32.xlu0 %v5014
  %v5016 = vpop.xlane.xlu0 %5015
  %v5017 = vsel %vm1642, %v4885, 0.0
  %5018 = vadd.xlane.f32.xlu0 %v5017
  %v5019 = vpop.xlane.xlu0 %5018
  %v5020 = vsel %vm1642, %v4887, 0.0
  %5021 = vadd.xlane.f32.xlu0 %v5020
  %v5022 = vpop.xlane.xlu0 %5021
  %v5023 = vsel %vm1642, %v4889, 0.0
  %5024 = vadd.xlane.f32.xlu0 %v5023
  %v5025 = vpop.xlane.xlu0 %5024
  %v5026 = vsel %vm1642, %v4891, 0.0
  %5027 = vadd.xlane.f32.xlu0 %v5026
  %v5028 = vpop.xlane.xlu0 %5027
  %v5029 = vsel %vm1642, %v4893, 0.0
  %5030 = vadd.xlane.f32.xlu0 %v5029
  %v5031 = vpop.xlane.xlu0 %5030
  %v5032 = vsel %vm1642, %v4895, 0.0
  %5033 = vadd.xlane.f32.xlu0 %v5032
  %v5034 = vpop.xlane.xlu0 %5033
  %v5035 = vsel %vm1642, %v4897, 0.0
  %5036 = vadd.xlane.f32.xlu0 %v5035
  %v5037 = vpop.xlane.xlu0 %5036
  %v5038 = vsel %vm1642, %v4899, 0.0
  %5039 = vadd.xlane.f32.xlu0 %v5038
  %v5040 = vpop.xlane.xlu0 %5039
  %v5041 = vsel %vm1642, %v4901, 0.0
  %5042 = vadd.xlane.f32.xlu0 %v5041
  %v5043 = vpop.xlane.xlu0 %5042
  %v5044 = vsel %vm1642, %v4903, 0.0
  %5045 = vadd.xlane.f32.xlu0 %v5044
  %v5046 = vpop.xlane.xlu0 %5045
  %v5047 = vsel %vm1642, %v4905, 0.0
  %5048 = vadd.xlane.f32.xlu0 %v5047
  %v5049 = vpop.xlane.xlu0 %5048
  %v5050 = vsel %vm1642, %v4907, 0.0
  %5051 = vadd.xlane.f32.xlu0 %v5050
  %v5052 = vpop.xlane.xlu0 %5051
  %v5053 = vsel %vm1642, %v4909, 0.0
  %5054 = vadd.xlane.f32.xlu0 %v5053
  %v5055 = vpop.xlane.xlu0 %5054
  %v5056 = vsel %vm1642, %v4911, 0.0
  %5057 = vadd.xlane.f32.xlu0 %v5056
  %v5058 = vpop.xlane.xlu0 %5057
  %v5059 = vsel %vm1642, %v4913, 0.0
  %5060 = vadd.xlane.f32.xlu0 %v5059
  %v5061 = vpop.xlane.xlu0 %5060
  %v5062 = vsel %vm1642, %v4915, 0.0
  %5063 = vadd.xlane.f32.xlu0 %v5062
  %v5064 = vpop.xlane.xlu0 %5063
  %v5065 = vsel %vm1642, %v4917, 0.0
  %5066 = vadd.xlane.f32.xlu0 %v5065
  %v5067 = vpop.xlane.xlu0 %5066
  %v5068 = vsel %vm1642, %v4919, 0.0
  %5069 = vadd.xlane.f32.xlu0 %v5068
  %v5070 = vpop.xlane.xlu0 %5069
  %v5071 = vsel %vm1642, %v4921, 0.0
  %5072 = vadd.xlane.f32.xlu0 %v5071
  %v5073 = vpop.xlane.xlu0 %5072
  %v5074 = vsel %vm1642, %v4923, 0.0
  %5075 = vadd.xlane.f32.xlu0 %v5074
  %v5076 = vpop.xlane.xlu0 %5075
  %v5077 = vsel %vm1642, %v4925, 0.0
  %5078 = vadd.xlane.f32.xlu0 %v5077
  %v5079 = vpop.xlane.xlu0 %5078
  %v5080 = vsel %vm1642, %v4927, 0.0
  %5081 = vadd.xlane.f32.xlu0 %v5080
  %v5082 = vpop.xlane.xlu0 %5081
  %v5083 = vsel %vm1642, %v4929, 0.0
  %5084 = vadd.xlane.f32.xlu0 %v5083
  %v5085 = vpop.xlane.xlu0 %5084
  %v5086 = vsel %vm1642, %v4931, 0.0
  %5087 = vadd.xlane.f32.xlu0 %v5086
  %v5088 = vpop.xlane.xlu0 %5087
  %v5089 = vsel %vm1642, %v4933, 0.0
  %5090 = vadd.xlane.f32.xlu0 %v5089
  %v5091 = vpop.xlane.xlu0 %5090
  %v5092 = vsel %vm1642, %v4935, 0.0
  %5093 = vadd.xlane.f32.xlu0 %v5092
  %v5094 = vpop.xlane.xlu0 %5093
  %v5095 = vsel %vm1642, %v4937, 0.0
  %5096 = vadd.xlane.f32.xlu0 %v5095
  %v5097 = vpop.xlane.xlu0 %5096
  %v5098 = vsel %vm1642, %v4939, 0.0
  %5099 = vadd.xlane.f32.xlu0 %v5098
  %v5100 = vpop.xlane.xlu0 %5099
  %v5101 = vsel %vm1642, %v4941, 0.0
  %5102 = vadd.xlane.f32.xlu0 %v5101
  %v5103 = vpop.xlane.xlu0 %5102
  %v5104 = vsel %vm1642, %v4943, 0.0
  %5105 = vadd.xlane.f32.xlu0 %v5104
  %v5106 = vpop.xlane.xlu0 %5105
  %v5107 = vsel %vm1642, %v4945, 0.0
  %5108 = vadd.xlane.f32.xlu0 %v5107
  %v5109 = vpop.xlane.xlu0 %5108
  %v5110 = vsel %vm1642, %v4947, 0.0
  %5111 = vadd.xlane.f32.xlu0 %v5110
  %v5112 = vpop.xlane.xlu0 %5111
  %v5113 = vsel %vm1642, %v4949, 0.0
  %5114 = vadd.xlane.f32.xlu0 %v5113
  %v5115 = vpop.xlane.xlu0 %5114
  %v5116 = vsel %vm1642, %v4951, 0.0
  %5117 = vadd.xlane.f32.xlu0 %v5116
  %v5118 = vpop.xlane.xlu0 %5117
  %v5119 = vsel %vm1642, %v4953, 0.0
  %5120 = vadd.xlane.f32.xlu0 %v5119
  %v5121 = vpop.xlane.xlu0 %5120
  %v5122 = vsel %vm1642, %v4955, 0.0
  %5123 = vadd.xlane.f32.xlu0 %v5122
  %v5124 = vpop.xlane.xlu0 %5123
  %v5125 = vsel %vm1642, %v4957, 0.0
  %5126 = vadd.xlane.f32.xlu0 %v5125
  %v5127 = vpop.xlane.xlu0 %5126
  %v5128 = vsel %vm1642, %v4959, 0.0
  %5129 = vadd.xlane.f32.xlu0 %v5128
  %v5130 = vpop.xlane.xlu0 %5129
  %v5131 = vsel %vm1642, %v4961, 0.0
  %5132 = vadd.xlane.f32.xlu0 %v5131
  %v5133 = vpop.xlane.xlu0 %5132
  %v5134 = vsel %vm1642, %v4963, 0.0
  %5135 = vadd.xlane.f32.xlu0 %v5134
  %v5136 = vpop.xlane.xlu0 %5135
  %v5137 = vsel %vm1642, %v4965, 0.0
  %5138 = vadd.xlane.f32.xlu0 %v5137
  %v5139 = vpop.xlane.xlu0 %5138
  %v5140 = vsel %vm1642, %v4967, 0.0
  %5141 = vadd.xlane.f32.xlu0 %v5140
  %v5142 = vpop.xlane.xlu0 %5141
  %v5143 = vsel %vm1642, %v4969, 0.0
  %5144 = vadd.xlane.f32.xlu0 %v5143
  %v5145 = vpop.xlane.xlu0 %5144
  %v5146 = vsel %vm1642, %v4971, 0.0
  %5147 = vadd.xlane.f32.xlu0 %v5146
  %v5148 = vpop.xlane.xlu0 %5147
  %v5149 = vsel %vm1642, %v4973, 0.0
  %5150 = vadd.xlane.f32.xlu0 %v5149
  %v5151 = vpop.xlane.xlu0 %5150
  %v5152 = vsel %vm1642, %v4975, 0.0
  %5153 = vadd.xlane.f32.xlu0 %v5152
  %v5154 = vpop.xlane.xlu0 %5153
  %v5155 = vsel %vm1642, %v4977, 0.0
  %5156 = vadd.xlane.f32.xlu0 %v5155
  %v5157 = vpop.xlane.xlu0 %5156
  %v5158 = vsel %vm1642, %v4979, 0.0
  %5159 = vadd.xlane.f32.xlu0 %v5158
  %v5160 = vpop.xlane.xlu0 %5159
  %v5161 = vsel %vm1642, %v4981, 0.0
  %5162 = vadd.xlane.f32.xlu0 %v5161
  %v5163 = vpop.xlane.xlu0 %5162
  %v5164 = vsel %vm1642, %v4983, 0.0
  %5165 = vadd.xlane.f32.xlu0 %v5164
  %v5166 = vpop.xlane.xlu0 %5165
  %v5167 = vsel %vm1642, %v4985, 0.0
  %5168 = vadd.xlane.f32.xlu0 %v5167
  %v5169 = vpop.xlane.xlu0 %5168
  %v5170 = vsel %vm1642, %v4987, 0.0
  %5171 = vadd.xlane.f32.xlu0 %v5170
  %v5172 = vpop.xlane.xlu0 %5171
  %v5173 = vsel %vm1642, %v4989, 0.0
  %5174 = vadd.xlane.f32.xlu0 %v5173
  %v5175 = vpop.xlane.xlu0 %5174
  %v5176 = vsel %vm1642, %v4991, 0.0
  %5177 = vadd.xlane.f32.xlu0 %v5176
  %v5178 = vpop.xlane.xlu0 %5177
  %v5179 = vsel %vm1642, %v4993, 0.0
  %5180 = vadd.xlane.f32.xlu0 %v5179
  %v5181 = vpop.xlane.xlu0 %5180
  %v5182 = vsel %vm1642, %v4995, 0.0
  %5183 = vadd.xlane.f32.xlu0 %v5182
  %v5184 = vpop.xlane.xlu0 %5183
  %v5185 = vsel %vm1642, %v4997, 0.0
  %5186 = vadd.xlane.f32.xlu0 %v5185
  %v5187 = vpop.xlane.xlu0 %5186
  %v5188 = vsel %vm1642, %v4999, 0.0
  %5189 = vadd.xlane.f32.xlu0 %v5188
  %v5190 = vpop.xlane.xlu0 %5189
  %v5191 = vsel %vm1642, %v5001, 0.0
  %5192 = vadd.xlane.f32.xlu0 %v5191
  %v5193 = vpop.xlane.xlu0 %5192
  %v5194 = vpack.c.bf16 %v4877, %v4875
  %v5195 = vpack.c.bf16 %v4881, %v4879
  %v5196 = vpack.c.bf16 %v4885, %v4883
  %v5197 = vpack.c.bf16 %v4889, %v4887
  %v5198 = vpack.c.bf16 %v4893, %v4891
  %v5199 = vpack.c.bf16 %v4897, %v4895
  %v5200 = vpack.c.bf16 %v4901, %v4899
  %v5201 = vpack.c.bf16 %v4905, %v4903
  %v5202 = vpack.c.bf16 %v4909, %v4907
  %v5203 = vpack.c.bf16 %v4913, %v4911
  %v5204 = vpack.c.bf16 %v4917, %v4915
  %v5205 = vpack.c.bf16 %v4921, %v4919
  %v5206 = vpack.c.bf16 %v4925, %v4923
  %v5207 = vpack.c.bf16 %v4929, %v4927
  %v5208 = vpack.c.bf16 %v4933, %v4931
  %v5209 = vpack.c.bf16 %v4937, %v4935
  %v5210 = vpack.c.bf16 %v4941, %v4939
  %v5211 = vpack.c.bf16 %v4945, %v4943
  %v5212 = vpack.c.bf16 %v4949, %v4947
  %v5213 = vpack.c.bf16 %v4953, %v4951
  %v5214 = vpack.c.bf16 %v4957, %v4955
  %v5215 = vpack.c.bf16 %v4961, %v4959
  %v5216 = vpack.c.bf16 %v4965, %v4963
  %v5217 = vpack.c.bf16 %v4969, %v4967
  %v5218 = vpack.c.bf16 %v4973, %v4971
  %v5219 = vpack.c.bf16 %v4977, %v4975
  %v5220 = vpack.c.bf16 %v4981, %v4979
  %v5221 = vpack.c.bf16 %v4985, %v4983
  %v5222 = vpack.c.bf16 %v4989, %v4987
  %v5223 = vpack.c.bf16 %v4993, %v4991
  %v5224 = vpack.c.bf16 %v4997, %v4995
  %v5225 = vpack.c.bf16 %v5001, %v4999
  %5226 = vrot.lane.b32.xlu0 %v3705, 56
  %v5227 = vpop.permute.xlu0 %5226
  %5228 = vrot.lane.b32.xlu0 %v3706, 56
  %v5229 = vpop.permute.xlu0 %5228
  %5230 = vrot.lane.b32.xlu0 %v3707, 56
  %v5231 = vpop.permute.xlu0 %5230
  %5232 = vrot.lane.b32.xlu0 %v3708, 56
  %v5233 = vpop.permute.xlu0 %5232
  %v5239 = vsel %vm1642, %v5194, 0
  %v5242 = vsel %vm1642, %v5195, 0
  %v5245 = vsel %vm1642, %v5196, 0
  %v5248 = vsel %vm1642, %v5197, 0
  %5250 = vmatprep.subr.bf16.mxu0 0
  %5251 = vmatpush1.bf16.msra.mxu0 %v5227
  %5252 = vmatprep.subr.bf16.mxu0 0
  %5253 = vmatpush1.bf16.msra.mxu0 %v5229
  %5254 = vmatprep.subr.bf16.mxu0 0
  %5255 = vmatpush1.bf16.msra.mxu0 %v5231
  %5256 = vmatprep.subr.bf16.mxu0 0
  %5257 = vmatpush1.bf16.msra.mxu0 %v5233
  %5258 = vmatprep.subr.bf16.mxu0 0
  %5259 = vmatpush1.bf16.msra.mxu0 0
  %5260 = vmatprep.subr.bf16.mxu0 0
  %5261 = vmatpush1.bf16.msra.mxu0 0
  %5262 = vmatprep.subr.bf16.mxu0 0
  %5263 = vmatpush1.bf16.msra.mxu0 0
  %5264 = vmatprep.subr.bf16.mxu0 0
  %5265 = vmatpush1.bf16.msra.mxu0 0
  %5266 = vmatprep.subr.bf16.mxu0 0
  %5267 = vmatpush1.bf16.msra.mxu0 0
  %5268 = vmatprep.subr.bf16.mxu0 0
  %5269 = vmatpush1.bf16.msra.mxu0 0
  %5270 = vmatprep.subr.bf16.mxu0 0
  %5271 = vmatpush1.bf16.msra.mxu0 0
  %5272 = vmatprep.subr.bf16.mxu0 0
  %5273 = vmatpush1.bf16.msra.mxu0 0
  %5274 = vmatprep.subr.bf16.mxu0 0
  %5275 = vmatpush1.bf16.msra.mxu0 0
  %5276 = vmatprep.subr.bf16.mxu0 0
  %5277 = vmatpush1.bf16.msra.mxu0 0
  %5278 = vmatprep.subr.bf16.mxu0 0
  %5279 = vmatpush1.bf16.msra.mxu0 0
  %5280 = vmatprep.subr.bf16.mxu0 0
  %5281 = vmatpush1.bf16.msra.mxu0 0
  %5282 = vmatprep.mubr.bf16.mxu0 0
  %5283 = vmatmul.mubr.bf16.gmra.mrb[0].mxu0 %v5239
  %v5284 = vpop.f32.mrb[0].mxu0
  %v5285 = vadd.f32 0.0, %v5284
  %v5286 = vpop.f32.mrb[0].mxu0
  %v5287 = vpop.f32.mrb[0].mxu0
  %v5288 = vadd.f32 0.0, %v5287
  %v5289 = vpop.f32.mrb[0].mxu0
  %5290 = vmatprep.mubr.bf16.mxu0 0
  %5291 = vmatmul.mubr.bf16.gmra.mrb[0].mxu0 %v5242
  %v5292 = vpop.f32.mrb[0].mxu0
  %v5293 = vadd.f32 0.0, %v5292
  %v5294 = vpop.f32.mrb[0].mxu0
  %v5295 = vpop.f32.mrb[0].mxu0
  %v5296 = vadd.f32 0.0, %v5295
  %v5297 = vpop.f32.mrb[0].mxu0
  %5298 = vmatprep.mubr.bf16.mxu0 0
  %5299 = vmatmul.mubr.bf16.gmra.mrb[0].mxu0 %v5245
  %v5300 = vpop.f32.mrb[0].mxu0
  %v5301 = vadd.f32 0.0, %v5300
  %v5302 = vpop.f32.mrb[0].mxu0
  %v5303 = vpop.f32.mrb[0].mxu0
  %v5304 = vadd.f32 0.0, %v5303
  %v5305 = vpop.f32.mrb[0].mxu0
  %5306 = vmatprep.mubr.bf16.mxu0 0
  %5307 = vmatmul.mubr.bf16.gmra.mrb[0].mxu0 %v5248
  %v5308 = vpop.f32.mrb[0].mxu0
  %v5309 = vadd.f32 0.0, %v5308
  %v5310 = vpop.f32.mrb[0].mxu0
  %v5311 = vpop.f32.mrb[0].mxu0
  %v5312 = vadd.f32 0.0, %v5311
  %v5313 = vpop.f32.mrb[0].mxu0
  %5314 = vdwg.mxu0
  %5315 = vrot.lane.b32.xlu0 %v3709, 56
  %v5316 = vpop.permute.xlu0 %5315
  %5317 = vrot.lane.b32.xlu0 %v3710, 56
  %v5318 = vpop.permute.xlu0 %5317
  %5319 = vrot.lane.b32.xlu0 %v3711, 56
  %v5320 = vpop.permute.xlu0 %5319
  %5321 = vrot.lane.b32.xlu0 %v3712, 56
  %v5322 = vpop.permute.xlu0 %5321
  %v5328 = vsel %vm1642, %v5198, 0
  %v5331 = vsel %vm1642, %v5199, 0
  %v5334 = vsel %vm1642, %v5200, 0
  %v5337 = vsel %vm1642, %v5201, 0
  %5339 = vmatprep.subr.bf16.mxu0 0
  %5340 = vmatpush1.bf16.msra.mxu0 %v5316
  %5341 = vmatprep.subr.bf16.mxu0 0
  %5342 = vmatpush1.bf16.msra.mxu0 %v5318
  %5343 = vmatprep.subr.bf16.mxu0 0
  %5344 = vmatpush1.bf16.msra.mxu0 %v5320
  %5345 = vmatprep.subr.bf16.mxu0 0
  %5346 = vmatpush1.bf16.msra.mxu0 %v5322
  %5347 = vmatprep.subr.bf16.mxu0 0
  %5348 = vmatpush1.bf16.msra.mxu0 0
  %5349 = vmatprep.subr.bf16.mxu0 0
  %5350 = vmatpush1.bf16.msra.mxu0 0
  %5351 = vmatprep.subr.bf16.mxu0 0
  %5352 = vmatpush1.bf16.msra.mxu0 0
  %5353 = vmatprep.subr.bf16.mxu0 0
  %5354 = vmatpush1.bf16.msra.mxu0 0
  %5355 = vmatprep.subr.bf16.mxu0 0
  %5356 = vmatpush1.bf16.msra.mxu0 0
  %5357 = vmatprep.subr.bf16.mxu0 0
  %5358 = vmatpush1.bf16.msra.mxu0 0
  %5359 = vmatprep.subr.bf16.mxu0 0
  %5360 = vmatpush1.bf16.msra.mxu0 0
  %5361 = vmatprep.subr.bf16.mxu0 0
  %5362 = vmatpush1.bf16.msra.mxu0 0
  %5363 = vmatprep.subr.bf16.mxu0 0
  %5364 = vmatpush1.bf16.msra.mxu0 0
  %5365 = vmatprep.subr.bf16.mxu0 0
  %5366 = vmatpush1.bf16.msra.mxu0 0
  %5367 = vmatprep.subr.bf16.mxu0 0
  %5368 = vmatpush1.bf16.msra.mxu0 0
  %5369 = vmatprep.subr.bf16.mxu0 0
  %5370 = vmatpush1.bf16.msra.mxu0 0
  %5371 = vmatprep.mubr.bf16.mxu0 0
  %5372 = vmatmul.mubr.bf16.gmra.mrb[0].mxu0 %v5328
  %v5373 = vpop.f32.mrb[0].mxu0
  %v5374 = vadd.f32 0.0, %v5373
  %v5375 = vpop.f32.mrb[0].mxu0
  %v5376 = vpop.f32.mrb[0].mxu0
  %v5377 = vadd.f32 0.0, %v5376
  %v5378 = vpop.f32.mrb[0].mxu0
  %5379 = vmatprep.mubr.bf16.mxu0 0
  %5380 = vmatmul.mubr.bf16.gmra.mrb[0].mxu0 %v5331
  %v5381 = vpop.f32.mrb[0].mxu0
  %v5382 = vadd.f32 0.0, %v5381
  %v5383 = vpop.f32.mrb[0].mxu0
  %v5384 = vpop.f32.mrb[0].mxu0
  %v5385 = vadd.f32 0.0, %v5384
  %v5386 = vpop.f32.mrb[0].mxu0
  %5387 = vmatprep.mubr.bf16.mxu0 0
  %5388 = vmatmul.mubr.bf16.gmra.mrb[0].mxu0 %v5334
  %v5389 = vpop.f32.mrb[0].mxu0
  %v5390 = vadd.f32 0.0, %v5389
  %v5391 = vpop.f32.mrb[0].mxu0
  %v5392 = vpop.f32.mrb[0].mxu0
  %v5393 = vadd.f32 0.0, %v5392
  %v5394 = vpop.f32.mrb[0].mxu0
  %5395 = vmatprep.mubr.bf16.mxu0 0
  %5396 = vmatmul.mubr.bf16.gmra.mrb[0].mxu0 %v5337
  %v5397 = vpop.f32.mrb[0].mxu0
  %v5398 = vadd.f32 0.0, %v5397
  %v5399 = vpop.f32.mrb[0].mxu0
  %v5400 = vpop.f32.mrb[0].mxu0
  %v5401 = vadd.f32 0.0, %v5400
  %v5402 = vpop.f32.mrb[0].mxu0
  %5403 = vdwg.mxu0
  %5404 = vrot.lane.b32.xlu0 %v3713, 56
  %v5405 = vpop.permute.xlu0 %5404
  %5406 = vrot.lane.b32.xlu0 %v3714, 56
  %v5407 = vpop.permute.xlu0 %5406
  %5408 = vrot.lane.b32.xlu0 %v3715, 56
  %v5409 = vpop.permute.xlu0 %5408
  %5410 = vrot.lane.b32.xlu0 %v3716, 56
  %v5411 = vpop.permute.xlu0 %5410
  %v5417 = vsel %vm1642, %v5202, 0
  %v5420 = vsel %vm1642, %v5203, 0
  %v5423 = vsel %vm1642, %v5204, 0
  %v5426 = vsel %vm1642, %v5205, 0
  %5428 = vmatprep.subr.bf16.mxu0 0
  %5429 = vmatpush1.bf16.msra.mxu0 %v5405
  %5430 = vmatprep.subr.bf16.mxu0 0
  %5431 = vmatpush1.bf16.msra.mxu0 %v5407
  %5432 = vmatprep.subr.bf16.mxu0 0
  %5433 = vmatpush1.bf16.msra.mxu0 %v5409
  %5434 = vmatprep.subr.bf16.mxu0 0
  %5435 = vmatpush1.bf16.msra.mxu0 %v5411
  %5436 = vmatprep.subr.bf16.mxu0 0
  %5437 = vmatpush1.bf16.msra.mxu0 0
  %5438 = vmatprep.subr.bf16.mxu0 0
  %5439 = vmatpush1.bf16.msra.mxu0 0
  %5440 = vmatprep.subr.bf16.mxu0 0
  %5441 = vmatpush1.bf16.msra.mxu0 0
  %5442 = vmatprep.subr.bf16.mxu0 0
  %5443 = vmatpush1.bf16.msra.mxu0 0
  %5444 = vmatprep.subr.bf16.mxu0 0
  %5445 = vmatpush1.bf16.msra.mxu0 0
  %5446 = vmatprep.subr.bf16.mxu0 0
  %5447 = vmatpush1.bf16.msra.mxu0 0
  %5448 = vmatprep.subr.bf16.mxu0 0
  %5449 = vmatpush1.bf16.msra.mxu0 0
  %5450 = vmatprep.subr.bf16.mxu0 0
  %5451 = vmatpush1.bf16.msra.mxu0 0
  %5452 = vmatprep.subr.bf16.mxu0 0
  %5453 = vmatpush1.bf16.msra.mxu0 0
  %5454 = vmatprep.subr.bf16.mxu0 0
  %5455 = vmatpush1.bf16.msra.mxu0 0
  %5456 = vmatprep.subr.bf16.mxu0 0
  %5457 = vmatpush1.bf16.msra.mxu0 0
  %5458 = vmatprep.subr.bf16.mxu0 0
  %5459 = vmatpush1.bf16.msra.mxu0 0
  %5460 = vmatprep.mubr.bf16.mxu0 0
  %5461 = vmatmul.mubr.bf16.gmra.mrb[0].mxu0 %v5417
  %v5462 = vpop.f32.mrb[0].mxu0
  %v5463 = vadd.f32 0.0, %v5462
  %v5464 = vpop.f32.mrb[0].mxu0
  %v5465 = vpop.f32.mrb[0].mxu0
  %v5466 = vadd.f32 0.0, %v5465
  %v5467 = vpop.f32.mrb[0].mxu0
  %5468 = vmatprep.mubr.bf16.mxu0 0
  %5469 = vmatmul.mubr.bf16.gmra.mrb[0].mxu0 %v5420
  %v5470 = vpop.f32.mrb[0].mxu0
  %v5471 = vadd.f32 0.0, %v5470
  %v5472 = vpop.f32.mrb[0].mxu0
  %v5473 = vpop.f32.mrb[0].mxu0
  %v5474 = vadd.f32 0.0, %v5473
  %v5475 = vpop.f32.mrb[0].mxu0
  %5476 = vmatprep.mubr.bf16.mxu0 0
  %5477 = vmatmul.mubr.bf16.gmra.mrb[0].mxu0 %v5423
  %v5478 = vpop.f32.mrb[0].mxu0
  %v5479 = vadd.f32 0.0, %v5478
  %v5480 = vpop.f32.mrb[0].mxu0
  %v5481 = vpop.f32.mrb[0].mxu0
  %v5482 = vadd.f32 0.0, %v5481
  %v5483 = vpop.f32.mrb[0].mxu0
  %5484 = vmatprep.mubr.bf16.mxu0 0
  %5485 = vmatmul.mubr.bf16.gmra.mrb[0].mxu0 %v5426
  %v5486 = vpop.f32.mrb[0].mxu0
  %v5487 = vadd.f32 0.0, %v5486
  %v5488 = vpop.f32.mrb[0].mxu0
  %v5489 = vpop.f32.mrb[0].mxu0
  %v5490 = vadd.f32 0.0, %v5489
  %v5491 = vpop.f32.mrb[0].mxu0
  %5492 = vdwg.mxu0
  %5493 = vrot.lane.b32.xlu0 %v3717, 56
  %v5494 = vpop.permute.xlu0 %5493
  %5495 = vrot.lane.b32.xlu0 %v3718, 56
  %v5496 = vpop.permute.xlu0 %5495
  %5497 = vrot.lane.b32.xlu0 %v3719, 56
  %v5498 = vpop.permute.xlu0 %5497
  %5499 = vrot.lane.b32.xlu0 %v3720, 56
  %v5500 = vpop.permute.xlu0 %5499
  %v5506 = vsel %vm1642, %v5206, 0
  %v5509 = vsel %vm1642, %v5207, 0
  %v5512 = vsel %vm1642, %v5208, 0
  %v5515 = vsel %vm1642, %v5209, 0
  %5517 = vmatprep.subr.bf16.mxu0 0
  %5518 = vmatpush1.bf16.msra.mxu0 %v5494
  %5519 = vmatprep.subr.bf16.mxu0 0
  %5520 = vmatpush1.bf16.msra.mxu0 %v5496
  %5521 = vmatprep.subr.bf16.mxu0 0
  %5522 = vmatpush1.bf16.msra.mxu0 %v5498
  %5523 = vmatprep.subr.bf16.mxu0 0
  %5524 = vmatpush1.bf16.msra.mxu0 %v5500
  %5525 = vmatprep.subr.bf16.mxu0 0
  %5526 = vmatpush1.bf16.msra.mxu0 0
  %5527 = vmatprep.subr.bf16.mxu0 0
  %5528 = vmatpush1.bf16.msra.mxu0 0
  %5529 = vmatprep.subr.bf16.mxu0 0
  %5530 = vmatpush1.bf16.msra.mxu0 0
  %5531 = vmatprep.subr.bf16.mxu0 0
  %5532 = vmatpush1.bf16.msra.mxu0 0
  %5533 = vmatprep.subr.bf16.mxu0 0
  %5534 = vmatpush1.bf16.msra.mxu0 0
  %5535 = vmatprep.subr.bf16.mxu0 0
  %5536 = vmatpush1.bf16.msra.mxu0 0
  %5537 = vmatprep.subr.bf16.mxu0 0
  %5538 = vmatpush1.bf16.msra.mxu0 0
  %5539 = vmatprep.subr.bf16.mxu0 0
  %5540 = vmatpush1.bf16.msra.mxu0 0
  %5541 = vmatprep.subr.bf16.mxu0 0
  %5542 = vmatpush1.bf16.msra.mxu0 0
  %5543 = vmatprep.subr.bf16.mxu0 0
  %5544 = vmatpush1.bf16.msra.mxu0 0
  %5545 = vmatprep.subr.bf16.mxu0 0
  %5546 = vmatpush1.bf16.msra.mxu0 0
  %5547 = vmatprep.subr.bf16.mxu0 0
  %5548 = vmatpush1.bf16.msra.mxu0 0
  %5549 = vmatprep.mubr.bf16.mxu0 0
  %5550 = vmatmul.mubr.bf16.gmra.mrb[0].mxu0 %v5506
  %v5551 = vpop.f32.mrb[0].mxu0
  %v5552 = vadd.f32 0.0, %v5551
  %v5553 = vpop.f32.mrb[0].mxu0
  %v5554 = vpop.f32.mrb[0].mxu0
  %v5555 = vadd.f32 0.0, %v5554
  %v5556 = vpop.f32.mrb[0].mxu0
  %5557 = vmatprep.mubr.bf16.mxu0 0
  %5558 = vmatmul.mubr.bf16.gmra.mrb[0].mxu0 %v5509
  %v5559 = vpop.f32.mrb[0].mxu0
  %v5560 = vadd.f32 0.0, %v5559
  %v5561 = vpop.f32.mrb[0].mxu0
  %v5562 = vpop.f32.mrb[0].mxu0
  %v5563 = vadd.f32 0.0, %v5562
  %v5564 = vpop.f32.mrb[0].mxu0
  %5565 = vmatprep.mubr.bf16.mxu0 0
  %5566 = vmatmul.mubr.bf16.gmra.mrb[0].mxu0 %v5512
  %v5567 = vpop.f32.mrb[0].mxu0
  %v5568 = vadd.f32 0.0, %v5567
  %v5569 = vpop.f32.mrb[0].mxu0
  %v5570 = vpop.f32.mrb[0].mxu0
  %v5571 = vadd.f32 0.0, %v5570
  %v5572 = vpop.f32.mrb[0].mxu0
  %5573 = vmatprep.mubr.bf16.mxu0 0
  %5574 = vmatmul.mubr.bf16.gmra.mrb[0].mxu0 %v5515
  %v5575 = vpop.f32.mrb[0].mxu0
  %v5576 = vadd.f32 0.0, %v5575
  %v5577 = vpop.f32.mrb[0].mxu0
  %v5578 = vpop.f32.mrb[0].mxu0
  %v5579 = vadd.f32 0.0, %v5578
  %v5580 = vpop.f32.mrb[0].mxu0
  %5581 = vdwg.mxu0
  %5582 = vrot.lane.b32.xlu0 %v3721, 56
  %v5583 = vpop.permute.xlu0 %5582
  %5584 = vrot.lane.b32.xlu0 %v3722, 56
  %v5585 = vpop.permute.xlu0 %5584
  %5586 = vrot.lane.b32.xlu0 %v3723, 56
  %v5587 = vpop.permute.xlu0 %5586
  %5588 = vrot.lane.b32.xlu0 %v3724, 56
  %v5589 = vpop.permute.xlu0 %5588
  %v5595 = vsel %vm1642, %v5210, 0
  %v5598 = vsel %vm1642, %v5211, 0
  %v5601 = vsel %vm1642, %v5212, 0
  %v5604 = vsel %vm1642, %v5213, 0
  %5606 = vmatprep.subr.bf16.mxu0 0
  %5607 = vmatpush1.bf16.msra.mxu0 %v5583
  %5608 = vmatprep.subr.bf16.mxu0 0
  %5609 = vmatpush1.bf16.msra.mxu0 %v5585
  %5610 = vmatprep.subr.bf16.mxu0 0
  %5611 = vmatpush1.bf16.msra.mxu0 %v5587
  %5612 = vmatprep.subr.bf16.mxu0 0
  %5613 = vmatpush1.bf16.msra.mxu0 %v5589
  %5614 = vmatprep.subr.bf16.mxu0 0
  %5615 = vmatpush1.bf16.msra.mxu0 0
  %5616 = vmatprep.subr.bf16.mxu0 0
  %5617 = vmatpush1.bf16.msra.mxu0 0
  %5618 = vmatprep.subr.bf16.mxu0 0
  %5619 = vmatpush1.bf16.msra.mxu0 0
  %5620 = vmatprep.subr.bf16.mxu0 0
  %5621 = vmatpush1.bf16.msra.mxu0 0
  %5622 = vmatprep.subr.bf16.mxu0 0
  %5623 = vmatpush1.bf16.msra.mxu0 0
  %5624 = vmatprep.subr.bf16.mxu0 0
  %5625 = vmatpush1.bf16.msra.mxu0 0
  %5626 = vmatprep.subr.bf16.mxu0 0
  %5627 = vmatpush1.bf16.msra.mxu0 0
  %5628 = vmatprep.subr.bf16.mxu0 0
  %5629 = vmatpush1.bf16.msra.mxu0 0
  %5630 = vmatprep.subr.bf16.mxu0 0
  %5631 = vmatpush1.bf16.msra.mxu0 0
  %5632 = vmatprep.subr.bf16.mxu0 0
  %5633 = vmatpush1.bf16.msra.mxu0 0
  %5634 = vmatprep.subr.bf16.mxu0 0
  %5635 = vmatpush1.bf16.msra.mxu0 0
  %5636 = vmatprep.subr.bf16.mxu0 0
  %5637 = vmatpush1.bf16.msra.mxu0 0
  %5638 = vmatprep.mubr.bf16.mxu0 0
  %5639 = vmatmul.mubr.bf16.gmra.mrb[0].mxu0 %v5595
  %v5640 = vpop.f32.mrb[0].mxu0
  %v5641 = vadd.f32 0.0, %v5640
  %v5642 = vpop.f32.mrb[0].mxu0
  %v5643 = vpop.f32.mrb[0].mxu0
  %v5644 = vadd.f32 0.0, %v5643
  %v5645 = vpop.f32.mrb[0].mxu0
  %5646 = vmatprep.mubr.bf16.mxu0 0
  %5647 = vmatmul.mubr.bf16.gmra.mrb[0].mxu0 %v5598
  %v5648 = vpop.f32.mrb[0].mxu0
  %v5649 = vadd.f32 0.0, %v5648
  %v5650 = vpop.f32.mrb[0].mxu0
  %v5651 = vpop.f32.mrb[0].mxu0
  %v5652 = vadd.f32 0.0, %v5651
  %v5653 = vpop.f32.mrb[0].mxu0
  %5654 = vmatprep.mubr.bf16.mxu0 0
  %5655 = vmatmul.mubr.bf16.gmra.mrb[0].mxu0 %v5601
  %v5656 = vpop.f32.mrb[0].mxu0
  %v5657 = vadd.f32 0.0, %v5656
  %v5658 = vpop.f32.mrb[0].mxu0
  %v5659 = vpop.f32.mrb[0].mxu0
  %v5660 = vadd.f32 0.0, %v5659
  %v5661 = vpop.f32.mrb[0].mxu0
  %5662 = vmatprep.mubr.bf16.mxu0 0
  %5663 = vmatmul.mubr.bf16.gmra.mrb[0].mxu0 %v5604
  %v5664 = vpop.f32.mrb[0].mxu0
  %v5665 = vadd.f32 0.0, %v5664
  %v5666 = vpop.f32.mrb[0].mxu0
  %v5667 = vpop.f32.mrb[0].mxu0
  %v5668 = vadd.f32 0.0, %v5667
  %v5669 = vpop.f32.mrb[0].mxu0
  %5670 = vdwg.mxu0
  %5671 = vrot.lane.b32.xlu0 %v3725, 56
  %v5672 = vpop.permute.xlu0 %5671
  %5673 = vrot.lane.b32.xlu0 %v3726, 56
  %v5674 = vpop.permute.xlu0 %5673
  %5675 = vrot.lane.b32.xlu0 %v3727, 56
  %v5676 = vpop.permute.xlu0 %5675
  %5677 = vrot.lane.b32.xlu0 %v3728, 56
  %v5678 = vpop.permute.xlu0 %5677
  %v5684 = vsel %vm1642, %v5214, 0
  %v5687 = vsel %vm1642, %v5215, 0
  %v5690 = vsel %vm1642, %v5216, 0
  %v5693 = vsel %vm1642, %v5217, 0
  %5695 = vmatprep.subr.bf16.mxu0 0
  %5696 = vmatpush1.bf16.msra.mxu0 %v5672
  %5697 = vmatprep.subr.bf16.mxu0 0
  %5698 = vmatpush1.bf16.msra.mxu0 %v5674
  %5699 = vmatprep.subr.bf16.mxu0 0
  %5700 = vmatpush1.bf16.msra.mxu0 %v5676
  %5701 = vmatprep.subr.bf16.mxu0 0
  %5702 = vmatpush1.bf16.msra.mxu0 %v5678
  %5703 = vmatprep.subr.bf16.mxu0 0
  %5704 = vmatpush1.bf16.msra.mxu0 0
  %5705 = vmatprep.subr.bf16.mxu0 0
  %5706 = vmatpush1.bf16.msra.mxu0 0
  %5707 = vmatprep.subr.bf16.mxu0 0
  %5708 = vmatpush1.bf16.msra.mxu0 0
  %5709 = vmatprep.subr.bf16.mxu0 0
  %5710 = vmatpush1.bf16.msra.mxu0 0
  %5711 = vmatprep.subr.bf16.mxu0 0
  %5712 = vmatpush1.bf16.msra.mxu0 0
  %5713 = vmatprep.subr.bf16.mxu0 0
  %5714 = vmatpush1.bf16.msra.mxu0 0
  %5715 = vmatprep.subr.bf16.mxu0 0
  %5716 = vmatpush1.bf16.msra.mxu0 0
  %5717 = vmatprep.subr.bf16.mxu0 0
  %5718 = vmatpush1.bf16.msra.mxu0 0
  %5719 = vmatprep.subr.bf16.mxu0 0
  %5720 = vmatpush1.bf16.msra.mxu0 0
  %5721 = vmatprep.subr.bf16.mxu0 0
  %5722 = vmatpush1.bf16.msra.mxu0 0
  %5723 = vmatprep.subr.bf16.mxu0 0
  %5724 = vmatpush1.bf16.msra.mxu0 0
  %5725 = vmatprep.subr.bf16.mxu0 0
  %5726 = vmatpush1.bf16.msra.mxu0 0
  %5727 = vmatprep.mubr.bf16.mxu0 0
  %5728 = vmatmul.mubr.bf16.gmra.mrb[0].mxu0 %v5684
  %v5729 = vpop.f32.mrb[0].mxu0
  %v5730 = vadd.f32 0.0, %v5729
  %v5731 = vpop.f32.mrb[0].mxu0
  %v5732 = vpop.f32.mrb[0].mxu0
  %v5733 = vadd.f32 0.0, %v5732
  %v5734 = vpop.f32.mrb[0].mxu0
  %5735 = vmatprep.mubr.bf16.mxu0 0
  %5736 = vmatmul.mubr.bf16.gmra.mrb[0].mxu0 %v5687
  %v5737 = vpop.f32.mrb[0].mxu0
  %v5738 = vadd.f32 0.0, %v5737
  %v5739 = vpop.f32.mrb[0].mxu0
  %v5740 = vpop.f32.mrb[0].mxu0
  %v5741 = vadd.f32 0.0, %v5740
  %v5742 = vpop.f32.mrb[0].mxu0
  %5743 = vmatprep.mubr.bf16.mxu0 0
  %5744 = vmatmul.mubr.bf16.gmra.mrb[0].mxu0 %v5690
  %v5745 = vpop.f32.mrb[0].mxu0
  %v5746 = vadd.f32 0.0, %v5745
  %v5747 = vpop.f32.mrb[0].mxu0
  %v5748 = vpop.f32.mrb[0].mxu0
  %v5749 = vadd.f32 0.0, %v5748
  %v5750 = vpop.f32.mrb[0].mxu0
  %5751 = vmatprep.mubr.bf16.mxu0 0
  %5752 = vmatmul.mubr.bf16.gmra.mrb[0].mxu0 %v5693
  %v5753 = vpop.f32.mrb[0].mxu0
  %v5754 = vadd.f32 0.0, %v5753
  %v5755 = vpop.f32.mrb[0].mxu0
  %v5756 = vpop.f32.mrb[0].mxu0
  %v5757 = vadd.f32 0.0, %v5756
  %v5758 = vpop.f32.mrb[0].mxu0
  %5759 = vdwg.mxu0
  %5760 = vrot.lane.b32.xlu0 %v3729, 56
  %v5761 = vpop.permute.xlu0 %5760
  %5762 = vrot.lane.b32.xlu0 %v3730, 56
  %v5763 = vpop.permute.xlu0 %5762
  %5764 = vrot.lane.b32.xlu0 %v3731, 56
  %v5765 = vpop.permute.xlu0 %5764
  %5766 = vrot.lane.b32.xlu0 %v3732, 56
  %v5767 = vpop.permute.xlu0 %5766
  %v5773 = vsel %vm1642, %v5218, 0
  %v5776 = vsel %vm1642, %v5219, 0
  %v5779 = vsel %vm1642, %v5220, 0
  %v5782 = vsel %vm1642, %v5221, 0
  %5784 = vmatprep.subr.bf16.mxu0 0
  %5785 = vmatpush1.bf16.msra.mxu0 %v5761
  %5786 = vmatprep.subr.bf16.mxu0 0
  %5787 = vmatpush1.bf16.msra.mxu0 %v5763
  %5788 = vmatprep.subr.bf16.mxu0 0
  %5789 = vmatpush1.bf16.msra.mxu0 %v5765
  %5790 = vmatprep.subr.bf16.mxu0 0
  %5791 = vmatpush1.bf16.msra.mxu0 %v5767
  %5792 = vmatprep.subr.bf16.mxu0 0
  %5793 = vmatpush1.bf16.msra.mxu0 0
  %5794 = vmatprep.subr.bf16.mxu0 0
  %5795 = vmatpush1.bf16.msra.mxu0 0
  %5796 = vmatprep.subr.bf16.mxu0 0
  %5797 = vmatpush1.bf16.msra.mxu0 0
  %5798 = vmatprep.subr.bf16.mxu0 0
  %5799 = vmatpush1.bf16.msra.mxu0 0
  %5800 = vmatprep.subr.bf16.mxu0 0
  %5801 = vmatpush1.bf16.msra.mxu0 0
  %5802 = vmatprep.subr.bf16.mxu0 0
  %5803 = vmatpush1.bf16.msra.mxu0 0
  %5804 = vmatprep.subr.bf16.mxu0 0
  %5805 = vmatpush1.bf16.msra.mxu0 0
  %5806 = vmatprep.subr.bf16.mxu0 0
  %5807 = vmatpush1.bf16.msra.mxu0 0
  %5808 = vmatprep.subr.bf16.mxu0 0
  %5809 = vmatpush1.bf16.msra.mxu0 0
  %5810 = vmatprep.subr.bf16.mxu0 0
  %5811 = vmatpush1.bf16.msra.mxu0 0
  %5812 = vmatprep.subr.bf16.mxu0 0
  %5813 = vmatpush1.bf16.msra.mxu0 0
  %5814 = vmatprep.subr.bf16.mxu0 0
  %5815 = vmatpush1.bf16.msra.mxu0 0
  %5816 = vmatprep.mubr.bf16.mxu0 0
  %5817 = vmatmul.mubr.bf16.gmra.mrb[0].mxu0 %v5773
  %v5818 = vpop.f32.mrb[0].mxu0
  %v5819 = vadd.f32 0.0, %v5818
  %v5820 = vpop.f32.mrb[0].mxu0
  %v5821 = vpop.f32.mrb[0].mxu0
  %v5822 = vadd.f32 0.0, %v5821
  %v5823 = vpop.f32.mrb[0].mxu0
  %5824 = vmatprep.mubr.bf16.mxu0 0
  %5825 = vmatmul.mubr.bf16.gmra.mrb[0].mxu0 %v5776
  %v5826 = vpop.f32.mrb[0].mxu0
  %v5827 = vadd.f32 0.0, %v5826
  %v5828 = vpop.f32.mrb[0].mxu0
  %v5829 = vpop.f32.mrb[0].mxu0
  %v5830 = vadd.f32 0.0, %v5829
  %v5831 = vpop.f32.mrb[0].mxu0
  %5832 = vmatprep.mubr.bf16.mxu0 0
  %5833 = vmatmul.mubr.bf16.gmra.mrb[0].mxu0 %v5779
  %v5834 = vpop.f32.mrb[0].mxu0
  %v5835 = vadd.f32 0.0, %v5834
  %v5836 = vpop.f32.mrb[0].mxu0
  %v5837 = vpop.f32.mrb[0].mxu0
  %v5838 = vadd.f32 0.0, %v5837
  %v5839 = vpop.f32.mrb[0].mxu0
  %5840 = vmatprep.mubr.bf16.mxu0 0
  %5841 = vmatmul.mubr.bf16.gmra.mrb[0].mxu0 %v5782
  %v5842 = vpop.f32.mrb[0].mxu0
  %v5843 = vadd.f32 0.0, %v5842
  %v5844 = vpop.f32.mrb[0].mxu0
  %v5845 = vpop.f32.mrb[0].mxu0
  %v5846 = vadd.f32 0.0, %v5845
  %v5847 = vpop.f32.mrb[0].mxu0
  %5848 = vdwg.mxu0
  %5849 = vrot.lane.b32.xlu0 %v3733, 56
  %v5850 = vpop.permute.xlu0 %5849
  %5851 = vrot.lane.b32.xlu0 %v3734, 56
  %v5852 = vpop.permute.xlu0 %5851
  %5853 = vrot.lane.b32.xlu0 %v3735, 56
  %v5854 = vpop.permute.xlu0 %5853
  %5855 = vrot.lane.b32.xlu0 %v3736, 56
  %v5856 = vpop.permute.xlu0 %5855
  %v5862 = vsel %vm1642, %v5222, 0
  %v5865 = vsel %vm1642, %v5223, 0
  %v5868 = vsel %vm1642, %v5224, 0
  %v5871 = vsel %vm1642, %v5225, 0
  %5873 = vmatprep.subr.bf16.mxu0 0
  %5874 = vmatpush1.bf16.msra.mxu0 %v5850
  %5875 = vmatprep.subr.bf16.mxu0 0
  %5876 = vmatpush1.bf16.msra.mxu0 %v5852
  %5877 = vmatprep.subr.bf16.mxu0 0
  %5878 = vmatpush1.bf16.msra.mxu0 %v5854
  %5879 = vmatprep.subr.bf16.mxu0 0
  %5880 = vmatpush1.bf16.msra.mxu0 %v5856
  %5881 = vmatprep.subr.bf16.mxu0 0
  %5882 = vmatpush1.bf16.msra.mxu0 0
  %5883 = vmatprep.subr.bf16.mxu0 0
  %5884 = vmatpush1.bf16.msra.mxu0 0
  %5885 = vmatprep.subr.bf16.mxu0 0
  %5886 = vmatpush1.bf16.msra.mxu0 0
  %5887 = vmatprep.subr.bf16.mxu0 0
  %5888 = vmatpush1.bf16.msra.mxu0 0
  %5889 = vmatprep.subr.bf16.mxu0 0
  %5890 = vmatpush1.bf16.msra.mxu0 0
  %5891 = vmatprep.subr.bf16.mxu0 0
  %5892 = vmatpush1.bf16.msra.mxu0 0
  %5893 = vmatprep.subr.bf16.mxu0 0
  %5894 = vmatpush1.bf16.msra.mxu0 0
  %5895 = vmatprep.subr.bf16.mxu0 0
  %5896 = vmatpush1.bf16.msra.mxu0 0
  %5897 = vmatprep.subr.bf16.mxu0 0
  %5898 = vmatpush1.bf16.msra.mxu0 0
  %5899 = vmatprep.subr.bf16.mxu0 0
  %5900 = vmatpush1.bf16.msra.mxu0 0
  %5901 = vmatprep.subr.bf16.mxu0 0
  %5902 = vmatpush1.bf16.msra.mxu0 0
  %5903 = vmatprep.subr.bf16.mxu0 0
  %5904 = vmatpush1.bf16.msra.mxu0 0
  %5905 = vmatprep.mubr.bf16.mxu0 0
  %5906 = vmatmul.mubr.bf16.gmra.mrb[0].mxu0 %v5862
  %v5907 = vpop.f32.mrb[0].mxu0
  %v5908 = vadd.f32 0.0, %v5907
  %v5909 = vpop.f32.mrb[0].mxu0
  %v5910 = vpop.f32.mrb[0].mxu0
  %v5911 = vadd.f32 0.0, %v5910
  %v5912 = vpop.f32.mrb[0].mxu0
  %5913 = vmatprep.mubr.bf16.mxu0 0
  %5914 = vmatmul.mubr.bf16.gmra.mrb[0].mxu0 %v5865
  %v5915 = vpop.f32.mrb[0].mxu0
  %v5916 = vadd.f32 0.0, %v5915
  %v5917 = vpop.f32.mrb[0].mxu0
  %v5918 = vpop.f32.mrb[0].mxu0
  %v5919 = vadd.f32 0.0, %v5918
  %v5920 = vpop.f32.mrb[0].mxu0
  %5921 = vmatprep.mubr.bf16.mxu0 0
  %5922 = vmatmul.mubr.bf16.gmra.mrb[0].mxu0 %v5868
  %v5923 = vpop.f32.mrb[0].mxu0
  %v5924 = vadd.f32 0.0, %v5923
  %v5925 = vpop.f32.mrb[0].mxu0
  %v5926 = vpop.f32.mrb[0].mxu0
  %v5927 = vadd.f32 0.0, %v5926
  %v5928 = vpop.f32.mrb[0].mxu0
  %5929 = vmatprep.mubr.bf16.mxu0 0
  %5930 = vmatmul.mubr.bf16.gmra.mrb[0].mxu0 %v5871
  %v5931 = vpop.f32.mrb[0].mxu0
  %v5932 = vadd.f32 0.0, %v5931
  %v5933 = vpop.f32.mrb[0].mxu0
  %v5934 = vpop.f32.mrb[0].mxu0
  %v5935 = vadd.f32 0.0, %v5934
  %v5936 = vpop.f32.mrb[0].mxu0
  %5937 = vdwg.mxu0
  %v5938 = vrcp.pop %v5004
  %v5939 = vrcp.pop %v5007
  %v5940 = vrcp.pop %v5010
  %v5941 = vrcp.pop %v5013
  %v5942 = vrcp.pop %v5016
  %v5943 = vrcp.pop %v5019
  %v5944 = vrcp.pop %v5022
  %v5945 = vrcp.pop %v5025
  %v5946 = vrcp.pop %v5028
  %v5947 = vrcp.pop %v5031
  %v5948 = vrcp.pop %v5034
  %v5949 = vrcp.pop %v5037
  %v5950 = vrcp.pop %v5040
  %v5951 = vrcp.pop %v5043
  %v5952 = vrcp.pop %v5046
  %v5953 = vrcp.pop %v5049
  %v5954 = vrcp.pop %v5052
  %v5955 = vrcp.pop %v5055
  %v5956 = vrcp.pop %v5058
  %v5957 = vrcp.pop %v5061
  %v5958 = vrcp.pop %v5064
  %v5959 = vrcp.pop %v5067
  %v5960 = vrcp.pop %v5070
  %v5961 = vrcp.pop %v5073
  %v5962 = vrcp.pop %v5076
  %v5963 = vrcp.pop %v5079
  %v5964 = vrcp.pop %v5082
  %v5965 = vrcp.pop %v5085
  %v5966 = vrcp.pop %v5088
  %v5967 = vrcp.pop %v5091
  %v5968 = vrcp.pop %v5094
  %v5969 = vrcp.pop %v5097
  %v5970 = vrcp.pop %v5100
  %v5971 = vrcp.pop %v5103
  %v5972 = vrcp.pop %v5106
  %v5973 = vrcp.pop %v5109
  %v5974 = vrcp.pop %v5112
  %v5975 = vrcp.pop %v5115
  %v5976 = vrcp.pop %v5118
  %v5977 = vrcp.pop %v5121
  %v5978 = vrcp.pop %v5124
  %v5979 = vrcp.pop %v5127
  %v5980 = vrcp.pop %v5130
  %v5981 = vrcp.pop %v5133
  %v5982 = vrcp.pop %v5136
  %v5983 = vrcp.pop %v5139
  %v5984 = vrcp.pop %v5142
  %v5985 = vrcp.pop %v5145
  %v5986 = vrcp.pop %v5148
  %v5987 = vrcp.pop %v5151
  %v5988 = vrcp.pop %v5154
  %v5989 = vrcp.pop %v5157
  %v5990 = vrcp.pop %v5160
  %v5991 = vrcp.pop %v5163
  %v5992 = vrcp.pop %v5166
  %v5993 = vrcp.pop %v5169
  %v5994 = vrcp.pop %v5172
  %v5995 = vrcp.pop %v5175
  %v5996 = vrcp.pop %v5178
  %v5997 = vrcp.pop %v5181
  %v5998 = vrcp.pop %v5184
  %v5999 = vrcp.pop %v5187
  %v6000 = vrcp.pop %v5190
  %v6001 = vrcp.pop %v5193
  %v6002 = vmul.f32 %v5285, %v5938
  %v6003 = vmul.f32 %v5288, %v5939
  %v6004 = vmul.f32 %v5293, %v5940
  %v6005 = vmul.f32 %v5296, %v5941
  %v6006 = vmul.f32 %v5301, %v5942
  %v6007 = vmul.f32 %v5304, %v5943
  %v6008 = vmul.f32 %v5309, %v5944
  %v6009 = vmul.f32 %v5312, %v5945
  %v6010 = vmul.f32 %v5374, %v5946
  %v6011 = vmul.f32 %v5377, %v5947
  %v6012 = vmul.f32 %v5382, %v5948
  %v6013 = vmul.f32 %v5385, %v5949
  %v6014 = vmul.f32 %v5390, %v5950
  %v6015 = vmul.f32 %v5393, %v5951
  %v6016 = vmul.f32 %v5398, %v5952
  %v6017 = vmul.f32 %v5401, %v5953
  %v6018 = vmul.f32 %v5463, %v5954
  %v6019 = vmul.f32 %v5466, %v5955
  %v6020 = vmul.f32 %v5471, %v5956
  %v6021 = vmul.f32 %v5474, %v5957
  %v6022 = vmul.f32 %v5479, %v5958
  %v6023 = vmul.f32 %v5482, %v5959
  %v6024 = vmul.f32 %v5487, %v5960
  %v6025 = vmul.f32 %v5490, %v5961
  %v6026 = vmul.f32 %v5552, %v5962
  %v6027 = vmul.f32 %v5555, %v5963
  %v6028 = vmul.f32 %v5560, %v5964
  %v6029 = vmul.f32 %v5563, %v5965
  %v6030 = vmul.f32 %v5568, %v5966
  %v6031 = vmul.f32 %v5571, %v5967
  %v6032 = vmul.f32 %v5576, %v5968
  %v6033 = vmul.f32 %v5579, %v5969
  %v6034 = vmul.f32 %v5641, %v5970
  %v6035 = vmul.f32 %v5644, %v5971
  %v6036 = vmul.f32 %v5649, %v5972
  %v6037 = vmul.f32 %v5652, %v5973
  %v6038 = vmul.f32 %v5657, %v5974
  %v6039 = vmul.f32 %v5660, %v5975
  %v6040 = vmul.f32 %v5665, %v5976
  %v6041 = vmul.f32 %v5668, %v5977
  %v6042 = vmul.f32 %v5730, %v5978
  %v6043 = vmul.f32 %v5733, %v5979
  %v6044 = vmul.f32 %v5738, %v5980
  %v6045 = vmul.f32 %v5741, %v5981
  %v6046 = vmul.f32 %v5746, %v5982
  %v6047 = vmul.f32 %v5749, %v5983
  %v6048 = vmul.f32 %v5754, %v5984
  %v6049 = vmul.f32 %v5757, %v5985
  %v6050 = vmul.f32 %v5819, %v5986
  %v6051 = vmul.f32 %v5822, %v5987
  %v6052 = vmul.f32 %v5827, %v5988
  %v6053 = vmul.f32 %v5830, %v5989
  %v6054 = vmul.f32 %v5835, %v5990
  %v6055 = vmul.f32 %v5838, %v5991
  %v6056 = vmul.f32 %v5843, %v5992
  %v6057 = vmul.f32 %v5846, %v5993
  %v6058 = vmul.f32 %v5908, %v5994
  %v6059 = vmul.f32 %v5911, %v5995
  %v6060 = vmul.f32 %v5916, %v5996
  %v6061 = vmul.f32 %v5919, %v5997
  %v6062 = vmul.f32 %v5924, %v5998
  %v6063 = vmul.f32 %v5927, %v5999
  %v6064 = vmul.f32 %v5932, %v6000
  %v6065 = vmul.f32 %v5935, %v6001
  %v6066 = vld [vmem:[#allocation3] sm:$0xff]
  %v6067 = vld [vmem:[#allocation3 + $0x8] sm:$0xff]
  %v6068 = vld [vmem:[#allocation3 + $0x10] sm:$0xff]
  %v6069 = vld [vmem:[#allocation3 + $0x18] sm:$0xff]
  %v6070 = vld [vmem:[#allocation3 + $0x20] sm:$0xff]
  %v6071 = vld [vmem:[#allocation3 + $0x28] sm:$0xff]
  %v6072 = vld [vmem:[#allocation3 + $0x30] sm:$0xff]
  %v6073 = vld [vmem:[#allocation3 + $0x38] sm:$0xff]
  %v6074 = vld [vmem:[#allocation3 + $0x40] sm:$0xff]
  %v6075 = vld [vmem:[#allocation3 + $0x48] sm:$0xff]
  %v6076 = vld [vmem:[#allocation3 + $0x50] sm:$0xff]
  %v6077 = vld [vmem:[#allocation3 + $0x58] sm:$0xff]
  %v6078 = vld [vmem:[#allocation3 + $0x60] sm:$0xff]
  %v6079 = vld [vmem:[#allocation3 + $0x68] sm:$0xff]
  %v6080 = vld [vmem:[#allocation3 + $0x70] sm:$0xff]
  %v6081 = vld [vmem:[#allocation3 + $0x78] sm:$0xff]
  %v6082 = vld [vmem:[#allocation3 + $0x80] sm:$0xff]
  %v6083 = vld [vmem:[#allocation3 + $0x88] sm:$0xff]
  %v6084 = vld [vmem:[#allocation3 + $0x90] sm:$0xff]
  %v6085 = vld [vmem:[#allocation3 + $0x98] sm:$0xff]
  %v6086 = vld [vmem:[#allocation3 + $0xa0] sm:$0xff]
  %v6087 = vld [vmem:[#allocation3 + $0xa8] sm:$0xff]
  %v6088 = vld [vmem:[#allocation3 + $0xb0] sm:$0xff]
  %v6089 = vld [vmem:[#allocation3 + $0xb8] sm:$0xff]
  %v6090 = vld [vmem:[#allocation3 + $0xc0] sm:$0xff]
  %v6091 = vld [vmem:[#allocation3 + $0xc8] sm:$0xff]
  %v6092 = vld [vmem:[#allocation3 + $0xd0] sm:$0xff]
  %v6093 = vld [vmem:[#allocation3 + $0xd8] sm:$0xff]
  %v6094 = vld [vmem:[#allocation3 + $0xe0] sm:$0xff]
  %v6095 = vld [vmem:[#allocation3 + $0xe8] sm:$0xff]
  %v6096 = vld [vmem:[#allocation3 + $0xf0] sm:$0xff]
  %v6097 = vld [vmem:[#allocation3 + $0xf8] sm:$0xff]
  %v6098 = vld [vmem:[#allocation3 + $0x100] sm:$0xff]
  %v6099 = vld [vmem:[#allocation3 + $0x108] sm:$0xff]
  %v6100 = vld [vmem:[#allocation3 + $0x110] sm:$0xff]
  %v6101 = vld [vmem:[#allocation3 + $0x118] sm:$0xff]
  %v6102 = vld [vmem:[#allocation3 + $0x120] sm:$0xff]
  %v6103 = vld [vmem:[#allocation3 + $0x128] sm:$0xff]
  %v6104 = vld [vmem:[#allocation3 + $0x130] sm:$0xff]
  %v6105 = vld [vmem:[#allocation3 + $0x138] sm:$0xff]
  %v6106 = vld [vmem:[#allocation3 + $0x140] sm:$0xff]
  %v6107 = vld [vmem:[#allocation3 + $0x148] sm:$0xff]
  %v6108 = vld [vmem:[#allocation3 + $0x150] sm:$0xff]
  %v6109 = vld [vmem:[#allocation3 + $0x158] sm:$0xff]
  %v6110 = vld [vmem:[#allocation3 + $0x160] sm:$0xff]
  %v6111 = vld [vmem:[#allocation3 + $0x168] sm:$0xff]
  %v6112 = vld [vmem:[#allocation3 + $0x170] sm:$0xff]
  %v6113 = vld [vmem:[#allocation3 + $0x178] sm:$0xff]
  %v6114 = vld [vmem:[#allocation3 + $0x180] sm:$0xff]
  %v6115 = vld [vmem:[#allocation3 + $0x188] sm:$0xff]
  %v6116 = vld [vmem:[#allocation3 + $0x190] sm:$0xff]
  %v6117 = vld [vmem:[#allocation3 + $0x198] sm:$0xff]
  %v6118 = vld [vmem:[#allocation3 + $0x1a0] sm:$0xff]
  %v6119 = vld [vmem:[#allocation3 + $0x1a8] sm:$0xff]
  %v6120 = vld [vmem:[#allocation3 + $0x1b0] sm:$0xff]
  %v6121 = vld [vmem:[#allocation3 + $0x1b8] sm:$0xff]
  %v6122 = vld [vmem:[#allocation3 + $0x1c0] sm:$0xff]
  %v6123 = vld [vmem:[#allocation3 + $0x1c8] sm:$0xff]
  %v6124 = vld [vmem:[#allocation3 + $0x1d0] sm:$0xff]
  %v6125 = vld [vmem:[#allocation3 + $0x1d8] sm:$0xff]
  %v6126 = vld [vmem:[#allocation3 + $0x1e0] sm:$0xff]
  %v6127 = vld [vmem:[#allocation3 + $0x1e8] sm:$0xff]
  %v6128 = vld [vmem:[#allocation3 + $0x1f0] sm:$0xff]
  %v6129 = vld [vmem:[#allocation3 + $0x1f8] sm:$0xff]
  %v6130 = vpack.c.bf16 %v6003, %v6002
  %v6131 = vpack.c.bf16 %v6005, %v6004
  %v6132 = vpack.c.bf16 %v6007, %v6006
  %v6133 = vpack.c.bf16 %v6009, %v6008
  %v6134 = vpack.c.bf16 %v6011, %v6010
  %v6135 = vpack.c.bf16 %v6013, %v6012
  %v6136 = vpack.c.bf16 %v6015, %v6014
  %v6137 = vpack.c.bf16 %v6017, %v6016
  %v6138 = vpack.c.bf16 %v6019, %v6018
  %v6139 = vpack.c.bf16 %v6021, %v6020
  %v6140 = vpack.c.bf16 %v6023, %v6022
  %v6141 = vpack.c.bf16 %v6025, %v6024
  %v6142 = vpack.c.bf16 %v6027, %v6026
  %v6143 = vpack.c.bf16 %v6029, %v6028
  %v6144 = vpack.c.bf16 %v6031, %v6030
  %v6145 = vpack.c.bf16 %v6033, %v6032
  %v6146 = vpack.c.bf16 %v6035, %v6034
  %v6147 = vpack.c.bf16 %v6037, %v6036
  %v6148 = vpack.c.bf16 %v6039, %v6038
  %v6149 = vpack.c.bf16 %v6041, %v6040
  %v6150 = vpack.c.bf16 %v6043, %v6042
  %v6151 = vpack.c.bf16 %v6045, %v6044
  %v6152 = vpack.c.bf16 %v6047, %v6046
  %v6153 = vpack.c.bf16 %v6049, %v6048
  %v6154 = vpack.c.bf16 %v6051, %v6050
  %v6155 = vpack.c.bf16 %v6053, %v6052
  %v6156 = vpack.c.bf16 %v6055, %v6054
  %v6157 = vpack.c.bf16 %v6057, %v6056
  %v6158 = vpack.c.bf16 %v6059, %v6058
  %v6159 = vpack.c.bf16 %v6061, %v6060
  %v6160 = vpack.c.bf16 %v6063, %v6062
  %v6161 = vpack.c.bf16 %v6065, %v6064
  %v6162 = vld [vmem:[%s3 + $0x4] sm:$0xf]
  %v6164 = vsel %vm845, %v6130, 0
  %v6167 = vsel %vm845, %v6131, 0
  %v6170 = vsel %vm845, %v6132, 0
  %v6173 = vsel %vm845, %v6133, 0
  %v6176 = vsel %vm845, %v6134, 0
  %v6179 = vsel %vm845, %v6135, 0
  %v6182 = vsel %vm845, %v6136, 0
  %v6185 = vsel %vm845, %v6137, 0
  %v6188 = vsel %vm845, %v6138, 0
  %v6191 = vsel %vm845, %v6139, 0
  %v6194 = vsel %vm845, %v6140, 0
  %v6197 = vsel %vm845, %v6141, 0
  %v6200 = vsel %vm845, %v6142, 0
  %v6203 = vsel %vm845, %v6143, 0
  %v6206 = vsel %vm845, %v6144, 0
  %v6209 = vsel %vm845, %v6145, 0
  %v6212 = vsel %vm845, %v6146, 0
  %v6215 = vsel %vm845, %v6147, 0
  %v6218 = vsel %vm845, %v6148, 0
  %v6221 = vsel %vm845, %v6149, 0
  %v6224 = vsel %vm845, %v6150, 0
  %v6227 = vsel %vm845, %v6151, 0
  %v6230 = vsel %vm845, %v6152, 0
  %v6233 = vsel %vm845, %v6153, 0
  %v6236 = vsel %vm845, %v6154, 0
  %v6239 = vsel %vm845, %v6155, 0
  %v6242 = vsel %vm845, %v6156, 0
  %v6245 = vsel %vm845, %v6157, 0
  %v6248 = vsel %vm845, %v6158, 0
  %v6251 = vsel %vm845, %v6159, 0
  %v6254 = vsel %vm845, %v6160, 0
  %v6257 = vsel %vm845, %v6161, 0
  %v6260 = vsel %vm3284, %v6162, 0
  %6262 = vmatprep.subr.bf16.mxu0 0
  %6263 = vmatpush1.bf16.msra.mxu0 %v6260
  %6264 = vmatprep.subr.bf16.mxu0 0
  %6265 = vmatpush1.bf16.msra.mxu0 0
  %6266 = vmatprep.subr.bf16.mxu0 0
  %6267 = vmatpush1.bf16.msra.mxu0 0
  %6268 = vmatprep.subr.bf16.mxu0 0
  %6269 = vmatpush1.bf16.msra.mxu0 0
  %6270 = vmatprep.subr.bf16.mxu0 0
  %6271 = vmatpush1.bf16.msra.mxu0 0
  %6272 = vmatprep.subr.bf16.mxu0 0
  %6273 = vmatpush1.bf16.msra.mxu0 0
  %6274 = vmatprep.subr.bf16.mxu0 0
  %6275 = vmatpush1.bf16.msra.mxu0 0
  %6276 = vmatprep.subr.bf16.mxu0 0
  %6277 = vmatpush1.bf16.msra.mxu0 0
  %6278 = vmatprep.subr.bf16.mxu0 0
  %6279 = vmatpush1.bf16.msra.mxu0 0
  %6280 = vmatprep.subr.bf16.mxu0 0
  %6281 = vmatpush1.bf16.msra.mxu0 0
  %6282 = vmatprep.subr.bf16.mxu0 0
  %6283 = vmatpush1.bf16.msra.mxu0 0
  %6284 = vmatprep.subr.bf16.mxu0 0
  %6285 = vmatpush1.bf16.msra.mxu0 0
  %6286 = vmatprep.subr.bf16.mxu0 0
  %6287 = vmatpush1.bf16.msra.mxu0 0
  %6288 = vmatprep.subr.bf16.mxu0 0
  %6289 = vmatpush1.bf16.msra.mxu0 0
  %6290 = vmatprep.subr.bf16.mxu0 0
  %6291 = vmatpush1.bf16.msra.mxu0 0
  %6292 = vmatprep.subr.bf16.mxu0 0
  %6293 = vmatpush1.bf16.msra.mxu0 0
  %6294 = vmatprep.mubr.bf16.mxu0 0
  %6295 = vmatmul.mubr.bf16.gmra.mrb[0].mxu0 %v6164
  %v6296 = vpop.f32.mrb[0].mxu0
  %v6297 = vadd.f32 0.0, %v6296
  %v6298 = vpop.f32.mrb[0].mxu0
  %v6299 = vpop.f32.mrb[0].mxu0
  %v6300 = vadd.f32 0.0, %v6299
  %v6301 = vpop.f32.mrb[0].mxu0
  %6302 = vmatprep.mubr.bf16.mxu0 0
  %6303 = vmatmul.mubr.bf16.gmra.mrb[0].mxu0 %v6167
  %v6304 = vpop.f32.mrb[0].mxu0
  %v6305 = vadd.f32 0.0, %v6304
  %v6306 = vpop.f32.mrb[0].mxu0
  %v6307 = vpop.f32.mrb[0].mxu0
  %v6308 = vadd.f32 0.0, %v6307
  %v6309 = vpop.f32.mrb[0].mxu0
  %6310 = vmatprep.mubr.bf16.mxu0 0
  %6311 = vmatmul.mubr.bf16.gmra.mrb[0].mxu0 %v6170
  %v6312 = vpop.f32.mrb[0].mxu0
  %v6313 = vadd.f32 0.0, %v6312
  %v6314 = vpop.f32.mrb[0].mxu0
  %v6315 = vpop.f32.mrb[0].mxu0
  %v6316 = vadd.f32 0.0, %v6315
  %v6317 = vpop.f32.mrb[0].mxu0
  %6318 = vmatprep.mubr.bf16.mxu0 0
  %6319 = vmatmul.mubr.bf16.gmra.mrb[0].mxu0 %v6173
  %v6320 = vpop.f32.mrb[0].mxu0
  %v6321 = vadd.f32 0.0, %v6320
  %v6322 = vpop.f32.mrb[0].mxu0
  %v6323 = vpop.f32.mrb[0].mxu0
  %v6324 = vadd.f32 0.0, %v6323
  %v6325 = vpop.f32.mrb[0].mxu0
  %6326 = vmatprep.mubr.bf16.mxu0 0
  %6327 = vmatmul.mubr.bf16.gmra.mrb[0].mxu0 %v6176
  %v6328 = vpop.f32.mrb[0].mxu0
  %v6329 = vadd.f32 0.0, %v6328
  %v6330 = vpop.f32.mrb[0].mxu0
  %v6331 = vpop.f32.mrb[0].mxu0
  %v6332 = vadd.f32 0.0, %v6331
  %v6333 = vpop.f32.mrb[0].mxu0
  %6334 = vmatprep.mubr.bf16.mxu0 0
  %6335 = vmatmul.mubr.bf16.gmra.mrb[0].mxu0 %v6179
  %v6336 = vpop.f32.mrb[0].mxu0
  %v6337 = vadd.f32 0.0, %v6336
  %v6338 = vpop.f32.mrb[0].mxu0
  %v6339 = vpop.f32.mrb[0].mxu0
  %v6340 = vadd.f32 0.0, %v6339
  %v6341 = vpop.f32.mrb[0].mxu0
  %6342 = vmatprep.mubr.bf16.mxu0 0
  %6343 = vmatmul.mubr.bf16.gmra.mrb[0].mxu0 %v6182
  %v6344 = vpop.f32.mrb[0].mxu0
  %v6345 = vadd.f32 0.0, %v6344
  %v6346 = vpop.f32.mrb[0].mxu0
  %v6347 = vpop.f32.mrb[0].mxu0
  %v6348 = vadd.f32 0.0, %v6347
  %v6349 = vpop.f32.mrb[0].mxu0
  %6350 = vmatprep.mubr.bf16.mxu0 0
  %6351 = vmatmul.mubr.bf16.gmra.mrb[0].mxu0 %v6185
  %v6352 = vpop.f32.mrb[0].mxu0
  %v6353 = vadd.f32 0.0, %v6352
  %v6354 = vpop.f32.mrb[0].mxu0
  %v6355 = vpop.f32.mrb[0].mxu0
  %v6356 = vadd.f32 0.0, %v6355
  %v6357 = vpop.f32.mrb[0].mxu0
  %6358 = vmatprep.mubr.bf16.mxu0 0
  %6359 = vmatmul.mubr.bf16.gmra.mrb[0].mxu0 %v6188
  %v6360 = vpop.f32.mrb[0].mxu0
  %v6361 = vadd.f32 0.0, %v6360
  %v6362 = vpop.f32.mrb[0].mxu0
  %v6363 = vpop.f32.mrb[0].mxu0
  %v6364 = vadd.f32 0.0, %v6363
  %v6365 = vpop.f32.mrb[0].mxu0
  %6366 = vmatprep.mubr.bf16.mxu0 0
  %6367 = vmatmul.mubr.bf16.gmra.mrb[0].mxu0 %v6191
  %v6368 = vpop.f32.mrb[0].mxu0
  %v6369 = vadd.f32 0.0, %v6368
  %v6370 = vpop.f32.mrb[0].mxu0
  %v6371 = vpop.f32.mrb[0].mxu0
  %v6372 = vadd.f32 0.0, %v6371
  %v6373 = vpop.f32.mrb[0].mxu0
  %6374 = vmatprep.mubr.bf16.mxu0 0
  %6375 = vmatmul.mubr.bf16.gmra.mrb[0].mxu0 %v6194
  %v6376 = vpop.f32.mrb[0].mxu0
  %v6377 = vadd.f32 0.0, %v6376
  %v6378 = vpop.f32.mrb[0].mxu0
  %v6379 = vpop.f32.mrb[0].mxu0
  %v6380 = vadd.f32 0.0, %v6379
  %v6381 = vpop.f32.mrb[0].mxu0
  %6382 = vmatprep.mubr.bf16.mxu0 0
  %6383 = vmatmul.mubr.bf16.gmra.mrb[0].mxu0 %v6197
  %v6384 = vpop.f32.mrb[0].mxu0
  %v6385 = vadd.f32 0.0, %v6384
  %v6386 = vpop.f32.mrb[0].mxu0
  %v6387 = vpop.f32.mrb[0].mxu0
  %v6388 = vadd.f32 0.0, %v6387
  %v6389 = vpop.f32.mrb[0].mxu0
  %6390 = vmatprep.mubr.bf16.mxu0 0
  %6391 = vmatmul.mubr.bf16.gmra.mrb[0].mxu0 %v6200
  %v6392 = vpop.f32.mrb[0].mxu0
  %v6393 = vadd.f32 0.0, %v6392
  %v6394 = vpop.f32.mrb[0].mxu0
  %v6395 = vpop.f32.mrb[0].mxu0
  %v6396 = vadd.f32 0.0, %v6395
  %v6397 = vpop.f32.mrb[0].mxu0
  %6398 = vmatprep.mubr.bf16.mxu0 0
  %6399 = vmatmul.mubr.bf16.gmra.mrb[0].mxu0 %v6203
  %v6400 = vpop.f32.mrb[0].mxu0
  %v6401 = vadd.f32 0.0, %v6400
  %v6402 = vpop.f32.mrb[0].mxu0
  %v6403 = vpop.f32.mrb[0].mxu0
  %v6404 = vadd.f32 0.0, %v6403
  %v6405 = vpop.f32.mrb[0].mxu0
  %6406 = vmatprep.mubr.bf16.mxu0 0
  %6407 = vmatmul.mubr.bf16.gmra.mrb[0].mxu0 %v6206
  %v6408 = vpop.f32.mrb[0].mxu0
  %v6409 = vadd.f32 0.0, %v6408
  %v6410 = vpop.f32.mrb[0].mxu0
  %v6411 = vpop.f32.mrb[0].mxu0
  %v6412 = vadd.f32 0.0, %v6411
  %v6413 = vpop.f32.mrb[0].mxu0
  %6414 = vmatprep.mubr.bf16.mxu0 0
  %6415 = vmatmul.mubr.bf16.gmra.mrb[0].mxu0 %v6209
  %v6416 = vpop.f32.mrb[0].mxu0
  %v6417 = vadd.f32 0.0, %v6416
  %v6418 = vpop.f32.mrb[0].mxu0
  %v6419 = vpop.f32.mrb[0].mxu0
  %v6420 = vadd.f32 0.0, %v6419
  %v6421 = vpop.f32.mrb[0].mxu0
  %6422 = vmatprep.mubr.bf16.mxu0 0
  %6423 = vmatmul.mubr.bf16.gmra.mrb[0].mxu0 %v6212
  %v6424 = vpop.f32.mrb[0].mxu0
  %v6425 = vadd.f32 0.0, %v6424
  %v6426 = vpop.f32.mrb[0].mxu0
  %v6427 = vpop.f32.mrb[0].mxu0
  %v6428 = vadd.f32 0.0, %v6427
  %v6429 = vpop.f32.mrb[0].mxu0
  %6430 = vmatprep.mubr.bf16.mxu0 0
  %6431 = vmatmul.mubr.bf16.gmra.mrb[0].mxu0 %v6215
  %v6432 = vpop.f32.mrb[0].mxu0
  %v6433 = vadd.f32 0.0, %v6432
  %v6434 = vpop.f32.mrb[0].mxu0
  %v6435 = vpop.f32.mrb[0].mxu0
  %v6436 = vadd.f32 0.0, %v6435
  %v6437 = vpop.f32.mrb[0].mxu0
  %6438 = vmatprep.mubr.bf16.mxu0 0
  %6439 = vmatmul.mubr.bf16.gmra.mrb[0].mxu0 %v6218
  %v6440 = vpop.f32.mrb[0].mxu0
  %v6441 = vadd.f32 0.0, %v6440
  %v6442 = vpop.f32.mrb[0].mxu0
  %v6443 = vpop.f32.mrb[0].mxu0
  %v6444 = vadd.f32 0.0, %v6443
  %v6445 = vpop.f32.mrb[0].mxu0
  %6446 = vmatprep.mubr.bf16.mxu0 0
  %6447 = vmatmul.mubr.bf16.gmra.mrb[0].mxu0 %v6221
  %v6448 = vpop.f32.mrb[0].mxu0
  %v6449 = vadd.f32 0.0, %v6448
  %v6450 = vpop.f32.mrb[0].mxu0
  %v6451 = vpop.f32.mrb[0].mxu0
  %v6452 = vadd.f32 0.0, %v6451
  %v6453 = vpop.f32.mrb[0].mxu0
  %6454 = vmatprep.mubr.bf16.mxu0 0
  %6455 = vmatmul.mubr.bf16.gmra.mrb[0].mxu0 %v6224
  %v6456 = vpop.f32.mrb[0].mxu0
  %v6457 = vadd.f32 0.0, %v6456
  %v6458 = vpop.f32.mrb[0].mxu0
  %v6459 = vpop.f32.mrb[0].mxu0
  %v6460 = vadd.f32 0.0, %v6459
  %v6461 = vpop.f32.mrb[0].mxu0
  %6462 = vmatprep.mubr.bf16.mxu0 0
  %6463 = vmatmul.mubr.bf16.gmra.mrb[0].mxu0 %v6227
  %v6464 = vpop.f32.mrb[0].mxu0
  %v6465 = vadd.f32 0.0, %v6464
  %v6466 = vpop.f32.mrb[0].mxu0
  %v6467 = vpop.f32.mrb[0].mxu0
  %v6468 = vadd.f32 0.0, %v6467
  %v6469 = vpop.f32.mrb[0].mxu0
  %6470 = vmatprep.mubr.bf16.mxu0 0
  %6471 = vmatmul.mubr.bf16.gmra.mrb[0].mxu0 %v6230
  %v6472 = vpop.f32.mrb[0].mxu0
  %v6473 = vadd.f32 0.0, %v6472
  %v6474 = vpop.f32.mrb[0].mxu0
  %v6475 = vpop.f32.mrb[0].mxu0
  %v6476 = vadd.f32 0.0, %v6475
  %v6477 = vpop.f32.mrb[0].mxu0
  %6478 = vmatprep.mubr.bf16.mxu0 0
  %6479 = vmatmul.mubr.bf16.gmra.mrb[0].mxu0 %v6233
  %v6480 = vpop.f32.mrb[0].mxu0
  %v6481 = vadd.f32 0.0, %v6480
  %v6482 = vpop.f32.mrb[0].mxu0
  %v6483 = vpop.f32.mrb[0].mxu0
  %v6484 = vadd.f32 0.0, %v6483
  %v6485 = vpop.f32.mrb[0].mxu0
  %6486 = vmatprep.mubr.bf16.mxu0 0
  %6487 = vmatmul.mubr.bf16.gmra.mrb[0].mxu0 %v6236
  %v6488 = vpop.f32.mrb[0].mxu0
  %v6489 = vadd.f32 0.0, %v6488
  %v6490 = vpop.f32.mrb[0].mxu0
  %v6491 = vpop.f32.mrb[0].mxu0
  %v6492 = vadd.f32 0.0, %v6491
  %v6493 = vpop.f32.mrb[0].mxu0
  %6494 = vmatprep.mubr.bf16.mxu0 0
  %6495 = vmatmul.mubr.bf16.gmra.mrb[0].mxu0 %v6239
  %v6496 = vpop.f32.mrb[0].mxu0
  %v6497 = vadd.f32 0.0, %v6496
  %v6498 = vpop.f32.mrb[0].mxu0
  %v6499 = vpop.f32.mrb[0].mxu0
  %v6500 = vadd.f32 0.0, %v6499
  %v6501 = vpop.f32.mrb[0].mxu0
  %6502 = vmatprep.mubr.bf16.mxu0 0
  %6503 = vmatmul.mubr.bf16.gmra.mrb[0].mxu0 %v6242
  %v6504 = vpop.f32.mrb[0].mxu0
  %v6505 = vadd.f32 0.0, %v6504
  %v6506 = vpop.f32.mrb[0].mxu0
  %v6507 = vpop.f32.mrb[0].mxu0
  %v6508 = vadd.f32 0.0, %v6507
  %v6509 = vpop.f32.mrb[0].mxu0
  %6510 = vmatprep.mubr.bf16.mxu0 0
  %6511 = vmatmul.mubr.bf16.gmra.mrb[0].mxu0 %v6245
  %v6512 = vpop.f32.mrb[0].mxu0
  %v6513 = vadd.f32 0.0, %v6512
  %v6514 = vpop.f32.mrb[0].mxu0
  %v6515 = vpop.f32.mrb[0].mxu0
  %v6516 = vadd.f32 0.0, %v6515
  %v6517 = vpop.f32.mrb[0].mxu0
  %6518 = vmatprep.mubr.bf16.mxu0 0
  %6519 = vmatmul.mubr.bf16.gmra.mrb[0].mxu0 %v6248
  %v6520 = vpop.f32.mrb[0].mxu0
  %v6521 = vadd.f32 0.0, %v6520
  %v6522 = vpop.f32.mrb[0].mxu0
  %v6523 = vpop.f32.mrb[0].mxu0
  %v6524 = vadd.f32 0.0, %v6523
  %v6525 = vpop.f32.mrb[0].mxu0
  %6526 = vmatprep.mubr.bf16.mxu0 0
  %6527 = vmatmul.mubr.bf16.gmra.mrb[0].mxu0 %v6251
  %v6528 = vpop.f32.mrb[0].mxu0
  %v6529 = vadd.f32 0.0, %v6528
  %v6530 = vpop.f32.mrb[0].mxu0
  %v6531 = vpop.f32.mrb[0].mxu0
  %v6532 = vadd.f32 0.0, %v6531
  %v6533 = vpop.f32.mrb[0].mxu0
  %6534 = vmatprep.mubr.bf16.mxu0 0
  %6535 = vmatmul.mubr.bf16.gmra.mrb[0].mxu0 %v6254
  %v6536 = vpop.f32.mrb[0].mxu0
  %v6537 = vadd.f32 0.0, %v6536
  %v6538 = vpop.f32.mrb[0].mxu0
  %v6539 = vpop.f32.mrb[0].mxu0
  %v6540 = vadd.f32 0.0, %v6539
  %v6541 = vpop.f32.mrb[0].mxu0
  %6542 = vmatprep.mubr.bf16.mxu0 0
  %6543 = vmatmul.mubr.bf16.gmra.mrb[0].mxu0 %v6257
  %v6544 = vpop.f32.mrb[0].mxu0
  %v6545 = vadd.f32 0.0, %v6544
  %v6546 = vpop.f32.mrb[0].mxu0
  %v6547 = vpop.f32.mrb[0].mxu0
  %v6548 = vadd.f32 0.0, %v6547
  %v6549 = vpop.f32.mrb[0].mxu0
  %6550 = vdwg.mxu0
  %v6551 = vadd.f32 %v6066, %v6297
  %v6552 = vadd.f32 %v6067, %v6300
  %v6553 = vadd.f32 %v6068, %v6305
  %v6554 = vadd.f32 %v6069, %v6308
  %v6555 = vadd.f32 %v6070, %v6313
  %v6556 = vadd.f32 %v6071, %v6316
  %v6557 = vadd.f32 %v6072, %v6321
  %v6558 = vadd.f32 %v6073, %v6324
  %v6559 = vadd.f32 %v6074, %v6329
  %v6560 = vadd.f32 %v6075, %v6332
  %v6561 = vadd.f32 %v6076, %v6337
  %v6562 = vadd.f32 %v6077, %v6340
  %v6563 = vadd.f32 %v6078, %v6345
  %v6564 = vadd.f32 %v6079, %v6348
  %v6565 = vadd.f32 %v6080, %v6353
  %v6566 = vadd.f32 %v6081, %v6356
  %v6567 = vadd.f32 %v6082, %v6361
  %v6568 = vadd.f32 %v6083, %v6364
  %v6569 = vadd.f32 %v6084, %v6369
  %v6570 = vadd.f32 %v6085, %v6372
  %v6571 = vadd.f32 %v6086, %v6377
  %v6572 = vadd.f32 %v6087, %v6380
  %v6573 = vadd.f32 %v6088, %v6385
  %v6574 = vadd.f32 %v6089, %v6388
  %v6575 = vadd.f32 %v6090, %v6393
  %v6576 = vadd.f32 %v6091, %v6396
  %v6577 = vadd.f32 %v6092, %v6401
  %v6578 = vadd.f32 %v6093, %v6404
  %v6579 = vadd.f32 %v6094, %v6409
  %v6580 = vadd.f32 %v6095, %v6412
  %v6581 = vadd.f32 %v6096, %v6417
  %v6582 = vadd.f32 %v6097, %v6420
  %v6583 = vadd.f32 %v6098, %v6425
  %v6584 = vadd.f32 %v6099, %v6428
  %v6585 = vadd.f32 %v6100, %v6433
  %v6586 = vadd.f32 %v6101, %v6436
  %v6587 = vadd.f32 %v6102, %v6441
  %v6588 = vadd.f32 %v6103, %v6444
  %v6589 = vadd.f32 %v6104, %v6449
  %v6590 = vadd.f32 %v6105, %v6452
  %v6591 = vadd.f32 %v6106, %v6457
  %v6592 = vadd.f32 %v6107, %v6460
  %v6593 = vadd.f32 %v6108, %v6465
  %v6594 = vadd.f32 %v6109, %v6468
  %v6595 = vadd.f32 %v6110, %v6473
  %v6596 = vadd.f32 %v6111, %v6476
  %v6597 = vadd.f32 %v6112, %v6481
  %v6598 = vadd.f32 %v6113, %v6484
  %v6599 = vadd.f32 %v6114, %v6489
  %v6600 = vadd.f32 %v6115, %v6492
  %v6601 = vadd.f32 %v6116, %v6497
  %v6602 = vadd.f32 %v6117, %v6500
  %v6603 = vadd.f32 %v6118, %v6505
  %v6604 = vadd.f32 %v6119, %v6508
  %v6605 = vadd.f32 %v6120, %v6513
  %v6606 = vadd.f32 %v6121, %v6516
  %v6607 = vadd.f32 %v6122, %v6521
  %v6608 = vadd.f32 %v6123, %v6524
  %v6609 = vadd.f32 %v6124, %v6529
  %v6610 = vadd.f32 %v6125, %v6532
  %v6611 = vadd.f32 %v6126, %v6537
  %v6612 = vadd.f32 %v6127, %v6540
  %v6613 = vadd.f32 %v6128, %v6545
  %v6614 = vadd.f32 %v6129, %v6548
  %6615 = vst.msk [vmem:[#allocation3] sm:$0xff] %vm271, %v6551
  %6616 = vst.msk [vmem:[#allocation3 + $0x8] sm:$0xff] %vm271, %v6552
  %6617 = vst.msk [vmem:[#allocation3 + $0x10] sm:$0xff] %vm271, %v6553
  %6618 = vst.msk [vmem:[#allocation3 + $0x18] sm:$0xff] %vm271, %v6554
  %6619 = vst.msk [vmem:[#allocation3 + $0x20] sm:$0xff] %vm271, %v6555
  %6620 = vst.msk [vmem:[#allocation3 + $0x28] sm:$0xff] %vm271, %v6556
  %6621 = vst.msk [vmem:[#allocation3 + $0x30] sm:$0xff] %vm271, %v6557
  %6622 = vst.msk [vmem:[#allocation3 + $0x38] sm:$0xff] %vm271, %v6558
  %6623 = vst.msk [vmem:[#allocation3 + $0x40] sm:$0xff] %vm271, %v6559
  %6624 = vst.msk [vmem:[#allocation3 + $0x48] sm:$0xff] %vm271, %v6560
  %6625 = vst.msk [vmem:[#allocation3 + $0x50] sm:$0xff] %vm271, %v6561
  %6626 = vst.msk [vmem:[#allocation3 + $0x58] sm:$0xff] %vm271, %v6562
  %6627 = vst.msk [vmem:[#allocation3 + $0x60] sm:$0xff] %vm271, %v6563
  %6628 = vst.msk [vmem:[#allocation3 + $0x68] sm:$0xff] %vm271, %v6564
  %6629 = vst.msk [vmem:[#allocation3 + $0x70] sm:$0xff] %vm271, %v6565
  %6630 = vst.msk [vmem:[#allocation3 + $0x78] sm:$0xff] %vm271, %v6566
  %6631 = vst.msk [vmem:[#allocation3 + $0x80] sm:$0xff] %vm271, %v6567
  %6632 = vst.msk [vmem:[#allocation3 + $0x88] sm:$0xff] %vm271, %v6568
  %6633 = vst.msk [vmem:[#allocation3 + $0x90] sm:$0xff] %vm271, %v6569
  %6634 = vst.msk [vmem:[#allocation3 + $0x98] sm:$0xff] %vm271, %v6570
  %6635 = vst.msk [vmem:[#allocation3 + $0xa0] sm:$0xff] %vm271, %v6571
  %6636 = vst.msk [vmem:[#allocation3 + $0xa8] sm:$0xff] %vm271, %v6572
  %6637 = vst.msk [vmem:[#allocation3 + $0xb0] sm:$0xff] %vm271, %v6573
  %6638 = vst.msk [vmem:[#allocation3 + $0xb8] sm:$0xff] %vm271, %v6574
  %6639 = vst.msk [vmem:[#allocation3 + $0xc0] sm:$0xff] %vm271, %v6575
  %6640 = vst.msk [vmem:[#allocation3 + $0xc8] sm:$0xff] %vm271, %v6576
  %6641 = vst.msk [vmem:[#allocation3 + $0xd0] sm:$0xff] %vm271, %v6577
  %6642 = vst.msk [vmem:[#allocation3 + $0xd8] sm:$0xff] %vm271, %v6578
  %6643 = vst.msk [vmem:[#allocation3 + $0xe0] sm:$0xff] %vm271, %v6579
  %6644 = vst.msk [vmem:[#allocation3 + $0xe8] sm:$0xff] %vm271, %v6580
  %6645 = vst.msk [vmem:[#allocation3 + $0xf0] sm:$0xff] %vm271, %v6581
  %6646 = vst.msk [vmem:[#allocation3 + $0xf8] sm:$0xff] %vm271, %v6582
  %6647 = vst.msk [vmem:[#allocation3 + $0x100] sm:$0xff] %vm271, %v6583
  %6648 = vst.msk [vmem:[#allocation3 + $0x108] sm:$0xff] %vm271, %v6584
  %6649 = vst.msk [vmem:[#allocation3 + $0x110] sm:$0xff] %vm271, %v6585
  %6650 = vst.msk [vmem:[#allocation3 + $0x118] sm:$0xff] %vm271, %v6586
  %6651 = vst.msk [vmem:[#allocation3 + $0x120] sm:$0xff] %vm271, %v6587
  %6652 = vst.msk [vmem:[#allocation3 + $0x128] sm:$0xff] %vm271, %v6588
  %6653 = vst.msk [vmem:[#allocation3 + $0x130] sm:$0xff] %vm271, %v6589
  %6654 = vst.msk [vmem:[#allocation3 + $0x138] sm:$0xff] %vm271, %v6590
  %6655 = vst.msk [vmem:[#allocation3 + $0x140] sm:$0xff] %vm271, %v6591
  %6656 = vst.msk [vmem:[#allocation3 + $0x148] sm:$0xff] %vm271, %v6592
  %6657 = vst.msk [vmem:[#allocation3 + $0x150] sm:$0xff] %vm271, %v6593
  %6658 = vst.msk [vmem:[#allocation3 + $0x158] sm:$0xff] %vm271, %v6594
  %6659 = vst.msk [vmem:[#allocation3 + $0x160] sm:$0xff] %vm271, %v6595
  %6660 = vst.msk [vmem:[#allocation3 + $0x168] sm:$0xff] %vm271, %v6596
  %6661 = vst.msk [vmem:[#allocation3 + $0x170] sm:$0xff] %vm271, %v6597
  %6662 = vst.msk [vmem:[#allocation3 + $0x178] sm:$0xff] %vm271, %v6598
  %6663 = vst.msk [vmem:[#allocation3 + $0x180] sm:$0xff] %vm271, %v6599
  %6664 = vst.msk [vmem:[#allocation3 + $0x188] sm:$0xff] %vm271, %v6600
  %6665 = vst.msk [vmem:[#allocation3 + $0x190] sm:$0xff] %vm271, %v6601
  %6666 = vst.msk [vmem:[#allocation3 + $0x198] sm:$0xff] %vm271, %v6602
  %6667 = vst.msk [vmem:[#allocation3 + $0x1a0] sm:$0xff] %vm271, %v6603
  %6668 = vst.msk [vmem:[#allocation3 + $0x1a8] sm:$0xff] %vm271, %v6604
  %6669 = vst.msk [vmem:[#allocation3 + $0x1b0] sm:$0xff] %vm271, %v6605
  %6670 = vst.msk [vmem:[#allocation3 + $0x1b8] sm:$0xff] %vm271, %v6606
  %6671 = vst.msk [vmem:[#allocation3 + $0x1c0] sm:$0xff] %vm271, %v6607
  %6672 = vst.msk [vmem:[#allocation3 + $0x1c8] sm:$0xff] %vm271, %v6608
  %6673 = vst.msk [vmem:[#allocation3 + $0x1d0] sm:$0xff] %vm271, %v6609
  %6674 = vst.msk [vmem:[#allocation3 + $0x1d8] sm:$0xff] %vm271, %v6610
  %6675 = vst.msk [vmem:[#allocation3 + $0x1e0] sm:$0xff] %vm271, %v6611
  %6676 = vst.msk [vmem:[#allocation3 + $0x1e8] sm:$0xff] %vm271, %v6612
  %6677 = vst.msk [vmem:[#allocation3 + $0x1f0] sm:$0xff] %vm271, %v6613
  %6678 = vst.msk [vmem:[#allocation3 + $0x1f8] sm:$0xff] %vm271, %v6614
  %v6679 = vld [vmem:[#allocation2] sm:$0xff]
  %v6680 = vld [vmem:[#allocation2 + $0x8] sm:$0xff]
  %v6681 = vld [vmem:[#allocation2 + $0x10] sm:$0xff]
  %v6682 = vld [vmem:[#allocation2 + $0x18] sm:$0xff]
  %v6683 = vld [vmem:[#allocation2 + $0x20] sm:$0xff]
  %v6684 = vld [vmem:[#allocation2 + $0x28] sm:$0xff]
  %v6685 = vld [vmem:[#allocation2 + $0x30] sm:$0xff]
  %v6686 = vld [vmem:[#allocation2 + $0x38] sm:$0xff]
  %v6687 = vld [vmem:[#allocation2 + $0x40] sm:$0xff]
  %v6688 = vld [vmem:[#allocation2 + $0x48] sm:$0xff]
  %v6689 = vld [vmem:[#allocation2 + $0x50] sm:$0xff]
  %v6690 = vld [vmem:[#allocation2 + $0x58] sm:$0xff]
  %v6691 = vld [vmem:[#allocation2 + $0x60] sm:$0xff]
  %v6692 = vld [vmem:[#allocation2 + $0x68] sm:$0xff]
  %v6693 = vld [vmem:[#allocation2 + $0x70] sm:$0xff]
  %v6694 = vld [vmem:[#allocation2 + $0x78] sm:$0xff]
  %v6695 = vld [vmem:[#allocation2 + $0x80] sm:$0xff]
  %v6696 = vld [vmem:[#allocation2 + $0x88] sm:$0xff]
  %v6697 = vld [vmem:[#allocation2 + $0x90] sm:$0xff]
  %v6698 = vld [vmem:[#allocation2 + $0x98] sm:$0xff]
  %v6699 = vld [vmem:[#allocation2 + $0xa0] sm:$0xff]
  %v6700 = vld [vmem:[#allocation2 + $0xa8] sm:$0xff]
  %v6701 = vld [vmem:[#allocation2 + $0xb0] sm:$0xff]
  %v6702 = vld [vmem:[#allocation2 + $0xb8] sm:$0xff]
  %v6703 = vld [vmem:[#allocation2 + $0xc0] sm:$0xff]
  %v6704 = vld [vmem:[#allocation2 + $0xc8] sm:$0xff]
  %v6705 = vld [vmem:[#allocation2 + $0xd0] sm:$0xff]
  %v6706 = vld [vmem:[#allocation2 + $0xd8] sm:$0xff]
  %v6707 = vld [vmem:[#allocation2 + $0xe0] sm:$0xff]
  %v6708 = vld [vmem:[#allocation2 + $0xe8] sm:$0xff]
  %v6709 = vld [vmem:[#allocation2 + $0xf0] sm:$0xff]
  %v6710 = vld [vmem:[#allocation2 + $0xf8] sm:$0xff]
  %s6711 = scalar_lea.vmem %s5, 128
  %v6712 = vld [vmem:[%s6711] sm:$0xff]
  %v6713 = vld [vmem:[%s6711 + $0x8] sm:$0xff]
  %v6714 = vld [vmem:[%s6711 + $0x10] sm:$0xff]
  %v6715 = vld [vmem:[%s6711 + $0x18] sm:$0xff]
  %v6716 = vld [vmem:[%s6711 + $0x20] sm:$0xff]
  %v6717 = vld [vmem:[%s6711 + $0x28] sm:$0xff]
  %v6718 = vld [vmem:[%s6711 + $0x30] sm:$0xff]
  %v6719 = vld [vmem:[%s6711 + $0x38] sm:$0xff]
  %6724 = vrot.lane.b32.xlu0 %v6679, 112
  %v6725 = vpop.permute.xlu0 %6724
  %6726 = vrot.lane.b32.xlu0 %v6680, 112
  %v6727 = vpop.permute.xlu0 %6726
  %6728 = vrot.lane.b32.xlu0 %v6681, 112
  %v6729 = vpop.permute.xlu0 %6728
  %6730 = vrot.lane.b32.xlu0 %v6682, 112
  %v6731 = vpop.permute.xlu0 %6730
  %6732 = vrot.lane.b32.xlu0 %v6679, 80
  %v6733 = vpop.permute.xlu0 %6732
  %6734 = vrot.lane.b32.xlu0 %v6680, 80
  %v6735 = vpop.permute.xlu0 %6734
  %6736 = vrot.lane.b32.xlu0 %v6681, 80
  %v6737 = vpop.permute.xlu0 %6736
  %6738 = vrot.lane.b32.xlu0 %v6682, 80
  %v6739 = vpop.permute.xlu0 %6738
  %v6741 = vsel %vm845, %v6725, 0
  %v6744 = vsel %vm845, %v6727, 0
  %v6747 = vsel %vm845, %v6729, 0
  %v6750 = vsel %vm845, %v6731, 0
  %v6753 = vsel %vm845, %v6733, 0
  %v6756 = vsel %vm845, %v6735, 0
  %v6759 = vsel %vm845, %v6737, 0
  %v6762 = vsel %vm845, %v6739, 0
  %6764 = vmatprep.subr.bf16.mxu0 0
  %6765 = vmatpush1.bf16.xpose.msra.mxu0 %v6753
  %6766 = vmatprep.subr.bf16.mxu0 0
  %6767 = vmatpush1.bf16.xpose.msra.mxu0 %v6756
  %6768 = vmatprep.subr.bf16.mxu0 0
  %6769 = vmatpush1.bf16.xpose.msra.mxu0 %v6759
  %6770 = vmatprep.subr.bf16.mxu0 0
  %6771 = vmatpush1.bf16.xpose.msra.mxu0 %v6762
  %6772 = vmatprep.subr.bf16.mxu0 0
  %6773 = vmatpush1.bf16.xpose.msra.mxu0 0
  %6774 = vmatprep.subr.bf16.mxu0 0
  %6775 = vmatpush1.bf16.xpose.msra.mxu0 0
  %6776 = vmatprep.subr.bf16.mxu0 0
  %6777 = vmatpush1.bf16.xpose.msra.mxu0 0
  %6778 = vmatprep.subr.bf16.mxu0 0
  %6779 = vmatpush1.bf16.xpose.msra.mxu0 0
  %6780 = vmatprep.subr.bf16.mxu0 0
  %6781 = vmatpush1.bf16.xpose.msra.mxu0 0
  %6782 = vmatprep.subr.bf16.mxu0 0
  %6783 = vmatpush1.bf16.xpose.msra.mxu0 0
  %6784 = vmatprep.subr.bf16.mxu0 0
  %6785 = vmatpush1.bf16.xpose.msra.mxu0 0
  %6786 = vmatprep.subr.bf16.mxu0 0
  %6787 = vmatpush1.bf16.xpose.msra.mxu0 0
  %6788 = vmatprep.subr.bf16.mxu0 0
  %6789 = vmatpush1.bf16.xpose.msra.mxu0 0
  %6790 = vmatprep.subr.bf16.mxu0 0
  %6791 = vmatpush1.bf16.xpose.msra.mxu0 0
  %6792 = vmatprep.subr.bf16.mxu0 0
  %6793 = vmatpush1.bf16.xpose.msra.mxu0 0
  %6794 = vmatprep.subr.bf16.mxu0 0
  %6795 = vmatpush1.bf16.xpose.msra.mxu0 0
  %6796 = vmatprep.mubr.bf16.mxu0 0
  %6797 = vmatmul.mubr.bf16.gmra.mrb[0].mxu0 %v6741
  %v6798 = vpop.f32.mrb[0].mxu0
  %v6799 = vadd.f32 %v6712, %v6798
  %v6800 = vpop.f32.mrb[0].mxu0
  %v6801 = vpop.f32.mrb[0].mxu0
  %v6802 = vadd.f32 %v6713, %v6801
  %v6803 = vpop.f32.mrb[0].mxu0
  %6804 = vmatprep.mubr.bf16.mxu0 0
  %6805 = vmatmul.mubr.bf16.gmra.mrb[0].mxu0 %v6744
  %v6806 = vpop.f32.mrb[0].mxu0
  %v6807 = vadd.f32 %v6714, %v6806
  %v6808 = vpop.f32.mrb[0].mxu0
  %v6809 = vpop.f32.mrb[0].mxu0
  %v6810 = vadd.f32 %v6715, %v6809
  %v6811 = vpop.f32.mrb[0].mxu0
  %6812 = vmatprep.mubr.bf16.mxu0 0
  %6813 = vmatmul.mubr.bf16.gmra.mrb[0].mxu0 %v6747
  %v6814 = vpop.f32.mrb[0].mxu0
  %v6815 = vadd.f32 %v6716, %v6814
  %v6816 = vpop.f32.mrb[0].mxu0
  %v6817 = vpop.f32.mrb[0].mxu0
  %v6818 = vadd.f32 %v6717, %v6817
  %v6819 = vpop.f32.mrb[0].mxu0
  %6820 = vmatprep.mubr.bf16.mxu0 0
  %6821 = vmatmul.mubr.bf16.gmra.mrb[0].mxu0 %v6750
  %v6822 = vpop.f32.mrb[0].mxu0
  %v6823 = vadd.f32 %v6718, %v6822
  %v6824 = vpop.f32.mrb[0].mxu0
  %v6825 = vpop.f32.mrb[0].mxu0
  %v6826 = vadd.f32 %v6719, %v6825
  %v6827 = vpop.f32.mrb[0].mxu0
  %6828 = vdwg.mxu0
  %6833 = vrot.lane.b32.xlu0 %v6683, 112
  %v6834 = vpop.permute.xlu0 %6833
  %6835 = vrot.lane.b32.xlu0 %v6684, 112
  %v6836 = vpop.permute.xlu0 %6835
  %6837 = vrot.lane.b32.xlu0 %v6685, 112
  %v6838 = vpop.permute.xlu0 %6837
  %6839 = vrot.lane.b32.xlu0 %v6686, 112
  %v6840 = vpop.permute.xlu0 %6839
  %6841 = vrot.lane.b32.xlu0 %v6683, 80
  %v6842 = vpop.permute.xlu0 %6841
  %6843 = vrot.lane.b32.xlu0 %v6684, 80
  %v6844 = vpop.permute.xlu0 %6843
  %6845 = vrot.lane.b32.xlu0 %v6685, 80
  %v6846 = vpop.permute.xlu0 %6845
  %6847 = vrot.lane.b32.xlu0 %v6686, 80
  %v6848 = vpop.permute.xlu0 %6847
  %v6850 = vsel %vm845, %v6834, 0
  %v6853 = vsel %vm845, %v6836, 0
  %v6856 = vsel %vm845, %v6838, 0
  %v6859 = vsel %vm845, %v6840, 0
  %v6862 = vsel %vm845, %v6842, 0
  %v6865 = vsel %vm845, %v6844, 0
  %v6868 = vsel %vm845, %v6846, 0
  %v6871 = vsel %vm845, %v6848, 0
  %6873 = vmatprep.subr.bf16.mxu0 0
  %6874 = vmatpush1.bf16.xpose.msra.mxu0 %v6862
  %6875 = vmatprep.subr.bf16.mxu0 0
  %6876 = vmatpush1.bf16.xpose.msra.mxu0 %v6865
  %6877 = vmatprep.subr.bf16.mxu0 0
  %6878 = vmatpush1.bf16.xpose.msra.mxu0 %v6868
  %6879 = vmatprep.subr.bf16.mxu0 0
  %6880 = vmatpush1.bf16.xpose.msra.mxu0 %v6871
  %6881 = vmatprep.subr.bf16.mxu0 0
  %6882 = vmatpush1.bf16.xpose.msra.mxu0 0
  %6883 = vmatprep.subr.bf16.mxu0 0
  %6884 = vmatpush1.bf16.xpose.msra.mxu0 0
  %6885 = vmatprep.subr.bf16.mxu0 0
  %6886 = vmatpush1.bf16.xpose.msra.mxu0 0
  %6887 = vmatprep.subr.bf16.mxu0 0
  %6888 = vmatpush1.bf16.xpose.msra.mxu0 0
  %6889 = vmatprep.subr.bf16.mxu0 0
  %6890 = vmatpush1.bf16.xpose.msra.mxu0 0
  %6891 = vmatprep.subr.bf16.mxu0 0
  %6892 = vmatpush1.bf16.xpose.msra.mxu0 0
  %6893 = vmatprep.subr.bf16.mxu0 0
  %6894 = vmatpush1.bf16.xpose.msra.mxu0 0
  %6895 = vmatprep.subr.bf16.mxu0 0
  %6896 = vmatpush1.bf16.xpose.msra.mxu0 0
  %6897 = vmatprep.subr.bf16.mxu0 0
  %6898 = vmatpush1.bf16.xpose.msra.mxu0 0
  %6899 = vmatprep.subr.bf16.mxu0 0
  %6900 = vmatpush1.bf16.xpose.msra.mxu0 0
  %6901 = vmatprep.subr.bf16.mxu0 0
  %6902 = vmatpush1.bf16.xpose.msra.mxu0 0
  %6903 = vmatprep.subr.bf16.mxu0 0
  %6904 = vmatpush1.bf16.xpose.msra.mxu0 0
  %6905 = vmatprep.mubr.bf16.mxu0 0
  %6906 = vmatmul.mubr.bf16.gmra.mrb[0].mxu0 %v6850
  %v6907 = vpop.f32.mrb[0].mxu0
  %v6908 = vadd.f32 %v6712, %v6907
  %v6909 = vpop.f32.mrb[0].mxu0
  %v6910 = vpop.f32.mrb[0].mxu0
  %v6911 = vadd.f32 %v6713, %v6910
  %v6912 = vpop.f32.mrb[0].mxu0
  %6913 = vmatprep.mubr.bf16.mxu0 0
  %6914 = vmatmul.mubr.bf16.gmra.mrb[0].mxu0 %v6853
  %v6915 = vpop.f32.mrb[0].mxu0
  %v6916 = vadd.f32 %v6714, %v6915
  %v6917 = vpop.f32.mrb[0].mxu0
  %v6918 = vpop.f32.mrb[0].mxu0
  %v6919 = vadd.f32 %v6715, %v6918
  %v6920 = vpop.f32.mrb[0].mxu0
  %6921 = vmatprep.mubr.bf16.mxu0 0
  %6922 = vmatmul.mubr.bf16.gmra.mrb[0].mxu0 %v6856
  %v6923 = vpop.f32.mrb[0].mxu0
  %v6924 = vadd.f32 %v6716, %v6923
  %v6925 = vpop.f32.mrb[0].mxu0
  %v6926 = vpop.f32.mrb[0].mxu0
  %v6927 = vadd.f32 %v6717, %v6926
  %v6928 = vpop.f32.mrb[0].mxu0
  %6929 = vmatprep.mubr.bf16.mxu0 0
  %6930 = vmatmul.mubr.bf16.gmra.mrb[0].mxu0 %v6859
  %v6931 = vpop.f32.mrb[0].mxu0
  %v6932 = vadd.f32 %v6718, %v6931
  %v6933 = vpop.f32.mrb[0].mxu0
  %v6934 = vpop.f32.mrb[0].mxu0
  %v6935 = vadd.f32 %v6719, %v6934
  %v6936 = vpop.f32.mrb[0].mxu0
  %6937 = vdwg.mxu0
  %6942 = vrot.lane.b32.xlu0 %v6687, 112
  %v6943 = vpop.permute.xlu0 %6942
  %6944 = vrot.lane.b32.xlu0 %v6688, 112
  %v6945 = vpop.permute.xlu0 %6944
  %6946 = vrot.lane.b32.xlu0 %v6689, 112
  %v6947 = vpop.permute.xlu0 %6946
  %6948 = vrot.lane.b32.xlu0 %v6690, 112
  %v6949 = vpop.permute.xlu0 %6948
  %6950 = vrot.lane.b32.xlu0 %v6687, 80
  %v6951 = vpop.permute.xlu0 %6950
  %6952 = vrot.lane.b32.xlu0 %v6688, 80
  %v6953 = vpop.permute.xlu0 %6952
  %6954 = vrot.lane.b32.xlu0 %v6689, 80
  %v6955 = vpop.permute.xlu0 %6954
  %6956 = vrot.lane.b32.xlu0 %v6690, 80
  %v6957 = vpop.permute.xlu0 %6956
  %v6959 = vsel %vm845, %v6943, 0
  %v6962 = vsel %vm845, %v6945, 0
  %v6965 = vsel %vm845, %v6947, 0
  %v6968 = vsel %vm845, %v6949, 0
  %v6971 = vsel %vm845, %v6951, 0
  %v6974 = vsel %vm845, %v6953, 0
  %v6977 = vsel %vm845, %v6955, 0
  %v6980 = vsel %vm845, %v6957, 0
  %6982 = vmatprep.subr.bf16.mxu0 0
  %6983 = vmatpush1.bf16.xpose.msra.mxu0 %v6971
  %6984 = vmatprep.subr.bf16.mxu0 0
  %6985 = vmatpush1.bf16.xpose.msra.mxu0 %v6974
  %6986 = vmatprep.subr.bf16.mxu0 0
  %6987 = vmatpush1.bf16.xpose.msra.mxu0 %v6977
  %6988 = vmatprep.subr.bf16.mxu0 0
  %6989 = vmatpush1.bf16.xpose.msra.mxu0 %v6980
  %6990 = vmatprep.subr.bf16.mxu0 0
  %6991 = vmatpush1.bf16.xpose.msra.mxu0 0
  %6992 = vmatprep.subr.bf16.mxu0 0
  %6993 = vmatpush1.bf16.xpose.msra.mxu0 0
  %6994 = vmatprep.subr.bf16.mxu0 0
  %6995 = vmatpush1.bf16.xpose.msra.mxu0 0
  %6996 = vmatprep.subr.bf16.mxu0 0
  %6997 = vmatpush1.bf16.xpose.msra.mxu0 0
  %6998 = vmatprep.subr.bf16.mxu0 0
  %6999 = vmatpush1.bf16.xpose.msra.mxu0 0
  %7000 = vmatprep.subr.bf16.mxu0 0
  %7001 = vmatpush1.bf16.xpose.msra.mxu0 0
  %7002 = vmatprep.subr.bf16.mxu0 0
  %7003 = vmatpush1.bf16.xpose.msra.mxu0 0
  %7004 = vmatprep.subr.bf16.mxu0 0
  %7005 = vmatpush1.bf16.xpose.msra.mxu0 0
  %7006 = vmatprep.subr.bf16.mxu0 0
  %7007 = vmatpush1.bf16.xpose.msra.mxu0 0
  %7008 = vmatprep.subr.bf16.mxu0 0
  %7009 = vmatpush1.bf16.xpose.msra.mxu0 0
  %7010 = vmatprep.subr.bf16.mxu0 0
  %7011 = vmatpush1.bf16.xpose.msra.mxu0 0
  %7012 = vmatprep.subr.bf16.mxu0 0
  %7013 = vmatpush1.bf16.xpose.msra.mxu0 0
  %7014 = vmatprep.mubr.bf16.mxu0 0
  %7015 = vmatmul.mubr.bf16.gmra.mrb[0].mxu0 %v6959
  %v7016 = vpop.f32.mrb[0].mxu0
  %v7017 = vadd.f32 %v6712, %v7016
  %v7018 = vpop.f32.mrb[0].mxu0
  %v7019 = vpop.f32.mrb[0].mxu0
  %v7020 = vadd.f32 %v6713, %v7019
  %v7021 = vpop.f32.mrb[0].mxu0
  %7022 = vmatprep.mubr.bf16.mxu0 0
  %7023 = vmatmul.mubr.bf16.gmra.mrb[0].mxu0 %v6962
  %v7024 = vpop.f32.mrb[0].mxu0
  %v7025 = vadd.f32 %v6714, %v7024
  %v7026 = vpop.f32.mrb[0].mxu0
  %v7027 = vpop.f32.mrb[0].mxu0
  %v7028 = vadd.f32 %v6715, %v7027
  %v7029 = vpop.f32.mrb[0].mxu0
  %7030 = vmatprep.mubr.bf16.mxu0 0
  %7031 = vmatmul.mubr.bf16.gmra.mrb[0].mxu0 %v6965
  %v7032 = vpop.f32.mrb[0].mxu0
  %v7033 = vadd.f32 %v6716, %v7032
  %v7034 = vpop.f32.mrb[0].mxu0
  %v7035 = vpop.f32.mrb[0].mxu0
  %v7036 = vadd.f32 %v6717, %v7035
  %v7037 = vpop.f32.mrb[0].mxu0
  %7038 = vmatprep.mubr.bf16.mxu0 0
  %7039 = vmatmul.mubr.bf16.gmra.mrb[0].mxu0 %v6968
  %v7040 = vpop.f32.mrb[0].mxu0
  %v7041 = vadd.f32 %v6718, %v7040
  %v7042 = vpop.f32.mrb[0].mxu0
  %v7043 = vpop.f32.mrb[0].mxu0
  %v7044 = vadd.f32 %v6719, %v7043
  %v7045 = vpop.f32.mrb[0].mxu0
  %7046 = vdwg.mxu0
  %7051 = vrot.lane.b32.xlu0 %v6691, 112
  %v7052 = vpop.permute.xlu0 %7051
  %7053 = vrot.lane.b32.xlu0 %v6692, 112
  %v7054 = vpop.permute.xlu0 %7053
  %7055 = vrot.lane.b32.xlu0 %v6693, 112
  %v7056 = vpop.permute.xlu0 %7055
  %7057 = vrot.lane.b32.xlu0 %v6694, 112
  %v7058 = vpop.permute.xlu0 %7057
  %7059 = vrot.lane.b32.xlu0 %v6691, 80
  %v7060 = vpop.permute.xlu0 %7059
  %7061 = vrot.lane.b32.xlu0 %v6692, 80
  %v7062 = vpop.permute.xlu0 %7061
  %7063 = vrot.lane.b32.xlu0 %v6693, 80
  %v7064 = vpop.permute.xlu0 %7063
  %7065 = vrot.lane.b32.xlu0 %v6694, 80
  %v7066 = vpop.permute.xlu0 %7065
  %v7068 = vsel %vm845, %v7052, 0
  %v7071 = vsel %vm845, %v7054, 0
  %v7074 = vsel %vm845, %v7056, 0
  %v7077 = vsel %vm845, %v7058, 0
  %v7080 = vsel %vm845, %v7060, 0
  %v7083 = vsel %vm845, %v7062, 0
  %v7086 = vsel %vm845, %v7064, 0
  %v7089 = vsel %vm845, %v7066, 0
  %7091 = vmatprep.subr.bf16.mxu0 0
  %7092 = vmatpush1.bf16.xpose.msra.mxu0 %v7080
  %7093 = vmatprep.subr.bf16.mxu0 0
  %7094 = vmatpush1.bf16.xpose.msra.mxu0 %v7083
  %7095 = vmatprep.subr.bf16.mxu0 0
  %7096 = vmatpush1.bf16.xpose.msra.mxu0 %v7086
  %7097 = vmatprep.subr.bf16.mxu0 0
  %7098 = vmatpush1.bf16.xpose.msra.mxu0 %v7089
  %7099 = vmatprep.subr.bf16.mxu0 0
  %7100 = vmatpush1.bf16.xpose.msra.mxu0 0
  %7101 = vmatprep.subr.bf16.mxu0 0
  %7102 = vmatpush1.bf16.xpose.msra.mxu0 0
  %7103 = vmatprep.subr.bf16.mxu0 0
  %7104 = vmatpush1.bf16.xpose.msra.mxu0 0
  %7105 = vmatprep.subr.bf16.mxu0 0
  %7106 = vmatpush1.bf16.xpose.msra.mxu0 0
  %7107 = vmatprep.subr.bf16.mxu0 0
  %7108 = vmatpush1.bf16.xpose.msra.mxu0 0
  %7109 = vmatprep.subr.bf16.mxu0 0
  %7110 = vmatpush1.bf16.xpose.msra.mxu0 0
  %7111 = vmatprep.subr.bf16.mxu0 0
  %7112 = vmatpush1.bf16.xpose.msra.mxu0 0
  %7113 = vmatprep.subr.bf16.mxu0 0
  %7114 = vmatpush1.bf16.xpose.msra.mxu0 0
  %7115 = vmatprep.subr.bf16.mxu0 0
  %7116 = vmatpush1.bf16.xpose.msra.mxu0 0
  %7117 = vmatprep.subr.bf16.mxu0 0
  %7118 = vmatpush1.bf16.xpose.msra.mxu0 0
  %7119 = vmatprep.subr.bf16.mxu0 0
  %7120 = vmatpush1.bf16.xpose.msra.mxu0 0
  %7121 = vmatprep.subr.bf16.mxu0 0
  %7122 = vmatpush1.bf16.xpose.msra.mxu0 0
  %7123 = vmatprep.mubr.bf16.mxu0 0
  %7124 = vmatmul.mubr.bf16.gmra.mrb[0].mxu0 %v7068
  %v7125 = vpop.f32.mrb[0].mxu0
  %v7126 = vadd.f32 %v6712, %v7125
  %v7127 = vpop.f32.mrb[0].mxu0
  %v7128 = vpop.f32.mrb[0].mxu0
  %v7129 = vadd.f32 %v6713, %v7128
  %v7130 = vpop.f32.mrb[0].mxu0
  %7131 = vmatprep.mubr.bf16.mxu0 0
  %7132 = vmatmul.mubr.bf16.gmra.mrb[0].mxu0 %v7071
  %v7133 = vpop.f32.mrb[0].mxu0
  %v7134 = vadd.f32 %v6714, %v7133
  %v7135 = vpop.f32.mrb[0].mxu0
  %v7136 = vpop.f32.mrb[0].mxu0
  %v7137 = vadd.f32 %v6715, %v7136
  %v7138 = vpop.f32.mrb[0].mxu0
  %7139 = vmatprep.mubr.bf16.mxu0 0
  %7140 = vmatmul.mubr.bf16.gmra.mrb[0].mxu0 %v7074
  %v7141 = vpop.f32.mrb[0].mxu0
  %v7142 = vadd.f32 %v6716, %v7141
  %v7143 = vpop.f32.mrb[0].mxu0
  %v7144 = vpop.f32.mrb[0].mxu0
  %v7145 = vadd.f32 %v6717, %v7144
  %v7146 = vpop.f32.mrb[0].mxu0
  %7147 = vmatprep.mubr.bf16.mxu0 0
  %7148 = vmatmul.mubr.bf16.gmra.mrb[0].mxu0 %v7077
  %v7149 = vpop.f32.mrb[0].mxu0
  %v7150 = vadd.f32 %v6718, %v7149
  %v7151 = vpop.f32.mrb[0].mxu0
  %v7152 = vpop.f32.mrb[0].mxu0
  %v7153 = vadd.f32 %v6719, %v7152
  %v7154 = vpop.f32.mrb[0].mxu0
  %7155 = vdwg.mxu0
  %7160 = vrot.lane.b32.xlu0 %v6695, 112
  %v7161 = vpop.permute.xlu0 %7160
  %7162 = vrot.lane.b32.xlu0 %v6696, 112
  %v7163 = vpop.permute.xlu0 %7162
  %7164 = vrot.lane.b32.xlu0 %v6697, 112
  %v7165 = vpop.permute.xlu0 %7164
  %7166 = vrot.lane.b32.xlu0 %v6698, 112
  %v7167 = vpop.permute.xlu0 %7166
  %7168 = vrot.lane.b32.xlu0 %v6695, 80
  %v7169 = vpop.permute.xlu0 %7168
  %7170 = vrot.lane.b32.xlu0 %v6696, 80
  %v7171 = vpop.permute.xlu0 %7170
  %7172 = vrot.lane.b32.xlu0 %v6697, 80
  %v7173 = vpop.permute.xlu0 %7172
  %7174 = vrot.lane.b32.xlu0 %v6698, 80
  %v7175 = vpop.permute.xlu0 %7174
  %v7177 = vsel %vm845, %v7161, 0
  %v7180 = vsel %vm845, %v7163, 0
  %v7183 = vsel %vm845, %v7165, 0
  %v7186 = vsel %vm845, %v7167, 0
  %v7189 = vsel %vm845, %v7169, 0
  %v7192 = vsel %vm845, %v7171, 0
  %v7195 = vsel %vm845, %v7173, 0
  %v7198 = vsel %vm845, %v7175, 0
  %7200 = vmatprep.subr.bf16.mxu0 0
  %7201 = vmatpush1.bf16.xpose.msra.mxu0 %v7189
  %7202 = vmatprep.subr.bf16.mxu0 0
  %7203 = vmatpush1.bf16.xpose.msra.mxu0 %v7192
  %7204 = vmatprep.subr.bf16.mxu0 0
  %7205 = vmatpush1.bf16.xpose.msra.mxu0 %v7195
  %7206 = vmatprep.subr.bf16.mxu0 0
  %7207 = vmatpush1.bf16.xpose.msra.mxu0 %v7198
  %7208 = vmatprep.subr.bf16.mxu0 0
  %7209 = vmatpush1.bf16.xpose.msra.mxu0 0
  %7210 = vmatprep.subr.bf16.mxu0 0
  %7211 = vmatpush1.bf16.xpose.msra.mxu0 0
  %7212 = vmatprep.subr.bf16.mxu0 0
  %7213 = vmatpush1.bf16.xpose.msra.mxu0 0
  %7214 = vmatprep.subr.bf16.mxu0 0
  %7215 = vmatpush1.bf16.xpose.msra.mxu0 0
  %7216 = vmatprep.subr.bf16.mxu0 0
  %7217 = vmatpush1.bf16.xpose.msra.mxu0 0
  %7218 = vmatprep.subr.bf16.mxu0 0
  %7219 = vmatpush1.bf16.xpose.msra.mxu0 0
  %7220 = vmatprep.subr.bf16.mxu0 0
  %7221 = vmatpush1.bf16.xpose.msra.mxu0 0
  %7222 = vmatprep.subr.bf16.mxu0 0
  %7223 = vmatpush1.bf16.xpose.msra.mxu0 0
  %7224 = vmatprep.subr.bf16.mxu0 0
  %7225 = vmatpush1.bf16.xpose.msra.mxu0 0
  %7226 = vmatprep.subr.bf16.mxu0 0
  %7227 = vmatpush1.bf16.xpose.msra.mxu0 0
  %7228 = vmatprep.subr.bf16.mxu0 0
  %7229 = vmatpush1.bf16.xpose.msra.mxu0 0
  %7230 = vmatprep.subr.bf16.mxu0 0
  %7231 = vmatpush1.bf16.xpose.msra.mxu0 0
  %7232 = vmatprep.mubr.bf16.mxu0 0
  %7233 = vmatmul.mubr.bf16.gmra.mrb[0].mxu0 %v7177
  %v7234 = vpop.f32.mrb[0].mxu0
  %v7235 = vadd.f32 %v6712, %v7234
  %v7236 = vpop.f32.mrb[0].mxu0
  %v7237 = vpop.f32.mrb[0].mxu0
  %v7238 = vadd.f32 %v6713, %v7237
  %v7239 = vpop.f32.mrb[0].mxu0
  %7240 = vmatprep.mubr.bf16.mxu0 0
  %7241 = vmatmul.mubr.bf16.gmra.mrb[0].mxu0 %v7180
  %v7242 = vpop.f32.mrb[0].mxu0
  %v7243 = vadd.f32 %v6714, %v7242
  %v7244 = vpop.f32.mrb[0].mxu0
  %v7245 = vpop.f32.mrb[0].mxu0
  %v7246 = vadd.f32 %v6715, %v7245
  %v7247 = vpop.f32.mrb[0].mxu0
  %7248 = vmatprep.mubr.bf16.mxu0 0
  %7249 = vmatmul.mubr.bf16.gmra.mrb[0].mxu0 %v7183
  %v7250 = vpop.f32.mrb[0].mxu0
  %v7251 = vadd.f32 %v6716, %v7250
  %v7252 = vpop.f32.mrb[0].mxu0
  %v7253 = vpop.f32.mrb[0].mxu0
  %v7254 = vadd.f32 %v6717, %v7253
  %v7255 = vpop.f32.mrb[0].mxu0
  %7256 = vmatprep.mubr.bf16.mxu0 0
  %7257 = vmatmul.mubr.bf16.gmra.mrb[0].mxu0 %v7186
  %v7258 = vpop.f32.mrb[0].mxu0
  %v7259 = vadd.f32 %v6718, %v7258
  %v7260 = vpop.f32.mrb[0].mxu0
  %v7261 = vpop.f32.mrb[0].mxu0
  %v7262 = vadd.f32 %v6719, %v7261
  %v7263 = vpop.f32.mrb[0].mxu0
  %7264 = vdwg.mxu0
  %7269 = vrot.lane.b32.xlu0 %v6699, 112
  %v7270 = vpop.permute.xlu0 %7269
  %7271 = vrot.lane.b32.xlu0 %v6700, 112
  %v7272 = vpop.permute.xlu0 %7271
  %7273 = vrot.lane.b32.xlu0 %v6701, 112
  %v7274 = vpop.permute.xlu0 %7273
  %7275 = vrot.lane.b32.xlu0 %v6702, 112
  %v7276 = vpop.permute.xlu0 %7275
  %7277 = vrot.lane.b32.xlu0 %v6699, 80
  %v7278 = vpop.permute.xlu0 %7277
  %7279 = vrot.lane.b32.xlu0 %v6700, 80
  %v7280 = vpop.permute.xlu0 %7279
  %7281 = vrot.lane.b32.xlu0 %v6701, 80
  %v7282 = vpop.permute.xlu0 %7281
  %7283 = vrot.lane.b32.xlu0 %v6702, 80
  %v7284 = vpop.permute.xlu0 %7283
  %v7286 = vsel %vm845, %v7270, 0
  %v7289 = vsel %vm845, %v7272, 0
  %v7292 = vsel %vm845, %v7274, 0
  %v7295 = vsel %vm845, %v7276, 0
  %v7298 = vsel %vm845, %v7278, 0
  %v7301 = vsel %vm845, %v7280, 0
  %v7304 = vsel %vm845, %v7282, 0
  %v7307 = vsel %vm845, %v7284, 0
  %7309 = vmatprep.subr.bf16.mxu0 0
  %7310 = vmatpush1.bf16.xpose.msra.mxu0 %v7298
  %7311 = vmatprep.subr.bf16.mxu0 0
  %7312 = vmatpush1.bf16.xpose.msra.mxu0 %v7301
  %7313 = vmatprep.subr.bf16.mxu0 0
  %7314 = vmatpush1.bf16.xpose.msra.mxu0 %v7304
  %7315 = vmatprep.subr.bf16.mxu0 0
  %7316 = vmatpush1.bf16.xpose.msra.mxu0 %v7307
  %7317 = vmatprep.subr.bf16.mxu0 0
  %7318 = vmatpush1.bf16.xpose.msra.mxu0 0
  %7319 = vmatprep.subr.bf16.mxu0 0
  %7320 = vmatpush1.bf16.xpose.msra.mxu0 0
  %7321 = vmatprep.subr.bf16.mxu0 0
  %7322 = vmatpush1.bf16.xpose.msra.mxu0 0
  %7323 = vmatprep.subr.bf16.mxu0 0
  %7324 = vmatpush1.bf16.xpose.msra.mxu0 0
  %7325 = vmatprep.subr.bf16.mxu0 0
  %7326 = vmatpush1.bf16.xpose.msra.mxu0 0
  %7327 = vmatprep.subr.bf16.mxu0 0
  %7328 = vmatpush1.bf16.xpose.msra.mxu0 0
  %7329 = vmatprep.subr.bf16.mxu0 0
  %7330 = vmatpush1.bf16.xpose.msra.mxu0 0
  %7331 = vmatprep.subr.bf16.mxu0 0
  %7332 = vmatpush1.bf16.xpose.msra.mxu0 0
  %7333 = vmatprep.subr.bf16.mxu0 0
  %7334 = vmatpush1.bf16.xpose.msra.mxu0 0
  %7335 = vmatprep.subr.bf16.mxu0 0
  %7336 = vmatpush1.bf16.xpose.msra.mxu0 0
  %7337 = vmatprep.subr.bf16.mxu0 0
  %7338 = vmatpush1.bf16.xpose.msra.mxu0 0
  %7339 = vmatprep.subr.bf16.mxu0 0
  %7340 = vmatpush1.bf16.xpose.msra.mxu0 0
  %7341 = vmatprep.mubr.bf16.mxu0 0
  %7342 = vmatmul.mubr.bf16.gmra.mrb[0].mxu0 %v7286
  %v7343 = vpop.f32.mrb[0].mxu0
  %v7344 = vadd.f32 %v6712, %v7343
  %v7345 = vpop.f32.mrb[0].mxu0
  %v7346 = vpop.f32.mrb[0].mxu0
  %v7347 = vadd.f32 %v6713, %v7346
  %v7348 = vpop.f32.mrb[0].mxu0
  %7349 = vmatprep.mubr.bf16.mxu0 0
  %7350 = vmatmul.mubr.bf16.gmra.mrb[0].mxu0 %v7289
  %v7351 = vpop.f32.mrb[0].mxu0
  %v7352 = vadd.f32 %v6714, %v7351
  %v7353 = vpop.f32.mrb[0].mxu0
  %v7354 = vpop.f32.mrb[0].mxu0
  %v7355 = vadd.f32 %v6715, %v7354
  %v7356 = vpop.f32.mrb[0].mxu0
  %7357 = vmatprep.mubr.bf16.mxu0 0
  %7358 = vmatmul.mubr.bf16.gmra.mrb[0].mxu0 %v7292
  %v7359 = vpop.f32.mrb[0].mxu0
  %v7360 = vadd.f32 %v6716, %v7359
  %v7361 = vpop.f32.mrb[0].mxu0
  %v7362 = vpop.f32.mrb[0].mxu0
  %v7363 = vadd.f32 %v6717, %v7362
  %v7364 = vpop.f32.mrb[0].mxu0
  %7365 = vmatprep.mubr.bf16.mxu0 0
  %7366 = vmatmul.mubr.bf16.gmra.mrb[0].mxu0 %v7295
  %v7367 = vpop.f32.mrb[0].mxu0
  %v7368 = vadd.f32 %v6718, %v7367
  %v7369 = vpop.f32.mrb[0].mxu0
  %v7370 = vpop.f32.mrb[0].mxu0
  %v7371 = vadd.f32 %v6719, %v7370
  %v7372 = vpop.f32.mrb[0].mxu0
  %7373 = vdwg.mxu0
  %7378 = vrot.lane.b32.xlu0 %v6703, 112
  %v7379 = vpop.permute.xlu0 %7378
  %7380 = vrot.lane.b32.xlu0 %v6704, 112
  %v7381 = vpop.permute.xlu0 %7380
  %7382 = vrot.lane.b32.xlu0 %v6705, 112
  %v7383 = vpop.permute.xlu0 %7382
  %7384 = vrot.lane.b32.xlu0 %v6706, 112
  %v7385 = vpop.permute.xlu0 %7384
  %7386 = vrot.lane.b32.xlu0 %v6703, 80
  %v7387 = vpop.permute.xlu0 %7386
  %7388 = vrot.lane.b32.xlu0 %v6704, 80
  %v7389 = vpop.permute.xlu0 %7388
  %7390 = vrot.lane.b32.xlu0 %v6705, 80
  %v7391 = vpop.permute.xlu0 %7390
  %7392 = vrot.lane.b32.xlu0 %v6706, 80
  %v7393 = vpop.permute.xlu0 %7392
  %v7395 = vsel %vm845, %v7379, 0
  %v7398 = vsel %vm845, %v7381, 0
  %v7401 = vsel %vm845, %v7383, 0
  %v7404 = vsel %vm845, %v7385, 0
  %v7407 = vsel %vm845, %v7387, 0
  %v7410 = vsel %vm845, %v7389, 0
  %v7413 = vsel %vm845, %v7391, 0
  %v7416 = vsel %vm845, %v7393, 0
  %7418 = vmatprep.subr.bf16.mxu0 0
  %7419 = vmatpush1.bf16.xpose.msra.mxu0 %v7407
  %7420 = vmatprep.subr.bf16.mxu0 0
  %7421 = vmatpush1.bf16.xpose.msra.mxu0 %v7410
  %7422 = vmatprep.subr.bf16.mxu0 0
  %7423 = vmatpush1.bf16.xpose.msra.mxu0 %v7413
  %7424 = vmatprep.subr.bf16.mxu0 0
  %7425 = vmatpush1.bf16.xpose.msra.mxu0 %v7416
  %7426 = vmatprep.subr.bf16.mxu0 0
  %7427 = vmatpush1.bf16.xpose.msra.mxu0 0
  %7428 = vmatprep.subr.bf16.mxu0 0
  %7429 = vmatpush1.bf16.xpose.msra.mxu0 0
  %7430 = vmatprep.subr.bf16.mxu0 0
  %7431 = vmatpush1.bf16.xpose.msra.mxu0 0
  %7432 = vmatprep.subr.bf16.mxu0 0
  %7433 = vmatpush1.bf16.xpose.msra.mxu0 0
  %7434 = vmatprep.subr.bf16.mxu0 0
  %7435 = vmatpush1.bf16.xpose.msra.mxu0 0
  %7436 = vmatprep.subr.bf16.mxu0 0
  %7437 = vmatpush1.bf16.xpose.msra.mxu0 0
  %7438 = vmatprep.subr.bf16.mxu0 0
  %7439 = vmatpush1.bf16.xpose.msra.mxu0 0
  %7440 = vmatprep.subr.bf16.mxu0 0
  %7441 = vmatpush1.bf16.xpose.msra.mxu0 0
  %7442 = vmatprep.subr.bf16.mxu0 0
  %7443 = vmatpush1.bf16.xpose.msra.mxu0 0
  %7444 = vmatprep.subr.bf16.mxu0 0
  %7445 = vmatpush1.bf16.xpose.msra.mxu0 0
  %7446 = vmatprep.subr.bf16.mxu0 0
  %7447 = vmatpush1.bf16.xpose.msra.mxu0 0
  %7448 = vmatprep.subr.bf16.mxu0 0
  %7449 = vmatpush1.bf16.xpose.msra.mxu0 0
  %7450 = vmatprep.mubr.bf16.mxu0 0
  %7451 = vmatmul.mubr.bf16.gmra.mrb[0].mxu0 %v7395
  %v7452 = vpop.f32.mrb[0].mxu0
  %v7453 = vadd.f32 %v6712, %v7452
  %v7454 = vpop.f32.mrb[0].mxu0
  %v7455 = vpop.f32.mrb[0].mxu0
  %v7456 = vadd.f32 %v6713, %v7455
  %v7457 = vpop.f32.mrb[0].mxu0
  %7458 = vmatprep.mubr.bf16.mxu0 0
  %7459 = vmatmul.mubr.bf16.gmra.mrb[0].mxu0 %v7398
  %v7460 = vpop.f32.mrb[0].mxu0
  %v7461 = vadd.f32 %v6714, %v7460
  %v7462 = vpop.f32.mrb[0].mxu0
  %v7463 = vpop.f32.mrb[0].mxu0
  %v7464 = vadd.f32 %v6715, %v7463
  %v7465 = vpop.f32.mrb[0].mxu0
  %7466 = vmatprep.mubr.bf16.mxu0 0
  %7467 = vmatmul.mubr.bf16.gmra.mrb[0].mxu0 %v7401
  %v7468 = vpop.f32.mrb[0].mxu0
  %v7469 = vadd.f32 %v6716, %v7468
  %v7470 = vpop.f32.mrb[0].mxu0
  %v7471 = vpop.f32.mrb[0].mxu0
  %v7472 = vadd.f32 %v6717, %v7471
  %v7473 = vpop.f32.mrb[0].mxu0
  %7474 = vmatprep.mubr.bf16.mxu0 0
  %7475 = vmatmul.mubr.bf16.gmra.mrb[0].mxu0 %v7404
  %v7476 = vpop.f32.mrb[0].mxu0
  %v7477 = vadd.f32 %v6718, %v7476
  %v7478 = vpop.f32.mrb[0].mxu0
  %v7479 = vpop.f32.mrb[0].mxu0
  %v7480 = vadd.f32 %v6719, %v7479
  %v7481 = vpop.f32.mrb[0].mxu0
  %7482 = vdwg.mxu0
  %7487 = vrot.lane.b32.xlu0 %v6707, 112
  %v7488 = vpop.permute.xlu0 %7487
  %7489 = vrot.lane.b32.xlu0 %v6708, 112
  %v7490 = vpop.permute.xlu0 %7489
  %7491 = vrot.lane.b32.xlu0 %v6709, 112
  %v7492 = vpop.permute.xlu0 %7491
  %7493 = vrot.lane.b32.xlu0 %v6710, 112
  %v7494 = vpop.permute.xlu0 %7493
  %7495 = vrot.lane.b32.xlu0 %v6707, 80
  %v7496 = vpop.permute.xlu0 %7495
  %7497 = vrot.lane.b32.xlu0 %v6708, 80
  %v7498 = vpop.permute.xlu0 %7497
  %7499 = vrot.lane.b32.xlu0 %v6709, 80
  %v7500 = vpop.permute.xlu0 %7499
  %7501 = vrot.lane.b32.xlu0 %v6710, 80
  %v7502 = vpop.permute.xlu0 %7501
  %v7504 = vsel %vm845, %v7488, 0
  %v7507 = vsel %vm845, %v7490, 0
  %v7510 = vsel %vm845, %v7492, 0
  %v7513 = vsel %vm845, %v7494, 0
  %v7516 = vsel %vm845, %v7496, 0
  %v7519 = vsel %vm845, %v7498, 0
  %v7522 = vsel %vm845, %v7500, 0
  %v7525 = vsel %vm845, %v7502, 0
  %7527 = vmatprep.subr.bf16.mxu0 0
  %7528 = vmatpush1.bf16.xpose.msra.mxu0 %v7516
  %7529 = vmatprep.subr.bf16.mxu0 0
  %7530 = vmatpush1.bf16.xpose.msra.mxu0 %v7519
  %7531 = vmatprep.subr.bf16.mxu0 0
  %7532 = vmatpush1.bf16.xpose.msra.mxu0 %v7522
  %7533 = vmatprep.subr.bf16.mxu0 0
  %7534 = vmatpush1.bf16.xpose.msra.mxu0 %v7525
  %7535 = vmatprep.subr.bf16.mxu0 0
  %7536 = vmatpush1.bf16.xpose.msra.mxu0 0
  %7537 = vmatprep.subr.bf16.mxu0 0
  %7538 = vmatpush1.bf16.xpose.msra.mxu0 0
  %7539 = vmatprep.subr.bf16.mxu0 0
  %7540 = vmatpush1.bf16.xpose.msra.mxu0 0
  %7541 = vmatprep.subr.bf16.mxu0 0
  %7542 = vmatpush1.bf16.xpose.msra.mxu0 0
  %7543 = vmatprep.subr.bf16.mxu0 0
  %7544 = vmatpush1.bf16.xpose.msra.mxu0 0
  %7545 = vmatprep.subr.bf16.mxu0 0
  %7546 = vmatpush1.bf16.xpose.msra.mxu0 0
  %7547 = vmatprep.subr.bf16.mxu0 0
  %7548 = vmatpush1.bf16.xpose.msra.mxu0 0
  %7549 = vmatprep.subr.bf16.mxu0 0
  %7550 = vmatpush1.bf16.xpose.msra.mxu0 0
  %7551 = vmatprep.subr.bf16.mxu0 0
  %7552 = vmatpush1.bf16.xpose.msra.mxu0 0
  %7553 = vmatprep.subr.bf16.mxu0 0
  %7554 = vmatpush1.bf16.xpose.msra.mxu0 0
  %7555 = vmatprep.subr.bf16.mxu0 0
  %7556 = vmatpush1.bf16.xpose.msra.mxu0 0
  %7557 = vmatprep.subr.bf16.mxu0 0
  %7558 = vmatpush1.bf16.xpose.msra.mxu0 0
  %7559 = vmatprep.mubr.bf16.mxu0 0
  %7560 = vmatmul.mubr.bf16.gmra.mrb[0].mxu0 %v7504
  %v7561 = vpop.f32.mrb[0].mxu0
  %v7562 = vadd.f32 %v6712, %v7561
  %v7563 = vpop.f32.mrb[0].mxu0
  %v7564 = vpop.f32.mrb[0].mxu0
  %v7565 = vadd.f32 %v6713, %v7564
  %v7566 = vpop.f32.mrb[0].mxu0
  %7567 = vmatprep.mubr.bf16.mxu0 0
  %7568 = vmatmul.mubr.bf16.gmra.mrb[0].mxu0 %v7507
  %v7569 = vpop.f32.mrb[0].mxu0
  %v7570 = vadd.f32 %v6714, %v7569
  %v7571 = vpop.f32.mrb[0].mxu0
  %v7572 = vpop.f32.mrb[0].mxu0
  %v7573 = vadd.f32 %v6715, %v7572
  %v7574 = vpop.f32.mrb[0].mxu0
  %7575 = vmatprep.mubr.bf16.mxu0 0
  %7576 = vmatmul.mubr.bf16.gmra.mrb[0].mxu0 %v7510
  %v7577 = vpop.f32.mrb[0].mxu0
  %v7578 = vadd.f32 %v6716, %v7577
  %v7579 = vpop.f32.mrb[0].mxu0
  %v7580 = vpop.f32.mrb[0].mxu0
  %v7581 = vadd.f32 %v6717, %v7580
  %v7582 = vpop.f32.mrb[0].mxu0
  %7583 = vmatprep.mubr.bf16.mxu0 0
  %7584 = vmatmul.mubr.bf16.gmra.mrb[0].mxu0 %v7513
  %v7585 = vpop.f32.mrb[0].mxu0
  %v7586 = vadd.f32 %v6718, %v7585
  %v7587 = vpop.f32.mrb[0].mxu0
  %v7588 = vpop.f32.mrb[0].mxu0
  %v7589 = vadd.f32 %v6719, %v7588
  %v7590 = vpop.f32.mrb[0].mxu0
  %7591 = vdwg.mxu0
  %v7592 = vsel %vm1642, %v6799, -inf
  %7593 = vmax.xlane.f32.xlu0 %v7592
  %v7594 = vpop.xlane.xlu0 %7593
  %v7595 = vsel %vm1642, %v6802, -inf
  %7596 = vmax.xlane.f32.xlu0 %v7595
  %v7597 = vpop.xlane.xlu0 %7596
  %v7598 = vsel %vm1642, %v6807, -inf
  %7599 = vmax.xlane.f32.xlu0 %v7598
  %v7600 = vpop.xlane.xlu0 %7599
  %v7601 = vsel %vm1642, %v6810, -inf
  %7602 = vmax.xlane.f32.xlu0 %v7601
  %v7603 = vpop.xlane.xlu0 %7602
  %v7604 = vsel %vm1642, %v6815, -inf
  %7605 = vmax.xlane.f32.xlu0 %v7604
  %v7606 = vpop.xlane.xlu0 %7605
  %v7607 = vsel %vm1642, %v6818, -inf
  %7608 = vmax.xlane.f32.xlu0 %v7607
  %v7609 = vpop.xlane.xlu0 %7608
  %v7610 = vsel %vm1642, %v6823, -inf
  %7611 = vmax.xlane.f32.xlu0 %v7610
  %v7612 = vpop.xlane.xlu0 %7611
  %v7613 = vsel %vm1642, %v6826, -inf
  %7614 = vmax.xlane.f32.xlu0 %v7613
  %v7615 = vpop.xlane.xlu0 %7614
  %v7616 = vsel %vm1642, %v6908, -inf
  %7617 = vmax.xlane.f32.xlu0 %v7616
  %v7618 = vpop.xlane.xlu0 %7617
  %v7619 = vsel %vm1642, %v6911, -inf
  %7620 = vmax.xlane.f32.xlu0 %v7619
  %v7621 = vpop.xlane.xlu0 %7620
  %v7622 = vsel %vm1642, %v6916, -inf
  %7623 = vmax.xlane.f32.xlu0 %v7622
  %v7624 = vpop.xlane.xlu0 %7623
  %v7625 = vsel %vm1642, %v6919, -inf
  %7626 = vmax.xlane.f32.xlu0 %v7625
  %v7627 = vpop.xlane.xlu0 %7626
  %v7628 = vsel %vm1642, %v6924, -inf
  %7629 = vmax.xlane.f32.xlu0 %v7628
  %v7630 = vpop.xlane.xlu0 %7629
  %v7631 = vsel %vm1642, %v6927, -inf
  %7632 = vmax.xlane.f32.xlu0 %v7631
  %v7633 = vpop.xlane.xlu0 %7632
  %v7634 = vsel %vm1642, %v6932, -inf
  %7635 = vmax.xlane.f32.xlu0 %v7634
  %v7636 = vpop.xlane.xlu0 %7635
  %v7637 = vsel %vm1642, %v6935, -inf
  %7638 = vmax.xlane.f32.xlu0 %v7637
  %v7639 = vpop.xlane.xlu0 %7638
  %v7640 = vsel %vm1642, %v7017, -inf
  %7641 = vmax.xlane.f32.xlu0 %v7640
  %v7642 = vpop.xlane.xlu0 %7641
  %v7643 = vsel %vm1642, %v7020, -inf
  %7644 = vmax.xlane.f32.xlu0 %v7643
  %v7645 = vpop.xlane.xlu0 %7644
  %v7646 = vsel %vm1642, %v7025, -inf
  %7647 = vmax.xlane.f32.xlu0 %v7646
  %v7648 = vpop.xlane.xlu0 %7647
  %v7649 = vsel %vm1642, %v7028, -inf
  %7650 = vmax.xlane.f32.xlu0 %v7649
  %v7651 = vpop.xlane.xlu0 %7650
  %v7652 = vsel %vm1642, %v7033, -inf
  %7653 = vmax.xlane.f32.xlu0 %v7652
  %v7654 = vpop.xlane.xlu0 %7653
  %v7655 = vsel %vm1642, %v7036, -inf
  %7656 = vmax.xlane.f32.xlu0 %v7655
  %v7657 = vpop.xlane.xlu0 %7656
  %v7658 = vsel %vm1642, %v7041, -inf
  %7659 = vmax.xlane.f32.xlu0 %v7658
  %v7660 = vpop.xlane.xlu0 %7659
  %v7661 = vsel %vm1642, %v7044, -inf
  %7662 = vmax.xlane.f32.xlu0 %v7661
  %v7663 = vpop.xlane.xlu0 %7662
  %v7664 = vsel %vm1642, %v7126, -inf
  %7665 = vmax.xlane.f32.xlu0 %v7664
  %v7666 = vpop.xlane.xlu0 %7665
  %v7667 = vsel %vm1642, %v7129, -inf
  %7668 = vmax.xlane.f32.xlu0 %v7667
  %v7669 = vpop.xlane.xlu0 %7668
  %v7670 = vsel %vm1642, %v7134, -inf
  %7671 = vmax.xlane.f32.xlu0 %v7670
  %v7672 = vpop.xlane.xlu0 %7671
  %v7673 = vsel %vm1642, %v7137, -inf
  %7674 = vmax.xlane.f32.xlu0 %v7673
  %v7675 = vpop.xlane.xlu0 %7674
  %v7676 = vsel %vm1642, %v7142, -inf
  %7677 = vmax.xlane.f32.xlu0 %v7676
  %v7678 = vpop.xlane.xlu0 %7677
  %v7679 = vsel %vm1642, %v7145, -inf
  %7680 = vmax.xlane.f32.xlu0 %v7679
  %v7681 = vpop.xlane.xlu0 %7680
  %v7682 = vsel %vm1642, %v7150, -inf
  %7683 = vmax.xlane.f32.xlu0 %v7682
  %v7684 = vpop.xlane.xlu0 %7683
  %v7685 = vsel %vm1642, %v7153, -inf
  %7686 = vmax.xlane.f32.xlu0 %v7685
  %v7687 = vpop.xlane.xlu0 %7686
  %v7688 = vsel %vm1642, %v7235, -inf
  %7689 = vmax.xlane.f32.xlu0 %v7688
  %v7690 = vpop.xlane.xlu0 %7689
  %v7691 = vsel %vm1642, %v7238, -inf
  %7692 = vmax.xlane.f32.xlu0 %v7691
  %v7693 = vpop.xlane.xlu0 %7692
  %v7694 = vsel %vm1642, %v7243, -inf
  %7695 = vmax.xlane.f32.xlu0 %v7694
  %v7696 = vpop.xlane.xlu0 %7695
  %v7697 = vsel %vm1642, %v7246, -inf
  %7698 = vmax.xlane.f32.xlu0 %v7697
  %v7699 = vpop.xlane.xlu0 %7698
  %v7700 = vsel %vm1642, %v7251, -inf
  %7701 = vmax.xlane.f32.xlu0 %v7700
  %v7702 = vpop.xlane.xlu0 %7701
  %v7703 = vsel %vm1642, %v7254, -inf
  %7704 = vmax.xlane.f32.xlu0 %v7703
  %v7705 = vpop.xlane.xlu0 %7704
  %v7706 = vsel %vm1642, %v7259, -inf
  %7707 = vmax.xlane.f32.xlu0 %v7706
  %v7708 = vpop.xlane.xlu0 %7707
  %v7709 = vsel %vm1642, %v7262, -inf
  %7710 = vmax.xlane.f32.xlu0 %v7709
  %v7711 = vpop.xlane.xlu0 %7710
  %v7712 = vsel %vm1642, %v7344, -inf
  %7713 = vmax.xlane.f32.xlu0 %v7712
  %v7714 = vpop.xlane.xlu0 %7713
  %v7715 = vsel %vm1642, %v7347, -inf
  %7716 = vmax.xlane.f32.xlu0 %v7715
  %v7717 = vpop.xlane.xlu0 %7716
  %v7718 = vsel %vm1642, %v7352, -inf
  %7719 = vmax.xlane.f32.xlu0 %v7718
  %v7720 = vpop.xlane.xlu0 %7719
  %v7721 = vsel %vm1642, %v7355, -inf
  %7722 = vmax.xlane.f32.xlu0 %v7721
  %v7723 = vpop.xlane.xlu0 %7722
  %v7724 = vsel %vm1642, %v7360, -inf
  %7725 = vmax.xlane.f32.xlu0 %v7724
  %v7726 = vpop.xlane.xlu0 %7725
  %v7727 = vsel %vm1642, %v7363, -inf
  %7728 = vmax.xlane.f32.xlu0 %v7727
  %v7729 = vpop.xlane.xlu0 %7728
  %v7730 = vsel %vm1642, %v7368, -inf
  %7731 = vmax.xlane.f32.xlu0 %v7730
  %v7732 = vpop.xlane.xlu0 %7731
  %v7733 = vsel %vm1642, %v7371, -inf
  %7734 = vmax.xlane.f32.xlu0 %v7733
  %v7735 = vpop.xlane.xlu0 %7734
  %v7736 = vsel %vm1642, %v7453, -inf
  %7737 = vmax.xlane.f32.xlu0 %v7736
  %v7738 = vpop.xlane.xlu0 %7737
  %v7739 = vsel %vm1642, %v7456, -inf
  %7740 = vmax.xlane.f32.xlu0 %v7739
  %v7741 = vpop.xlane.xlu0 %7740
  %v7742 = vsel %vm1642, %v7461, -inf
  %7743 = vmax.xlane.f32.xlu0 %v7742
  %v7744 = vpop.xlane.xlu0 %7743
  %v7745 = vsel %vm1642, %v7464, -inf
  %7746 = vmax.xlane.f32.xlu0 %v7745
  %v7747 = vpop.xlane.xlu0 %7746
  %v7748 = vsel %vm1642, %v7469, -inf
  %7749 = vmax.xlane.f32.xlu0 %v7748
  %v7750 = vpop.xlane.xlu0 %7749
  %v7751 = vsel %vm1642, %v7472, -inf
  %7752 = vmax.xlane.f32.xlu0 %v7751
  %v7753 = vpop.xlane.xlu0 %7752
  %v7754 = vsel %vm1642, %v7477, -inf
  %7755 = vmax.xlane.f32.xlu0 %v7754
  %v7756 = vpop.xlane.xlu0 %7755
  %v7757 = vsel %vm1642, %v7480, -inf
  %7758 = vmax.xlane.f32.xlu0 %v7757
  %v7759 = vpop.xlane.xlu0 %7758
  %v7760 = vsel %vm1642, %v7562, -inf
  %7761 = vmax.xlane.f32.xlu0 %v7760
  %v7762 = vpop.xlane.xlu0 %7761
  %v7763 = vsel %vm1642, %v7565, -inf
  %7764 = vmax.xlane.f32.xlu0 %v7763
  %v7765 = vpop.xlane.xlu0 %7764
  %v7766 = vsel %vm1642, %v7570, -inf
  %7767 = vmax.xlane.f32.xlu0 %v7766
  %v7768 = vpop.xlane.xlu0 %7767
  %v7769 = vsel %vm1642, %v7573, -inf
  %7770 = vmax.xlane.f32.xlu0 %v7769
  %v7771 = vpop.xlane.xlu0 %7770
  %v7772 = vsel %vm1642, %v7578, -inf
  %7773 = vmax.xlane.f32.xlu0 %v7772
  %v7774 = vpop.xlane.xlu0 %7773
  %v7775 = vsel %vm1642, %v7581, -inf
  %7776 = vmax.xlane.f32.xlu0 %v7775
  %v7777 = vpop.xlane.xlu0 %7776
  %v7778 = vsel %vm1642, %v7586, -inf
  %7779 = vmax.xlane.f32.xlu0 %v7778
  %v7780 = vpop.xlane.xlu0 %7779
  %v7781 = vsel %vm1642, %v7589, -inf
  %7782 = vmax.xlane.f32.xlu0 %v7781
  %v7783 = vpop.xlane.xlu0 %7782
  %v7784 = vsub.f32 %v6799, %v7594
  %v7785 = vsub.f32 %v6802, %v7597
  %v7786 = vsub.f32 %v6807, %v7600
  %v7787 = vsub.f32 %v6810, %v7603
  %v7788 = vsub.f32 %v6815, %v7606
  %v7789 = vsub.f32 %v6818, %v7609
  %v7790 = vsub.f32 %v6823, %v7612
  %v7791 = vsub.f32 %v6826, %v7615
  %v7792 = vsub.f32 %v6908, %v7618
  %v7793 = vsub.f32 %v6911, %v7621
  %v7794 = vsub.f32 %v6916, %v7624
  %v7795 = vsub.f32 %v6919, %v7627
  %v7796 = vsub.f32 %v6924, %v7630
  %v7797 = vsub.f32 %v6927, %v7633
  %v7798 = vsub.f32 %v6932, %v7636
  %v7799 = vsub.f32 %v6935, %v7639
  %v7800 = vsub.f32 %v7017, %v7642
  %v7801 = vsub.f32 %v7020, %v7645
  %v7802 = vsub.f32 %v7025, %v7648
  %v7803 = vsub.f32 %v7028, %v7651
  %v7804 = vsub.f32 %v7033, %v7654
  %v7805 = vsub.f32 %v7036, %v7657
  %v7806 = vsub.f32 %v7041, %v7660
  %v7807 = vsub.f32 %v7044, %v7663
  %v7808 = vsub.f32 %v7126, %v7666
  %v7809 = vsub.f32 %v7129, %v7669
  %v7810 = vsub.f32 %v7134, %v7672
  %v7811 = vsub.f32 %v7137, %v7675
  %v7812 = vsub.f32 %v7142, %v7678
  %v7813 = vsub.f32 %v7145, %v7681
  %v7814 = vsub.f32 %v7150, %v7684
  %v7815 = vsub.f32 %v7153, %v7687
  %v7816 = vsub.f32 %v7235, %v7690
  %v7817 = vsub.f32 %v7238, %v7693
  %v7818 = vsub.f32 %v7243, %v7696
  %v7819 = vsub.f32 %v7246, %v7699
  %v7820 = vsub.f32 %v7251, %v7702
  %v7821 = vsub.f32 %v7254, %v7705
  %v7822 = vsub.f32 %v7259, %v7708
  %v7823 = vsub.f32 %v7262, %v7711
  %v7824 = vsub.f32 %v7344, %v7714
  %v7825 = vsub.f32 %v7347, %v7717
  %v7826 = vsub.f32 %v7352, %v7720
  %v7827 = vsub.f32 %v7355, %v7723
  %v7828 = vsub.f32 %v7360, %v7726
  %v7829 = vsub.f32 %v7363, %v7729
  %v7830 = vsub.f32 %v7368, %v7732
  %v7831 = vsub.f32 %v7371, %v7735
  %v7832 = vsub.f32 %v7453, %v7738
  %v7833 = vsub.f32 %v7456, %v7741
  %v7834 = vsub.f32 %v7461, %v7744
  %v7835 = vsub.f32 %v7464, %v7747
  %v7836 = vsub.f32 %v7469, %v7750
  %v7837 = vsub.f32 %v7472, %v7753
  %v7838 = vsub.f32 %v7477, %v7756
  %v7839 = vsub.f32 %v7480, %v7759
  %v7840 = vsub.f32 %v7562, %v7762
  %v7841 = vsub.f32 %v7565, %v7765
  %v7842 = vsub.f32 %v7570, %v7768
  %v7843 = vsub.f32 %v7573, %v7771
  %v7844 = vsub.f32 %v7578, %v7774
  %v7845 = vsub.f32 %v7581, %v7777
  %v7846 = vsub.f32 %v7586, %v7780
  %v7847 = vsub.f32 %v7589, %v7783
  %v7848 = vmul.f32 %v7784, 1.442695
  %v7849 = vpow.pop %v7848
  %v7850 = vmul.f32 %v7785, 1.442695
  %v7851 = vpow.pop %v7850
  %v7852 = vmul.f32 %v7786, 1.442695
  %v7853 = vpow.pop %v7852
  %v7854 = vmul.f32 %v7787, 1.442695
  %v7855 = vpow.pop %v7854
  %v7856 = vmul.f32 %v7788, 1.442695
  %v7857 = vpow.pop %v7856
  %v7858 = vmul.f32 %v7789, 1.442695
  %v7859 = vpow.pop %v7858
  %v7860 = vmul.f32 %v7790, 1.442695
  %v7861 = vpow.pop %v7860
  %v7862 = vmul.f32 %v7791, 1.442695
  %v7863 = vpow.pop %v7862
  %v7864 = vmul.f32 %v7792, 1.442695
  %v7865 = vpow.pop %v7864
  %v7866 = vmul.f32 %v7793, 1.442695
  %v7867 = vpow.pop %v7866
  %v7868 = vmul.f32 %v7794, 1.442695
  %v7869 = vpow.pop %v7868
  %v7870 = vmul.f32 %v7795, 1.442695
  %v7871 = vpow.pop %v7870
  %v7872 = vmul.f32 %v7796, 1.442695
  %v7873 = vpow.pop %v7872
  %v7874 = vmul.f32 %v7797, 1.442695
  %v7875 = vpow.pop %v7874
  %v7876 = vmul.f32 %v7798, 1.442695
  %v7877 = vpow.pop %v7876
  %v7878 = vmul.f32 %v7799, 1.442695
  %v7879 = vpow.pop %v7878
  %v7880 = vmul.f32 %v7800, 1.442695
  %v7881 = vpow.pop %v7880
  %v7882 = vmul.f32 %v7801, 1.442695
  %v7883 = vpow.pop %v7882
  %v7884 = vmul.f32 %v7802, 1.442695
  %v7885 = vpow.pop %v7884
  %v7886 = vmul.f32 %v7803, 1.442695
  %v7887 = vpow.pop %v7886
  %v7888 = vmul.f32 %v7804, 1.442695
  %v7889 = vpow.pop %v7888
  %v7890 = vmul.f32 %v7805, 1.442695
  %v7891 = vpow.pop %v7890
  %v7892 = vmul.f32 %v7806, 1.442695
  %v7893 = vpow.pop %v7892
  %v7894 = vmul.f32 %v7807, 1.442695
  %v7895 = vpow.pop %v7894
  %v7896 = vmul.f32 %v7808, 1.442695
  %v7897 = vpow.pop %v7896
  %v7898 = vmul.f32 %v7809, 1.442695
  %v7899 = vpow.pop %v7898
  %v7900 = vmul.f32 %v7810, 1.442695
  %v7901 = vpow.pop %v7900
  %v7902 = vmul.f32 %v7811, 1.442695
  %v7903 = vpow.pop %v7902
  %v7904 = vmul.f32 %v7812, 1.442695
  %v7905 = vpow.pop %v7904
  %v7906 = vmul.f32 %v7813, 1.442695
  %v7907 = vpow.pop %v7906
  %v7908 = vmul.f32 %v7814, 1.442695
  %v7909 = vpow.pop %v7908
  %v7910 = vmul.f32 %v7815, 1.442695
  %v7911 = vpow.pop %v7910
  %v7912 = vmul.f32 %v7816, 1.442695
  %v7913 = vpow.pop %v7912
  %v7914 = vmul.f32 %v7817, 1.442695
  %v7915 = vpow.pop %v7914
  %v7916 = vmul.f32 %v7818, 1.442695
  %v7917 = vpow.pop %v7916
  %v7918 = vmul.f32 %v7819, 1.442695
  %v7919 = vpow.pop %v7918
  %v7920 = vmul.f32 %v7820, 1.442695
  %v7921 = vpow.pop %v7920
  %v7922 = vmul.f32 %v7821, 1.442695
  %v7923 = vpow.pop %v7922
  %v7924 = vmul.f32 %v7822, 1.442695
  %v7925 = vpow.pop %v7924
  %v7926 = vmul.f32 %v7823, 1.442695
  %v7927 = vpow.pop %v7926
  %v7928 = vmul.f32 %v7824, 1.442695
  %v7929 = vpow.pop %v7928
  %v7930 = vmul.f32 %v7825, 1.442695
  %v7931 = vpow.pop %v7930
  %v7932 = vmul.f32 %v7826, 1.442695
  %v7933 = vpow.pop %v7932
  %v7934 = vmul.f32 %v7827, 1.442695
  %v7935 = vpow.pop %v7934
  %v7936 = vmul.f32 %v7828, 1.442695
  %v7937 = vpow.pop %v7936
  %v7938 = vmul.f32 %v7829, 1.442695
  %v7939 = vpow.pop %v7938
  %v7940 = vmul.f32 %v7830, 1.442695
  %v7941 = vpow.pop %v7940
  %v7942 = vmul.f32 %v7831, 1.442695
  %v7943 = vpow.pop %v7942
  %v7944 = vmul.f32 %v7832, 1.442695
  %v7945 = vpow.pop %v7944
  %v7946 = vmul.f32 %v7833, 1.442695
  %v7947 = vpow.pop %v7946
  %v7948 = vmul.f32 %v7834, 1.442695
  %v7949 = vpow.pop %v7948
  %v7950 = vmul.f32 %v7835, 1.442695
  %v7951 = vpow.pop %v7950
  %v7952 = vmul.f32 %v7836, 1.442695
  %v7953 = vpow.pop %v7952
  %v7954 = vmul.f32 %v7837, 1.442695
  %v7955 = vpow.pop %v7954
  %v7956 = vmul.f32 %v7838, 1.442695
  %v7957 = vpow.pop %v7956
  %v7958 = vmul.f32 %v7839, 1.442695
  %v7959 = vpow.pop %v7958
  %v7960 = vmul.f32 %v7840, 1.442695
  %v7961 = vpow.pop %v7960
  %v7962 = vmul.f32 %v7841, 1.442695
  %v7963 = vpow.pop %v7962
  %v7964 = vmul.f32 %v7842, 1.442695
  %v7965 = vpow.pop %v7964
  %v7966 = vmul.f32 %v7843, 1.442695
  %v7967 = vpow.pop %v7966
  %v7968 = vmul.f32 %v7844, 1.442695
  %v7969 = vpow.pop %v7968
  %v7970 = vmul.f32 %v7845, 1.442695
  %v7971 = vpow.pop %v7970
  %v7972 = vmul.f32 %v7846, 1.442695
  %v7973 = vpow.pop %v7972
  %v7974 = vmul.f32 %v7847, 1.442695
  %v7975 = vpow.pop %v7974
  %v7976 = vsel %vm1642, %v7849, 0.0
  %7977 = vadd.xlane.f32.xlu0 %v7976
  %v7978 = vpop.xlane.xlu0 %7977
  %v7979 = vsel %vm1642, %v7851, 0.0
  %7980 = vadd.xlane.f32.xlu0 %v7979
  %v7981 = vpop.xlane.xlu0 %7980
  %v7982 = vsel %vm1642, %v7853, 0.0
  %7983 = vadd.xlane.f32.xlu0 %v7982
  %v7984 = vpop.xlane.xlu0 %7983
  %v7985 = vsel %vm1642, %v7855, 0.0
  %7986 = vadd.xlane.f32.xlu0 %v7985
  %v7987 = vpop.xlane.xlu0 %7986
  %v7988 = vsel %vm1642, %v7857, 0.0
  %7989 = vadd.xlane.f32.xlu0 %v7988
  %v7990 = vpop.xlane.xlu0 %7989
  %v7991 = vsel %vm1642, %v7859, 0.0
  %7992 = vadd.xlane.f32.xlu0 %v7991
  %v7993 = vpop.xlane.xlu0 %7992
  %v7994 = vsel %vm1642, %v7861, 0.0
  %7995 = vadd.xlane.f32.xlu0 %v7994
  %v7996 = vpop.xlane.xlu0 %7995
  %v7997 = vsel %vm1642, %v7863, 0.0
  %7998 = vadd.xlane.f32.xlu0 %v7997
  %v7999 = vpop.xlane.xlu0 %7998
  %v8000 = vsel %vm1642, %v7865, 0.0
  %8001 = vadd.xlane.f32.xlu0 %v8000
  %v8002 = vpop.xlane.xlu0 %8001
  %v8003 = vsel %vm1642, %v7867, 0.0
  %8004 = vadd.xlane.f32.xlu0 %v8003
  %v8005 = vpop.xlane.xlu0 %8004
  %v8006 = vsel %vm1642, %v7869, 0.0
  %8007 = vadd.xlane.f32.xlu0 %v8006
  %v8008 = vpop.xlane.xlu0 %8007
  %v8009 = vsel %vm1642, %v7871, 0.0
  %8010 = vadd.xlane.f32.xlu0 %v8009
  %v8011 = vpop.xlane.xlu0 %8010
  %v8012 = vsel %vm1642, %v7873, 0.0
  %8013 = vadd.xlane.f32.xlu0 %v8012
  %v8014 = vpop.xlane.xlu0 %8013
  %v8015 = vsel %vm1642, %v7875, 0.0
  %8016 = vadd.xlane.f32.xlu0 %v8015
  %v8017 = vpop.xlane.xlu0 %8016
  %v8018 = vsel %vm1642, %v7877, 0.0
  %8019 = vadd.xlane.f32.xlu0 %v8018
  %v8020 = vpop.xlane.xlu0 %8019
  %v8021 = vsel %vm1642, %v7879, 0.0
  %8022 = vadd.xlane.f32.xlu0 %v8021
  %v8023 = vpop.xlane.xlu0 %8022
  %v8024 = vsel %vm1642, %v7881, 0.0
  %8025 = vadd.xlane.f32.xlu0 %v8024
  %v8026 = vpop.xlane.xlu0 %8025
  %v8027 = vsel %vm1642, %v7883, 0.0
  %8028 = vadd.xlane.f32.xlu0 %v8027
  %v8029 = vpop.xlane.xlu0 %8028
  %v8030 = vsel %vm1642, %v7885, 0.0
  %8031 = vadd.xlane.f32.xlu0 %v8030
  %v8032 = vpop.xlane.xlu0 %8031
  %v8033 = vsel %vm1642, %v7887, 0.0
  %8034 = vadd.xlane.f32.xlu0 %v8033
  %v8035 = vpop.xlane.xlu0 %8034
  %v8036 = vsel %vm1642, %v7889, 0.0
  %8037 = vadd.xlane.f32.xlu0 %v8036
  %v8038 = vpop.xlane.xlu0 %8037
  %v8039 = vsel %vm1642, %v7891, 0.0
  %8040 = vadd.xlane.f32.xlu0 %v8039
  %v8041 = vpop.xlane.xlu0 %8040
  %v8042 = vsel %vm1642, %v7893, 0.0
  %8043 = vadd.xlane.f32.xlu0 %v8042
  %v8044 = vpop.xlane.xlu0 %8043
  %v8045 = vsel %vm1642, %v7895, 0.0
  %8046 = vadd.xlane.f32.xlu0 %v8045
  %v8047 = vpop.xlane.xlu0 %8046
  %v8048 = vsel %vm1642, %v7897, 0.0
  %8049 = vadd.xlane.f32.xlu0 %v8048
  %v8050 = vpop.xlane.xlu0 %8049
  %v8051 = vsel %vm1642, %v7899, 0.0
  %8052 = vadd.xlane.f32.xlu0 %v8051
  %v8053 = vpop.xlane.xlu0 %8052
  %v8054 = vsel %vm1642, %v7901, 0.0
  %8055 = vadd.xlane.f32.xlu0 %v8054
  %v8056 = vpop.xlane.xlu0 %8055
  %v8057 = vsel %vm1642, %v7903, 0.0
  %8058 = vadd.xlane.f32.xlu0 %v8057
  %v8059 = vpop.xlane.xlu0 %8058
  %v8060 = vsel %vm1642, %v7905, 0.0
  %8061 = vadd.xlane.f32.xlu0 %v8060
  %v8062 = vpop.xlane.xlu0 %8061
  %v8063 = vsel %vm1642, %v7907, 0.0
  %8064 = vadd.xlane.f32.xlu0 %v8063
  %v8065 = vpop.xlane.xlu0 %8064
  %v8066 = vsel %vm1642, %v7909, 0.0
  %8067 = vadd.xlane.f32.xlu0 %v8066
  %v8068 = vpop.xlane.xlu0 %8067
  %v8069 = vsel %vm1642, %v7911, 0.0
  %8070 = vadd.xlane.f32.xlu0 %v8069
  %v8071 = vpop.xlane.xlu0 %8070
  %v8072 = vsel %vm1642, %v7913, 0.0
  %8073 = vadd.xlane.f32.xlu0 %v8072
  %v8074 = vpop.xlane.xlu0 %8073
  %v8075 = vsel %vm1642, %v7915, 0.0
  %8076 = vadd.xlane.f32.xlu0 %v8075
  %v8077 = vpop.xlane.xlu0 %8076
  %v8078 = vsel %vm1642, %v7917, 0.0
  %8079 = vadd.xlane.f32.xlu0 %v8078
  %v8080 = vpop.xlane.xlu0 %8079
  %v8081 = vsel %vm1642, %v7919, 0.0
  %8082 = vadd.xlane.f32.xlu0 %v8081
  %v8083 = vpop.xlane.xlu0 %8082
  %v8084 = vsel %vm1642, %v7921, 0.0
  %8085 = vadd.xlane.f32.xlu0 %v8084
  %v8086 = vpop.xlane.xlu0 %8085
  %v8087 = vsel %vm1642, %v7923, 0.0
  %8088 = vadd.xlane.f32.xlu0 %v8087
  %v8089 = vpop.xlane.xlu0 %8088
  %v8090 = vsel %vm1642, %v7925, 0.0
  %8091 = vadd.xlane.f32.xlu0 %v8090
  %v8092 = vpop.xlane.xlu0 %8091
  %v8093 = vsel %vm1642, %v7927, 0.0
  %8094 = vadd.xlane.f32.xlu0 %v8093
  %v8095 = vpop.xlane.xlu0 %8094
  %v8096 = vsel %vm1642, %v7929, 0.0
  %8097 = vadd.xlane.f32.xlu0 %v8096
  %v8098 = vpop.xlane.xlu0 %8097
  %v8099 = vsel %vm1642, %v7931, 0.0
  %8100 = vadd.xlane.f32.xlu0 %v8099
  %v8101 = vpop.xlane.xlu0 %8100
  %v8102 = vsel %vm1642, %v7933, 0.0
  %8103 = vadd.xlane.f32.xlu0 %v8102
  %v8104 = vpop.xlane.xlu0 %8103
  %v8105 = vsel %vm1642, %v7935, 0.0
  %8106 = vadd.xlane.f32.xlu0 %v8105
  %v8107 = vpop.xlane.xlu0 %8106
  %v8108 = vsel %vm1642, %v7937, 0.0
  %8109 = vadd.xlane.f32.xlu0 %v8108
  %v8110 = vpop.xlane.xlu0 %8109
  %v8111 = vsel %vm1642, %v7939, 0.0
  %8112 = vadd.xlane.f32.xlu0 %v8111
  %v8113 = vpop.xlane.xlu0 %8112
  %v8114 = vsel %vm1642, %v7941, 0.0
  %8115 = vadd.xlane.f32.xlu0 %v8114
  %v8116 = vpop.xlane.xlu0 %8115
  %v8117 = vsel %vm1642, %v7943, 0.0
  %8118 = vadd.xlane.f32.xlu0 %v8117
  %v8119 = vpop.xlane.xlu0 %8118
  %v8120 = vsel %vm1642, %v7945, 0.0
  %8121 = vadd.xlane.f32.xlu0 %v8120
  %v8122 = vpop.xlane.xlu0 %8121
  %v8123 = vsel %vm1642, %v7947, 0.0
  %8124 = vadd.xlane.f32.xlu0 %v8123
  %v8125 = vpop.xlane.xlu0 %8124
  %v8126 = vsel %vm1642, %v7949, 0.0
  %8127 = vadd.xlane.f32.xlu0 %v8126
  %v8128 = vpop.xlane.xlu0 %8127
  %v8129 = vsel %vm1642, %v7951, 0.0
  %8130 = vadd.xlane.f32.xlu0 %v8129
  %v8131 = vpop.xlane.xlu0 %8130
  %v8132 = vsel %vm1642, %v7953, 0.0
  %8133 = vadd.xlane.f32.xlu0 %v8132
  %v8134 = vpop.xlane.xlu0 %8133
  %v8135 = vsel %vm1642, %v7955, 0.0
  %8136 = vadd.xlane.f32.xlu0 %v8135
  %v8137 = vpop.xlane.xlu0 %8136
  %v8138 = vsel %vm1642, %v7957, 0.0
  %8139 = vadd.xlane.f32.xlu0 %v8138
  %v8140 = vpop.xlane.xlu0 %8139
  %v8141 = vsel %vm1642, %v7959, 0.0
  %8142 = vadd.xlane.f32.xlu0 %v8141
  %v8143 = vpop.xlane.xlu0 %8142
  %v8144 = vsel %vm1642, %v7961, 0.0
  %8145 = vadd.xlane.f32.xlu0 %v8144
  %v8146 = vpop.xlane.xlu0 %8145
  %v8147 = vsel %vm1642, %v7963, 0.0
  %8148 = vadd.xlane.f32.xlu0 %v8147
  %v8149 = vpop.xlane.xlu0 %8148
  %v8150 = vsel %vm1642, %v7965, 0.0
  %8151 = vadd.xlane.f32.xlu0 %v8150
  %v8152 = vpop.xlane.xlu0 %8151
  %v8153 = vsel %vm1642, %v7967, 0.0
  %8154 = vadd.xlane.f32.xlu0 %v8153
  %v8155 = vpop.xlane.xlu0 %8154
  %v8156 = vsel %vm1642, %v7969, 0.0
  %8157 = vadd.xlane.f32.xlu0 %v8156
  %v8158 = vpop.xlane.xlu0 %8157
  %v8159 = vsel %vm1642, %v7971, 0.0
  %8160 = vadd.xlane.f32.xlu0 %v8159
  %v8161 = vpop.xlane.xlu0 %8160
  %v8162 = vsel %vm1642, %v7973, 0.0
  %8163 = vadd.xlane.f32.xlu0 %v8162
  %v8164 = vpop.xlane.xlu0 %8163
  %v8165 = vsel %vm1642, %v7975, 0.0
  %8166 = vadd.xlane.f32.xlu0 %v8165
  %v8167 = vpop.xlane.xlu0 %8166
  %v8168 = vpack.c.bf16 %v7851, %v7849
  %v8169 = vpack.c.bf16 %v7855, %v7853
  %v8170 = vpack.c.bf16 %v7859, %v7857
  %v8171 = vpack.c.bf16 %v7863, %v7861
  %v8172 = vpack.c.bf16 %v7867, %v7865
  %v8173 = vpack.c.bf16 %v7871, %v7869
  %v8174 = vpack.c.bf16 %v7875, %v7873
  %v8175 = vpack.c.bf16 %v7879, %v7877
  %v8176 = vpack.c.bf16 %v7883, %v7881
  %v8177 = vpack.c.bf16 %v7887, %v7885
  %v8178 = vpack.c.bf16 %v7891, %v7889
  %v8179 = vpack.c.bf16 %v7895, %v7893
  %v8180 = vpack.c.bf16 %v7899, %v7897
  %v8181 = vpack.c.bf16 %v7903, %v7901
  %v8182 = vpack.c.bf16 %v7907, %v7905
  %v8183 = vpack.c.bf16 %v7911, %v7909
  %v8184 = vpack.c.bf16 %v7915, %v7913
  %v8185 = vpack.c.bf16 %v7919, %v7917
  %v8186 = vpack.c.bf16 %v7923, %v7921
  %v8187 = vpack.c.bf16 %v7927, %v7925
  %v8188 = vpack.c.bf16 %v7931, %v7929
  %v8189 = vpack.c.bf16 %v7935, %v7933
  %v8190 = vpack.c.bf16 %v7939, %v7937
  %v8191 = vpack.c.bf16 %v7943, %v7941
  %v8192 = vpack.c.bf16 %v7947, %v7945
  %v8193 = vpack.c.bf16 %v7951, %v7949
  %v8194 = vpack.c.bf16 %v7955, %v7953
  %v8195 = vpack.c.bf16 %v7959, %v7957
  %v8196 = vpack.c.bf16 %v7963, %v7961
  %v8197 = vpack.c.bf16 %v7967, %v7965
  %v8198 = vpack.c.bf16 %v7971, %v7969
  %v8199 = vpack.c.bf16 %v7975, %v7973
  %8200 = vrot.lane.b32.xlu0 %v6679, 48
  %v8201 = vpop.permute.xlu0 %8200
  %8202 = vrot.lane.b32.xlu0 %v6680, 48
  %v8203 = vpop.permute.xlu0 %8202
  %8204 = vrot.lane.b32.xlu0 %v6681, 48
  %v8205 = vpop.permute.xlu0 %8204
  %8206 = vrot.lane.b32.xlu0 %v6682, 48
  %v8207 = vpop.permute.xlu0 %8206
  %v8213 = vsel %vm1642, %v8168, 0
  %v8216 = vsel %vm1642, %v8169, 0
  %v8219 = vsel %vm1642, %v8170, 0
  %v8222 = vsel %vm1642, %v8171, 0
  %8224 = vmatprep.subr.bf16.mxu0 0
  %8225 = vmatpush1.bf16.msra.mxu0 %v8201
  %8226 = vmatprep.subr.bf16.mxu0 0
  %8227 = vmatpush1.bf16.msra.mxu0 %v8203
  %8228 = vmatprep.subr.bf16.mxu0 0
  %8229 = vmatpush1.bf16.msra.mxu0 %v8205
  %8230 = vmatprep.subr.bf16.mxu0 0
  %8231 = vmatpush1.bf16.msra.mxu0 %v8207
  %8232 = vmatprep.subr.bf16.mxu0 0
  %8233 = vmatpush1.bf16.msra.mxu0 0
  %8234 = vmatprep.subr.bf16.mxu0 0
  %8235 = vmatpush1.bf16.msra.mxu0 0
  %8236 = vmatprep.subr.bf16.mxu0 0
  %8237 = vmatpush1.bf16.msra.mxu0 0
  %8238 = vmatprep.subr.bf16.mxu0 0
  %8239 = vmatpush1.bf16.msra.mxu0 0
  %8240 = vmatprep.subr.bf16.mxu0 0
  %8241 = vmatpush1.bf16.msra.mxu0 0
  %8242 = vmatprep.subr.bf16.mxu0 0
  %8243 = vmatpush1.bf16.msra.mxu0 0
  %8244 = vmatprep.subr.bf16.mxu0 0
  %8245 = vmatpush1.bf16.msra.mxu0 0
  %8246 = vmatprep.subr.bf16.mxu0 0
  %8247 = vmatpush1.bf16.msra.mxu0 0
  %8248 = vmatprep.subr.bf16.mxu0 0
  %8249 = vmatpush1.bf16.msra.mxu0 0
  %8250 = vmatprep.subr.bf16.mxu0 0
  %8251 = vmatpush1.bf16.msra.mxu0 0
  %8252 = vmatprep.subr.bf16.mxu0 0
  %8253 = vmatpush1.bf16.msra.mxu0 0
  %8254 = vmatprep.subr.bf16.mxu0 0
  %8255 = vmatpush1.bf16.msra.mxu0 0
  %8256 = vmatprep.mubr.bf16.mxu0 0
  %8257 = vmatmul.mubr.bf16.gmra.mrb[0].mxu0 %v8213
  %v8258 = vpop.f32.mrb[0].mxu0
  %v8259 = vadd.f32 0.0, %v8258
  %v8260 = vpop.f32.mrb[0].mxu0
  %v8261 = vpop.f32.mrb[0].mxu0
  %v8262 = vadd.f32 0.0, %v8261
  %v8263 = vpop.f32.mrb[0].mxu0
  %8264 = vmatprep.mubr.bf16.mxu0 0
  %8265 = vmatmul.mubr.bf16.gmra.mrb[0].mxu0 %v8216
  %v8266 = vpop.f32.mrb[0].mxu0
  %v8267 = vadd.f32 0.0, %v8266
  %v8268 = vpop.f32.mrb[0].mxu0
  %v8269 = vpop.f32.mrb[0].mxu0
  %v8270 = vadd.f32 0.0, %v8269
  %v8271 = vpop.f32.mrb[0].mxu0
  %8272 = vmatprep.mubr.bf16.mxu0 0
  %8273 = vmatmul.mubr.bf16.gmra.mrb[0].mxu0 %v8219
  %v8274 = vpop.f32.mrb[0].mxu0
  %v8275 = vadd.f32 0.0, %v8274
  %v8276 = vpop.f32.mrb[0].mxu0
  %v8277 = vpop.f32.mrb[0].mxu0
  %v8278 = vadd.f32 0.0, %v8277
  %v8279 = vpop.f32.mrb[0].mxu0
  %8280 = vmatprep.mubr.bf16.mxu0 0
  %8281 = vmatmul.mubr.bf16.gmra.mrb[0].mxu0 %v8222
  %v8282 = vpop.f32.mrb[0].mxu0
  %v8283 = vadd.f32 0.0, %v8282
  %v8284 = vpop.f32.mrb[0].mxu0
  %v8285 = vpop.f32.mrb[0].mxu0
  %v8286 = vadd.f32 0.0, %v8285
  %v8287 = vpop.f32.mrb[0].mxu0
  %8288 = vdwg.mxu0
  %8289 = vrot.lane.b32.xlu0 %v6683, 48
  %v8290 = vpop.permute.xlu0 %8289
  %8291 = vrot.lane.b32.xlu0 %v6684, 48
  %v8292 = vpop.permute.xlu0 %8291
  %8293 = vrot.lane.b32.xlu0 %v6685, 48
  %v8294 = vpop.permute.xlu0 %8293
  %8295 = vrot.lane.b32.xlu0 %v6686, 48
  %v8296 = vpop.permute.xlu0 %8295
  %v8302 = vsel %vm1642, %v8172, 0
  %v8305 = vsel %vm1642, %v8173, 0
  %v8308 = vsel %vm1642, %v8174, 0
  %v8311 = vsel %vm1642, %v8175, 0
  %8313 = vmatprep.subr.bf16.mxu0 0
  %8314 = vmatpush1.bf16.msra.mxu0 %v8290
  %8315 = vmatprep.subr.bf16.mxu0 0
  %8316 = vmatpush1.bf16.msra.mxu0 %v8292
  %8317 = vmatprep.subr.bf16.mxu0 0
  %8318 = vmatpush1.bf16.msra.mxu0 %v8294
  %8319 = vmatprep.subr.bf16.mxu0 0
  %8320 = vmatpush1.bf16.msra.mxu0 %v8296
  %8321 = vmatprep.subr.bf16.mxu0 0
  %8322 = vmatpush1.bf16.msra.mxu0 0
  %8323 = vmatprep.subr.bf16.mxu0 0
  %8324 = vmatpush1.bf16.msra.mxu0 0
  %8325 = vmatprep.subr.bf16.mxu0 0
  %8326 = vmatpush1.bf16.msra.mxu0 0
  %8327 = vmatprep.subr.bf16.mxu0 0
  %8328 = vmatpush1.bf16.msra.mxu0 0
  %8329 = vmatprep.subr.bf16.mxu0 0
  %8330 = vmatpush1.bf16.msra.mxu0 0
  %8331 = vmatprep.subr.bf16.mxu0 0
  %8332 = vmatpush1.bf16.msra.mxu0 0
  %8333 = vmatprep.subr.bf16.mxu0 0
  %8334 = vmatpush1.bf16.msra.mxu0 0
  %8335 = vmatprep.subr.bf16.mxu0 0
  %8336 = vmatpush1.bf16.msra.mxu0 0
  %8337 = vmatprep.subr.bf16.mxu0 0
  %8338 = vmatpush1.bf16.msra.mxu0 0
  %8339 = vmatprep.subr.bf16.mxu0 0
  %8340 = vmatpush1.bf16.msra.mxu0 0
  %8341 = vmatprep.subr.bf16.mxu0 0
  %8342 = vmatpush1.bf16.msra.mxu0 0
  %8343 = vmatprep.subr.bf16.mxu0 0
  %8344 = vmatpush1.bf16.msra.mxu0 0
  %8345 = vmatprep.mubr.bf16.mxu0 0
  %8346 = vmatmul.mubr.bf16.gmra.mrb[0].mxu0 %v8302
  %v8347 = vpop.f32.mrb[0].mxu0
  %v8348 = vadd.f32 0.0, %v8347
  %v8349 = vpop.f32.mrb[0].mxu0
  %v8350 = vpop.f32.mrb[0].mxu0
  %v8351 = vadd.f32 0.0, %v8350
  %v8352 = vpop.f32.mrb[0].mxu0
  %8353 = vmatprep.mubr.bf16.mxu0 0
  %8354 = vmatmul.mubr.bf16.gmra.mrb[0].mxu0 %v8305
  %v8355 = vpop.f32.mrb[0].mxu0
  %v8356 = vadd.f32 0.0, %v8355
  %v8357 = vpop.f32.mrb[0].mxu0
  %v8358 = vpop.f32.mrb[0].mxu0
  %v8359 = vadd.f32 0.0, %v8358
  %v8360 = vpop.f32.mrb[0].mxu0
  %8361 = vmatprep.mubr.bf16.mxu0 0
  %8362 = vmatmul.mubr.bf16.gmra.mrb[0].mxu0 %v8308
  %v8363 = vpop.f32.mrb[0].mxu0
  %v8364 = vadd.f32 0.0, %v8363
  %v8365 = vpop.f32.mrb[0].mxu0
  %v8366 = vpop.f32.mrb[0].mxu0
  %v8367 = vadd.f32 0.0, %v8366
  %v8368 = vpop.f32.mrb[0].mxu0
  %8369 = vmatprep.mubr.bf16.mxu0 0
  %8370 = vmatmul.mubr.bf16.gmra.mrb[0].mxu0 %v8311
  %v8371 = vpop.f32.mrb[0].mxu0
  %v8372 = vadd.f32 0.0, %v8371
  %v8373 = vpop.f32.mrb[0].mxu0
  %v8374 = vpop.f32.mrb[0].mxu0
  %v8375 = vadd.f32 0.0, %v8374
  %v8376 = vpop.f32.mrb[0].mxu0
  %8377 = vdwg.mxu0
  %8378 = vrot.lane.b32.xlu0 %v6687, 48
  %v8379 = vpop.permute.xlu0 %8378
  %8380 = vrot.lane.b32.xlu0 %v6688, 48
  %v8381 = vpop.permute.xlu0 %8380
  %8382 = vrot.lane.b32.xlu0 %v6689, 48
  %v8383 = vpop.permute.xlu0 %8382
  %8384 = vrot.lane.b32.xlu0 %v6690, 48
  %v8385 = vpop.permute.xlu0 %8384
  %v8391 = vsel %vm1642, %v8176, 0
  %v8394 = vsel %vm1642, %v8177, 0
  %v8397 = vsel %vm1642, %v8178, 0
  %v8400 = vsel %vm1642, %v8179, 0
  %8402 = vmatprep.subr.bf16.mxu0 0
  %8403 = vmatpush1.bf16.msra.mxu0 %v8379
  %8404 = vmatprep.subr.bf16.mxu0 0
  %8405 = vmatpush1.bf16.msra.mxu0 %v8381
  %8406 = vmatprep.subr.bf16.mxu0 0
  %8407 = vmatpush1.bf16.msra.mxu0 %v8383
  %8408 = vmatprep.subr.bf16.mxu0 0
  %8409 = vmatpush1.bf16.msra.mxu0 %v8385
  %8410 = vmatprep.subr.bf16.mxu0 0
  %8411 = vmatpush1.bf16.msra.mxu0 0
  %8412 = vmatprep.subr.bf16.mxu0 0
  %8413 = vmatpush1.bf16.msra.mxu0 0
  %8414 = vmatprep.subr.bf16.mxu0 0
  %8415 = vmatpush1.bf16.msra.mxu0 0
  %8416 = vmatprep.subr.bf16.mxu0 0
  %8417 = vmatpush1.bf16.msra.mxu0 0
  %8418 = vmatprep.subr.bf16.mxu0 0
  %8419 = vmatpush1.bf16.msra.mxu0 0
  %8420 = vmatprep.subr.bf16.mxu0 0
  %8421 = vmatpush1.bf16.msra.mxu0 0
  %8422 = vmatprep.subr.bf16.mxu0 0
  %8423 = vmatpush1.bf16.msra.mxu0 0
  %8424 = vmatprep.subr.bf16.mxu0 0
  %8425 = vmatpush1.bf16.msra.mxu0 0
  %8426 = vmatprep.subr.bf16.mxu0 0
  %8427 = vmatpush1.bf16.msra.mxu0 0
  %8428 = vmatprep.subr.bf16.mxu0 0
  %8429 = vmatpush1.bf16.msra.mxu0 0
  %8430 = vmatprep.subr.bf16.mxu0 0
  %8431 = vmatpush1.bf16.msra.mxu0 0
  %8432 = vmatprep.subr.bf16.mxu0 0
  %8433 = vmatpush1.bf16.msra.mxu0 0
  %8434 = vmatprep.mubr.bf16.mxu0 0
  %8435 = vmatmul.mubr.bf16.gmra.mrb[0].mxu0 %v8391
  %v8436 = vpop.f32.mrb[0].mxu0
  %v8437 = vadd.f32 0.0, %v8436
  %v8438 = vpop.f32.mrb[0].mxu0
  %v8439 = vpop.f32.mrb[0].mxu0
  %v8440 = vadd.f32 0.0, %v8439
  %v8441 = vpop.f32.mrb[0].mxu0
  %8442 = vmatprep.mubr.bf16.mxu0 0
  %8443 = vmatmul.mubr.bf16.gmra.mrb[0].mxu0 %v8394
  %v8444 = vpop.f32.mrb[0].mxu0
  %v8445 = vadd.f32 0.0, %v8444
  %v8446 = vpop.f32.mrb[0].mxu0
  %v8447 = vpop.f32.mrb[0].mxu0
  %v8448 = vadd.f32 0.0, %v8447
  %v8449 = vpop.f32.mrb[0].mxu0
  %8450 = vmatprep.mubr.bf16.mxu0 0
  %8451 = vmatmul.mubr.bf16.gmra.mrb[0].mxu0 %v8397
  %v8452 = vpop.f32.mrb[0].mxu0
  %v8453 = vadd.f32 0.0, %v8452
  %v8454 = vpop.f32.mrb[0].mxu0
  %v8455 = vpop.f32.mrb[0].mxu0
  %v8456 = vadd.f32 0.0, %v8455
  %v8457 = vpop.f32.mrb[0].mxu0
  %8458 = vmatprep.mubr.bf16.mxu0 0
  %8459 = vmatmul.mubr.bf16.gmra.mrb[0].mxu0 %v8400
  %v8460 = vpop.f32.mrb[0].mxu0
  %v8461 = vadd.f32 0.0, %v8460
  %v8462 = vpop.f32.mrb[0].mxu0
  %v8463 = vpop.f32.mrb[0].mxu0
  %v8464 = vadd.f32 0.0, %v8463
  %v8465 = vpop.f32.mrb[0].mxu0
  %8466 = vdwg.mxu0
  %8467 = vrot.lane.b32.xlu0 %v6691, 48
  %v8468 = vpop.permute.xlu0 %8467
  %8469 = vrot.lane.b32.xlu0 %v6692, 48
  %v8470 = vpop.permute.xlu0 %8469
  %8471 = vrot.lane.b32.xlu0 %v6693, 48
  %v8472 = vpop.permute.xlu0 %8471
  %8473 = vrot.lane.b32.xlu0 %v6694, 48
  %v8474 = vpop.permute.xlu0 %8473
  %v8480 = vsel %vm1642, %v8180, 0
  %v8483 = vsel %vm1642, %v8181, 0
  %v8486 = vsel %vm1642, %v8182, 0
  %v8489 = vsel %vm1642, %v8183, 0
  %8491 = vmatprep.subr.bf16.mxu0 0
  %8492 = vmatpush1.bf16.msra.mxu0 %v8468
  %8493 = vmatprep.subr.bf16.mxu0 0
  %8494 = vmatpush1.bf16.msra.mxu0 %v8470
  %8495 = vmatprep.subr.bf16.mxu0 0
  %8496 = vmatpush1.bf16.msra.mxu0 %v8472
  %8497 = vmatprep.subr.bf16.mxu0 0
  %8498 = vmatpush1.bf16.msra.mxu0 %v8474
  %8499 = vmatprep.subr.bf16.mxu0 0
  %8500 = vmatpush1.bf16.msra.mxu0 0
  %8501 = vmatprep.subr.bf16.mxu0 0
  %8502 = vmatpush1.bf16.msra.mxu0 0
  %8503 = vmatprep.subr.bf16.mxu0 0
  %8504 = vmatpush1.bf16.msra.mxu0 0
  %8505 = vmatprep.subr.bf16.mxu0 0
  %8506 = vmatpush1.bf16.msra.mxu0 0
  %8507 = vmatprep.subr.bf16.mxu0 0
  %8508 = vmatpush1.bf16.msra.mxu0 0
  %8509 = vmatprep.subr.bf16.mxu0 0
  %8510 = vmatpush1.bf16.msra.mxu0 0
  %8511 = vmatprep.subr.bf16.mxu0 0
  %8512 = vmatpush1.bf16.msra.mxu0 0
  %8513 = vmatprep.subr.bf16.mxu0 0
  %8514 = vmatpush1.bf16.msra.mxu0 0
  %8515 = vmatprep.subr.bf16.mxu0 0
  %8516 = vmatpush1.bf16.msra.mxu0 0
  %8517 = vmatprep.subr.bf16.mxu0 0
  %8518 = vmatpush1.bf16.msra.mxu0 0
  %8519 = vmatprep.subr.bf16.mxu0 0
  %8520 = vmatpush1.bf16.msra.mxu0 0
  %8521 = vmatprep.subr.bf16.mxu0 0
  %8522 = vmatpush1.bf16.msra.mxu0 0
  %8523 = vmatprep.mubr.bf16.mxu0 0
  %8524 = vmatmul.mubr.bf16.gmra.mrb[0].mxu0 %v8480
  %v8525 = vpop.f32.mrb[0].mxu0
  %v8526 = vadd.f32 0.0, %v8525
  %v8527 = vpop.f32.mrb[0].mxu0
  %v8528 = vpop.f32.mrb[0].mxu0
  %v8529 = vadd.f32 0.0, %v8528
  %v8530 = vpop.f32.mrb[0].mxu0
  %8531 = vmatprep.mubr.bf16.mxu0 0
  %8532 = vmatmul.mubr.bf16.gmra.mrb[0].mxu0 %v8483
  %v8533 = vpop.f32.mrb[0].mxu0
  %v8534 = vadd.f32 0.0, %v8533
  %v8535 = vpop.f32.mrb[0].mxu0
  %v8536 = vpop.f32.mrb[0].mxu0
  %v8537 = vadd.f32 0.0, %v8536
  %v8538 = vpop.f32.mrb[0].mxu0
  %8539 = vmatprep.mubr.bf16.mxu0 0
  %8540 = vmatmul.mubr.bf16.gmra.mrb[0].mxu0 %v8486
  %v8541 = vpop.f32.mrb[0].mxu0
  %v8542 = vadd.f32 0.0, %v8541
  %v8543 = vpop.f32.mrb[0].mxu0
  %v8544 = vpop.f32.mrb[0].mxu0
  %v8545 = vadd.f32 0.0, %v8544
  %v8546 = vpop.f32.mrb[0].mxu0
  %8547 = vmatprep.mubr.bf16.mxu0 0
  %8548 = vmatmul.mubr.bf16.gmra.mrb[0].mxu0 %v8489
  %v8549 = vpop.f32.mrb[0].mxu0
  %v8550 = vadd.f32 0.0, %v8549
  %v8551 = vpop.f32.mrb[0].mxu0
  %v8552 = vpop.f32.mrb[0].mxu0
  %v8553 = vadd.f32 0.0, %v8552
  %v8554 = vpop.f32.mrb[0].mxu0
  %8555 = vdwg.mxu0
  %8556 = vrot.lane.b32.xlu0 %v6695, 48
  %v8557 = vpop.permute.xlu0 %8556
  %8558 = vrot.lane.b32.xlu0 %v6696, 48
  %v8559 = vpop.permute.xlu0 %8558
  %8560 = vrot.lane.b32.xlu0 %v6697, 48
  %v8561 = vpop.permute.xlu0 %8560
  %8562 = vrot.lane.b32.xlu0 %v6698, 48
  %v8563 = vpop.permute.xlu0 %8562
  %v8569 = vsel %vm1642, %v8184, 0
  %v8572 = vsel %vm1642, %v8185, 0
  %v8575 = vsel %vm1642, %v8186, 0
  %v8578 = vsel %vm1642, %v8187, 0
  %8580 = vmatprep.subr.bf16.mxu0 0
  %8581 = vmatpush1.bf16.msra.mxu0 %v8557
  %8582 = vmatprep.subr.bf16.mxu0 0
  %8583 = vmatpush1.bf16.msra.mxu0 %v8559
  %8584 = vmatprep.subr.bf16.mxu0 0
  %8585 = vmatpush1.bf16.msra.mxu0 %v8561
  %8586 = vmatprep.subr.bf16.mxu0 0
  %8587 = vmatpush1.bf16.msra.mxu0 %v8563
  %8588 = vmatprep.subr.bf16.mxu0 0
  %8589 = vmatpush1.bf16.msra.mxu0 0
  %8590 = vmatprep.subr.bf16.mxu0 0
  %8591 = vmatpush1.bf16.msra.mxu0 0
  %8592 = vmatprep.subr.bf16.mxu0 0
  %8593 = vmatpush1.bf16.msra.mxu0 0
  %8594 = vmatprep.subr.bf16.mxu0 0
  %8595 = vmatpush1.bf16.msra.mxu0 0
  %8596 = vmatprep.subr.bf16.mxu0 0
  %8597 = vmatpush1.bf16.msra.mxu0 0
  %8598 = vmatprep.subr.bf16.mxu0 0
  %8599 = vmatpush1.bf16.msra.mxu0 0
  %8600 = vmatprep.subr.bf16.mxu0 0
  %8601 = vmatpush1.bf16.msra.mxu0 0
  %8602 = vmatprep.subr.bf16.mxu0 0
  %8603 = vmatpush1.bf16.msra.mxu0 0
  %8604 = vmatprep.subr.bf16.mxu0 0
  %8605 = vmatpush1.bf16.msra.mxu0 0
  %8606 = vmatprep.subr.bf16.mxu0 0
  %8607 = vmatpush1.bf16.msra.mxu0 0
  %8608 = vmatprep.subr.bf16.mxu0 0
  %8609 = vmatpush1.bf16.msra.mxu0 0
  %8610 = vmatprep.subr.bf16.mxu0 0
  %8611 = vmatpush1.bf16.msra.mxu0 0
  %8612 = vmatprep.mubr.bf16.mxu0 0
  %8613 = vmatmul.mubr.bf16.gmra.mrb[0].mxu0 %v8569
  %v8614 = vpop.f32.mrb[0].mxu0
  %v8615 = vadd.f32 0.0, %v8614
  %v8616 = vpop.f32.mrb[0].mxu0
  %v8617 = vpop.f32.mrb[0].mxu0
  %v8618 = vadd.f32 0.0, %v8617
  %v8619 = vpop.f32.mrb[0].mxu0
  %8620 = vmatprep.mubr.bf16.mxu0 0
  %8621 = vmatmul.mubr.bf16.gmra.mrb[0].mxu0 %v8572
  %v8622 = vpop.f32.mrb[0].mxu0
  %v8623 = vadd.f32 0.0, %v8622
  %v8624 = vpop.f32.mrb[0].mxu0
  %v8625 = vpop.f32.mrb[0].mxu0
  %v8626 = vadd.f32 0.0, %v8625
  %v8627 = vpop.f32.mrb[0].mxu0
  %8628 = vmatprep.mubr.bf16.mxu0 0
  %8629 = vmatmul.mubr.bf16.gmra.mrb[0].mxu0 %v8575
  %v8630 = vpop.f32.mrb[0].mxu0
  %v8631 = vadd.f32 0.0, %v8630
  %v8632 = vpop.f32.mrb[0].mxu0
  %v8633 = vpop.f32.mrb[0].mxu0
  %v8634 = vadd.f32 0.0, %v8633
  %v8635 = vpop.f32.mrb[0].mxu0
  %8636 = vmatprep.mubr.bf16.mxu0 0
  %8637 = vmatmul.mubr.bf16.gmra.mrb[0].mxu0 %v8578
  %v8638 = vpop.f32.mrb[0].mxu0
  %v8639 = vadd.f32 0.0, %v8638
  %v8640 = vpop.f32.mrb[0].mxu0
  %v8641 = vpop.f32.mrb[0].mxu0
  %v8642 = vadd.f32 0.0, %v8641
  %v8643 = vpop.f32.mrb[0].mxu0
  %8644 = vdwg.mxu0
  %8645 = vrot.lane.b32.xlu0 %v6699, 48
  %v8646 = vpop.permute.xlu0 %8645
  %8647 = vrot.lane.b32.xlu0 %v6700, 48
  %v8648 = vpop.permute.xlu0 %8647
  %8649 = vrot.lane.b32.xlu0 %v6701, 48
  %v8650 = vpop.permute.xlu0 %8649
  %8651 = vrot.lane.b32.xlu0 %v6702, 48
  %v8652 = vpop.permute.xlu0 %8651
  %v8658 = vsel %vm1642, %v8188, 0
  %v8661 = vsel %vm1642, %v8189, 0
  %v8664 = vsel %vm1642, %v8190, 0
  %v8667 = vsel %vm1642, %v8191, 0
  %8669 = vmatprep.subr.bf16.mxu0 0
  %8670 = vmatpush1.bf16.msra.mxu0 %v8646
  %8671 = vmatprep.subr.bf16.mxu0 0
  %8672 = vmatpush1.bf16.msra.mxu0 %v8648
  %8673 = vmatprep.subr.bf16.mxu0 0
  %8674 = vmatpush1.bf16.msra.mxu0 %v8650
  %8675 = vmatprep.subr.bf16.mxu0 0
  %8676 = vmatpush1.bf16.msra.mxu0 %v8652
  %8677 = vmatprep.subr.bf16.mxu0 0
  %8678 = vmatpush1.bf16.msra.mxu0 0
  %8679 = vmatprep.subr.bf16.mxu0 0
  %8680 = vmatpush1.bf16.msra.mxu0 0
  %8681 = vmatprep.subr.bf16.mxu0 0
  %8682 = vmatpush1.bf16.msra.mxu0 0
  %8683 = vmatprep.subr.bf16.mxu0 0
  %8684 = vmatpush1.bf16.msra.mxu0 0
  %8685 = vmatprep.subr.bf16.mxu0 0
  %8686 = vmatpush1.bf16.msra.mxu0 0
  %8687 = vmatprep.subr.bf16.mxu0 0
  %8688 = vmatpush1.bf16.msra.mxu0 0
  %8689 = vmatprep.subr.bf16.mxu0 0
  %8690 = vmatpush1.bf16.msra.mxu0 0
  %8691 = vmatprep.subr.bf16.mxu0 0
  %8692 = vmatpush1.bf16.msra.mxu0 0
  %8693 = vmatprep.subr.bf16.mxu0 0
  %8694 = vmatpush1.bf16.msra.mxu0 0
  %8695 = vmatprep.subr.bf16.mxu0 0
  %8696 = vmatpush1.bf16.msra.mxu0 0
  %8697 = vmatprep.subr.bf16.mxu0 0
  %8698 = vmatpush1.bf16.msra.mxu0 0
  %8699 = vmatprep.subr.bf16.mxu0 0
  %8700 = vmatpush1.bf16.msra.mxu0 0
  %8701 = vmatprep.mubr.bf16.mxu0 0
  %8702 = vmatmul.mubr.bf16.gmra.mrb[0].mxu0 %v8658
  %v8703 = vpop.f32.mrb[0].mxu0
  %v8704 = vadd.f32 0.0, %v8703
  %v8705 = vpop.f32.mrb[0].mxu0
  %v8706 = vpop.f32.mrb[0].mxu0
  %v8707 = vadd.f32 0.0, %v8706
  %v8708 = vpop.f32.mrb[0].mxu0
  %8709 = vmatprep.mubr.bf16.mxu0 0
  %8710 = vmatmul.mubr.bf16.gmra.mrb[0].mxu0 %v8661
  %v8711 = vpop.f32.mrb[0].mxu0
  %v8712 = vadd.f32 0.0, %v8711
  %v8713 = vpop.f32.mrb[0].mxu0
  %v8714 = vpop.f32.mrb[0].mxu0
  %v8715 = vadd.f32 0.0, %v8714
  %v8716 = vpop.f32.mrb[0].mxu0
  %8717 = vmatprep.mubr.bf16.mxu0 0
  %8718 = vmatmul.mubr.bf16.gmra.mrb[0].mxu0 %v8664
  %v8719 = vpop.f32.mrb[0].mxu0
  %v8720 = vadd.f32 0.0, %v8719
  %v8721 = vpop.f32.mrb[0].mxu0
  %v8722 = vpop.f32.mrb[0].mxu0
  %v8723 = vadd.f32 0.0, %v8722
  %v8724 = vpop.f32.mrb[0].mxu0
  %8725 = vmatprep.mubr.bf16.mxu0 0
  %8726 = vmatmul.mubr.bf16.gmra.mrb[0].mxu0 %v8667
  %v8727 = vpop.f32.mrb[0].mxu0
  %v8728 = vadd.f32 0.0, %v8727
  %v8729 = vpop.f32.mrb[0].mxu0
  %v8730 = vpop.f32.mrb[0].mxu0
  %v8731 = vadd.f32 0.0, %v8730
  %v8732 = vpop.f32.mrb[0].mxu0
  %8733 = vdwg.mxu0
  %8734 = vrot.lane.b32.xlu0 %v6703, 48
  %v8735 = vpop.permute.xlu0 %8734
  %8736 = vrot.lane.b32.xlu0 %v6704, 48
  %v8737 = vpop.permute.xlu0 %8736
  %8738 = vrot.lane.b32.xlu0 %v6705, 48
  %v8739 = vpop.permute.xlu0 %8738
  %8740 = vrot.lane.b32.xlu0 %v6706, 48
  %v8741 = vpop.permute.xlu0 %8740
  %v8747 = vsel %vm1642, %v8192, 0
  %v8750 = vsel %vm1642, %v8193, 0
  %v8753 = vsel %vm1642, %v8194, 0
  %v8756 = vsel %vm1642, %v8195, 0
  %8758 = vmatprep.subr.bf16.mxu0 0
  %8759 = vmatpush1.bf16.msra.mxu0 %v8735
  %8760 = vmatprep.subr.bf16.mxu0 0
  %8761 = vmatpush1.bf16.msra.mxu0 %v8737
  %8762 = vmatprep.subr.bf16.mxu0 0
  %8763 = vmatpush1.bf16.msra.mxu0 %v8739
  %8764 = vmatprep.subr.bf16.mxu0 0
  %8765 = vmatpush1.bf16.msra.mxu0 %v8741
  %8766 = vmatprep.subr.bf16.mxu0 0
  %8767 = vmatpush1.bf16.msra.mxu0 0
  %8768 = vmatprep.subr.bf16.mxu0 0
  %8769 = vmatpush1.bf16.msra.mxu0 0
  %8770 = vmatprep.subr.bf16.mxu0 0
  %8771 = vmatpush1.bf16.msra.mxu0 0
  %8772 = vmatprep.subr.bf16.mxu0 0
  %8773 = vmatpush1.bf16.msra.mxu0 0
  %8774 = vmatprep.subr.bf16.mxu0 0
  %8775 = vmatpush1.bf16.msra.mxu0 0
  %8776 = vmatprep.subr.bf16.mxu0 0
  %8777 = vmatpush1.bf16.msra.mxu0 0
  %8778 = vmatprep.subr.bf16.mxu0 0
  %8779 = vmatpush1.bf16.msra.mxu0 0
  %8780 = vmatprep.subr.bf16.mxu0 0
  %8781 = vmatpush1.bf16.msra.mxu0 0
  %8782 = vmatprep.subr.bf16.mxu0 0
  %8783 = vmatpush1.bf16.msra.mxu0 0
  %8784 = vmatprep.subr.bf16.mxu0 0
  %8785 = vmatpush1.bf16.msra.mxu0 0
  %8786 = vmatprep.subr.bf16.mxu0 0
  %8787 = vmatpush1.bf16.msra.mxu0 0
  %8788 = vmatprep.subr.bf16.mxu0 0
  %8789 = vmatpush1.bf16.msra.mxu0 0
  %8790 = vmatprep.mubr.bf16.mxu0 0
  %8791 = vmatmul.mubr.bf16.gmra.mrb[0].mxu0 %v8747
  %v8792 = vpop.f32.mrb[0].mxu0
  %v8793 = vadd.f32 0.0, %v8792
  %v8794 = vpop.f32.mrb[0].mxu0
  %v8795 = vpop.f32.mrb[0].mxu0
  %v8796 = vadd.f32 0.0, %v8795
  %v8797 = vpop.f32.mrb[0].mxu0
  %8798 = vmatprep.mubr.bf16.mxu0 0
  %8799 = vmatmul.mubr.bf16.gmra.mrb[0].mxu0 %v8750
  %v8800 = vpop.f32.mrb[0].mxu0
  %v8801 = vadd.f32 0.0, %v8800
  %v8802 = vpop.f32.mrb[0].mxu0
  %v8803 = vpop.f32.mrb[0].mxu0
  %v8804 = vadd.f32 0.0, %v8803
  %v8805 = vpop.f32.mrb[0].mxu0
  %8806 = vmatprep.mubr.bf16.mxu0 0
  %8807 = vmatmul.mubr.bf16.gmra.mrb[0].mxu0 %v8753
  %v8808 = vpop.f32.mrb[0].mxu0
  %v8809 = vadd.f32 0.0, %v8808
  %v8810 = vpop.f32.mrb[0].mxu0
  %v8811 = vpop.f32.mrb[0].mxu0
  %v8812 = vadd.f32 0.0, %v8811
  %v8813 = vpop.f32.mrb[0].mxu0
  %8814 = vmatprep.mubr.bf16.mxu0 0
  %8815 = vmatmul.mubr.bf16.gmra.mrb[0].mxu0 %v8756
  %v8816 = vpop.f32.mrb[0].mxu0
  %v8817 = vadd.f32 0.0, %v8816
  %v8818 = vpop.f32.mrb[0].mxu0
  %v8819 = vpop.f32.mrb[0].mxu0
  %v8820 = vadd.f32 0.0, %v8819
  %v8821 = vpop.f32.mrb[0].mxu0
  %8822 = vdwg.mxu0
  %8823 = vrot.lane.b32.xlu0 %v6707, 48
  %v8824 = vpop.permute.xlu0 %8823
  %8825 = vrot.lane.b32.xlu0 %v6708, 48
  %v8826 = vpop.permute.xlu0 %8825
  %8827 = vrot.lane.b32.xlu0 %v6709, 48
  %v8828 = vpop.permute.xlu0 %8827
  %8829 = vrot.lane.b32.xlu0 %v6710, 48
  %v8830 = vpop.permute.xlu0 %8829
  %v8836 = vsel %vm1642, %v8196, 0
  %v8839 = vsel %vm1642, %v8197, 0
  %v8842 = vsel %vm1642, %v8198, 0
  %v8845 = vsel %vm1642, %v8199, 0
  %8847 = vmatprep.subr.bf16.mxu0 0
  %8848 = vmatpush1.bf16.msra.mxu0 %v8824
  %8849 = vmatprep.subr.bf16.mxu0 0
  %8850 = vmatpush1.bf16.msra.mxu0 %v8826
  %8851 = vmatprep.subr.bf16.mxu0 0
  %8852 = vmatpush1.bf16.msra.mxu0 %v8828
  %8853 = vmatprep.subr.bf16.mxu0 0
  %8854 = vmatpush1.bf16.msra.mxu0 %v8830
  %8855 = vmatprep.subr.bf16.mxu0 0
  %8856 = vmatpush1.bf16.msra.mxu0 0
  %8857 = vmatprep.subr.bf16.mxu0 0
  %8858 = vmatpush1.bf16.msra.mxu0 0
  %8859 = vmatprep.subr.bf16.mxu0 0
  %8860 = vmatpush1.bf16.msra.mxu0 0
  %8861 = vmatprep.subr.bf16.mxu0 0
  %8862 = vmatpush1.bf16.msra.mxu0 0
  %8863 = vmatprep.subr.bf16.mxu0 0
  %8864 = vmatpush1.bf16.msra.mxu0 0
  %8865 = vmatprep.subr.bf16.mxu0 0
  %8866 = vmatpush1.bf16.msra.mxu0 0
  %8867 = vmatprep.subr.bf16.mxu0 0
  %8868 = vmatpush1.bf16.msra.mxu0 0
  %8869 = vmatprep.subr.bf16.mxu0 0
  %8870 = vmatpush1.bf16.msra.mxu0 0
  %8871 = vmatprep.subr.bf16.mxu0 0
  %8872 = vmatpush1.bf16.msra.mxu0 0
  %8873 = vmatprep.subr.bf16.mxu0 0
  %8874 = vmatpush1.bf16.msra.mxu0 0
  %8875 = vmatprep.subr.bf16.mxu0 0
  %8876 = vmatpush1.bf16.msra.mxu0 0
  %8877 = vmatprep.subr.bf16.mxu0 0
  %8878 = vmatpush1.bf16.msra.mxu0 0
  %8879 = vmatprep.mubr.bf16.mxu0 0
  %8880 = vmatmul.mubr.bf16.gmra.mrb[0].mxu0 %v8836
  %v8881 = vpop.f32.mrb[0].mxu0
  %v8882 = vadd.f32 0.0, %v8881
  %v8883 = vpop.f32.mrb[0].mxu0
  %v8884 = vpop.f32.mrb[0].mxu0
  %v8885 = vadd.f32 0.0, %v8884
  %v8886 = vpop.f32.mrb[0].mxu0
  %8887 = vmatprep.mubr.bf16.mxu0 0
  %8888 = vmatmul.mubr.bf16.gmra.mrb[0].mxu0 %v8839
  %v8889 = vpop.f32.mrb[0].mxu0
  %v8890 = vadd.f32 0.0, %v8889
  %v8891 = vpop.f32.mrb[0].mxu0
  %v8892 = vpop.f32.mrb[0].mxu0
  %v8893 = vadd.f32 0.0, %v8892
  %v8894 = vpop.f32.mrb[0].mxu0
  %8895 = vmatprep.mubr.bf16.mxu0 0
  %8896 = vmatmul.mubr.bf16.gmra.mrb[0].mxu0 %v8842
  %v8897 = vpop.f32.mrb[0].mxu0
  %v8898 = vadd.f32 0.0, %v8897
  %v8899 = vpop.f32.mrb[0].mxu0
  %v8900 = vpop.f32.mrb[0].mxu0
  %v8901 = vadd.f32 0.0, %v8900
  %v8902 = vpop.f32.mrb[0].mxu0
  %8903 = vmatprep.mubr.bf16.mxu0 0
  %8904 = vmatmul.mubr.bf16.gmra.mrb[0].mxu0 %v8845
  %v8905 = vpop.f32.mrb[0].mxu0
  %v8906 = vadd.f32 0.0, %v8905
  %v8907 = vpop.f32.mrb[0].mxu0
  %v8908 = vpop.f32.mrb[0].mxu0
  %v8909 = vadd.f32 0.0, %v8908
  %v8910 = vpop.f32.mrb[0].mxu0
  %8911 = vdwg.mxu0
  %v8912 = vrcp.pop %v7978
  %v8913 = vrcp.pop %v7981
  %v8914 = vrcp.pop %v7984
  %v8915 = vrcp.pop %v7987
  %v8916 = vrcp.pop %v7990
  %v8917 = vrcp.pop %v7993
  %v8918 = vrcp.pop %v7996
  %v8919 = vrcp.pop %v7999
  %v8920 = vrcp.pop %v8002
  %v8921 = vrcp.pop %v8005
  %v8922 = vrcp.pop %v8008
  %v8923 = vrcp.pop %v8011
  %v8924 = vrcp.pop %v8014
  %v8925 = vrcp.pop %v8017
  %v8926 = vrcp.pop %v8020
  %v8927 = vrcp.pop %v8023
  %v8928 = vrcp.pop %v8026
  %v8929 = vrcp.pop %v8029
  %v8930 = vrcp.pop %v8032
  %v8931 = vrcp.pop %v8035
  %v8932 = vrcp.pop %v8038
  %v8933 = vrcp.pop %v8041
  %v8934 = vrcp.pop %v8044
  %v8935 = vrcp.pop %v8047
  %v8936 = vrcp.pop %v8050
  %v8937 = vrcp.pop %v8053
  %v8938 = vrcp.pop %v8056
  %v8939 = vrcp.pop %v8059
  %v8940 = vrcp.pop %v8062
  %v8941 = vrcp.pop %v8065
  %v8942 = vrcp.pop %v8068
  %v8943 = vrcp.pop %v8071
  %v8944 = vrcp.pop %v8074
  %v8945 = vrcp.pop %v8077
  %v8946 = vrcp.pop %v8080
  %v8947 = vrcp.pop %v8083
  %v8948 = vrcp.pop %v8086
  %v8949 = vrcp.pop %v8089
  %v8950 = vrcp.pop %v8092
  %v8951 = vrcp.pop %v8095
  %v8952 = vrcp.pop %v8098
  %v8953 = vrcp.pop %v8101
  %v8954 = vrcp.pop %v8104
  %v8955 = vrcp.pop %v8107
  %v8956 = vrcp.pop %v8110
  %v8957 = vrcp.pop %v8113
  %v8958 = vrcp.pop %v8116
  %v8959 = vrcp.pop %v8119
  %v8960 = vrcp.pop %v8122
  %v8961 = vrcp.pop %v8125
  %v8962 = vrcp.pop %v8128
  %v8963 = vrcp.pop %v8131
  %v8964 = vrcp.pop %v8134
  %v8965 = vrcp.pop %v8137
  %v8966 = vrcp.pop %v8140
  %v8967 = vrcp.pop %v8143
  %v8968 = vrcp.pop %v8146
  %v8969 = vrcp.pop %v8149
  %v8970 = vrcp.pop %v8152
  %v8971 = vrcp.pop %v8155
  %v8972 = vrcp.pop %v8158
  %v8973 = vrcp.pop %v8161
  %v8974 = vrcp.pop %v8164
  %v8975 = vrcp.pop %v8167
  %v8976 = vmul.f32 %v8259, %v8912
  %v8977 = vmul.f32 %v8262, %v8913
  %v8978 = vmul.f32 %v8267, %v8914
  %v8979 = vmul.f32 %v8270, %v8915
  %v8980 = vmul.f32 %v8275, %v8916
  %v8981 = vmul.f32 %v8278, %v8917
  %v8982 = vmul.f32 %v8283, %v8918
  %v8983 = vmul.f32 %v8286, %v8919
  %v8984 = vmul.f32 %v8348, %v8920
  %v8985 = vmul.f32 %v8351, %v8921
  %v8986 = vmul.f32 %v8356, %v8922
  %v8987 = vmul.f32 %v8359, %v8923
  %v8988 = vmul.f32 %v8364, %v8924
  %v8989 = vmul.f32 %v8367, %v8925
  %v8990 = vmul.f32 %v8372, %v8926
  %v8991 = vmul.f32 %v8375, %v8927
  %v8992 = vmul.f32 %v8437, %v8928
  %v8993 = vmul.f32 %v8440, %v8929
  %v8994 = vmul.f32 %v8445, %v8930
  %v8995 = vmul.f32 %v8448, %v8931
  %v8996 = vmul.f32 %v8453, %v8932
  %v8997 = vmul.f32 %v8456, %v8933
  %v8998 = vmul.f32 %v8461, %v8934
  %v8999 = vmul.f32 %v8464, %v8935
  %v9000 = vmul.f32 %v8526, %v8936
  %v9001 = vmul.f32 %v8529, %v8937
  %v9002 = vmul.f32 %v8534, %v8938
  %v9003 = vmul.f32 %v8537, %v8939
  %v9004 = vmul.f32 %v8542, %v8940
  %v9005 = vmul.f32 %v8545, %v8941
  %v9006 = vmul.f32 %v8550, %v8942
  %v9007 = vmul.f32 %v8553, %v8943
  %v9008 = vmul.f32 %v8615, %v8944
  %v9009 = vmul.f32 %v8618, %v8945
  %v9010 = vmul.f32 %v8623, %v8946
  %v9011 = vmul.f32 %v8626, %v8947
  %v9012 = vmul.f32 %v8631, %v8948
  %v9013 = vmul.f32 %v8634, %v8949
  %v9014 = vmul.f32 %v8639, %v8950
  %v9015 = vmul.f32 %v8642, %v8951
  %v9016 = vmul.f32 %v8704, %v8952
  %v9017 = vmul.f32 %v8707, %v8953
  %v9018 = vmul.f32 %v8712, %v8954
  %v9019 = vmul.f32 %v8715, %v8955
  %v9020 = vmul.f32 %v8720, %v8956
  %v9021 = vmul.f32 %v8723, %v8957
  %v9022 = vmul.f32 %v8728, %v8958
  %v9023 = vmul.f32 %v8731, %v8959
  %v9024 = vmul.f32 %v8793, %v8960
  %v9025 = vmul.f32 %v8796, %v8961
  %v9026 = vmul.f32 %v8801, %v8962
  %v9027 = vmul.f32 %v8804, %v8963
  %v9028 = vmul.f32 %v8809, %v8964
  %v9029 = vmul.f32 %v8812, %v8965
  %v9030 = vmul.f32 %v8817, %v8966
  %v9031 = vmul.f32 %v8820, %v8967
  %v9032 = vmul.f32 %v8882, %v8968
  %v9033 = vmul.f32 %v8885, %v8969
  %v9034 = vmul.f32 %v8890, %v8970
  %v9035 = vmul.f32 %v8893, %v8971
  %v9036 = vmul.f32 %v8898, %v8972
  %v9037 = vmul.f32 %v8901, %v8973
  %v9038 = vmul.f32 %v8906, %v8974
  %v9039 = vmul.f32 %v8909, %v8975
  %v9040 = vld [vmem:[#allocation3] sm:$0xff]
  %v9041 = vld [vmem:[#allocation3 + $0x8] sm:$0xff]
  %v9042 = vld [vmem:[#allocation3 + $0x10] sm:$0xff]
  %v9043 = vld [vmem:[#allocation3 + $0x18] sm:$0xff]
  %v9044 = vld [vmem:[#allocation3 + $0x20] sm:$0xff]
  %v9045 = vld [vmem:[#allocation3 + $0x28] sm:$0xff]
  %v9046 = vld [vmem:[#allocation3 + $0x30] sm:$0xff]
  %v9047 = vld [vmem:[#allocation3 + $0x38] sm:$0xff]
  %v9048 = vld [vmem:[#allocation3 + $0x40] sm:$0xff]
  %v9049 = vld [vmem:[#allocation3 + $0x48] sm:$0xff]
  %v9050 = vld [vmem:[#allocation3 + $0x50] sm:$0xff]
  %v9051 = vld [vmem:[#allocation3 + $0x58] sm:$0xff]
  %v9052 = vld [vmem:[#allocation3 + $0x60] sm:$0xff]
  %v9053 = vld [vmem:[#allocation3 + $0x68] sm:$0xff]
  %v9054 = vld [vmem:[#allocation3 + $0x70] sm:$0xff]
  %v9055 = vld [vmem:[#allocation3 + $0x78] sm:$0xff]
  %v9056 = vld [vmem:[#allocation3 + $0x80] sm:$0xff]
  %v9057 = vld [vmem:[#allocation3 + $0x88] sm:$0xff]
  %v9058 = vld [vmem:[#allocation3 + $0x90] sm:$0xff]
  %v9059 = vld [vmem:[#allocation3 + $0x98] sm:$0xff]
  %v9060 = vld [vmem:[#allocation3 + $0xa0] sm:$0xff]
  %v9061 = vld [vmem:[#allocation3 + $0xa8] sm:$0xff]
  %v9062 = vld [vmem:[#allocation3 + $0xb0] sm:$0xff]
  %v9063 = vld [vmem:[#allocation3 + $0xb8] sm:$0xff]
  %v9064 = vld [vmem:[#allocation3 + $0xc0] sm:$0xff]
  %v9065 = vld [vmem:[#allocation3 + $0xc8] sm:$0xff]
  %v9066 = vld [vmem:[#allocation3 + $0xd0] sm:$0xff]
  %v9067 = vld [vmem:[#allocation3 + $0xd8] sm:$0xff]
  %v9068 = vld [vmem:[#allocation3 + $0xe0] sm:$0xff]
  %v9069 = vld [vmem:[#allocation3 + $0xe8] sm:$0xff]
  %v9070 = vld [vmem:[#allocation3 + $0xf0] sm:$0xff]
  %v9071 = vld [vmem:[#allocation3 + $0xf8] sm:$0xff]
  %v9072 = vld [vmem:[#allocation3 + $0x100] sm:$0xff]
  %v9073 = vld [vmem:[#allocation3 + $0x108] sm:$0xff]
  %v9074 = vld [vmem:[#allocation3 + $0x110] sm:$0xff]
  %v9075 = vld [vmem:[#allocation3 + $0x118] sm:$0xff]
  %v9076 = vld [vmem:[#allocation3 + $0x120] sm:$0xff]
  %v9077 = vld [vmem:[#allocation3 + $0x128] sm:$0xff]
  %v9078 = vld [vmem:[#allocation3 + $0x130] sm:$0xff]
  %v9079 = vld [vmem:[#allocation3 + $0x138] sm:$0xff]
  %v9080 = vld [vmem:[#allocation3 + $0x140] sm:$0xff]
  %v9081 = vld [vmem:[#allocation3 + $0x148] sm:$0xff]
  %v9082 = vld [vmem:[#allocation3 + $0x150] sm:$0xff]
  %v9083 = vld [vmem:[#allocation3 + $0x158] sm:$0xff]
  %v9084 = vld [vmem:[#allocation3 + $0x160] sm:$0xff]
  %v9085 = vld [vmem:[#allocation3 + $0x168] sm:$0xff]
  %v9086 = vld [vmem:[#allocation3 + $0x170] sm:$0xff]
  %v9087 = vld [vmem:[#allocation3 + $0x178] sm:$0xff]
  %v9088 = vld [vmem:[#allocation3 + $0x180] sm:$0xff]
  %v9089 = vld [vmem:[#allocation3 + $0x188] sm:$0xff]
  %v9090 = vld [vmem:[#allocation3 + $0x190] sm:$0xff]
  %v9091 = vld [vmem:[#allocation3 + $0x198] sm:$0xff]
  %v9092 = vld [vmem:[#allocation3 + $0x1a0] sm:$0xff]
  %v9093 = vld [vmem:[#allocation3 + $0x1a8] sm:$0xff]
  %v9094 = vld [vmem:[#allocation3 + $0x1b0] sm:$0xff]
  %v9095 = vld [vmem:[#allocation3 + $0x1b8] sm:$0xff]
  %v9096 = vld [vmem:[#allocation3 + $0x1c0] sm:$0xff]
  %v9097 = vld [vmem:[#allocation3 + $0x1c8] sm:$0xff]
  %v9098 = vld [vmem:[#allocation3 + $0x1d0] sm:$0xff]
  %v9099 = vld [vmem:[#allocation3 + $0x1d8] sm:$0xff]
  %v9100 = vld [vmem:[#allocation3 + $0x1e0] sm:$0xff]
  %v9101 = vld [vmem:[#allocation3 + $0x1e8] sm:$0xff]
  %v9102 = vld [vmem:[#allocation3 + $0x1f0] sm:$0xff]
  %v9103 = vld [vmem:[#allocation3 + $0x1f8] sm:$0xff]
  %v9104 = vpack.c.bf16 %v8977, %v8976
  %v9105 = vpack.c.bf16 %v8979, %v8978
  %v9106 = vpack.c.bf16 %v8981, %v8980
  %v9107 = vpack.c.bf16 %v8983, %v8982
  %v9108 = vpack.c.bf16 %v8985, %v8984
  %v9109 = vpack.c.bf16 %v8987, %v8986
  %v9110 = vpack.c.bf16 %v8989, %v8988
  %v9111 = vpack.c.bf16 %v8991, %v8990
  %v9112 = vpack.c.bf16 %v8993, %v8992
  %v9113 = vpack.c.bf16 %v8995, %v8994
  %v9114 = vpack.c.bf16 %v8997, %v8996
  %v9115 = vpack.c.bf16 %v8999, %v8998
  %v9116 = vpack.c.bf16 %v9001, %v9000
  %v9117 = vpack.c.bf16 %v9003, %v9002
  %v9118 = vpack.c.bf16 %v9005, %v9004
  %v9119 = vpack.c.bf16 %v9007, %v9006
  %v9120 = vpack.c.bf16 %v9009, %v9008
  %v9121 = vpack.c.bf16 %v9011, %v9010
  %v9122 = vpack.c.bf16 %v9013, %v9012
  %v9123 = vpack.c.bf16 %v9015, %v9014
  %v9124 = vpack.c.bf16 %v9017, %v9016
  %v9125 = vpack.c.bf16 %v9019, %v9018
  %v9126 = vpack.c.bf16 %v9021, %v9020
  %v9127 = vpack.c.bf16 %v9023, %v9022
  %v9128 = vpack.c.bf16 %v9025, %v9024
  %v9129 = vpack.c.bf16 %v9027, %v9026
  %v9130 = vpack.c.bf16 %v9029, %v9028
  %v9131 = vpack.c.bf16 %v9031, %v9030
  %v9132 = vpack.c.bf16 %v9033, %v9032
  %v9133 = vpack.c.bf16 %v9035, %v9034
  %v9134 = vpack.c.bf16 %v9037, %v9036
  %v9135 = vpack.c.bf16 %v9039, %v9038
  %v9136 = vld [vmem:[%s3 + $0x8] sm:$0xf]
  %v9138 = vsel %vm845, %v9104, 0
  %v9141 = vsel %vm845, %v9105, 0
  %v9144 = vsel %vm845, %v9106, 0
  %v9147 = vsel %vm845, %v9107, 0
  %v9150 = vsel %vm845, %v9108, 0
  %v9153 = vsel %vm845, %v9109, 0
  %v9156 = vsel %vm845, %v9110, 0
  %v9159 = vsel %vm845, %v9111, 0
  %v9162 = vsel %vm845, %v9112, 0
  %v9165 = vsel %vm845, %v9113, 0
  %v9168 = vsel %vm845, %v9114, 0
  %v9171 = vsel %vm845, %v9115, 0
  %v9174 = vsel %vm845, %v9116, 0
  %v9177 = vsel %vm845, %v9117, 0
  %v9180 = vsel %vm845, %v9118, 0
  %v9183 = vsel %vm845, %v9119, 0
  %v9186 = vsel %vm845, %v9120, 0
  %v9189 = vsel %vm845, %v9121, 0
  %v9192 = vsel %vm845, %v9122, 0
  %v9195 = vsel %vm845, %v9123, 0
  %v9198 = vsel %vm845, %v9124, 0
  %v9201 = vsel %vm845, %v9125, 0
  %v9204 = vsel %vm845, %v9126, 0
  %v9207 = vsel %vm845, %v9127, 0
  %v9210 = vsel %vm845, %v9128, 0
  %v9213 = vsel %vm845, %v9129, 0
  %v9216 = vsel %vm845, %v9130, 0
  %v9219 = vsel %vm845, %v9131, 0
  %v9222 = vsel %vm845, %v9132, 0
  %v9225 = vsel %vm845, %v9133, 0
  %v9228 = vsel %vm845, %v9134, 0
  %v9231 = vsel %vm845, %v9135, 0
  %v9234 = vsel %vm3284, %v9136, 0
  %9236 = vmatprep.subr.bf16.mxu0 0
  %9237 = vmatpush1.bf16.msra.mxu0 %v9234
  %9238 = vmatprep.subr.bf16.mxu0 0
  %9239 = vmatpush1.bf16.msra.mxu0 0
  %9240 = vmatprep.subr.bf16.mxu0 0
  %9241 = vmatpush1.bf16.msra.mxu0 0
  %9242 = vmatprep.subr.bf16.mxu0 0
  %9243 = vmatpush1.bf16.msra.mxu0 0
  %9244 = vmatprep.subr.bf16.mxu0 0
  %9245 = vmatpush1.bf16.msra.mxu0 0
  %9246 = vmatprep.subr.bf16.mxu0 0
  %9247 = vmatpush1.bf16.msra.mxu0 0
  %9248 = vmatprep.subr.bf16.mxu0 0
  %9249 = vmatpush1.bf16.msra.mxu0 0
  %9250 = vmatprep.subr.bf16.mxu0 0
  %9251 = vmatpush1.bf16.msra.mxu0 0
  %9252 = vmatprep.subr.bf16.mxu0 0
  %9253 = vmatpush1.bf16.msra.mxu0 0
  %9254 = vmatprep.subr.bf16.mxu0 0
  %9255 = vmatpush1.bf16.msra.mxu0 0
  %9256 = vmatprep.subr.bf16.mxu0 0
  %9257 = vmatpush1.bf16.msra.mxu0 0
  %9258 = vmatprep.subr.bf16.mxu0 0
  %9259 = vmatpush1.bf16.msra.mxu0 0
  %9260 = vmatprep.subr.bf16.mxu0 0
  %9261 = vmatpush1.bf16.msra.mxu0 0
  %9262 = vmatprep.subr.bf16.mxu0 0
  %9263 = vmatpush1.bf16.msra.mxu0 0
  %9264 = vmatprep.subr.bf16.mxu0 0
  %9265 = vmatpush1.bf16.msra.mxu0 0
  %9266 = vmatprep.subr.bf16.mxu0 0
  %9267 = vmatpush1.bf16.msra.mxu0 0
  %9268 = vmatprep.mubr.bf16.mxu0 0
  %9269 = vmatmul.mubr.bf16.gmra.mrb[0].mxu0 %v9138
  %v9270 = vpop.f32.mrb[0].mxu0
  %v9271 = vadd.f32 0.0, %v9270
  %v9272 = vpop.f32.mrb[0].mxu0
  %v9273 = vpop.f32.mrb[0].mxu0
  %v9274 = vadd.f32 0.0, %v9273
  %v9275 = vpop.f32.mrb[0].mxu0
  %9276 = vmatprep.mubr.bf16.mxu0 0
  %9277 = vmatmul.mubr.bf16.gmra.mrb[0].mxu0 %v9141
  %v9278 = vpop.f32.mrb[0].mxu0
  %v9279 = vadd.f32 0.0, %v9278
  %v9280 = vpop.f32.mrb[0].mxu0
  %v9281 = vpop.f32.mrb[0].mxu0
  %v9282 = vadd.f32 0.0, %v9281
  %v9283 = vpop.f32.mrb[0].mxu0
  %9284 = vmatprep.mubr.bf16.mxu0 0
  %9285 = vmatmul.mubr.bf16.gmra.mrb[0].mxu0 %v9144
  %v9286 = vpop.f32.mrb[0].mxu0
  %v9287 = vadd.f32 0.0, %v9286
  %v9288 = vpop.f32.mrb[0].mxu0
  %v9289 = vpop.f32.mrb[0].mxu0
  %v9290 = vadd.f32 0.0, %v9289
  %v9291 = vpop.f32.mrb[0].mxu0
  %9292 = vmatprep.mubr.bf16.mxu0 0
  %9293 = vmatmul.mubr.bf16.gmra.mrb[0].mxu0 %v9147
  %v9294 = vpop.f32.mrb[0].mxu0
  %v9295 = vadd.f32 0.0, %v9294
  %v9296 = vpop.f32.mrb[0].mxu0
  %v9297 = vpop.f32.mrb[0].mxu0
  %v9298 = vadd.f32 0.0, %v9297
  %v9299 = vpop.f32.mrb[0].mxu0
  %9300 = vmatprep.mubr.bf16.mxu0 0
  %9301 = vmatmul.mubr.bf16.gmra.mrb[0].mxu0 %v9150
  %v9302 = vpop.f32.mrb[0].mxu0
  %v9303 = vadd.f32 0.0, %v9302
  %v9304 = vpop.f32.mrb[0].mxu0
  %v9305 = vpop.f32.mrb[0].mxu0
  %v9306 = vadd.f32 0.0, %v9305
  %v9307 = vpop.f32.mrb[0].mxu0
  %9308 = vmatprep.mubr.bf16.mxu0 0
  %9309 = vmatmul.mubr.bf16.gmra.mrb[0].mxu0 %v9153
  %v9310 = vpop.f32.mrb[0].mxu0
  %v9311 = vadd.f32 0.0, %v9310
  %v9312 = vpop.f32.mrb[0].mxu0
  %v9313 = vpop.f32.mrb[0].mxu0
  %v9314 = vadd.f32 0.0, %v9313
  %v9315 = vpop.f32.mrb[0].mxu0
  %9316 = vmatprep.mubr.bf16.mxu0 0
  %9317 = vmatmul.mubr.bf16.gmra.mrb[0].mxu0 %v9156
  %v9318 = vpop.f32.mrb[0].mxu0
  %v9319 = vadd.f32 0.0, %v9318
  %v9320 = vpop.f32.mrb[0].mxu0
  %v9321 = vpop.f32.mrb[0].mxu0
  %v9322 = vadd.f32 0.0, %v9321
  %v9323 = vpop.f32.mrb[0].mxu0
  %9324 = vmatprep.mubr.bf16.mxu0 0
  %9325 = vmatmul.mubr.bf16.gmra.mrb[0].mxu0 %v9159
  %v9326 = vpop.f32.mrb[0].mxu0
  %v9327 = vadd.f32 0.0, %v9326
  %v9328 = vpop.f32.mrb[0].mxu0
  %v9329 = vpop.f32.mrb[0].mxu0
  %v9330 = vadd.f32 0.0, %v9329
  %v9331 = vpop.f32.mrb[0].mxu0
  %9332 = vmatprep.mubr.bf16.mxu0 0
  %9333 = vmatmul.mubr.bf16.gmra.mrb[0].mxu0 %v9162
  %v9334 = vpop.f32.mrb[0].mxu0
  %v9335 = vadd.f32 0.0, %v9334
  %v9336 = vpop.f32.mrb[0].mxu0
  %v9337 = vpop.f32.mrb[0].mxu0
  %v9338 = vadd.f32 0.0, %v9337
  %v9339 = vpop.f32.mrb[0].mxu0
  %9340 = vmatprep.mubr.bf16.mxu0 0
  %9341 = vmatmul.mubr.bf16.gmra.mrb[0].mxu0 %v9165
  %v9342 = vpop.f32.mrb[0].mxu0
  %v9343 = vadd.f32 0.0, %v9342
  %v9344 = vpop.f32.mrb[0].mxu0
  %v9345 = vpop.f32.mrb[0].mxu0
  %v9346 = vadd.f32 0.0, %v9345
  %v9347 = vpop.f32.mrb[0].mxu0
  %9348 = vmatprep.mubr.bf16.mxu0 0
  %9349 = vmatmul.mubr.bf16.gmra.mrb[0].mxu0 %v9168
  %v9350 = vpop.f32.mrb[0].mxu0
  %v9351 = vadd.f32 0.0, %v9350
  %v9352 = vpop.f32.mrb[0].mxu0
  %v9353 = vpop.f32.mrb[0].mxu0
  %v9354 = vadd.f32 0.0, %v9353
  %v9355 = vpop.f32.mrb[0].mxu0
  %9356 = vmatprep.mubr.bf16.mxu0 0
  %9357 = vmatmul.mubr.bf16.gmra.mrb[0].mxu0 %v9171
  %v9358 = vpop.f32.mrb[0].mxu0
  %v9359 = vadd.f32 0.0, %v9358
  %v9360 = vpop.f32.mrb[0].mxu0
  %v9361 = vpop.f32.mrb[0].mxu0
  %v9362 = vadd.f32 0.0, %v9361
  %v9363 = vpop.f32.mrb[0].mxu0
  %9364 = vmatprep.mubr.bf16.mxu0 0
  %9365 = vmatmul.mubr.bf16.gmra.mrb[0].mxu0 %v9174
  %v9366 = vpop.f32.mrb[0].mxu0
  %v9367 = vadd.f32 0.0, %v9366
  %v9368 = vpop.f32.mrb[0].mxu0
  %v9369 = vpop.f32.mrb[0].mxu0
  %v9370 = vadd.f32 0.0, %v9369
  %v9371 = vpop.f32.mrb[0].mxu0
  %9372 = vmatprep.mubr.bf16.mxu0 0
  %9373 = vmatmul.mubr.bf16.gmra.mrb[0].mxu0 %v9177
  %v9374 = vpop.f32.mrb[0].mxu0
  %v9375 = vadd.f32 0.0, %v9374
  %v9376 = vpop.f32.mrb[0].mxu0
  %v9377 = vpop.f32.mrb[0].mxu0
  %v9378 = vadd.f32 0.0, %v9377
  %v9379 = vpop.f32.mrb[0].mxu0
  %9380 = vmatprep.mubr.bf16.mxu0 0
  %9381 = vmatmul.mubr.bf16.gmra.mrb[0].mxu0 %v9180
  %v9382 = vpop.f32.mrb[0].mxu0
  %v9383 = vadd.f32 0.0, %v9382
  %v9384 = vpop.f32.mrb[0].mxu0
  %v9385 = vpop.f32.mrb[0].mxu0
  %v9386 = vadd.f32 0.0, %v9385
  %v9387 = vpop.f32.mrb[0].mxu0
  %9388 = vmatprep.mubr.bf16.mxu0 0
  %9389 = vmatmul.mubr.bf16.gmra.mrb[0].mxu0 %v9183
  %v9390 = vpop.f32.mrb[0].mxu0
  %v9391 = vadd.f32 0.0, %v9390
  %v9392 = vpop.f32.mrb[0].mxu0
  %v9393 = vpop.f32.mrb[0].mxu0
  %v9394 = vadd.f32 0.0, %v9393
  %v9395 = vpop.f32.mrb[0].mxu0
  %9396 = vmatprep.mubr.bf16.mxu0 0
  %9397 = vmatmul.mubr.bf16.gmra.mrb[0].mxu0 %v9186
  %v9398 = vpop.f32.mrb[0].mxu0
  %v9399 = vadd.f32 0.0, %v9398
  %v9400 = vpop.f32.mrb[0].mxu0
  %v9401 = vpop.f32.mrb[0].mxu0
  %v9402 = vadd.f32 0.0, %v9401
  %v9403 = vpop.f32.mrb[0].mxu0
  %9404 = vmatprep.mubr.bf16.mxu0 0
  %9405 = vmatmul.mubr.bf16.gmra.mrb[0].mxu0 %v9189
  %v9406 = vpop.f32.mrb[0].mxu0
  %v9407 = vadd.f32 0.0, %v9406
  %v9408 = vpop.f32.mrb[0].mxu0
  %v9409 = vpop.f32.mrb[0].mxu0
  %v9410 = vadd.f32 0.0, %v9409
  %v9411 = vpop.f32.mrb[0].mxu0
  %9412 = vmatprep.mubr.bf16.mxu0 0
  %9413 = vmatmul.mubr.bf16.gmra.mrb[0].mxu0 %v9192
  %v9414 = vpop.f32.mrb[0].mxu0
  %v9415 = vadd.f32 0.0, %v9414
  %v9416 = vpop.f32.mrb[0].mxu0
  %v9417 = vpop.f32.mrb[0].mxu0
  %v9418 = vadd.f32 0.0, %v9417
  %v9419 = vpop.f32.mrb[0].mxu0
  %9420 = vmatprep.mubr.bf16.mxu0 0
  %9421 = vmatmul.mubr.bf16.gmra.mrb[0].mxu0 %v9195
  %v9422 = vpop.f32.mrb[0].mxu0
  %v9423 = vadd.f32 0.0, %v9422
  %v9424 = vpop.f32.mrb[0].mxu0
  %v9425 = vpop.f32.mrb[0].mxu0
  %v9426 = vadd.f32 0.0, %v9425
  %v9427 = vpop.f32.mrb[0].mxu0
  %9428 = vmatprep.mubr.bf16.mxu0 0
  %9429 = vmatmul.mubr.bf16.gmra.mrb[0].mxu0 %v9198
  %v9430 = vpop.f32.mrb[0].mxu0
  %v9431 = vadd.f32 0.0, %v9430
  %v9432 = vpop.f32.mrb[0].mxu0
  %v9433 = vpop.f32.mrb[0].mxu0
  %v9434 = vadd.f32 0.0, %v9433
  %v9435 = vpop.f32.mrb[0].mxu0
  %9436 = vmatprep.mubr.bf16.mxu0 0
  %9437 = vmatmul.mubr.bf16.gmra.mrb[0].mxu0 %v9201
  %v9438 = vpop.f32.mrb[0].mxu0
  %v9439 = vadd.f32 0.0, %v9438
  %v9440 = vpop.f32.mrb[0].mxu0
  %v9441 = vpop.f32.mrb[0].mxu0
  %v9442 = vadd.f32 0.0, %v9441
  %v9443 = vpop.f32.mrb[0].mxu0
  %9444 = vmatprep.mubr.bf16.mxu0 0
  %9445 = vmatmul.mubr.bf16.gmra.mrb[0].mxu0 %v9204
  %v9446 = vpop.f32.mrb[0].mxu0
  %v9447 = vadd.f32 0.0, %v9446
  %v9448 = vpop.f32.mrb[0].mxu0
  %v9449 = vpop.f32.mrb[0].mxu0
  %v9450 = vadd.f32 0.0, %v9449
  %v9451 = vpop.f32.mrb[0].mxu0
  %9452 = vmatprep.mubr.bf16.mxu0 0
  %9453 = vmatmul.mubr.bf16.gmra.mrb[0].mxu0 %v9207
  %v9454 = vpop.f32.mrb[0].mxu0
  %v9455 = vadd.f32 0.0, %v9454
  %v9456 = vpop.f32.mrb[0].mxu0
  %v9457 = vpop.f32.mrb[0].mxu0
  %v9458 = vadd.f32 0.0, %v9457
  %v9459 = vpop.f32.mrb[0].mxu0
  %9460 = vmatprep.mubr.bf16.mxu0 0
  %9461 = vmatmul.mubr.bf16.gmra.mrb[0].mxu0 %v9210
  %v9462 = vpop.f32.mrb[0].mxu0
  %v9463 = vadd.f32 0.0, %v9462
  %v9464 = vpop.f32.mrb[0].mxu0
  %v9465 = vpop.f32.mrb[0].mxu0
  %v9466 = vadd.f32 0.0, %v9465
  %v9467 = vpop.f32.mrb[0].mxu0
  %9468 = vmatprep.mubr.bf16.mxu0 0
  %9469 = vmatmul.mubr.bf16.gmra.mrb[0].mxu0 %v9213
  %v9470 = vpop.f32.mrb[0].mxu0
  %v9471 = vadd.f32 0.0, %v9470
  %v9472 = vpop.f32.mrb[0].mxu0
  %v9473 = vpop.f32.mrb[0].mxu0
  %v9474 = vadd.f32 0.0, %v9473
  %v9475 = vpop.f32.mrb[0].mxu0
  %9476 = vmatprep.mubr.bf16.mxu0 0
  %9477 = vmatmul.mubr.bf16.gmra.mrb[0].mxu0 %v9216
  %v9478 = vpop.f32.mrb[0].mxu0
  %v9479 = vadd.f32 0.0, %v9478
  %v9480 = vpop.f32.mrb[0].mxu0
  %v9481 = vpop.f32.mrb[0].mxu0
  %v9482 = vadd.f32 0.0, %v9481
  %v9483 = vpop.f32.mrb[0].mxu0
  %9484 = vmatprep.mubr.bf16.mxu0 0
  %9485 = vmatmul.mubr.bf16.gmra.mrb[0].mxu0 %v9219
  %v9486 = vpop.f32.mrb[0].mxu0
  %v9487 = vadd.f32 0.0, %v9486
  %v9488 = vpop.f32.mrb[0].mxu0
  %v9489 = vpop.f32.mrb[0].mxu0
  %v9490 = vadd.f32 0.0, %v9489
  %v9491 = vpop.f32.mrb[0].mxu0
  %9492 = vmatprep.mubr.bf16.mxu0 0
  %9493 = vmatmul.mubr.bf16.gmra.mrb[0].mxu0 %v9222
  %v9494 = vpop.f32.mrb[0].mxu0
  %v9495 = vadd.f32 0.0, %v9494
  %v9496 = vpop.f32.mrb[0].mxu0
  %v9497 = vpop.f32.mrb[0].mxu0
  %v9498 = vadd.f32 0.0, %v9497
  %v9499 = vpop.f32.mrb[0].mxu0
  %9500 = vmatprep.mubr.bf16.mxu0 0
  %9501 = vmatmul.mubr.bf16.gmra.mrb[0].mxu0 %v9225
  %v9502 = vpop.f32.mrb[0].mxu0
  %v9503 = vadd.f32 0.0, %v9502
  %v9504 = vpop.f32.mrb[0].mxu0
  %v9505 = vpop.f32.mrb[0].mxu0
  %v9506 = vadd.f32 0.0, %v9505
  %v9507 = vpop.f32.mrb[0].mxu0
  %9508 = vmatprep.mubr.bf16.mxu0 0
  %9509 = vmatmul.mubr.bf16.gmra.mrb[0].mxu0 %v9228
  %v9510 = vpop.f32.mrb[0].mxu0
  %v9511 = vadd.f32 0.0, %v9510
  %v9512 = vpop.f32.mrb[0].mxu0
  %v9513 = vpop.f32.mrb[0].mxu0
  %v9514 = vadd.f32 0.0, %v9513
  %v9515 = vpop.f32.mrb[0].mxu0
  %9516 = vmatprep.mubr.bf16.mxu0 0
  %9517 = vmatmul.mubr.bf16.gmra.mrb[0].mxu0 %v9231
  %v9518 = vpop.f32.mrb[0].mxu0
  %v9519 = vadd.f32 0.0, %v9518
  %v9520 = vpop.f32.mrb[0].mxu0
  %v9521 = vpop.f32.mrb[0].mxu0
  %v9522 = vadd.f32 0.0, %v9521
  %v9523 = vpop.f32.mrb[0].mxu0
  %9524 = vdwg.mxu0
  %v9525 = vadd.f32 %v9040, %v9271
  %v9526 = vadd.f32 %v9041, %v9274
  %v9527 = vadd.f32 %v9042, %v9279
  %v9528 = vadd.f32 %v9043, %v9282
  %v9529 = vadd.f32 %v9044, %v9287
  %v9530 = vadd.f32 %v9045, %v9290
  %v9531 = vadd.f32 %v9046, %v9295
  %v9532 = vadd.f32 %v9047, %v9298
  %v9533 = vadd.f32 %v9048, %v9303
  %v9534 = vadd.f32 %v9049, %v9306
  %v9535 = vadd.f32 %v9050, %v9311
  %v9536 = vadd.f32 %v9051, %v9314
  %v9537 = vadd.f32 %v9052, %v9319
  %v9538 = vadd.f32 %v9053, %v9322
  %v9539 = vadd.f32 %v9054, %v9327
  %v9540 = vadd.f32 %v9055, %v9330
  %v9541 = vadd.f32 %v9056, %v9335
  %v9542 = vadd.f32 %v9057, %v9338
  %v9543 = vadd.f32 %v9058, %v9343
  %v9544 = vadd.f32 %v9059, %v9346
  %v9545 = vadd.f32 %v9060, %v9351
  %v9546 = vadd.f32 %v9061, %v9354
  %v9547 = vadd.f32 %v9062, %v9359
  %v9548 = vadd.f32 %v9063, %v9362
  %v9549 = vadd.f32 %v9064, %v9367
  %v9550 = vadd.f32 %v9065, %v9370
  %v9551 = vadd.f32 %v9066, %v9375
  %v9552 = vadd.f32 %v9067, %v9378
  %v9553 = vadd.f32 %v9068, %v9383
  %v9554 = vadd.f32 %v9069, %v9386
  %v9555 = vadd.f32 %v9070, %v9391
  %v9556 = vadd.f32 %v9071, %v9394
  %v9557 = vadd.f32 %v9072, %v9399
  %v9558 = vadd.f32 %v9073, %v9402
  %v9559 = vadd.f32 %v9074, %v9407
  %v9560 = vadd.f32 %v9075, %v9410
  %v9561 = vadd.f32 %v9076, %v9415
  %v9562 = vadd.f32 %v9077, %v9418
  %v9563 = vadd.f32 %v9078, %v9423
  %v9564 = vadd.f32 %v9079, %v9426
  %v9565 = vadd.f32 %v9080, %v9431
  %v9566 = vadd.f32 %v9081, %v9434
  %v9567 = vadd.f32 %v9082, %v9439
  %v9568 = vadd.f32 %v9083, %v9442
  %v9569 = vadd.f32 %v9084, %v9447
  %v9570 = vadd.f32 %v9085, %v9450
  %v9571 = vadd.f32 %v9086, %v9455
  %v9572 = vadd.f32 %v9087, %v9458
  %v9573 = vadd.f32 %v9088, %v9463
  %v9574 = vadd.f32 %v9089, %v9466
  %v9575 = vadd.f32 %v9090, %v9471
  %v9576 = vadd.f32 %v9091, %v9474
  %v9577 = vadd.f32 %v9092, %v9479
  %v9578 = vadd.f32 %v9093, %v9482
  %v9579 = vadd.f32 %v9094, %v9487
  %v9580 = vadd.f32 %v9095, %v9490
  %v9581 = vadd.f32 %v9096, %v9495
  %v9582 = vadd.f32 %v9097, %v9498
  %v9583 = vadd.f32 %v9098, %v9503
  %v9584 = vadd.f32 %v9099, %v9506
  %v9585 = vadd.f32 %v9100, %v9511
  %v9586 = vadd.f32 %v9101, %v9514
  %v9587 = vadd.f32 %v9102, %v9519
  %v9588 = vadd.f32 %v9103, %v9522
  %9589 = vst.msk [vmem:[#allocation3] sm:$0xff] %vm271, %v9525
  %9590 = vst.msk [vmem:[#allocation3 + $0x8] sm:$0xff] %vm271, %v9526
  %9591 = vst.msk [vmem:[#allocation3 + $0x10] sm:$0xff] %vm271, %v9527
  %9592 = vst.msk [vmem:[#allocation3 + $0x18] sm:$0xff] %vm271, %v9528
  %9593 = vst.msk [vmem:[#allocation3 + $0x20] sm:$0xff] %vm271, %v9529
  %9594 = vst.msk [vmem:[#allocation3 + $0x28] sm:$0xff] %vm271, %v9530
  %9595 = vst.msk [vmem:[#allocation3 + $0x30] sm:$0xff] %vm271, %v9531
  %9596 = vst.msk [vmem:[#allocation3 + $0x38] sm:$0xff] %vm271, %v9532
  %9597 = vst.msk [vmem:[#allocation3 + $0x40] sm:$0xff] %vm271, %v9533
  %9598 = vst.msk [vmem:[#allocation3 + $0x48] sm:$0xff] %vm271, %v9534
  %9599 = vst.msk [vmem:[#allocation3 + $0x50] sm:$0xff] %vm271, %v9535
  %9600 = vst.msk [vmem:[#allocation3 + $0x58] sm:$0xff] %vm271, %v9536
  %9601 = vst.msk [vmem:[#allocation3 + $0x60] sm:$0xff] %vm271, %v9537
  %9602 = vst.msk [vmem:[#allocation3 + $0x68] sm:$0xff] %vm271, %v9538
  %9603 = vst.msk [vmem:[#allocation3 + $0x70] sm:$0xff] %vm271, %v9539
  %9604 = vst.msk [vmem:[#allocation3 + $0x78] sm:$0xff] %vm271, %v9540
  %9605 = vst.msk [vmem:[#allocation3 + $0x80] sm:$0xff] %vm271, %v9541
  %9606 = vst.msk [vmem:[#allocation3 + $0x88] sm:$0xff] %vm271, %v9542
  %9607 = vst.msk [vmem:[#allocation3 + $0x90] sm:$0xff] %vm271, %v9543
  %9608 = vst.msk [vmem:[#allocation3 + $0x98] sm:$0xff] %vm271, %v9544
  %9609 = vst.msk [vmem:[#allocation3 + $0xa0] sm:$0xff] %vm271, %v9545
  %9610 = vst.msk [vmem:[#allocation3 + $0xa8] sm:$0xff] %vm271, %v9546
  %9611 = vst.msk [vmem:[#allocation3 + $0xb0] sm:$0xff] %vm271, %v9547
  %9612 = vst.msk [vmem:[#allocation3 + $0xb8] sm:$0xff] %vm271, %v9548
  %9613 = vst.msk [vmem:[#allocation3 + $0xc0] sm:$0xff] %vm271, %v9549
  %9614 = vst.msk [vmem:[#allocation3 + $0xc8] sm:$0xff] %vm271, %v9550
  %9615 = vst.msk [vmem:[#allocation3 + $0xd0] sm:$0xff] %vm271, %v9551
  %9616 = vst.msk [vmem:[#allocation3 + $0xd8] sm:$0xff] %vm271, %v9552
  %9617 = vst.msk [vmem:[#allocation3 + $0xe0] sm:$0xff] %vm271, %v9553
  %9618 = vst.msk [vmem:[#allocation3 + $0xe8] sm:$0xff] %vm271, %v9554
  %9619 = vst.msk [vmem:[#allocation3 + $0xf0] sm:$0xff] %vm271, %v9555
  %9620 = vst.msk [vmem:[#allocation3 + $0xf8] sm:$0xff] %vm271, %v9556
  %9621 = vst.msk [vmem:[#allocation3 + $0x100] sm:$0xff] %vm271, %v9557
  %9622 = vst.msk [vmem:[#allocation3 + $0x108] sm:$0xff] %vm271, %v9558
  %9623 = vst.msk [vmem:[#allocation3 + $0x110] sm:$0xff] %vm271, %v9559
  %9624 = vst.msk [vmem:[#allocation3 + $0x118] sm:$0xff] %vm271, %v9560
  %9625 = vst.msk [vmem:[#allocation3 + $0x120] sm:$0xff] %vm271, %v9561
  %9626 = vst.msk [vmem:[#allocation3 + $0x128] sm:$0xff] %vm271, %v9562
  %9627 = vst.msk [vmem:[#allocation3 + $0x130] sm:$0xff] %vm271, %v9563
  %9628 = vst.msk [vmem:[#allocation3 + $0x138] sm:$0xff] %vm271, %v9564
  %9629 = vst.msk [vmem:[#allocation3 + $0x140] sm:$0xff] %vm271, %v9565
  %9630 = vst.msk [vmem:[#allocation3 + $0x148] sm:$0xff] %vm271, %v9566
  %9631 = vst.msk [vmem:[#allocation3 + $0x150] sm:$0xff] %vm271, %v9567
  %9632 = vst.msk [vmem:[#allocation3 + $0x158] sm:$0xff] %vm271, %v9568
  %9633 = vst.msk [vmem:[#allocation3 + $0x160] sm:$0xff] %vm271, %v9569
  %9634 = vst.msk [vmem:[#allocation3 + $0x168] sm:$0xff] %vm271, %v9570
  %9635 = vst.msk [vmem:[#allocation3 + $0x170] sm:$0xff] %vm271, %v9571
  %9636 = vst.msk [vmem:[#allocation3 + $0x178] sm:$0xff] %vm271, %v9572
  %9637 = vst.msk [vmem:[#allocation3 + $0x180] sm:$0xff] %vm271, %v9573
  %9638 = vst.msk [vmem:[#allocation3 + $0x188] sm:$0xff] %vm271, %v9574
  %9639 = vst.msk [vmem:[#allocation3 + $0x190] sm:$0xff] %vm271, %v9575
  %9640 = vst.msk [vmem:[#allocation3 + $0x198] sm:$0xff] %vm271, %v9576
  %9641 = vst.msk [vmem:[#allocation3 + $0x1a0] sm:$0xff] %vm271, %v9577
  %9642 = vst.msk [vmem:[#allocation3 + $0x1a8] sm:$0xff] %vm271, %v9578
  %9643 = vst.msk [vmem:[#allocation3 + $0x1b0] sm:$0xff] %vm271, %v9579
  %9644 = vst.msk [vmem:[#allocation3 + $0x1b8] sm:$0xff] %vm271, %v9580
  %9645 = vst.msk [vmem:[#allocation3 + $0x1c0] sm:$0xff] %vm271, %v9581
  %9646 = vst.msk [vmem:[#allocation3 + $0x1c8] sm:$0xff] %vm271, %v9582
  %9647 = vst.msk [vmem:[#allocation3 + $0x1d0] sm:$0xff] %vm271, %v9583
  %9648 = vst.msk [vmem:[#allocation3 + $0x1d8] sm:$0xff] %vm271, %v9584
  %9649 = vst.msk [vmem:[#allocation3 + $0x1e0] sm:$0xff] %vm271, %v9585
  %9650 = vst.msk [vmem:[#allocation3 + $0x1e8] sm:$0xff] %vm271, %v9586
  %9651 = vst.msk [vmem:[#allocation3 + $0x1f0] sm:$0xff] %vm271, %v9587
  %9652 = vst.msk [vmem:[#allocation3 + $0x1f8] sm:$0xff] %vm271, %v9588
  %v9653 = vld [vmem:[#allocation2] sm:$0xff]
  %v9654 = vld [vmem:[#allocation2 + $0x8] sm:$0xff]
  %v9655 = vld [vmem:[#allocation2 + $0x10] sm:$0xff]
  %v9656 = vld [vmem:[#allocation2 + $0x18] sm:$0xff]
  %v9657 = vld [vmem:[#allocation2 + $0x20] sm:$0xff]
  %v9658 = vld [vmem:[#allocation2 + $0x28] sm:$0xff]
  %v9659 = vld [vmem:[#allocation2 + $0x30] sm:$0xff]
  %v9660 = vld [vmem:[#allocation2 + $0x38] sm:$0xff]
  %v9661 = vld [vmem:[#allocation2 + $0x40] sm:$0xff]
  %v9662 = vld [vmem:[#allocation2 + $0x48] sm:$0xff]
  %v9663 = vld [vmem:[#allocation2 + $0x50] sm:$0xff]
  %v9664 = vld [vmem:[#allocation2 + $0x58] sm:$0xff]
  %v9665 = vld [vmem:[#allocation2 + $0x60] sm:$0xff]
  %v9666 = vld [vmem:[#allocation2 + $0x68] sm:$0xff]
  %v9667 = vld [vmem:[#allocation2 + $0x70] sm:$0xff]
  %v9668 = vld [vmem:[#allocation2 + $0x78] sm:$0xff]
  %v9669 = vld [vmem:[#allocation2 + $0x80] sm:$0xff]
  %v9670 = vld [vmem:[#allocation2 + $0x88] sm:$0xff]
  %v9671 = vld [vmem:[#allocation2 + $0x90] sm:$0xff]
  %v9672 = vld [vmem:[#allocation2 + $0x98] sm:$0xff]
  %v9673 = vld [vmem:[#allocation2 + $0xa0] sm:$0xff]
  %v9674 = vld [vmem:[#allocation2 + $0xa8] sm:$0xff]
  %v9675 = vld [vmem:[#allocation2 + $0xb0] sm:$0xff]
  %v9676 = vld [vmem:[#allocation2 + $0xb8] sm:$0xff]
  %v9677 = vld [vmem:[#allocation2 + $0xc0] sm:$0xff]
  %v9678 = vld [vmem:[#allocation2 + $0xc8] sm:$0xff]
  %v9679 = vld [vmem:[#allocation2 + $0xd0] sm:$0xff]
  %v9680 = vld [vmem:[#allocation2 + $0xd8] sm:$0xff]
  %v9681 = vld [vmem:[#allocation2 + $0xe0] sm:$0xff]
  %v9682 = vld [vmem:[#allocation2 + $0xe8] sm:$0xff]
  %v9683 = vld [vmem:[#allocation2 + $0xf0] sm:$0xff]
  %v9684 = vld [vmem:[#allocation2 + $0xf8] sm:$0xff]
  %s9685 = scalar_lea.vmem %s5, 192
  %v9686 = vld [vmem:[%s9685] sm:$0xff]
  %v9687 = vld [vmem:[%s9685 + $0x8] sm:$0xff]
  %v9688 = vld [vmem:[%s9685 + $0x10] sm:$0xff]
  %v9689 = vld [vmem:[%s9685 + $0x18] sm:$0xff]
  %v9690 = vld [vmem:[%s9685 + $0x20] sm:$0xff]
  %v9691 = vld [vmem:[%s9685 + $0x28] sm:$0xff]
  %v9692 = vld [vmem:[%s9685 + $0x30] sm:$0xff]
  %v9693 = vld [vmem:[%s9685 + $0x38] sm:$0xff]
  %9698 = vrot.lane.b32.xlu0 %v9653, 104
  %v9699 = vpop.permute.xlu0 %9698
  %9700 = vrot.lane.b32.xlu0 %v9654, 104
  %v9701 = vpop.permute.xlu0 %9700
  %9702 = vrot.lane.b32.xlu0 %v9655, 104
  %v9703 = vpop.permute.xlu0 %9702
  %9704 = vrot.lane.b32.xlu0 %v9656, 104
  %v9705 = vpop.permute.xlu0 %9704
  %9706 = vrot.lane.b32.xlu0 %v9653, 72
  %v9707 = vpop.permute.xlu0 %9706
  %9708 = vrot.lane.b32.xlu0 %v9654, 72
  %v9709 = vpop.permute.xlu0 %9708
  %9710 = vrot.lane.b32.xlu0 %v9655, 72
  %v9711 = vpop.permute.xlu0 %9710
  %9712 = vrot.lane.b32.xlu0 %v9656, 72
  %v9713 = vpop.permute.xlu0 %9712
  %v9715 = vsel %vm845, %v9699, 0
  %v9718 = vsel %vm845, %v9701, 0
  %v9721 = vsel %vm845, %v9703, 0
  %v9724 = vsel %vm845, %v9705, 0
  %v9727 = vsel %vm845, %v9707, 0
  %v9730 = vsel %vm845, %v9709, 0
  %v9733 = vsel %vm845, %v9711, 0
  %v9736 = vsel %vm845, %v9713, 0
  %9738 = vmatprep.subr.bf16.mxu0 0
  %9739 = vmatpush1.bf16.xpose.msra.mxu0 %v9727
  %9740 = vmatprep.subr.bf16.mxu0 0
  %9741 = vmatpush1.bf16.xpose.msra.mxu0 %v9730
  %9742 = vmatprep.subr.bf16.mxu0 0
  %9743 = vmatpush1.bf16.xpose.msra.mxu0 %v9733
  %9744 = vmatprep.subr.bf16.mxu0 0
  %9745 = vmatpush1.bf16.xpose.msra.mxu0 %v9736
  %9746 = vmatprep.subr.bf16.mxu0 0
  %9747 = vmatpush1.bf16.xpose.msra.mxu0 0
  %9748 = vmatprep.subr.bf16.mxu0 0
  %9749 = vmatpush1.bf16.xpose.msra.mxu0 0
  %9750 = vmatprep.subr.bf16.mxu0 0
  %9751 = vmatpush1.bf16.xpose.msra.mxu0 0
  %9752 = vmatprep.subr.bf16.mxu0 0
  %9753 = vmatpush1.bf16.xpose.msra.mxu0 0
  %9754 = vmatprep.subr.bf16.mxu0 0
  %9755 = vmatpush1.bf16.xpose.msra.mxu0 0
  %9756 = vmatprep.subr.bf16.mxu0 0
  %9757 = vmatpush1.bf16.xpose.msra.mxu0 0
  %9758 = vmatprep.subr.bf16.mxu0 0
  %9759 = vmatpush1.bf16.xpose.msra.mxu0 0
  %9760 = vmatprep.subr.bf16.mxu0 0
  %9761 = vmatpush1.bf16.xpose.msra.mxu0 0
  %9762 = vmatprep.subr.bf16.mxu0 0
  %9763 = vmatpush1.bf16.xpose.msra.mxu0 0
  %9764 = vmatprep.subr.bf16.mxu0 0
  %9765 = vmatpush1.bf16.xpose.msra.mxu0 0
  %9766 = vmatprep.subr.bf16.mxu0 0
  %9767 = vmatpush1.bf16.xpose.msra.mxu0 0
  %9768 = vmatprep.subr.bf16.mxu0 0
  %9769 = vmatpush1.bf16.xpose.msra.mxu0 0
  %9770 = vmatprep.mubr.bf16.mxu0 0
  %9771 = vmatmul.mubr.bf16.gmra.mrb[0].mxu0 %v9715
  %v9772 = vpop.f32.mrb[0].mxu0
  %v9773 = vadd.f32 %v9686, %v9772
  %v9774 = vpop.f32.mrb[0].mxu0
  %v9775 = vpop.f32.mrb[0].mxu0
  %v9776 = vadd.f32 %v9687, %v9775
  %v9777 = vpop.f32.mrb[0].mxu0
  %9778 = vmatprep.mubr.bf16.mxu0 0
  %9779 = vmatmul.mubr.bf16.gmra.mrb[0].mxu0 %v9718
  %v9780 = vpop.f32.mrb[0].mxu0
  %v9781 = vadd.f32 %v9688, %v9780
  %v9782 = vpop.f32.mrb[0].mxu0
  %v9783 = vpop.f32.mrb[0].mxu0
  %v9784 = vadd.f32 %v9689, %v9783
  %v9785 = vpop.f32.mrb[0].mxu0
  %9786 = vmatprep.mubr.bf16.mxu0 0
  %9787 = vmatmul.mubr.bf16.gmra.mrb[0].mxu0 %v9721
  %v9788 = vpop.f32.mrb[0].mxu0
  %v9789 = vadd.f32 %v9690, %v9788
  %v9790 = vpop.f32.mrb[0].mxu0
  %v9791 = vpop.f32.mrb[0].mxu0
  %v9792 = vadd.f32 %v9691, %v9791
  %v9793 = vpop.f32.mrb[0].mxu0
  %9794 = vmatprep.mubr.bf16.mxu0 0
  %9795 = vmatmul.mubr.bf16.gmra.mrb[0].mxu0 %v9724
  %v9796 = vpop.f32.mrb[0].mxu0
  %v9797 = vadd.f32 %v9692, %v9796
  %v9798 = vpop.f32.mrb[0].mxu0
  %v9799 = vpop.f32.mrb[0].mxu0
  %v9800 = vadd.f32 %v9693, %v9799
  %v9801 = vpop.f32.mrb[0].mxu0
  %9802 = vdwg.mxu0
  %9807 = vrot.lane.b32.xlu0 %v9657, 104
  %v9808 = vpop.permute.xlu0 %9807
  %9809 = vrot.lane.b32.xlu0 %v9658, 104
  %v9810 = vpop.permute.xlu0 %9809
  %9811 = vrot.lane.b32.xlu0 %v9659, 104
  %v9812 = vpop.permute.xlu0 %9811
  %9813 = vrot.lane.b32.xlu0 %v9660, 104
  %v9814 = vpop.permute.xlu0 %9813
  %9815 = vrot.lane.b32.xlu0 %v9657, 72
  %v9816 = vpop.permute.xlu0 %9815
  %9817 = vrot.lane.b32.xlu0 %v9658, 72
  %v9818 = vpop.permute.xlu0 %9817
  %9819 = vrot.lane.b32.xlu0 %v9659, 72
  %v9820 = vpop.permute.xlu0 %9819
  %9821 = vrot.lane.b32.xlu0 %v9660, 72
  %v9822 = vpop.permute.xlu0 %9821
  %v9824 = vsel %vm845, %v9808, 0
  %v9827 = vsel %vm845, %v9810, 0
  %v9830 = vsel %vm845, %v9812, 0
  %v9833 = vsel %vm845, %v9814, 0
  %v9836 = vsel %vm845, %v9816, 0
  %v9839 = vsel %vm845, %v9818, 0
  %v9842 = vsel %vm845, %v9820, 0
  %v9845 = vsel %vm845, %v9822, 0
  %9847 = vmatprep.subr.bf16.mxu0 0
  %9848 = vmatpush1.bf16.xpose.msra.mxu0 %v9836
  %9849 = vmatprep.subr.bf16.mxu0 0
  %9850 = vmatpush1.bf16.xpose.msra.mxu0 %v9839
  %9851 = vmatprep.subr.bf16.mxu0 0
  %9852 = vmatpush1.bf16.xpose.msra.mxu0 %v9842
  %9853 = vmatprep.subr.bf16.mxu0 0
  %9854 = vmatpush1.bf16.xpose.msra.mxu0 %v9845
  %9855 = vmatprep.subr.bf16.mxu0 0
  %9856 = vmatpush1.bf16.xpose.msra.mxu0 0
  %9857 = vmatprep.subr.bf16.mxu0 0
  %9858 = vmatpush1.bf16.xpose.msra.mxu0 0
  %9859 = vmatprep.subr.bf16.mxu0 0
  %9860 = vmatpush1.bf16.xpose.msra.mxu0 0
  %9861 = vmatprep.subr.bf16.mxu0 0
  %9862 = vmatpush1.bf16.xpose.msra.mxu0 0
  %9863 = vmatprep.subr.bf16.mxu0 0
  %9864 = vmatpush1.bf16.xpose.msra.mxu0 0
  %9865 = vmatprep.subr.bf16.mxu0 0
  %9866 = vmatpush1.bf16.xpose.msra.mxu0 0
  %9867 = vmatprep.subr.bf16.mxu0 0
  %9868 = vmatpush1.bf16.xpose.msra.mxu0 0
  %9869 = vmatprep.subr.bf16.mxu0 0
  %9870 = vmatpush1.bf16.xpose.msra.mxu0 0
  %9871 = vmatprep.subr.bf16.mxu0 0
  %9872 = vmatpush1.bf16.xpose.msra.mxu0 0
  %9873 = vmatprep.subr.bf16.mxu0 0
  %9874 = vmatpush1.bf16.xpose.msra.mxu0 0
  %9875 = vmatprep.subr.bf16.mxu0 0
  %9876 = vmatpush1.bf16.xpose.msra.mxu0 0
  %9877 = vmatprep.subr.bf16.mxu0 0
  %9878 = vmatpush1.bf16.xpose.msra.mxu0 0
  %9879 = vmatprep.mubr.bf16.mxu0 0
  %9880 = vmatmul.mubr.bf16.gmra.mrb[0].mxu0 %v9824
  %v9881 = vpop.f32.mrb[0].mxu0
  %v9882 = vadd.f32 %v9686, %v9881
  %v9883 = vpop.f32.mrb[0].mxu0
  %v9884 = vpop.f32.mrb[0].mxu0
  %v9885 = vadd.f32 %v9687, %v9884
  %v9886 = vpop.f32.mrb[0].mxu0
  %9887 = vmatprep.mubr.bf16.mxu0 0
  %9888 = vmatmul.mubr.bf16.gmra.mrb[0].mxu0 %v9827
  %v9889 = vpop.f32.mrb[0].mxu0
  %v9890 = vadd.f32 %v9688, %v9889
  %v9891 = vpop.f32.mrb[0].mxu0
  %v9892 = vpop.f32.mrb[0].mxu0
  %v9893 = vadd.f32 %v9689, %v9892
  %v9894 = vpop.f32.mrb[0].mxu0
  %9895 = vmatprep.mubr.bf16.mxu0 0
  %9896 = vmatmul.mubr.bf16.gmra.mrb[0].mxu0 %v9830
  %v9897 = vpop.f32.mrb[0].mxu0
  %v9898 = vadd.f32 %v9690, %v9897
  %v9899 = vpop.f32.mrb[0].mxu0
  %v9900 = vpop.f32.mrb[0].mxu0
  %v9901 = vadd.f32 %v9691, %v9900
  %v9902 = vpop.f32.mrb[0].mxu0
  %9903 = vmatprep.mubr.bf16.mxu0 0
  %9904 = vmatmul.mubr.bf16.gmra.mrb[0].mxu0 %v9833
  %v9905 = vpop.f32.mrb[0].mxu0
  %v9906 = vadd.f32 %v9692, %v9905
  %v9907 = vpop.f32.mrb[0].mxu0
  %v9908 = vpop.f32.mrb[0].mxu0
  %v9909 = vadd.f32 %v9693, %v9908
  %v9910 = vpop.f32.mrb[0].mxu0
  %9911 = vdwg.mxu0
  %9916 = vrot.lane.b32.xlu0 %v9661, 104
  %v9917 = vpop.permute.xlu0 %9916
  %9918 = vrot.lane.b32.xlu0 %v9662, 104
  %v9919 = vpop.permute.xlu0 %9918
  %9920 = vrot.lane.b32.xlu0 %v9663, 104
  %v9921 = vpop.permute.xlu0 %9920
  %9922 = vrot.lane.b32.xlu0 %v9664, 104
  %v9923 = vpop.permute.xlu0 %9922
  %9924 = vrot.lane.b32.xlu0 %v9661, 72
  %v9925 = vpop.permute.xlu0 %9924
  %9926 = vrot.lane.b32.xlu0 %v9662, 72
  %v9927 = vpop.permute.xlu0 %9926
  %9928 = vrot.lane.b32.xlu0 %v9663, 72
  %v9929 = vpop.permute.xlu0 %9928
  %9930 = vrot.lane.b32.xlu0 %v9664, 72
  %v9931 = vpop.permute.xlu0 %9930
  %v9933 = vsel %vm845, %v9917, 0
  %v9936 = vsel %vm845, %v9919, 0
  %v9939 = vsel %vm845, %v9921, 0
  %v9942 = vsel %vm845, %v9923, 0
  %v9945 = vsel %vm845, %v9925, 0
  %v9948 = vsel %vm845, %v9927, 0
  %v9951 = vsel %vm845, %v9929, 0
  %v9954 = vsel %vm845, %v9931, 0
  %9956 = vmatprep.subr.bf16.mxu0 0
  %9957 = vmatpush1.bf16.xpose.msra.mxu0 %v9945
  %9958 = vmatprep.subr.bf16.mxu0 0
  %9959 = vmatpush1.bf16.xpose.msra.mxu0 %v9948
  %9960 = vmatprep.subr.bf16.mxu0 0
  %9961 = vmatpush1.bf16.xpose.msra.mxu0 %v9951
  %9962 = vmatprep.subr.bf16.mxu0 0
  %9963 = vmatpush1.bf16.xpose.msra.mxu0 %v9954
  %9964 = vmatprep.subr.bf16.mxu0 0
  %9965 = vmatpush1.bf16.xpose.msra.mxu0 0
  %9966 = vmatprep.subr.bf16.mxu0 0
  %9967 = vmatpush1.bf16.xpose.msra.mxu0 0
  %9968 = vmatprep.subr.bf16.mxu0 0
  %9969 = vmatpush1.bf16.xpose.msra.mxu0 0
  %9970 = vmatprep.subr.bf16.mxu0 0
  %9971 = vmatpush1.bf16.xpose.msra.mxu0 0
  %9972 = vmatprep.subr.bf16.mxu0 0
  %9973 = vmatpush1.bf16.xpose.msra.mxu0 0
  %9974 = vmatprep.subr.bf16.mxu0 0
  %9975 = vmatpush1.bf16.xpose.msra.mxu0 0
  %9976 = vmatprep.subr.bf16.mxu0 0
  %9977 = vmatpush1.bf16.xpose.msra.mxu0 0
  %9978 = vmatprep.subr.bf16.mxu0 0
  %9979 = vmatpush1.bf16.xpose.msra.mxu0 0
  %9980 = vmatprep.subr.bf16.mxu0 0
  %9981 = vmatpush1.bf16.xpose.msra.mxu0 0
  %9982 = vmatprep.subr.bf16.mxu0 0
  %9983 = vmatpush1.bf16.xpose.msra.mxu0 0
  %9984 = vmatprep.subr.bf16.mxu0 0
  %9985 = vmatpush1.bf16.xpose.msra.mxu0 0
  %9986 = vmatprep.subr.bf16.mxu0 0
  %9987 = vmatpush1.bf16.xpose.msra.mxu0 0
  %9988 = vmatprep.mubr.bf16.mxu0 0
  %9989 = vmatmul.mubr.bf16.gmra.mrb[0].mxu0 %v9933
  %v9990 = vpop.f32.mrb[0].mxu0
  %v9991 = vadd.f32 %v9686, %v9990
  %v9992 = vpop.f32.mrb[0].mxu0
  %v9993 = vpop.f32.mrb[0].mxu0
  %v9994 = vadd.f32 %v9687, %v9993
  %v9995 = vpop.f32.mrb[0].mxu0
  %9996 = vmatprep.mubr.bf16.mxu0 0
  %9997 = vmatmul.mubr.bf16.gmra.mrb[0].mxu0 %v9936
  %v9998 = vpop.f32.mrb[0].mxu0
  %v9999 = vadd.f32 %v9688, %v9998
  %v10000 = vpop.f32.mrb[0].mxu0
  %v10001 = vpop.f32.mrb[0].mxu0
  %v10002 = vadd.f32 %v9689, %v10001
  %v10003 = vpop.f32.mrb[0].mxu0
  %10004 = vmatprep.mubr.bf16.mxu0 0
  %10005 = vmatmul.mubr.bf16.gmra.mrb[0].mxu0 %v9939
  %v10006 = vpop.f32.mrb[0].mxu0
  %v10007 = vadd.f32 %v9690, %v10006
  %v10008 = vpop.f32.mrb[0].mxu0
  %v10009 = vpop.f32.mrb[0].mxu0
  %v10010 = vadd.f32 %v9691, %v10009
  %v10011 = vpop.f32.mrb[0].mxu0
  %10012 = vmatprep.mubr.bf16.mxu0 0
  %10013 = vmatmul.mubr.bf16.gmra.mrb[0].mxu0 %v9942
  %v10014 = vpop.f32.mrb[0].mxu0
  %v10015 = vadd.f32 %v9692, %v10014
  %v10016 = vpop.f32.mrb[0].mxu0
  %v10017 = vpop.f32.mrb[0].mxu0
  %v10018 = vadd.f32 %v9693, %v10017
  %v10019 = vpop.f32.mrb[0].mxu0
  %10020 = vdwg.mxu0
  %10025 = vrot.lane.b32.xlu0 %v9665, 104
  %v10026 = vpop.permute.xlu0 %10025
  %10027 = vrot.lane.b32.xlu0 %v9666, 104
  %v10028 = vpop.permute.xlu0 %10027
  %10029 = vrot.lane.b32.xlu0 %v9667, 104
  %v10030 = vpop.permute.xlu0 %10029
  %10031 = vrot.lane.b32.xlu0 %v9668, 104
  %v10032 = vpop.permute.xlu0 %10031
  %10033 = vrot.lane.b32.xlu0 %v9665, 72
  %v10034 = vpop.permute.xlu0 %10033
  %10035 = vrot.lane.b32.xlu0 %v9666, 72
  %v10036 = vpop.permute.xlu0 %10035
  %10037 = vrot.lane.b32.xlu0 %v9667, 72
  %v10038 = vpop.permute.xlu0 %10037
  %10039 = vrot.lane.b32.xlu0 %v9668, 72
  %v10040 = vpop.permute.xlu0 %10039
  %v10042 = vsel %vm845, %v10026, 0
  %v10045 = vsel %vm845, %v10028, 0
  %v10048 = vsel %vm845, %v10030, 0
  %v10051 = vsel %vm845, %v10032, 0
  %v10054 = vsel %vm845, %v10034, 0
  %v10057 = vsel %vm845, %v10036, 0
  %v10060 = vsel %vm845, %v10038, 0
  %v10063 = vsel %vm845, %v10040, 0
  %10065 = vmatprep.subr.bf16.mxu0 0
  %10066 = vmatpush1.bf16.xpose.msra.mxu0 %v10054
  %10067 = vmatprep.subr.bf16.mxu0 0
  %10068 = vmatpush1.bf16.xpose.msra.mxu0 %v10057
  %10069 = vmatprep.subr.bf16.mxu0 0
  %10070 = vmatpush1.bf16.xpose.msra.mxu0 %v10060
  %10071 = vmatprep.subr.bf16.mxu0 0
  %10072 = vmatpush1.bf16.xpose.msra.mxu0 %v10063
  %10073 = vmatprep.subr.bf16.mxu0 0
  %10074 = vmatpush1.bf16.xpose.msra.mxu0 0
  %10075 = vmatprep.subr.bf16.mxu0 0
  %10076 = vmatpush1.bf16.xpose.msra.mxu0 0
  %10077 = vmatprep.subr.bf16.mxu0 0
  %10078 = vmatpush1.bf16.xpose.msra.mxu0 0
  %10079 = vmatprep.subr.bf16.mxu0 0
  %10080 = vmatpush1.bf16.xpose.msra.mxu0 0
  %10081 = vmatprep.subr.bf16.mxu0 0
  %10082 = vmatpush1.bf16.xpose.msra.mxu0 0
  %10083 = vmatprep.subr.bf16.mxu0 0
  %10084 = vmatpush1.bf16.xpose.msra.mxu0 0
  %10085 = vmatprep.subr.bf16.mxu0 0
  %10086 = vmatpush1.bf16.xpose.msra.mxu0 0
  %10087 = vmatprep.subr.bf16.mxu0 0
  %10088 = vmatpush1.bf16.xpose.msra.mxu0 0
  %10089 = vmatprep.subr.bf16.mxu0 0
  %10090 = vmatpush1.bf16.xpose.msra.mxu0 0
  %10091 = vmatprep.subr.bf16.mxu0 0
  %10092 = vmatpush1.bf16.xpose.msra.mxu0 0
  %10093 = vmatprep.subr.bf16.mxu0 0
  %10094 = vmatpush1.bf16.xpose.msra.mxu0 0
  %10095 = vmatprep.subr.bf16.mxu0 0
  %10096 = vmatpush1.bf16.xpose.msra.mxu0 0
  %10097 = vmatprep.mubr.bf16.mxu0 0
  %10098 = vmatmul.mubr.bf16.gmra.mrb[0].mxu0 %v10042
  %v10099 = vpop.f32.mrb[0].mxu0
  %v10100 = vadd.f32 %v9686, %v10099
  %v10101 = vpop.f32.mrb[0].mxu0
  %v10102 = vpop.f32.mrb[0].mxu0
  %v10103 = vadd.f32 %v9687, %v10102
  %v10104 = vpop.f32.mrb[0].mxu0
  %10105 = vmatprep.mubr.bf16.mxu0 0
  %10106 = vmatmul.mubr.bf16.gmra.mrb[0].mxu0 %v10045
  %v10107 = vpop.f32.mrb[0].mxu0
  %v10108 = vadd.f32 %v9688, %v10107
  %v10109 = vpop.f32.mrb[0].mxu0
  %v10110 = vpop.f32.mrb[0].mxu0
  %v10111 = vadd.f32 %v9689, %v10110
  %v10112 = vpop.f32.mrb[0].mxu0
  %10113 = vmatprep.mubr.bf16.mxu0 0
  %10114 = vmatmul.mubr.bf16.gmra.mrb[0].mxu0 %v10048
  %v10115 = vpop.f32.mrb[0].mxu0
  %v10116 = vadd.f32 %v9690, %v10115
  %v10117 = vpop.f32.mrb[0].mxu0
  %v10118 = vpop.f32.mrb[0].mxu0
  %v10119 = vadd.f32 %v9691, %v10118
  %v10120 = vpop.f32.mrb[0].mxu0
  %10121 = vmatprep.mubr.bf16.mxu0 0
  %10122 = vmatmul.mubr.bf16.gmra.mrb[0].mxu0 %v10051
  %v10123 = vpop.f32.mrb[0].mxu0
  %v10124 = vadd.f32 %v9692, %v10123
  %v10125 = vpop.f32.mrb[0].mxu0
  %v10126 = vpop.f32.mrb[0].mxu0
  %v10127 = vadd.f32 %v9693, %v10126
  %v10128 = vpop.f32.mrb[0].mxu0
  %10129 = vdwg.mxu0
  %10134 = vrot.lane.b32.xlu0 %v9669, 104
  %v10135 = vpop.permute.xlu0 %10134
  %10136 = vrot.lane.b32.xlu0 %v9670, 104
  %v10137 = vpop.permute.xlu0 %10136
  %10138 = vrot.lane.b32.xlu0 %v9671, 104
  %v10139 = vpop.permute.xlu0 %10138
  %10140 = vrot.lane.b32.xlu0 %v9672, 104
  %v10141 = vpop.permute.xlu0 %10140
  %10142 = vrot.lane.b32.xlu0 %v9669, 72
  %v10143 = vpop.permute.xlu0 %10142
  %10144 = vrot.lane.b32.xlu0 %v9670, 72
  %v10145 = vpop.permute.xlu0 %10144
  %10146 = vrot.lane.b32.xlu0 %v9671, 72
  %v10147 = vpop.permute.xlu0 %10146
  %10148 = vrot.lane.b32.xlu0 %v9672, 72
  %v10149 = vpop.permute.xlu0 %10148
  %v10151 = vsel %vm845, %v10135, 0
  %v10154 = vsel %vm845, %v10137, 0
  %v10157 = vsel %vm845, %v10139, 0
  %v10160 = vsel %vm845, %v10141, 0
  %v10163 = vsel %vm845, %v10143, 0
  %v10166 = vsel %vm845, %v10145, 0
  %v10169 = vsel %vm845, %v10147, 0
  %v10172 = vsel %vm845, %v10149, 0
  %10174 = vmatprep.subr.bf16.mxu0 0
  %10175 = vmatpush1.bf16.xpose.msra.mxu0 %v10163
  %10176 = vmatprep.subr.bf16.mxu0 0
  %10177 = vmatpush1.bf16.xpose.msra.mxu0 %v10166
  %10178 = vmatprep.subr.bf16.mxu0 0
  %10179 = vmatpush1.bf16.xpose.msra.mxu0 %v10169
  %10180 = vmatprep.subr.bf16.mxu0 0
  %10181 = vmatpush1.bf16.xpose.msra.mxu0 %v10172
  %10182 = vmatprep.subr.bf16.mxu0 0
  %10183 = vmatpush1.bf16.xpose.msra.mxu0 0
  %10184 = vmatprep.subr.bf16.mxu0 0
  %10185 = vmatpush1.bf16.xpose.msra.mxu0 0
  %10186 = vmatprep.subr.bf16.mxu0 0
  %10187 = vmatpush1.bf16.xpose.msra.mxu0 0
  %10188 = vmatprep.subr.bf16.mxu0 0
  %10189 = vmatpush1.bf16.xpose.msra.mxu0 0
  %10190 = vmatprep.subr.bf16.mxu0 0
  %10191 = vmatpush1.bf16.xpose.msra.mxu0 0
  %10192 = vmatprep.subr.bf16.mxu0 0
  %10193 = vmatpush1.bf16.xpose.msra.mxu0 0
  %10194 = vmatprep.subr.bf16.mxu0 0
  %10195 = vmatpush1.bf16.xpose.msra.mxu0 0
  %10196 = vmatprep.subr.bf16.mxu0 0
  %10197 = vmatpush1.bf16.xpose.msra.mxu0 0
  %10198 = vmatprep.subr.bf16.mxu0 0
  %10199 = vmatpush1.bf16.xpose.msra.mxu0 0
  %10200 = vmatprep.subr.bf16.mxu0 0
  %10201 = vmatpush1.bf16.xpose.msra.mxu0 0
  %10202 = vmatprep.subr.bf16.mxu0 0
  %10203 = vmatpush1.bf16.xpose.msra.mxu0 0
  %10204 = vmatprep.subr.bf16.mxu0 0
  %10205 = vmatpush1.bf16.xpose.msra.mxu0 0
  %10206 = vmatprep.mubr.bf16.mxu0 0
  %10207 = vmatmul.mubr.bf16.gmra.mrb[0].mxu0 %v10151
  %v10208 = vpop.f32.mrb[0].mxu0
  %v10209 = vadd.f32 %v9686, %v10208
  %v10210 = vpop.f32.mrb[0].mxu0
  %v10211 = vpop.f32.mrb[0].mxu0
  %v10212 = vadd.f32 %v9687, %v10211
  %v10213 = vpop.f32.mrb[0].mxu0
  %10214 = vmatprep.mubr.bf16.mxu0 0
  %10215 = vmatmul.mubr.bf16.gmra.mrb[0].mxu0 %v10154
  %v10216 = vpop.f32.mrb[0].mxu0
  %v10217 = vadd.f32 %v9688, %v10216
  %v10218 = vpop.f32.mrb[0].mxu0
  %v10219 = vpop.f32.mrb[0].mxu0
  %v10220 = vadd.f32 %v9689, %v10219
  %v10221 = vpop.f32.mrb[0].mxu0
  %10222 = vmatprep.mubr.bf16.mxu0 0
  %10223 = vmatmul.mubr.bf16.gmra.mrb[0].mxu0 %v10157
  %v10224 = vpop.f32.mrb[0].mxu0
  %v10225 = vadd.f32 %v9690, %v10224
  %v10226 = vpop.f32.mrb[0].mxu0
  %v10227 = vpop.f32.mrb[0].mxu0
  %v10228 = vadd.f32 %v9691, %v10227
  %v10229 = vpop.f32.mrb[0].mxu0
  %10230 = vmatprep.mubr.bf16.mxu0 0
  %10231 = vmatmul.mubr.bf16.gmra.mrb[0].mxu0 %v10160
  %v10232 = vpop.f32.mrb[0].mxu0
  %v10233 = vadd.f32 %v9692, %v10232
  %v10234 = vpop.f32.mrb[0].mxu0
  %v10235 = vpop.f32.mrb[0].mxu0
  %v10236 = vadd.f32 %v9693, %v10235
  %v10237 = vpop.f32.mrb[0].mxu0
  %10238 = vdwg.mxu0
  %10243 = vrot.lane.b32.xlu0 %v9673, 104
  %v10244 = vpop.permute.xlu0 %10243
  %10245 = vrot.lane.b32.xlu0 %v9674, 104
  %v10246 = vpop.permute.xlu0 %10245
  %10247 = vrot.lane.b32.xlu0 %v9675, 104
  %v10248 = vpop.permute.xlu0 %10247
  %10249 = vrot.lane.b32.xlu0 %v9676, 104
  %v10250 = vpop.permute.xlu0 %10249
  %10251 = vrot.lane.b32.xlu0 %v9673, 72
  %v10252 = vpop.permute.xlu0 %10251
  %10253 = vrot.lane.b32.xlu0 %v9674, 72
  %v10254 = vpop.permute.xlu0 %10253
  %10255 = vrot.lane.b32.xlu0 %v9675, 72
  %v10256 = vpop.permute.xlu0 %10255
  %10257 = vrot.lane.b32.xlu0 %v9676, 72
  %v10258 = vpop.permute.xlu0 %10257
  %v10260 = vsel %vm845, %v10244, 0
  %v10263 = vsel %vm845, %v10246, 0
  %v10266 = vsel %vm845, %v10248, 0
  %v10269 = vsel %vm845, %v10250, 0
  %v10272 = vsel %vm845, %v10252, 0
  %v10275 = vsel %vm845, %v10254, 0
  %v10278 = vsel %vm845, %v10256, 0
  %v10281 = vsel %vm845, %v10258, 0
  %10283 = vmatprep.subr.bf16.mxu0 0
  %10284 = vmatpush1.bf16.xpose.msra.mxu0 %v10272
  %10285 = vmatprep.subr.bf16.mxu0 0
  %10286 = vmatpush1.bf16.xpose.msra.mxu0 %v10275
  %10287 = vmatprep.subr.bf16.mxu0 0
  %10288 = vmatpush1.bf16.xpose.msra.mxu0 %v10278
  %10289 = vmatprep.subr.bf16.mxu0 0
  %10290 = vmatpush1.bf16.xpose.msra.mxu0 %v10281
  %10291 = vmatprep.subr.bf16.mxu0 0
  %10292 = vmatpush1.bf16.xpose.msra.mxu0 0
  %10293 = vmatprep.subr.bf16.mxu0 0
  %10294 = vmatpush1.bf16.xpose.msra.mxu0 0
  %10295 = vmatprep.subr.bf16.mxu0 0
  %10296 = vmatpush1.bf16.xpose.msra.mxu0 0
  %10297 = vmatprep.subr.bf16.mxu0 0
  %10298 = vmatpush1.bf16.xpose.msra.mxu0 0
  %10299 = vmatprep.subr.bf16.mxu0 0
  %10300 = vmatpush1.bf16.xpose.msra.mxu0 0
  %10301 = vmatprep.subr.bf16.mxu0 0
  %10302 = vmatpush1.bf16.xpose.msra.mxu0 0
  %10303 = vmatprep.subr.bf16.mxu0 0
  %10304 = vmatpush1.bf16.xpose.msra.mxu0 0
  %10305 = vmatprep.subr.bf16.mxu0 0
  %10306 = vmatpush1.bf16.xpose.msra.mxu0 0
  %10307 = vmatprep.subr.bf16.mxu0 0
  %10308 = vmatpush1.bf16.xpose.msra.mxu0 0
  %10309 = vmatprep.subr.bf16.mxu0 0
  %10310 = vmatpush1.bf16.xpose.msra.mxu0 0
  %10311 = vmatprep.subr.bf16.mxu0 0
  %10312 = vmatpush1.bf16.xpose.msra.mxu0 0
  %10313 = vmatprep.subr.bf16.mxu0 0
  %10314 = vmatpush1.bf16.xpose.msra.mxu0 0
  %10315 = vmatprep.mubr.bf16.mxu0 0
  %10316 = vmatmul.mubr.bf16.gmra.mrb[0].mxu0 %v10260
  %v10317 = vpop.f32.mrb[0].mxu0
  %v10318 = vadd.f32 %v9686, %v10317
  %v10319 = vpop.f32.mrb[0].mxu0
  %v10320 = vpop.f32.mrb[0].mxu0
  %v10321 = vadd.f32 %v9687, %v10320
  %v10322 = vpop.f32.mrb[0].mxu0
  %10323 = vmatprep.mubr.bf16.mxu0 0
  %10324 = vmatmul.mubr.bf16.gmra.mrb[0].mxu0 %v10263
  %v10325 = vpop.f32.mrb[0].mxu0
  %v10326 = vadd.f32 %v9688, %v10325
  %v10327 = vpop.f32.mrb[0].mxu0
  %v10328 = vpop.f32.mrb[0].mxu0
  %v10329 = vadd.f32 %v9689, %v10328
  %v10330 = vpop.f32.mrb[0].mxu0
  %10331 = vmatprep.mubr.bf16.mxu0 0
  %10332 = vmatmul.mubr.bf16.gmra.mrb[0].mxu0 %v10266
  %v10333 = vpop.f32.mrb[0].mxu0
  %v10334 = vadd.f32 %v9690, %v10333
  %v10335 = vpop.f32.mrb[0].mxu0
  %v10336 = vpop.f32.mrb[0].mxu0
  %v10337 = vadd.f32 %v9691, %v10336
  %v10338 = vpop.f32.mrb[0].mxu0
  %10339 = vmatprep.mubr.bf16.mxu0 0
  %10340 = vmatmul.mubr.bf16.gmra.mrb[0].mxu0 %v10269
  %v10341 = vpop.f32.mrb[0].mxu0
  %v10342 = vadd.f32 %v9692, %v10341
  %v10343 = vpop.f32.mrb[0].mxu0
  %v10344 = vpop.f32.mrb[0].mxu0
  %v10345 = vadd.f32 %v9693, %v10344
  %v10346 = vpop.f32.mrb[0].mxu0
  %10347 = vdwg.mxu0
  %10352 = vrot.lane.b32.xlu0 %v9677, 104
  %v10353 = vpop.permute.xlu0 %10352
  %10354 = vrot.lane.b32.xlu0 %v9678, 104
  %v10355 = vpop.permute.xlu0 %10354
  %10356 = vrot.lane.b32.xlu0 %v9679, 104
  %v10357 = vpop.permute.xlu0 %10356
  %10358 = vrot.lane.b32.xlu0 %v9680, 104
  %v10359 = vpop.permute.xlu0 %10358
  %10360 = vrot.lane.b32.xlu0 %v9677, 72
  %v10361 = vpop.permute.xlu0 %10360
  %10362 = vrot.lane.b32.xlu0 %v9678, 72
  %v10363 = vpop.permute.xlu0 %10362
  %10364 = vrot.lane.b32.xlu0 %v9679, 72
  %v10365 = vpop.permute.xlu0 %10364
  %10366 = vrot.lane.b32.xlu0 %v9680, 72
  %v10367 = vpop.permute.xlu0 %10366
  %v10369 = vsel %vm845, %v10353, 0
  %v10372 = vsel %vm845, %v10355, 0
  %v10375 = vsel %vm845, %v10357, 0
  %v10378 = vsel %vm845, %v10359, 0
  %v10381 = vsel %vm845, %v10361, 0
  %v10384 = vsel %vm845, %v10363, 0
  %v10387 = vsel %vm845, %v10365, 0
  %v10390 = vsel %vm845, %v10367, 0
  %10392 = vmatprep.subr.bf16.mxu0 0
  %10393 = vmatpush1.bf16.xpose.msra.mxu0 %v10381
  %10394 = vmatprep.subr.bf16.mxu0 0
  %10395 = vmatpush1.bf16.xpose.msra.mxu0 %v10384
  %10396 = vmatprep.subr.bf16.mxu0 0
  %10397 = vmatpush1.bf16.xpose.msra.mxu0 %v10387
  %10398 = vmatprep.subr.bf16.mxu0 0
  %10399 = vmatpush1.bf16.xpose.msra.mxu0 %v10390
  %10400 = vmatprep.subr.bf16.mxu0 0
  %10401 = vmatpush1.bf16.xpose.msra.mxu0 0
  %10402 = vmatprep.subr.bf16.mxu0 0
  %10403 = vmatpush1.bf16.xpose.msra.mxu0 0
  %10404 = vmatprep.subr.bf16.mxu0 0
  %10405 = vmatpush1.bf16.xpose.msra.mxu0 0
  %10406 = vmatprep.subr.bf16.mxu0 0
  %10407 = vmatpush1.bf16.xpose.msra.mxu0 0
  %10408 = vmatprep.subr.bf16.mxu0 0
  %10409 = vmatpush1.bf16.xpose.msra.mxu0 0
  %10410 = vmatprep.subr.bf16.mxu0 0
  %10411 = vmatpush1.bf16.xpose.msra.mxu0 0
  %10412 = vmatprep.subr.bf16.mxu0 0
  %10413 = vmatpush1.bf16.xpose.msra.mxu0 0
  %10414 = vmatprep.subr.bf16.mxu0 0
  %10415 = vmatpush1.bf16.xpose.msra.mxu0 0
  %10416 = vmatprep.subr.bf16.mxu0 0
  %10417 = vmatpush1.bf16.xpose.msra.mxu0 0
  %10418 = vmatprep.subr.bf16.mxu0 0
  %10419 = vmatpush1.bf16.xpose.msra.mxu0 0
  %10420 = vmatprep.subr.bf16.mxu0 0
  %10421 = vmatpush1.bf16.xpose.msra.mxu0 0
  %10422 = vmatprep.subr.bf16.mxu0 0
  %10423 = vmatpush1.bf16.xpose.msra.mxu0 0
  %10424 = vmatprep.mubr.bf16.mxu0 0
  %10425 = vmatmul.mubr.bf16.gmra.mrb[0].mxu0 %v10369
  %v10426 = vpop.f32.mrb[0].mxu0
  %v10427 = vadd.f32 %v9686, %v10426
  %v10428 = vpop.f32.mrb[0].mxu0
  %v10429 = vpop.f32.mrb[0].mxu0
  %v10430 = vadd.f32 %v9687, %v10429
  %v10431 = vpop.f32.mrb[0].mxu0
  %10432 = vmatprep.mubr.bf16.mxu0 0
  %10433 = vmatmul.mubr.bf16.gmra.mrb[0].mxu0 %v10372
  %v10434 = vpop.f32.mrb[0].mxu0
  %v10435 = vadd.f32 %v9688, %v10434
  %v10436 = vpop.f32.mrb[0].mxu0
  %v10437 = vpop.f32.mrb[0].mxu0
  %v10438 = vadd.f32 %v9689, %v10437
  %v10439 = vpop.f32.mrb[0].mxu0
  %10440 = vmatprep.mubr.bf16.mxu0 0
  %10441 = vmatmul.mubr.bf16.gmra.mrb[0].mxu0 %v10375
  %v10442 = vpop.f32.mrb[0].mxu0
  %v10443 = vadd.f32 %v9690, %v10442
  %v10444 = vpop.f32.mrb[0].mxu0
  %v10445 = vpop.f32.mrb[0].mxu0
  %v10446 = vadd.f32 %v9691, %v10445
  %v10447 = vpop.f32.mrb[0].mxu0
  %10448 = vmatprep.mubr.bf16.mxu0 0
  %10449 = vmatmul.mubr.bf16.gmra.mrb[0].mxu0 %v10378
  %v10450 = vpop.f32.mrb[0].mxu0
  %v10451 = vadd.f32 %v9692, %v10450
  %v10452 = vpop.f32.mrb[0].mxu0
  %v10453 = vpop.f32.mrb[0].mxu0
  %v10454 = vadd.f32 %v9693, %v10453
  %v10455 = vpop.f32.mrb[0].mxu0
  %10456 = vdwg.mxu0
  %10461 = vrot.lane.b32.xlu0 %v9681, 104
  %v10462 = vpop.permute.xlu0 %10461
  %10463 = vrot.lane.b32.xlu0 %v9682, 104
  %v10464 = vpop.permute.xlu0 %10463
  %10465 = vrot.lane.b32.xlu0 %v9683, 104
  %v10466 = vpop.permute.xlu0 %10465
  %10467 = vrot.lane.b32.xlu0 %v9684, 104
  %v10468 = vpop.permute.xlu0 %10467
  %10469 = vrot.lane.b32.xlu0 %v9681, 72
  %v10470 = vpop.permute.xlu0 %10469
  %10471 = vrot.lane.b32.xlu0 %v9682, 72
  %v10472 = vpop.permute.xlu0 %10471
  %10473 = vrot.lane.b32.xlu0 %v9683, 72
  %v10474 = vpop.permute.xlu0 %10473
  %10475 = vrot.lane.b32.xlu0 %v9684, 72
  %v10476 = vpop.permute.xlu0 %10475
  %v10478 = vsel %vm845, %v10462, 0
  %v10481 = vsel %vm845, %v10464, 0
  %v10484 = vsel %vm845, %v10466, 0
  %v10487 = vsel %vm845, %v10468, 0
  %v10490 = vsel %vm845, %v10470, 0
  %v10493 = vsel %vm845, %v10472, 0
  %v10496 = vsel %vm845, %v10474, 0
  %v10499 = vsel %vm845, %v10476, 0
  %10501 = vmatprep.subr.bf16.mxu0 0
  %10502 = vmatpush1.bf16.xpose.msra.mxu0 %v10490
  %10503 = vmatprep.subr.bf16.mxu0 0
  %10504 = vmatpush1.bf16.xpose.msra.mxu0 %v10493
  %10505 = vmatprep.subr.bf16.mxu0 0
  %10506 = vmatpush1.bf16.xpose.msra.mxu0 %v10496
  %10507 = vmatprep.subr.bf16.mxu0 0
  %10508 = vmatpush1.bf16.xpose.msra.mxu0 %v10499
  %10509 = vmatprep.subr.bf16.mxu0 0
  %10510 = vmatpush1.bf16.xpose.msra.mxu0 0
  %10511 = vmatprep.subr.bf16.mxu0 0
  %10512 = vmatpush1.bf16.xpose.msra.mxu0 0
  %10513 = vmatprep.subr.bf16.mxu0 0
  %10514 = vmatpush1.bf16.xpose.msra.mxu0 0
  %10515 = vmatprep.subr.bf16.mxu0 0
  %10516 = vmatpush1.bf16.xpose.msra.mxu0 0
  %10517 = vmatprep.subr.bf16.mxu0 0
  %10518 = vmatpush1.bf16.xpose.msra.mxu0 0
  %10519 = vmatprep.subr.bf16.mxu0 0
  %10520 = vmatpush1.bf16.xpose.msra.mxu0 0
  %10521 = vmatprep.subr.bf16.mxu0 0
  %10522 = vmatpush1.bf16.xpose.msra.mxu0 0
  %10523 = vmatprep.subr.bf16.mxu0 0
  %10524 = vmatpush1.bf16.xpose.msra.mxu0 0
  %10525 = vmatprep.subr.bf16.mxu0 0
  %10526 = vmatpush1.bf16.xpose.msra.mxu0 0
  %10527 = vmatprep.subr.bf16.mxu0 0
  %10528 = vmatpush1.bf16.xpose.msra.mxu0 0
  %10529 = vmatprep.subr.bf16.mxu0 0
  %10530 = vmatpush1.bf16.xpose.msra.mxu0 0
  %10531 = vmatprep.subr.bf16.mxu0 0
  %10532 = vmatpush1.bf16.xpose.msra.mxu0 0
  %10533 = vmatprep.mubr.bf16.mxu0 0
  %10534 = vmatmul.mubr.bf16.gmra.mrb[0].mxu0 %v10478
  %v10535 = vpop.f32.mrb[0].mxu0
  %v10536 = vadd.f32 %v9686, %v10535
  %v10537 = vpop.f32.mrb[0].mxu0
  %v10538 = vpop.f32.mrb[0].mxu0
  %v10539 = vadd.f32 %v9687, %v10538
  %v10540 = vpop.f32.mrb[0].mxu0
  %10541 = vmatprep.mubr.bf16.mxu0 0
  %10542 = vmatmul.mubr.bf16.gmra.mrb[0].mxu0 %v10481
  %v10543 = vpop.f32.mrb[0].mxu0
  %v10544 = vadd.f32 %v9688, %v10543
  %v10545 = vpop.f32.mrb[0].mxu0
  %v10546 = vpop.f32.mrb[0].mxu0
  %v10547 = vadd.f32 %v9689, %v10546
  %v10548 = vpop.f32.mrb[0].mxu0
  %10549 = vmatprep.mubr.bf16.mxu0 0
  %10550 = vmatmul.mubr.bf16.gmra.mrb[0].mxu0 %v10484
  %v10551 = vpop.f32.mrb[0].mxu0
  %v10552 = vadd.f32 %v9690, %v10551
  %v10553 = vpop.f32.mrb[0].mxu0
  %v10554 = vpop.f32.mrb[0].mxu0
  %v10555 = vadd.f32 %v9691, %v10554
  %v10556 = vpop.f32.mrb[0].mxu0
  %10557 = vmatprep.mubr.bf16.mxu0 0
  %10558 = vmatmul.mubr.bf16.gmra.mrb[0].mxu0 %v10487
  %v10559 = vpop.f32.mrb[0].mxu0
  %v10560 = vadd.f32 %v9692, %v10559
  %v10561 = vpop.f32.mrb[0].mxu0
  %v10562 = vpop.f32.mrb[0].mxu0
  %v10563 = vadd.f32 %v9693, %v10562
  %v10564 = vpop.f32.mrb[0].mxu0
  %10565 = vdwg.mxu0
  %v10566 = vsel %vm1642, %v9773, -inf
  %10567 = vmax.xlane.f32.xlu0 %v10566
  %v10568 = vpop.xlane.xlu0 %10567
  %v10569 = vsel %vm1642, %v9776, -inf
  %10570 = vmax.xlane.f32.xlu0 %v10569
  %v10571 = vpop.xlane.xlu0 %10570
  %v10572 = vsel %vm1642, %v9781, -inf
  %10573 = vmax.xlane.f32.xlu0 %v10572
  %v10574 = vpop.xlane.xlu0 %10573
  %v10575 = vsel %vm1642, %v9784, -inf
  %10576 = vmax.xlane.f32.xlu0 %v10575
  %v10577 = vpop.xlane.xlu0 %10576
  %v10578 = vsel %vm1642, %v9789, -inf
  %10579 = vmax.xlane.f32.xlu0 %v10578
  %v10580 = vpop.xlane.xlu0 %10579
  %v10581 = vsel %vm1642, %v9792, -inf
  %10582 = vmax.xlane.f32.xlu0 %v10581
  %v10583 = vpop.xlane.xlu0 %10582
  %v10584 = vsel %vm1642, %v9797, -inf
  %10585 = vmax.xlane.f32.xlu0 %v10584
  %v10586 = vpop.xlane.xlu0 %10585
  %v10587 = vsel %vm1642, %v9800, -inf
  %10588 = vmax.xlane.f32.xlu0 %v10587
  %v10589 = vpop.xlane.xlu0 %10588
  %v10590 = vsel %vm1642, %v9882, -inf
  %10591 = vmax.xlane.f32.xlu0 %v10590
  %v10592 = vpop.xlane.xlu0 %10591
  %v10593 = vsel %vm1642, %v9885, -inf
  %10594 = vmax.xlane.f32.xlu0 %v10593
  %v10595 = vpop.xlane.xlu0 %10594
  %v10596 = vsel %vm1642, %v9890, -inf
  %10597 = vmax.xlane.f32.xlu0 %v10596
  %v10598 = vpop.xlane.xlu0 %10597
  %v10599 = vsel %vm1642, %v9893, -inf
  %10600 = vmax.xlane.f32.xlu0 %v10599
  %v10601 = vpop.xlane.xlu0 %10600
  %v10602 = vsel %vm1642, %v9898, -inf
  %10603 = vmax.xlane.f32.xlu0 %v10602
  %v10604 = vpop.xlane.xlu0 %10603
  %v10605 = vsel %vm1642, %v9901, -inf
  %10606 = vmax.xlane.f32.xlu0 %v10605
  %v10607 = vpop.xlane.xlu0 %10606
  %v10608 = vsel %vm1642, %v9906, -inf
  %10609 = vmax.xlane.f32.xlu0 %v10608
  %v10610 = vpop.xlane.xlu0 %10609
  %v10611 = vsel %vm1642, %v9909, -inf
  %10612 = vmax.xlane.f32.xlu0 %v10611
  %v10613 = vpop.xlane.xlu0 %10612
  %v10614 = vsel %vm1642, %v9991, -inf
  %10615 = vmax.xlane.f32.xlu0 %v10614
  %v10616 = vpop.xlane.xlu0 %10615
  %v10617 = vsel %vm1642, %v9994, -inf
  %10618 = vmax.xlane.f32.xlu0 %v10617
  %v10619 = vpop.xlane.xlu0 %10618
  %v10620 = vsel %vm1642, %v9999, -inf
  %10621 = vmax.xlane.f32.xlu0 %v10620
  %v10622 = vpop.xlane.xlu0 %10621
  %v10623 = vsel %vm1642, %v10002, -inf
  %10624 = vmax.xlane.f32.xlu0 %v10623
  %v10625 = vpop.xlane.xlu0 %10624
  %v10626 = vsel %vm1642, %v10007, -inf
  %10627 = vmax.xlane.f32.xlu0 %v10626
  %v10628 = vpop.xlane.xlu0 %10627
  %v10629 = vsel %vm1642, %v10010, -inf
  %10630 = vmax.xlane.f32.xlu0 %v10629
  %v10631 = vpop.xlane.xlu0 %10630
  %v10632 = vsel %vm1642, %v10015, -inf
  %10633 = vmax.xlane.f32.xlu0 %v10632
  %v10634 = vpop.xlane.xlu0 %10633
  %v10635 = vsel %vm1642, %v10018, -inf
  %10636 = vmax.xlane.f32.xlu0 %v10635
  %v10637 = vpop.xlane.xlu0 %10636
  %v10638 = vsel %vm1642, %v10100, -inf
  %10639 = vmax.xlane.f32.xlu0 %v10638
  %v10640 = vpop.xlane.xlu0 %10639
  %v10641 = vsel %vm1642, %v10103, -inf
  %10642 = vmax.xlane.f32.xlu0 %v10641
  %v10643 = vpop.xlane.xlu0 %10642
  %v10644 = vsel %vm1642, %v10108, -inf
  %10645 = vmax.xlane.f32.xlu0 %v10644
  %v10646 = vpop.xlane.xlu0 %10645
  %v10647 = vsel %vm1642, %v10111, -inf
  %10648 = vmax.xlane.f32.xlu0 %v10647
  %v10649 = vpop.xlane.xlu0 %10648
  %v10650 = vsel %vm1642, %v10116, -inf
  %10651 = vmax.xlane.f32.xlu0 %v10650
  %v10652 = vpop.xlane.xlu0 %10651
  %v10653 = vsel %vm1642, %v10119, -inf
  %10654 = vmax.xlane.f32.xlu0 %v10653
  %v10655 = vpop.xlane.xlu0 %10654
  %v10656 = vsel %vm1642, %v10124, -inf
  %10657 = vmax.xlane.f32.xlu0 %v10656
  %v10658 = vpop.xlane.xlu0 %10657
  %v10659 = vsel %vm1642, %v10127, -inf
  %10660 = vmax.xlane.f32.xlu0 %v10659
  %v10661 = vpop.xlane.xlu0 %10660
  %v10662 = vsel %vm1642, %v10209, -inf
  %10663 = vmax.xlane.f32.xlu0 %v10662
  %v10664 = vpop.xlane.xlu0 %10663
  %v10665 = vsel %vm1642, %v10212, -inf
  %10666 = vmax.xlane.f32.xlu0 %v10665
  %v10667 = vpop.xlane.xlu0 %10666
  %v10668 = vsel %vm1642, %v10217, -inf
  %10669 = vmax.xlane.f32.xlu0 %v10668
  %v10670 = vpop.xlane.xlu0 %10669
  %v10671 = vsel %vm1642, %v10220, -inf
  %10672 = vmax.xlane.f32.xlu0 %v10671
  %v10673 = vpop.xlane.xlu0 %10672
  %v10674 = vsel %vm1642, %v10225, -inf
  %10675 = vmax.xlane.f32.xlu0 %v10674
  %v10676 = vpop.xlane.xlu0 %10675
  %v10677 = vsel %vm1642, %v10228, -inf
  %10678 = vmax.xlane.f32.xlu0 %v10677
  %v10679 = vpop.xlane.xlu0 %10678
  %v10680 = vsel %vm1642, %v10233, -inf
  %10681 = vmax.xlane.f32.xlu0 %v10680
  %v10682 = vpop.xlane.xlu0 %10681
  %v10683 = vsel %vm1642, %v10236, -inf
  %10684 = vmax.xlane.f32.xlu0 %v10683
  %v10685 = vpop.xlane.xlu0 %10684
  %v10686 = vsel %vm1642, %v10318, -inf
  %10687 = vmax.xlane.f32.xlu0 %v10686
  %v10688 = vpop.xlane.xlu0 %10687
  %v10689 = vsel %vm1642, %v10321, -inf
  %10690 = vmax.xlane.f32.xlu0 %v10689
  %v10691 = vpop.xlane.xlu0 %10690
  %v10692 = vsel %vm1642, %v10326, -inf
  %10693 = vmax.xlane.f32.xlu0 %v10692
  %v10694 = vpop.xlane.xlu0 %10693
  %v10695 = vsel %vm1642, %v10329, -inf
  %10696 = vmax.xlane.f32.xlu0 %v10695
  %v10697 = vpop.xlane.xlu0 %10696
  %v10698 = vsel %vm1642, %v10334, -inf
  %10699 = vmax.xlane.f32.xlu0 %v10698
  %v10700 = vpop.xlane.xlu0 %10699
  %v10701 = vsel %vm1642, %v10337, -inf
  %10702 = vmax.xlane.f32.xlu0 %v10701
  %v10703 = vpop.xlane.xlu0 %10702
  %v10704 = vsel %vm1642, %v10342, -inf
  %10705 = vmax.xlane.f32.xlu0 %v10704
  %v10706 = vpop.xlane.xlu0 %10705
  %v10707 = vsel %vm1642, %v10345, -inf
  %10708 = vmax.xlane.f32.xlu0 %v10707
  %v10709 = vpop.xlane.xlu0 %10708
  %v10710 = vsel %vm1642, %v10427, -inf
  %10711 = vmax.xlane.f32.xlu0 %v10710
  %v10712 = vpop.xlane.xlu0 %10711
  %v10713 = vsel %vm1642, %v10430, -inf
  %10714 = vmax.xlane.f32.xlu0 %v10713
  %v10715 = vpop.xlane.xlu0 %10714
  %v10716 = vsel %vm1642, %v10435, -inf
  %10717 = vmax.xlane.f32.xlu0 %v10716
  %v10718 = vpop.xlane.xlu0 %10717
  %v10719 = vsel %vm1642, %v10438, -inf
  %10720 = vmax.xlane.f32.xlu0 %v10719
  %v10721 = vpop.xlane.xlu0 %10720
  %v10722 = vsel %vm1642, %v10443, -inf
  %10723 = vmax.xlane.f32.xlu0 %v10722
  %v10724 = vpop.xlane.xlu0 %10723
  %v10725 = vsel %vm1642, %v10446, -inf
  %10726 = vmax.xlane.f32.xlu0 %v10725
  %v10727 = vpop.xlane.xlu0 %10726
  %v10728 = vsel %vm1642, %v10451, -inf
  %10729 = vmax.xlane.f32.xlu0 %v10728
  %v10730 = vpop.xlane.xlu0 %10729
  %v10731 = vsel %vm1642, %v10454, -inf
  %10732 = vmax.xlane.f32.xlu0 %v10731
  %v10733 = vpop.xlane.xlu0 %10732
  %v10734 = vsel %vm1642, %v10536, -inf
  %10735 = vmax.xlane.f32.xlu0 %v10734
  %v10736 = vpop.xlane.xlu0 %10735
  %v10737 = vsel %vm1642, %v10539, -inf
  %10738 = vmax.xlane.f32.xlu0 %v10737
  %v10739 = vpop.xlane.xlu0 %10738
  %v10740 = vsel %vm1642, %v10544, -inf
  %10741 = vmax.xlane.f32.xlu0 %v10740
  %v10742 = vpop.xlane.xlu0 %10741
  %v10743 = vsel %vm1642, %v10547, -inf
  %10744 = vmax.xlane.f32.xlu0 %v10743
  %v10745 = vpop.xlane.xlu0 %10744
  %v10746 = vsel %vm1642, %v10552, -inf
  %10747 = vmax.xlane.f32.xlu0 %v10746
  %v10748 = vpop.xlane.xlu0 %10747
  %v10749 = vsel %vm1642, %v10555, -inf
  %10750 = vmax.xlane.f32.xlu0 %v10749
  %v10751 = vpop.xlane.xlu0 %10750
  %v10752 = vsel %vm1642, %v10560, -inf
  %10753 = vmax.xlane.f32.xlu0 %v10752
  %v10754 = vpop.xlane.xlu0 %10753
  %v10755 = vsel %vm1642, %v10563, -inf
  %10756 = vmax.xlane.f32.xlu0 %v10755
  %v10757 = vpop.xlane.xlu0 %10756
  %v10758 = vsub.f32 %v9773, %v10568
  %v10759 = vsub.f32 %v9776, %v10571
  %v10760 = vsub.f32 %v9781, %v10574
  %v10761 = vsub.f32 %v9784, %v10577
  %v10762 = vsub.f32 %v9789, %v10580
  %v10763 = vsub.f32 %v9792, %v10583
  %v10764 = vsub.f32 %v9797, %v10586
  %v10765 = vsub.f32 %v9800, %v10589
  %v10766 = vsub.f32 %v9882, %v10592
  %v10767 = vsub.f32 %v9885, %v10595
  %v10768 = vsub.f32 %v9890, %v10598
  %v10769 = vsub.f32 %v9893, %v10601
  %v10770 = vsub.f32 %v9898, %v10604
  %v10771 = vsub.f32 %v9901, %v10607
  %v10772 = vsub.f32 %v9906, %v10610
  %v10773 = vsub.f32 %v9909, %v10613
  %v10774 = vsub.f32 %v9991, %v10616
  %v10775 = vsub.f32 %v9994, %v10619
  %v10776 = vsub.f32 %v9999, %v10622
  %v10777 = vsub.f32 %v10002, %v10625
  %v10778 = vsub.f32 %v10007, %v10628
  %v10779 = vsub.f32 %v10010, %v10631
  %v10780 = vsub.f32 %v10015, %v10634
  %v10781 = vsub.f32 %v10018, %v10637
  %v10782 = vsub.f32 %v10100, %v10640
  %v10783 = vsub.f32 %v10103, %v10643
  %v10784 = vsub.f32 %v10108, %v10646
  %v10785 = vsub.f32 %v10111, %v10649
  %v10786 = vsub.f32 %v10116, %v10652
  %v10787 = vsub.f32 %v10119, %v10655
  %v10788 = vsub.f32 %v10124, %v10658
  %v10789 = vsub.f32 %v10127, %v10661
  %v10790 = vsub.f32 %v10209, %v10664
  %v10791 = vsub.f32 %v10212, %v10667
  %v10792 = vsub.f32 %v10217, %v10670
  %v10793 = vsub.f32 %v10220, %v10673
  %v10794 = vsub.f32 %v10225, %v10676
  %v10795 = vsub.f32 %v10228, %v10679
  %v10796 = vsub.f32 %v10233, %v10682
  %v10797 = vsub.f32 %v10236, %v10685
  %v10798 = vsub.f32 %v10318, %v10688
  %v10799 = vsub.f32 %v10321, %v10691
  %v10800 = vsub.f32 %v10326, %v10694
  %v10801 = vsub.f32 %v10329, %v10697
  %v10802 = vsub.f32 %v10334, %v10700
  %v10803 = vsub.f32 %v10337, %v10703
  %v10804 = vsub.f32 %v10342, %v10706
  %v10805 = vsub.f32 %v10345, %v10709
  %v10806 = vsub.f32 %v10427, %v10712
  %v10807 = vsub.f32 %v10430, %v10715
  %v10808 = vsub.f32 %v10435, %v10718
  %v10809 = vsub.f32 %v10438, %v10721
  %v10810 = vsub.f32 %v10443, %v10724
  %v10811 = vsub.f32 %v10446, %v10727
  %v10812 = vsub.f32 %v10451, %v10730
  %v10813 = vsub.f32 %v10454, %v10733
  %v10814 = vsub.f32 %v10536, %v10736
  %v10815 = vsub.f32 %v10539, %v10739
  %v10816 = vsub.f32 %v10544, %v10742
  %v10817 = vsub.f32 %v10547, %v10745
  %v10818 = vsub.f32 %v10552, %v10748
  %v10819 = vsub.f32 %v10555, %v10751
  %v10820 = vsub.f32 %v10560, %v10754
  %v10821 = vsub.f32 %v10563, %v10757
  %v10822 = vmul.f32 %v10758, 1.442695
  %v10823 = vpow.pop %v10822
  %v10824 = vmul.f32 %v10759, 1.442695
  %v10825 = vpow.pop %v10824
  %v10826 = vmul.f32 %v10760, 1.442695
  %v10827 = vpow.pop %v10826
  %v10828 = vmul.f32 %v10761, 1.442695
  %v10829 = vpow.pop %v10828
  %v10830 = vmul.f32 %v10762, 1.442695
  %v10831 = vpow.pop %v10830
  %v10832 = vmul.f32 %v10763, 1.442695
  %v10833 = vpow.pop %v10832
  %v10834 = vmul.f32 %v10764, 1.442695
  %v10835 = vpow.pop %v10834
  %v10836 = vmul.f32 %v10765, 1.442695
  %v10837 = vpow.pop %v10836
  %v10838 = vmul.f32 %v10766, 1.442695
  %v10839 = vpow.pop %v10838
  %v10840 = vmul.f32 %v10767, 1.442695
  %v10841 = vpow.pop %v10840
  %v10842 = vmul.f32 %v10768, 1.442695
  %v10843 = vpow.pop %v10842
  %v10844 = vmul.f32 %v10769, 1.442695
  %v10845 = vpow.pop %v10844
  %v10846 = vmul.f32 %v10770, 1.442695
  %v10847 = vpow.pop %v10846
  %v10848 = vmul.f32 %v10771, 1.442695
  %v10849 = vpow.pop %v10848
  %v10850 = vmul.f32 %v10772, 1.442695
  %v10851 = vpow.pop %v10850
  %v10852 = vmul.f32 %v10773, 1.442695
  %v10853 = vpow.pop %v10852
  %v10854 = vmul.f32 %v10774, 1.442695
  %v10855 = vpow.pop %v10854
  %v10856 = vmul.f32 %v10775, 1.442695
  %v10857 = vpow.pop %v10856
  %v10858 = vmul.f32 %v10776, 1.442695
  %v10859 = vpow.pop %v10858
  %v10860 = vmul.f32 %v10777, 1.442695
  %v10861 = vpow.pop %v10860
  %v10862 = vmul.f32 %v10778, 1.442695
  %v10863 = vpow.pop %v10862
  %v10864 = vmul.f32 %v10779, 1.442695
  %v10865 = vpow.pop %v10864
  %v10866 = vmul.f32 %v10780, 1.442695
  %v10867 = vpow.pop %v10866
  %v10868 = vmul.f32 %v10781, 1.442695
  %v10869 = vpow.pop %v10868
  %v10870 = vmul.f32 %v10782, 1.442695
  %v10871 = vpow.pop %v10870
  %v10872 = vmul.f32 %v10783, 1.442695
  %v10873 = vpow.pop %v10872
  %v10874 = vmul.f32 %v10784, 1.442695
  %v10875 = vpow.pop %v10874
  %v10876 = vmul.f32 %v10785, 1.442695
  %v10877 = vpow.pop %v10876
  %v10878 = vmul.f32 %v10786, 1.442695
  %v10879 = vpow.pop %v10878
  %v10880 = vmul.f32 %v10787, 1.442695
  %v10881 = vpow.pop %v10880
  %v10882 = vmul.f32 %v10788, 1.442695
  %v10883 = vpow.pop %v10882
  %v10884 = vmul.f32 %v10789, 1.442695
  %v10885 = vpow.pop %v10884
  %v10886 = vmul.f32 %v10790, 1.442695
  %v10887 = vpow.pop %v10886
  %v10888 = vmul.f32 %v10791, 1.442695
  %v10889 = vpow.pop %v10888
  %v10890 = vmul.f32 %v10792, 1.442695
  %v10891 = vpow.pop %v10890
  %v10892 = vmul.f32 %v10793, 1.442695
  %v10893 = vpow.pop %v10892
  %v10894 = vmul.f32 %v10794, 1.442695
  %v10895 = vpow.pop %v10894
  %v10896 = vmul.f32 %v10795, 1.442695
  %v10897 = vpow.pop %v10896
  %v10898 = vmul.f32 %v10796, 1.442695
  %v10899 = vpow.pop %v10898
  %v10900 = vmul.f32 %v10797, 1.442695
  %v10901 = vpow.pop %v10900
  %v10902 = vmul.f32 %v10798, 1.442695
  %v10903 = vpow.pop %v10902
  %v10904 = vmul.f32 %v10799, 1.442695
  %v10905 = vpow.pop %v10904
  %v10906 = vmul.f32 %v10800, 1.442695
  %v10907 = vpow.pop %v10906
  %v10908 = vmul.f32 %v10801, 1.442695
  %v10909 = vpow.pop %v10908
  %v10910 = vmul.f32 %v10802, 1.442695
  %v10911 = vpow.pop %v10910
  %v10912 = vmul.f32 %v10803, 1.442695
  %v10913 = vpow.pop %v10912
  %v10914 = vmul.f32 %v10804, 1.442695
  %v10915 = vpow.pop %v10914
  %v10916 = vmul.f32 %v10805, 1.442695
  %v10917 = vpow.pop %v10916
  %v10918 = vmul.f32 %v10806, 1.442695
  %v10919 = vpow.pop %v10918
  %v10920 = vmul.f32 %v10807, 1.442695
  %v10921 = vpow.pop %v10920
  %v10922 = vmul.f32 %v10808, 1.442695
  %v10923 = vpow.pop %v10922
  %v10924 = vmul.f32 %v10809, 1.442695
  %v10925 = vpow.pop %v10924
  %v10926 = vmul.f32 %v10810, 1.442695
  %v10927 = vpow.pop %v10926
  %v10928 = vmul.f32 %v10811, 1.442695
  %v10929 = vpow.pop %v10928
  %v10930 = vmul.f32 %v10812, 1.442695
  %v10931 = vpow.pop %v10930
  %v10932 = vmul.f32 %v10813, 1.442695
  %v10933 = vpow.pop %v10932
  %v10934 = vmul.f32 %v10814, 1.442695
  %v10935 = vpow.pop %v10934
  %v10936 = vmul.f32 %v10815, 1.442695
  %v10937 = vpow.pop %v10936
  %v10938 = vmul.f32 %v10816, 1.442695
  %v10939 = vpow.pop %v10938
  %v10940 = vmul.f32 %v10817, 1.442695
  %v10941 = vpow.pop %v10940
  %v10942 = vmul.f32 %v10818, 1.442695
  %v10943 = vpow.pop %v10942
  %v10944 = vmul.f32 %v10819, 1.442695
  %v10945 = vpow.pop %v10944
  %v10946 = vmul.f32 %v10820, 1.442695
  %v10947 = vpow.pop %v10946
  %v10948 = vmul.f32 %v10821, 1.442695
  %v10949 = vpow.pop %v10948
  %v10950 = vsel %vm1642, %v10823, 0.0
  %10951 = vadd.xlane.f32.xlu0 %v10950
  %v10952 = vpop.xlane.xlu0 %10951
  %v10953 = vsel %vm1642, %v10825, 0.0
  %10954 = vadd.xlane.f32.xlu0 %v10953
  %v10955 = vpop.xlane.xlu0 %10954
  %v10956 = vsel %vm1642, %v10827, 0.0
  %10957 = vadd.xlane.f32.xlu0 %v10956
  %v10958 = vpop.xlane.xlu0 %10957
  %v10959 = vsel %vm1642, %v10829, 0.0
  %10960 = vadd.xlane.f32.xlu0 %v10959
  %v10961 = vpop.xlane.xlu0 %10960
  %v10962 = vsel %vm1642, %v10831, 0.0
  %10963 = vadd.xlane.f32.xlu0 %v10962
  %v10964 = vpop.xlane.xlu0 %10963
  %v10965 = vsel %vm1642, %v10833, 0.0
  %10966 = vadd.xlane.f32.xlu0 %v10965
  %v10967 = vpop.xlane.xlu0 %10966
  %v10968 = vsel %vm1642, %v10835, 0.0
  %10969 = vadd.xlane.f32.xlu0 %v10968
  %v10970 = vpop.xlane.xlu0 %10969
  %v10971 = vsel %vm1642, %v10837, 0.0
  %10972 = vadd.xlane.f32.xlu0 %v10971
  %v10973 = vpop.xlane.xlu0 %10972
  %v10974 = vsel %vm1642, %v10839, 0.0
  %10975 = vadd.xlane.f32.xlu0 %v10974
  %v10976 = vpop.xlane.xlu0 %10975
  %v10977 = vsel %vm1642, %v10841, 0.0
  %10978 = vadd.xlane.f32.xlu0 %v10977
  %v10979 = vpop.xlane.xlu0 %10978
  %v10980 = vsel %vm1642, %v10843, 0.0
  %10981 = vadd.xlane.f32.xlu0 %v10980
  %v10982 = vpop.xlane.xlu0 %10981
  %v10983 = vsel %vm1642, %v10845, 0.0
  %10984 = vadd.xlane.f32.xlu0 %v10983
  %v10985 = vpop.xlane.xlu0 %10984
  %v10986 = vsel %vm1642, %v10847, 0.0
  %10987 = vadd.xlane.f32.xlu0 %v10986
  %v10988 = vpop.xlane.xlu0 %10987
  %v10989 = vsel %vm1642, %v10849, 0.0
  %10990 = vadd.xlane.f32.xlu0 %v10989
  %v10991 = vpop.xlane.xlu0 %10990
  %v10992 = vsel %vm1642, %v10851, 0.0
  %10993 = vadd.xlane.f32.xlu0 %v10992
  %v10994 = vpop.xlane.xlu0 %10993
  %v10995 = vsel %vm1642, %v10853, 0.0
  %10996 = vadd.xlane.f32.xlu0 %v10995
  %v10997 = vpop.xlane.xlu0 %10996
  %v10998 = vsel %vm1642, %v10855, 0.0
  %10999 = vadd.xlane.f32.xlu0 %v10998
  %v11000 = vpop.xlane.xlu0 %10999
  %v11001 = vsel %vm1642, %v10857, 0.0
  %11002 = vadd.xlane.f32.xlu0 %v11001
  %v11003 = vpop.xlane.xlu0 %11002
  %v11004 = vsel %vm1642, %v10859, 0.0
  %11005 = vadd.xlane.f32.xlu0 %v11004
  %v11006 = vpop.xlane.xlu0 %11005
  %v11007 = vsel %vm1642, %v10861, 0.0
  %11008 = vadd.xlane.f32.xlu0 %v11007
  %v11009 = vpop.xlane.xlu0 %11008
  %v11010 = vsel %vm1642, %v10863, 0.0
  %11011 = vadd.xlane.f32.xlu0 %v11010
  %v11012 = vpop.xlane.xlu0 %11011
  %v11013 = vsel %vm1642, %v10865, 0.0
  %11014 = vadd.xlane.f32.xlu0 %v11013
  %v11015 = vpop.xlane.xlu0 %11014
  %v11016 = vsel %vm1642, %v10867, 0.0
  %11017 = vadd.xlane.f32.xlu0 %v11016
  %v11018 = vpop.xlane.xlu0 %11017
  %v11019 = vsel %vm1642, %v10869, 0.0
  %11020 = vadd.xlane.f32.xlu0 %v11019
  %v11021 = vpop.xlane.xlu0 %11020
  %v11022 = vsel %vm1642, %v10871, 0.0
  %11023 = vadd.xlane.f32.xlu0 %v11022
  %v11024 = vpop.xlane.xlu0 %11023
  %v11025 = vsel %vm1642, %v10873, 0.0
  %11026 = vadd.xlane.f32.xlu0 %v11025
  %v11027 = vpop.xlane.xlu0 %11026
  %v11028 = vsel %vm1642, %v10875, 0.0
  %11029 = vadd.xlane.f32.xlu0 %v11028
  %v11030 = vpop.xlane.xlu0 %11029
  %v11031 = vsel %vm1642, %v10877, 0.0
  %11032 = vadd.xlane.f32.xlu0 %v11031
  %v11033 = vpop.xlane.xlu0 %11032
  %v11034 = vsel %vm1642, %v10879, 0.0
  %11035 = vadd.xlane.f32.xlu0 %v11034
  %v11036 = vpop.xlane.xlu0 %11035
  %v11037 = vsel %vm1642, %v10881, 0.0
  %11038 = vadd.xlane.f32.xlu0 %v11037
  %v11039 = vpop.xlane.xlu0 %11038
  %v11040 = vsel %vm1642, %v10883, 0.0
  %11041 = vadd.xlane.f32.xlu0 %v11040
  %v11042 = vpop.xlane.xlu0 %11041
  %v11043 = vsel %vm1642, %v10885, 0.0
  %11044 = vadd.xlane.f32.xlu0 %v11043
  %v11045 = vpop.xlane.xlu0 %11044
  %v11046 = vsel %vm1642, %v10887, 0.0
  %11047 = vadd.xlane.f32.xlu0 %v11046
  %v11048 = vpop.xlane.xlu0 %11047
  %v11049 = vsel %vm1642, %v10889, 0.0
  %11050 = vadd.xlane.f32.xlu0 %v11049
  %v11051 = vpop.xlane.xlu0 %11050
  %v11052 = vsel %vm1642, %v10891, 0.0
  %11053 = vadd.xlane.f32.xlu0 %v11052
  %v11054 = vpop.xlane.xlu0 %11053
  %v11055 = vsel %vm1642, %v10893, 0.0
  %11056 = vadd.xlane.f32.xlu0 %v11055
  %v11057 = vpop.xlane.xlu0 %11056
  %v11058 = vsel %vm1642, %v10895, 0.0
  %11059 = vadd.xlane.f32.xlu0 %v11058
  %v11060 = vpop.xlane.xlu0 %11059
  %v11061 = vsel %vm1642, %v10897, 0.0
  %11062 = vadd.xlane.f32.xlu0 %v11061
  %v11063 = vpop.xlane.xlu0 %11062
  %v11064 = vsel %vm1642, %v10899, 0.0
  %11065 = vadd.xlane.f32.xlu0 %v11064
  %v11066 = vpop.xlane.xlu0 %11065
  %v11067 = vsel %vm1642, %v10901, 0.0
  %11068 = vadd.xlane.f32.xlu0 %v11067
  %v11069 = vpop.xlane.xlu0 %11068
  %v11070 = vsel %vm1642, %v10903, 0.0
  %11071 = vadd.xlane.f32.xlu0 %v11070
  %v11072 = vpop.xlane.xlu0 %11071
  %v11073 = vsel %vm1642, %v10905, 0.0
  %11074 = vadd.xlane.f32.xlu0 %v11073
  %v11075 = vpop.xlane.xlu0 %11074
  %v11076 = vsel %vm1642, %v10907, 0.0
  %11077 = vadd.xlane.f32.xlu0 %v11076
  %v11078 = vpop.xlane.xlu0 %11077
  %v11079 = vsel %vm1642, %v10909, 0.0
  %11080 = vadd.xlane.f32.xlu0 %v11079
  %v11081 = vpop.xlane.xlu0 %11080
  %v11082 = vsel %vm1642, %v10911, 0.0
  %11083 = vadd.xlane.f32.xlu0 %v11082
  %v11084 = vpop.xlane.xlu0 %11083
  %v11085 = vsel %vm1642, %v10913, 0.0
  %11086 = vadd.xlane.f32.xlu0 %v11085
  %v11087 = vpop.xlane.xlu0 %11086
  %v11088 = vsel %vm1642, %v10915, 0.0
  %11089 = vadd.xlane.f32.xlu0 %v11088
  %v11090 = vpop.xlane.xlu0 %11089
  %v11091 = vsel %vm1642, %v10917, 0.0
  %11092 = vadd.xlane.f32.xlu0 %v11091
  %v11093 = vpop.xlane.xlu0 %11092
  %v11094 = vsel %vm1642, %v10919, 0.0
  %11095 = vadd.xlane.f32.xlu0 %v11094
  %v11096 = vpop.xlane.xlu0 %11095
  %v11097 = vsel %vm1642, %v10921, 0.0
  %11098 = vadd.xlane.f32.xlu0 %v11097
  %v11099 = vpop.xlane.xlu0 %11098
  %v11100 = vsel %vm1642, %v10923, 0.0
  %11101 = vadd.xlane.f32.xlu0 %v11100
  %v11102 = vpop.xlane.xlu0 %11101
  %v11103 = vsel %vm1642, %v10925, 0.0
  %11104 = vadd.xlane.f32.xlu0 %v11103
  %v11105 = vpop.xlane.xlu0 %11104
  %v11106 = vsel %vm1642, %v10927, 0.0
  %11107 = vadd.xlane.f32.xlu0 %v11106
  %v11108 = vpop.xlane.xlu0 %11107
  %v11109 = vsel %vm1642, %v10929, 0.0
  %11110 = vadd.xlane.f32.xlu0 %v11109
  %v11111 = vpop.xlane.xlu0 %11110
  %v11112 = vsel %vm1642, %v10931, 0.0
  %11113 = vadd.xlane.f32.xlu0 %v11112
  %v11114 = vpop.xlane.xlu0 %11113
  %v11115 = vsel %vm1642, %v10933, 0.0
  %11116 = vadd.xlane.f32.xlu0 %v11115
  %v11117 = vpop.xlane.xlu0 %11116
  %v11118 = vsel %vm1642, %v10935, 0.0
  %11119 = vadd.xlane.f32.xlu0 %v11118
  %v11120 = vpop.xlane.xlu0 %11119
  %v11121 = vsel %vm1642, %v10937, 0.0
  %11122 = vadd.xlane.f32.xlu0 %v11121
  %v11123 = vpop.xlane.xlu0 %11122
  %v11124 = vsel %vm1642, %v10939, 0.0
  %11125 = vadd.xlane.f32.xlu0 %v11124
  %v11126 = vpop.xlane.xlu0 %11125
  %v11127 = vsel %vm1642, %v10941, 0.0
  %11128 = vadd.xlane.f32.xlu0 %v11127
  %v11129 = vpop.xlane.xlu0 %11128
  %v11130 = vsel %vm1642, %v10943, 0.0
  %11131 = vadd.xlane.f32.xlu0 %v11130
  %v11132 = vpop.xlane.xlu0 %11131
  %v11133 = vsel %vm1642, %v10945, 0.0
  %11134 = vadd.xlane.f32.xlu0 %v11133
  %v11135 = vpop.xlane.xlu0 %11134
  %v11136 = vsel %vm1642, %v10947, 0.0
  %11137 = vadd.xlane.f32.xlu0 %v11136
  %v11138 = vpop.xlane.xlu0 %11137
  %v11139 = vsel %vm1642, %v10949, 0.0
  %11140 = vadd.xlane.f32.xlu0 %v11139
  %v11141 = vpop.xlane.xlu0 %11140
  %v11142 = vpack.c.bf16 %v10825, %v10823
  %v11143 = vpack.c.bf16 %v10829, %v10827
  %v11144 = vpack.c.bf16 %v10833, %v10831
  %v11145 = vpack.c.bf16 %v10837, %v10835
  %v11146 = vpack.c.bf16 %v10841, %v10839
  %v11147 = vpack.c.bf16 %v10845, %v10843
  %v11148 = vpack.c.bf16 %v10849, %v10847
  %v11149 = vpack.c.bf16 %v10853, %v10851
  %v11150 = vpack.c.bf16 %v10857, %v10855
  %v11151 = vpack.c.bf16 %v10861, %v10859
  %v11152 = vpack.c.bf16 %v10865, %v10863
  %v11153 = vpack.c.bf16 %v10869, %v10867
  %v11154 = vpack.c.bf16 %v10873, %v10871
  %v11155 = vpack.c.bf16 %v10877, %v10875
  %v11156 = vpack.c.bf16 %v10881, %v10879
  %v11157 = vpack.c.bf16 %v10885, %v10883
  %v11158 = vpack.c.bf16 %v10889, %v10887
  %v11159 = vpack.c.bf16 %v10893, %v10891
  %v11160 = vpack.c.bf16 %v10897, %v10895
  %v11161 = vpack.c.bf16 %v10901, %v10899
  %v11162 = vpack.c.bf16 %v10905, %v10903
  %v11163 = vpack.c.bf16 %v10909, %v10907
  %v11164 = vpack.c.bf16 %v10913, %v10911
  %v11165 = vpack.c.bf16 %v10917, %v10915
  %v11166 = vpack.c.bf16 %v10921, %v10919
  %v11167 = vpack.c.bf16 %v10925, %v10923
  %v11168 = vpack.c.bf16 %v10929, %v10927
  %v11169 = vpack.c.bf16 %v10933, %v10931
  %v11170 = vpack.c.bf16 %v10937, %v10935
  %v11171 = vpack.c.bf16 %v10941, %v10939
  %v11172 = vpack.c.bf16 %v10945, %v10943
  %v11173 = vpack.c.bf16 %v10949, %v10947
  %11174 = vrot.lane.b32.xlu0 %v9653, 40
  %v11175 = vpop.permute.xlu0 %11174
  %11176 = vrot.lane.b32.xlu0 %v9654, 40
  %v11177 = vpop.permute.xlu0 %11176
  %11178 = vrot.lane.b32.xlu0 %v9655, 40
  %v11179 = vpop.permute.xlu0 %11178
  %11180 = vrot.lane.b32.xlu0 %v9656, 40
  %v11181 = vpop.permute.xlu0 %11180
  %v11187 = vsel %vm1642, %v11142, 0
  %v11190 = vsel %vm1642, %v11143, 0
  %v11193 = vsel %vm1642, %v11144, 0
  %v11196 = vsel %vm1642, %v11145, 0
  %11198 = vmatprep.subr.bf16.mxu0 0
  %11199 = vmatpush1.bf16.msra.mxu0 %v11175
  %11200 = vmatprep.subr.bf16.mxu0 0
  %11201 = vmatpush1.bf16.msra.mxu0 %v11177
  %11202 = vmatprep.subr.bf16.mxu0 0
  %11203 = vmatpush1.bf16.msra.mxu0 %v11179
  %11204 = vmatprep.subr.bf16.mxu0 0
  %11205 = vmatpush1.bf16.msra.mxu0 %v11181
  %11206 = vmatprep.subr.bf16.mxu0 0
  %11207 = vmatpush1.bf16.msra.mxu0 0
  %11208 = vmatprep.subr.bf16.mxu0 0
  %11209 = vmatpush1.bf16.msra.mxu0 0
  %11210 = vmatprep.subr.bf16.mxu0 0
  %11211 = vmatpush1.bf16.msra.mxu0 0
  %11212 = vmatprep.subr.bf16.mxu0 0
  %11213 = vmatpush1.bf16.msra.mxu0 0
  %11214 = vmatprep.subr.bf16.mxu0 0
  %11215 = vmatpush1.bf16.msra.mxu0 0
  %11216 = vmatprep.subr.bf16.mxu0 0
  %11217 = vmatpush1.bf16.msra.mxu0 0
  %11218 = vmatprep.subr.bf16.mxu0 0
  %11219 = vmatpush1.bf16.msra.mxu0 0
  %11220 = vmatprep.subr.bf16.mxu0 0
  %11221 = vmatpush1.bf16.msra.mxu0 0
  %11222 = vmatprep.subr.bf16.mxu0 0
  %11223 = vmatpush1.bf16.msra.mxu0 0
  %11224 = vmatprep.subr.bf16.mxu0 0
  %11225 = vmatpush1.bf16.msra.mxu0 0
  %11226 = vmatprep.subr.bf16.mxu0 0
  %11227 = vmatpush1.bf16.msra.mxu0 0
  %11228 = vmatprep.subr.bf16.mxu0 0
  %11229 = vmatpush1.bf16.msra.mxu0 0
  %11230 = vmatprep.mubr.bf16.mxu0 0
  %11231 = vmatmul.mubr.bf16.gmra.mrb[0].mxu0 %v11187
  %v11232 = vpop.f32.mrb[0].mxu0
  %v11233 = vadd.f32 0.0, %v11232
  %v11234 = vpop.f32.mrb[0].mxu0
  %v11235 = vpop.f32.mrb[0].mxu0
  %v11236 = vadd.f32 0.0, %v11235
  %v11237 = vpop.f32.mrb[0].mxu0
  %11238 = vmatprep.mubr.bf16.mxu0 0
  %11239 = vmatmul.mubr.bf16.gmra.mrb[0].mxu0 %v11190
  %v11240 = vpop.f32.mrb[0].mxu0
  %v11241 = vadd.f32 0.0, %v11240
  %v11242 = vpop.f32.mrb[0].mxu0
  %v11243 = vpop.f32.mrb[0].mxu0
  %v11244 = vadd.f32 0.0, %v11243
  %v11245 = vpop.f32.mrb[0].mxu0
  %11246 = vmatprep.mubr.bf16.mxu0 0
  %11247 = vmatmul.mubr.bf16.gmra.mrb[0].mxu0 %v11193
  %v11248 = vpop.f32.mrb[0].mxu0
  %v11249 = vadd.f32 0.0, %v11248
  %v11250 = vpop.f32.mrb[0].mxu0
  %v11251 = vpop.f32.mrb[0].mxu0
  %v11252 = vadd.f32 0.0, %v11251
  %v11253 = vpop.f32.mrb[0].mxu0
  %11254 = vmatprep.mubr.bf16.mxu0 0
  %11255 = vmatmul.mubr.bf16.gmra.mrb[0].mxu0 %v11196
  %v11256 = vpop.f32.mrb[0].mxu0
  %v11257 = vadd.f32 0.0, %v11256
  %v11258 = vpop.f32.mrb[0].mxu0
  %v11259 = vpop.f32.mrb[0].mxu0
  %v11260 = vadd.f32 0.0, %v11259
  %v11261 = vpop.f32.mrb[0].mxu0
  %11262 = vdwg.mxu0
  %11263 = vrot.lane.b32.xlu0 %v9657, 40
  %v11264 = vpop.permute.xlu0 %11263
  %11265 = vrot.lane.b32.xlu0 %v9658, 40
  %v11266 = vpop.permute.xlu0 %11265
  %11267 = vrot.lane.b32.xlu0 %v9659, 40
  %v11268 = vpop.permute.xlu0 %11267
  %11269 = vrot.lane.b32.xlu0 %v9660, 40
  %v11270 = vpop.permute.xlu0 %11269
  %v11276 = vsel %vm1642, %v11146, 0
  %v11279 = vsel %vm1642, %v11147, 0
  %v11282 = vsel %vm1642, %v11148, 0
  %v11285 = vsel %vm1642, %v11149, 0
  %11287 = vmatprep.subr.bf16.mxu0 0
  %11288 = vmatpush1.bf16.msra.mxu0 %v11264
  %11289 = vmatprep.subr.bf16.mxu0 0
  %11290 = vmatpush1.bf16.msra.mxu0 %v11266
  %11291 = vmatprep.subr.bf16.mxu0 0
  %11292 = vmatpush1.bf16.msra.mxu0 %v11268
  %11293 = vmatprep.subr.bf16.mxu0 0
  %11294 = vmatpush1.bf16.msra.mxu0 %v11270
  %11295 = vmatprep.subr.bf16.mxu0 0
  %11296 = vmatpush1.bf16.msra.mxu0 0
  %11297 = vmatprep.subr.bf16.mxu0 0
  %11298 = vmatpush1.bf16.msra.mxu0 0
  %11299 = vmatprep.subr.bf16.mxu0 0
  %11300 = vmatpush1.bf16.msra.mxu0 0
  %11301 = vmatprep.subr.bf16.mxu0 0
  %11302 = vmatpush1.bf16.msra.mxu0 0
  %11303 = vmatprep.subr.bf16.mxu0 0
  %11304 = vmatpush1.bf16.msra.mxu0 0
  %11305 = vmatprep.subr.bf16.mxu0 0
  %11306 = vmatpush1.bf16.msra.mxu0 0
  %11307 = vmatprep.subr.bf16.mxu0 0
  %11308 = vmatpush1.bf16.msra.mxu0 0
  %11309 = vmatprep.subr.bf16.mxu0 0
  %11310 = vmatpush1.bf16.msra.mxu0 0
  %11311 = vmatprep.subr.bf16.mxu0 0
  %11312 = vmatpush1.bf16.msra.mxu0 0
  %11313 = vmatprep.subr.bf16.mxu0 0
  %11314 = vmatpush1.bf16.msra.mxu0 0
  %11315 = vmatprep.subr.bf16.mxu0 0
  %11316 = vmatpush1.bf16.msra.mxu0 0
  %11317 = vmatprep.subr.bf16.mxu0 0
  %11318 = vmatpush1.bf16.msra.mxu0 0
  %11319 = vmatprep.mubr.bf16.mxu0 0
  %11320 = vmatmul.mubr.bf16.gmra.mrb[0].mxu0 %v11276
  %v11321 = vpop.f32.mrb[0].mxu0
  %v11322 = vadd.f32 0.0, %v11321
  %v11323 = vpop.f32.mrb[0].mxu0
  %v11324 = vpop.f32.mrb[0].mxu0
  %v11325 = vadd.f32 0.0, %v11324
  %v11326 = vpop.f32.mrb[0].mxu0
  %11327 = vmatprep.mubr.bf16.mxu0 0
  %11328 = vmatmul.mubr.bf16.gmra.mrb[0].mxu0 %v11279
  %v11329 = vpop.f32.mrb[0].mxu0
  %v11330 = vadd.f32 0.0, %v11329
  %v11331 = vpop.f32.mrb[0].mxu0
  %v11332 = vpop.f32.mrb[0].mxu0
  %v11333 = vadd.f32 0.0, %v11332
  %v11334 = vpop.f32.mrb[0].mxu0
  %11335 = vmatprep.mubr.bf16.mxu0 0
  %11336 = vmatmul.mubr.bf16.gmra.mrb[0].mxu0 %v11282
  %v11337 = vpop.f32.mrb[0].mxu0
  %v11338 = vadd.f32 0.0, %v11337
  %v11339 = vpop.f32.mrb[0].mxu0
  %v11340 = vpop.f32.mrb[0].mxu0
  %v11341 = vadd.f32 0.0, %v11340
  %v11342 = vpop.f32.mrb[0].mxu0
  %11343 = vmatprep.mubr.bf16.mxu0 0
  %11344 = vmatmul.mubr.bf16.gmra.mrb[0].mxu0 %v11285
  %v11345 = vpop.f32.mrb[0].mxu0
  %v11346 = vadd.f32 0.0, %v11345
  %v11347 = vpop.f32.mrb[0].mxu0
  %v11348 = vpop.f32.mrb[0].mxu0
  %v11349 = vadd.f32 0.0, %v11348
  %v11350 = vpop.f32.mrb[0].mxu0
  %11351 = vdwg.mxu0
  %11352 = vrot.lane.b32.xlu0 %v9661, 40
  %v11353 = vpop.permute.xlu0 %11352
  %11354 = vrot.lane.b32.xlu0 %v9662, 40
  %v11355 = vpop.permute.xlu0 %11354
  %11356 = vrot.lane.b32.xlu0 %v9663, 40
  %v11357 = vpop.permute.xlu0 %11356
  %11358 = vrot.lane.b32.xlu0 %v9664, 40
  %v11359 = vpop.permute.xlu0 %11358
  %v11365 = vsel %vm1642, %v11150, 0
  %v11368 = vsel %vm1642, %v11151, 0
  %v11371 = vsel %vm1642, %v11152, 0
  %v11374 = vsel %vm1642, %v11153, 0
  %11376 = vmatprep.subr.bf16.mxu0 0
  %11377 = vmatpush1.bf16.msra.mxu0 %v11353
  %11378 = vmatprep.subr.bf16.mxu0 0
  %11379 = vmatpush1.bf16.msra.mxu0 %v11355
  %11380 = vmatprep.subr.bf16.mxu0 0
  %11381 = vmatpush1.bf16.msra.mxu0 %v11357
  %11382 = vmatprep.subr.bf16.mxu0 0
  %11383 = vmatpush1.bf16.msra.mxu0 %v11359
  %11384 = vmatprep.subr.bf16.mxu0 0
  %11385 = vmatpush1.bf16.msra.mxu0 0
  %11386 = vmatprep.subr.bf16.mxu0 0
  %11387 = vmatpush1.bf16.msra.mxu0 0
  %11388 = vmatprep.subr.bf16.mxu0 0
  %11389 = vmatpush1.bf16.msra.mxu0 0
  %11390 = vmatprep.subr.bf16.mxu0 0
  %11391 = vmatpush1.bf16.msra.mxu0 0
  %11392 = vmatprep.subr.bf16.mxu0 0
  %11393 = vmatpush1.bf16.msra.mxu0 0
  %11394 = vmatprep.subr.bf16.mxu0 0
  %11395 = vmatpush1.bf16.msra.mxu0 0
  %11396 = vmatprep.subr.bf16.mxu0 0
  %11397 = vmatpush1.bf16.msra.mxu0 0
  %11398 = vmatprep.subr.bf16.mxu0 0
  %11399 = vmatpush1.bf16.msra.mxu0 0
  %11400 = vmatprep.subr.bf16.mxu0 0
  %11401 = vmatpush1.bf16.msra.mxu0 0
  %11402 = vmatprep.subr.bf16.mxu0 0
  %11403 = vmatpush1.bf16.msra.mxu0 0
  %11404 = vmatprep.subr.bf16.mxu0 0
  %11405 = vmatpush1.bf16.msra.mxu0 0
  %11406 = vmatprep.subr.bf16.mxu0 0
  %11407 = vmatpush1.bf16.msra.mxu0 0
  %11408 = vmatprep.mubr.bf16.mxu0 0
  %11409 = vmatmul.mubr.bf16.gmra.mrb[0].mxu0 %v11365
  %v11410 = vpop.f32.mrb[0].mxu0
  %v11411 = vadd.f32 0.0, %v11410
  %v11412 = vpop.f32.mrb[0].mxu0
  %v11413 = vpop.f32.mrb[0].mxu0
  %v11414 = vadd.f32 0.0, %v11413
  %v11415 = vpop.f32.mrb[0].mxu0
  %11416 = vmatprep.mubr.bf16.mxu0 0
  %11417 = vmatmul.mubr.bf16.gmra.mrb[0].mxu0 %v11368
  %v11418 = vpop.f32.mrb[0].mxu0
  %v11419 = vadd.f32 0.0, %v11418
  %v11420 = vpop.f32.mrb[0].mxu0
  %v11421 = vpop.f32.mrb[0].mxu0
  %v11422 = vadd.f32 0.0, %v11421
  %v11423 = vpop.f32.mrb[0].mxu0
  %11424 = vmatprep.mubr.bf16.mxu0 0
  %11425 = vmatmul.mubr.bf16.gmra.mrb[0].mxu0 %v11371
  %v11426 = vpop.f32.mrb[0].mxu0
  %v11427 = vadd.f32 0.0, %v11426
  %v11428 = vpop.f32.mrb[0].mxu0
  %v11429 = vpop.f32.mrb[0].mxu0
  %v11430 = vadd.f32 0.0, %v11429
  %v11431 = vpop.f32.mrb[0].mxu0
  %11432 = vmatprep.mubr.bf16.mxu0 0
  %11433 = vmatmul.mubr.bf16.gmra.mrb[0].mxu0 %v11374
  %v11434 = vpop.f32.mrb[0].mxu0
  %v11435 = vadd.f32 0.0, %v11434
  %v11436 = vpop.f32.mrb[0].mxu0
  %v11437 = vpop.f32.mrb[0].mxu0
  %v11438 = vadd.f32 0.0, %v11437
  %v11439 = vpop.f32.mrb[0].mxu0
  %11440 = vdwg.mxu0
  %11441 = vrot.lane.b32.xlu0 %v9665, 40
  %v11442 = vpop.permute.xlu0 %11441
  %11443 = vrot.lane.b32.xlu0 %v9666, 40
  %v11444 = vpop.permute.xlu0 %11443
  %11445 = vrot.lane.b32.xlu0 %v9667, 40
  %v11446 = vpop.permute.xlu0 %11445
  %11447 = vrot.lane.b32.xlu0 %v9668, 40
  %v11448 = vpop.permute.xlu0 %11447
  %v11454 = vsel %vm1642, %v11154, 0
  %v11457 = vsel %vm1642, %v11155, 0
  %v11460 = vsel %vm1642, %v11156, 0
  %v11463 = vsel %vm1642, %v11157, 0
  %11465 = vmatprep.subr.bf16.mxu0 0
  %11466 = vmatpush1.bf16.msra.mxu0 %v11442
  %11467 = vmatprep.subr.bf16.mxu0 0
  %11468 = vmatpush1.bf16.msra.mxu0 %v11444
  %11469 = vmatprep.subr.bf16.mxu0 0
  %11470 = vmatpush1.bf16.msra.mxu0 %v11446
  %11471 = vmatprep.subr.bf16.mxu0 0
  %11472 = vmatpush1.bf16.msra.mxu0 %v11448
  %11473 = vmatprep.subr.bf16.mxu0 0
  %11474 = vmatpush1.bf16.msra.mxu0 0
  %11475 = vmatprep.subr.bf16.mxu0 0
  %11476 = vmatpush1.bf16.msra.mxu0 0
  %11477 = vmatprep.subr.bf16.mxu0 0
  %11478 = vmatpush1.bf16.msra.mxu0 0
  %11479 = vmatprep.subr.bf16.mxu0 0
  %11480 = vmatpush1.bf16.msra.mxu0 0
  %11481 = vmatprep.subr.bf16.mxu0 0
  %11482 = vmatpush1.bf16.msra.mxu0 0
  %11483 = vmatprep.subr.bf16.mxu0 0
  %11484 = vmatpush1.bf16.msra.mxu0 0
  %11485 = vmatprep.subr.bf16.mxu0 0
  %11486 = vmatpush1.bf16.msra.mxu0 0
  %11487 = vmatprep.subr.bf16.mxu0 0
  %11488 = vmatpush1.bf16.msra.mxu0 0
  %11489 = vmatprep.subr.bf16.mxu0 0
  %11490 = vmatpush1.bf16.msra.mxu0 0
  %11491 = vmatprep.subr.bf16.mxu0 0
  %11492 = vmatpush1.bf16.msra.mxu0 0
  %11493 = vmatprep.subr.bf16.mxu0 0
  %11494 = vmatpush1.bf16.msra.mxu0 0
  %11495 = vmatprep.subr.bf16.mxu0 0
  %11496 = vmatpush1.bf16.msra.mxu0 0
  %11497 = vmatprep.mubr.bf16.mxu0 0
  %11498 = vmatmul.mubr.bf16.gmra.mrb[0].mxu0 %v11454
  %v11499 = vpop.f32.mrb[0].mxu0
  %v11500 = vadd.f32 0.0, %v11499
  %v11501 = vpop.f32.mrb[0].mxu0
  %v11502 = vpop.f32.mrb[0].mxu0
  %v11503 = vadd.f32 0.0, %v11502
  %v11504 = vpop.f32.mrb[0].mxu0
  %11505 = vmatprep.mubr.bf16.mxu0 0
  %11506 = vmatmul.mubr.bf16.gmra.mrb[0].mxu0 %v11457
  %v11507 = vpop.f32.mrb[0].mxu0
  %v11508 = vadd.f32 0.0, %v11507
  %v11509 = vpop.f32.mrb[0].mxu0
  %v11510 = vpop.f32.mrb[0].mxu0
  %v11511 = vadd.f32 0.0, %v11510
  %v11512 = vpop.f32.mrb[0].mxu0
  %11513 = vmatprep.mubr.bf16.mxu0 0
  %11514 = vmatmul.mubr.bf16.gmra.mrb[0].mxu0 %v11460
  %v11515 = vpop.f32.mrb[0].mxu0
  %v11516 = vadd.f32 0.0, %v11515
  %v11517 = vpop.f32.mrb[0].mxu0
  %v11518 = vpop.f32.mrb[0].mxu0
  %v11519 = vadd.f32 0.0, %v11518
  %v11520 = vpop.f32.mrb[0].mxu0
  %11521 = vmatprep.mubr.bf16.mxu0 0
  %11522 = vmatmul.mubr.bf16.gmra.mrb[0].mxu0 %v11463
  %v11523 = vpop.f32.mrb[0].mxu0
  %v11524 = vadd.f32 0.0, %v11523
  %v11525 = vpop.f32.mrb[0].mxu0
  %v11526 = vpop.f32.mrb[0].mxu0
  %v11527 = vadd.f32 0.0, %v11526
  %v11528 = vpop.f32.mrb[0].mxu0
  %11529 = vdwg.mxu0
  %11530 = vrot.lane.b32.xlu0 %v9669, 40
  %v11531 = vpop.permute.xlu0 %11530
  %11532 = vrot.lane.b32.xlu0 %v9670, 40
  %v11533 = vpop.permute.xlu0 %11532
  %11534 = vrot.lane.b32.xlu0 %v9671, 40
  %v11535 = vpop.permute.xlu0 %11534
  %11536 = vrot.lane.b32.xlu0 %v9672, 40
  %v11537 = vpop.permute.xlu0 %11536
  %v11543 = vsel %vm1642, %v11158, 0
  %v11546 = vsel %vm1642, %v11159, 0
  %v11549 = vsel %vm1642, %v11160, 0
  %v11552 = vsel %vm1642, %v11161, 0
  %11554 = vmatprep.subr.bf16.mxu0 0
  %11555 = vmatpush1.bf16.msra.mxu0 %v11531
  %11556 = vmatprep.subr.bf16.mxu0 0
  %11557 = vmatpush1.bf16.msra.mxu0 %v11533
  %11558 = vmatprep.subr.bf16.mxu0 0
  %11559 = vmatpush1.bf16.msra.mxu0 %v11535
  %11560 = vmatprep.subr.bf16.mxu0 0
  %11561 = vmatpush1.bf16.msra.mxu0 %v11537
  %11562 = vmatprep.subr.bf16.mxu0 0
  %11563 = vmatpush1.bf16.msra.mxu0 0
  %11564 = vmatprep.subr.bf16.mxu0 0
  %11565 = vmatpush1.bf16.msra.mxu0 0
  %11566 = vmatprep.subr.bf16.mxu0 0
  %11567 = vmatpush1.bf16.msra.mxu0 0
  %11568 = vmatprep.subr.bf16.mxu0 0
  %11569 = vmatpush1.bf16.msra.mxu0 0
  %11570 = vmatprep.subr.bf16.mxu0 0
  %11571 = vmatpush1.bf16.msra.mxu0 0
  %11572 = vmatprep.subr.bf16.mxu0 0
  %11573 = vmatpush1.bf16.msra.mxu0 0
  %11574 = vmatprep.subr.bf16.mxu0 0
  %11575 = vmatpush1.bf16.msra.mxu0 0
  %11576 = vmatprep.subr.bf16.mxu0 0
  %11577 = vmatpush1.bf16.msra.mxu0 0
  %11578 = vmatprep.subr.bf16.mxu0 0
  %11579 = vmatpush1.bf16.msra.mxu0 0
  %11580 = vmatprep.subr.bf16.mxu0 0
  %11581 = vmatpush1.bf16.msra.mxu0 0
  %11582 = vmatprep.subr.bf16.mxu0 0
  %11583 = vmatpush1.bf16.msra.mxu0 0
  %11584 = vmatprep.subr.bf16.mxu0 0
  %11585 = vmatpush1.bf16.msra.mxu0 0
  %11586 = vmatprep.mubr.bf16.mxu0 0
  %11587 = vmatmul.mubr.bf16.gmra.mrb[0].mxu0 %v11543
  %v11588 = vpop.f32.mrb[0].mxu0
  %v11589 = vadd.f32 0.0, %v11588
  %v11590 = vpop.f32.mrb[0].mxu0
  %v11591 = vpop.f32.mrb[0].mxu0
  %v11592 = vadd.f32 0.0, %v11591
  %v11593 = vpop.f32.mrb[0].mxu0
  %11594 = vmatprep.mubr.bf16.mxu0 0
  %11595 = vmatmul.mubr.bf16.gmra.mrb[0].mxu0 %v11546
  %v11596 = vpop.f32.mrb[0].mxu0
  %v11597 = vadd.f32 0.0, %v11596
  %v11598 = vpop.f32.mrb[0].mxu0
  %v11599 = vpop.f32.mrb[0].mxu0
  %v11600 = vadd.f32 0.0, %v11599
  %v11601 = vpop.f32.mrb[0].mxu0
  %11602 = vmatprep.mubr.bf16.mxu0 0
  %11603 = vmatmul.mubr.bf16.gmra.mrb[0].mxu0 %v11549
  %v11604 = vpop.f32.mrb[0].mxu0
  %v11605 = vadd.f32 0.0, %v11604
  %v11606 = vpop.f32.mrb[0].mxu0
  %v11607 = vpop.f32.mrb[0].mxu0
  %v11608 = vadd.f32 0.0, %v11607
  %v11609 = vpop.f32.mrb[0].mxu0
  %11610 = vmatprep.mubr.bf16.mxu0 0
  %11611 = vmatmul.mubr.bf16.gmra.mrb[0].mxu0 %v11552
  %v11612 = vpop.f32.mrb[0].mxu0
  %v11613 = vadd.f32 0.0, %v11612
  %v11614 = vpop.f32.mrb[0].mxu0
  %v11615 = vpop.f32.mrb[0].mxu0
  %v11616 = vadd.f32 0.0, %v11615
  %v11617 = vpop.f32.mrb[0].mxu0
  %11618 = vdwg.mxu0
  %11619 = vrot.lane.b32.xlu0 %v9673, 40
  %v11620 = vpop.permute.xlu0 %11619
  %11621 = vrot.lane.b32.xlu0 %v9674, 40
  %v11622 = vpop.permute.xlu0 %11621
  %11623 = vrot.lane.b32.xlu0 %v9675, 40
  %v11624 = vpop.permute.xlu0 %11623
  %11625 = vrot.lane.b32.xlu0 %v9676, 40
  %v11626 = vpop.permute.xlu0 %11625
  %v11632 = vsel %vm1642, %v11162, 0
  %v11635 = vsel %vm1642, %v11163, 0
  %v11638 = vsel %vm1642, %v11164, 0
  %v11641 = vsel %vm1642, %v11165, 0
  %11643 = vmatprep.subr.bf16.mxu0 0
  %11644 = vmatpush1.bf16.msra.mxu0 %v11620
  %11645 = vmatprep.subr.bf16.mxu0 0
  %11646 = vmatpush1.bf16.msra.mxu0 %v11622
  %11647 = vmatprep.subr.bf16.mxu0 0
  %11648 = vmatpush1.bf16.msra.mxu0 %v11624
  %11649 = vmatprep.subr.bf16.mxu0 0
  %11650 = vmatpush1.bf16.msra.mxu0 %v11626
  %11651 = vmatprep.subr.bf16.mxu0 0
  %11652 = vmatpush1.bf16.msra.mxu0 0
  %11653 = vmatprep.subr.bf16.mxu0 0
  %11654 = vmatpush1.bf16.msra.mxu0 0
  %11655 = vmatprep.subr.bf16.mxu0 0
  %11656 = vmatpush1.bf16.msra.mxu0 0
  %11657 = vmatprep.subr.bf16.mxu0 0
  %11658 = vmatpush1.bf16.msra.mxu0 0
  %11659 = vmatprep.subr.bf16.mxu0 0
  %11660 = vmatpush1.bf16.msra.mxu0 0
  %11661 = vmatprep.subr.bf16.mxu0 0
  %11662 = vmatpush1.bf16.msra.mxu0 0
  %11663 = vmatprep.subr.bf16.mxu0 0
  %11664 = vmatpush1.bf16.msra.mxu0 0
  %11665 = vmatprep.subr.bf16.mxu0 0
  %11666 = vmatpush1.bf16.msra.mxu0 0
  %11667 = vmatprep.subr.bf16.mxu0 0
  %11668 = vmatpush1.bf16.msra.mxu0 0
  %11669 = vmatprep.subr.bf16.mxu0 0
  %11670 = vmatpush1.bf16.msra.mxu0 0
  %11671 = vmatprep.subr.bf16.mxu0 0
  %11672 = vmatpush1.bf16.msra.mxu0 0
  %11673 = vmatprep.subr.bf16.mxu0 0
  %11674 = vmatpush1.bf16.msra.mxu0 0
  %11675 = vmatprep.mubr.bf16.mxu0 0
  %11676 = vmatmul.mubr.bf16.gmra.mrb[0].mxu0 %v11632
  %v11677 = vpop.f32.mrb[0].mxu0
  %v11678 = vadd.f32 0.0, %v11677
  %v11679 = vpop.f32.mrb[0].mxu0
  %v11680 = vpop.f32.mrb[0].mxu0
  %v11681 = vadd.f32 0.0, %v11680
  %v11682 = vpop.f32.mrb[0].mxu0
  %11683 = vmatprep.mubr.bf16.mxu0 0
  %11684 = vmatmul.mubr.bf16.gmra.mrb[0].mxu0 %v11635
  %v11685 = vpop.f32.mrb[0].mxu0
  %v11686 = vadd.f32 0.0, %v11685
  %v11687 = vpop.f32.mrb[0].mxu0
  %v11688 = vpop.f32.mrb[0].mxu0
  %v11689 = vadd.f32 0.0, %v11688
  %v11690 = vpop.f32.mrb[0].mxu0
  %11691 = vmatprep.mubr.bf16.mxu0 0
  %11692 = vmatmul.mubr.bf16.gmra.mrb[0].mxu0 %v11638
  %v11693 = vpop.f32.mrb[0].mxu0
  %v11694 = vadd.f32 0.0, %v11693
  %v11695 = vpop.f32.mrb[0].mxu0
  %v11696 = vpop.f32.mrb[0].mxu0
  %v11697 = vadd.f32 0.0, %v11696
  %v11698 = vpop.f32.mrb[0].mxu0
  %11699 = vmatprep.mubr.bf16.mxu0 0
  %11700 = vmatmul.mubr.bf16.gmra.mrb[0].mxu0 %v11641
  %v11701 = vpop.f32.mrb[0].mxu0
  %v11702 = vadd.f32 0.0, %v11701
  %v11703 = vpop.f32.mrb[0].mxu0
  %v11704 = vpop.f32.mrb[0].mxu0
  %v11705 = vadd.f32 0.0, %v11704
  %v11706 = vpop.f32.mrb[0].mxu0
  %11707 = vdwg.mxu0
  %11708 = vrot.lane.b32.xlu0 %v9677, 40
  %v11709 = vpop.permute.xlu0 %11708
  %11710 = vrot.lane.b32.xlu0 %v9678, 40
  %v11711 = vpop.permute.xlu0 %11710
  %11712 = vrot.lane.b32.xlu0 %v9679, 40
  %v11713 = vpop.permute.xlu0 %11712
  %11714 = vrot.lane.b32.xlu0 %v9680, 40
  %v11715 = vpop.permute.xlu0 %11714
  %v11721 = vsel %vm1642, %v11166, 0
  %v11724 = vsel %vm1642, %v11167, 0
  %v11727 = vsel %vm1642, %v11168, 0
  %v11730 = vsel %vm1642, %v11169, 0
  %11732 = vmatprep.subr.bf16.mxu0 0
  %11733 = vmatpush1.bf16.msra.mxu0 %v11709
  %11734 = vmatprep.subr.bf16.mxu0 0
  %11735 = vmatpush1.bf16.msra.mxu0 %v11711
  %11736 = vmatprep.subr.bf16.mxu0 0
  %11737 = vmatpush1.bf16.msra.mxu0 %v11713
  %11738 = vmatprep.subr.bf16.mxu0 0
  %11739 = vmatpush1.bf16.msra.mxu0 %v11715
  %11740 = vmatprep.subr.bf16.mxu0 0
  %11741 = vmatpush1.bf16.msra.mxu0 0
  %11742 = vmatprep.subr.bf16.mxu0 0
  %11743 = vmatpush1.bf16.msra.mxu0 0
  %11744 = vmatprep.subr.bf16.mxu0 0
  %11745 = vmatpush1.bf16.msra.mxu0 0
  %11746 = vmatprep.subr.bf16.mxu0 0
  %11747 = vmatpush1.bf16.msra.mxu0 0
  %11748 = vmatprep.subr.bf16.mxu0 0
  %11749 = vmatpush1.bf16.msra.mxu0 0
  %11750 = vmatprep.subr.bf16.mxu0 0
  %11751 = vmatpush1.bf16.msra.mxu0 0
  %11752 = vmatprep.subr.bf16.mxu0 0
  %11753 = vmatpush1.bf16.msra.mxu0 0
  %11754 = vmatprep.subr.bf16.mxu0 0
  %11755 = vmatpush1.bf16.msra.mxu0 0
  %11756 = vmatprep.subr.bf16.mxu0 0
  %11757 = vmatpush1.bf16.msra.mxu0 0
  %11758 = vmatprep.subr.bf16.mxu0 0
  %11759 = vmatpush1.bf16.msra.mxu0 0
  %11760 = vmatprep.subr.bf16.mxu0 0
  %11761 = vmatpush1.bf16.msra.mxu0 0
  %11762 = vmatprep.subr.bf16.mxu0 0
  %11763 = vmatpush1.bf16.msra.mxu0 0
  %11764 = vmatprep.mubr.bf16.mxu0 0
  %11765 = vmatmul.mubr.bf16.gmra.mrb[0].mxu0 %v11721
  %v11766 = vpop.f32.mrb[0].mxu0
  %v11767 = vadd.f32 0.0, %v11766
  %v11768 = vpop.f32.mrb[0].mxu0
  %v11769 = vpop.f32.mrb[0].mxu0
  %v11770 = vadd.f32 0.0, %v11769
  %v11771 = vpop.f32.mrb[0].mxu0
  %11772 = vmatprep.mubr.bf16.mxu0 0
  %11773 = vmatmul.mubr.bf16.gmra.mrb[0].mxu0 %v11724
  %v11774 = vpop.f32.mrb[0].mxu0
  %v11775 = vadd.f32 0.0, %v11774
  %v11776 = vpop.f32.mrb[0].mxu0
  %v11777 = vpop.f32.mrb[0].mxu0
  %v11778 = vadd.f32 0.0, %v11777
  %v11779 = vpop.f32.mrb[0].mxu0
  %11780 = vmatprep.mubr.bf16.mxu0 0
  %11781 = vmatmul.mubr.bf16.gmra.mrb[0].mxu0 %v11727
  %v11782 = vpop.f32.mrb[0].mxu0
  %v11783 = vadd.f32 0.0, %v11782
  %v11784 = vpop.f32.mrb[0].mxu0
  %v11785 = vpop.f32.mrb[0].mxu0
  %v11786 = vadd.f32 0.0, %v11785
  %v11787 = vpop.f32.mrb[0].mxu0
  %11788 = vmatprep.mubr.bf16.mxu0 0
  %11789 = vmatmul.mubr.bf16.gmra.mrb[0].mxu0 %v11730
  %v11790 = vpop.f32.mrb[0].mxu0
  %v11791 = vadd.f32 0.0, %v11790
  %v11792 = vpop.f32.mrb[0].mxu0
  %v11793 = vpop.f32.mrb[0].mxu0
  %v11794 = vadd.f32 0.0, %v11793
  %v11795 = vpop.f32.mrb[0].mxu0
  %11796 = vdwg.mxu0
  %11797 = vrot.lane.b32.xlu0 %v9681, 40
  %v11798 = vpop.permute.xlu0 %11797
  %11799 = vrot.lane.b32.xlu0 %v9682, 40
  %v11800 = vpop.permute.xlu0 %11799
  %11801 = vrot.lane.b32.xlu0 %v9683, 40
  %v11802 = vpop.permute.xlu0 %11801
  %11803 = vrot.lane.b32.xlu0 %v9684, 40
  %v11804 = vpop.permute.xlu0 %11803
  %v11810 = vsel %vm1642, %v11170, 0
  %v11813 = vsel %vm1642, %v11171, 0
  %v11816 = vsel %vm1642, %v11172, 0
  %v11819 = vsel %vm1642, %v11173, 0
  %11821 = vmatprep.subr.bf16.mxu0 0
  %11822 = vmatpush1.bf16.msra.mxu0 %v11798
  %11823 = vmatprep.subr.bf16.mxu0 0
  %11824 = vmatpush1.bf16.msra.mxu0 %v11800
  %11825 = vmatprep.subr.bf16.mxu0 0
  %11826 = vmatpush1.bf16.msra.mxu0 %v11802
  %11827 = vmatprep.subr.bf16.mxu0 0
  %11828 = vmatpush1.bf16.msra.mxu0 %v11804
  %11829 = vmatprep.subr.bf16.mxu0 0
  %11830 = vmatpush1.bf16.msra.mxu0 0
  %11831 = vmatprep.subr.bf16.mxu0 0
  %11832 = vmatpush1.bf16.msra.mxu0 0
  %11833 = vmatprep.subr.bf16.mxu0 0
  %11834 = vmatpush1.bf16.msra.mxu0 0
  %11835 = vmatprep.subr.bf16.mxu0 0
  %11836 = vmatpush1.bf16.msra.mxu0 0
  %11837 = vmatprep.subr.bf16.mxu0 0
  %11838 = vmatpush1.bf16.msra.mxu0 0
  %11839 = vmatprep.subr.bf16.mxu0 0
  %11840 = vmatpush1.bf16.msra.mxu0 0
  %11841 = vmatprep.subr.bf16.mxu0 0
  %11842 = vmatpush1.bf16.msra.mxu0 0
  %11843 = vmatprep.subr.bf16.mxu0 0
  %11844 = vmatpush1.bf16.msra.mxu0 0
  %11845 = vmatprep.subr.bf16.mxu0 0
  %11846 = vmatpush1.bf16.msra.mxu0 0
  %11847 = vmatprep.subr.bf16.mxu0 0
  %11848 = vmatpush1.bf16.msra.mxu0 0
  %11849 = vmatprep.subr.bf16.mxu0 0
  %11850 = vmatpush1.bf16.msra.mxu0 0
  %11851 = vmatprep.subr.bf16.mxu0 0
  %11852 = vmatpush1.bf16.msra.mxu0 0
  %11853 = vmatprep.mubr.bf16.mxu0 0
  %11854 = vmatmul.mubr.bf16.gmra.mrb[0].mxu0 %v11810
  %v11855 = vpop.f32.mrb[0].mxu0
  %v11856 = vadd.f32 0.0, %v11855
  %v11857 = vpop.f32.mrb[0].mxu0
  %v11858 = vpop.f32.mrb[0].mxu0
  %v11859 = vadd.f32 0.0, %v11858
  %v11860 = vpop.f32.mrb[0].mxu0
  %11861 = vmatprep.mubr.bf16.mxu0 0
  %11862 = vmatmul.mubr.bf16.gmra.mrb[0].mxu0 %v11813
  %v11863 = vpop.f32.mrb[0].mxu0
  %v11864 = vadd.f32 0.0, %v11863
  %v11865 = vpop.f32.mrb[0].mxu0
  %v11866 = vpop.f32.mrb[0].mxu0
  %v11867 = vadd.f32 0.0, %v11866
  %v11868 = vpop.f32.mrb[0].mxu0
  %11869 = vmatprep.mubr.bf16.mxu0 0
  %11870 = vmatmul.mubr.bf16.gmra.mrb[0].mxu0 %v11816
  %v11871 = vpop.f32.mrb[0].mxu0
  %v11872 = vadd.f32 0.0, %v11871
  %v11873 = vpop.f32.mrb[0].mxu0
  %v11874 = vpop.f32.mrb[0].mxu0
  %v11875 = vadd.f32 0.0, %v11874
  %v11876 = vpop.f32.mrb[0].mxu0
  %11877 = vmatprep.mubr.bf16.mxu0 0
  %11878 = vmatmul.mubr.bf16.gmra.mrb[0].mxu0 %v11819
  %v11879 = vpop.f32.mrb[0].mxu0
  %v11880 = vadd.f32 0.0, %v11879
  %v11881 = vpop.f32.mrb[0].mxu0
  %v11882 = vpop.f32.mrb[0].mxu0
  %v11883 = vadd.f32 0.0, %v11882
  %v11884 = vpop.f32.mrb[0].mxu0
  %11885 = vdwg.mxu0
  %v11886 = vrcp.pop %v10952
  %v11887 = vrcp.pop %v10955
  %v11888 = vrcp.pop %v10958
  %v11889 = vrcp.pop %v10961
  %v11890 = vrcp.pop %v10964
  %v11891 = vrcp.pop %v10967
  %v11892 = vrcp.pop %v10970
  %v11893 = vrcp.pop %v10973
  %v11894 = vrcp.pop %v10976
  %v11895 = vrcp.pop %v10979
  %v11896 = vrcp.pop %v10982
  %v11897 = vrcp.pop %v10985
  %v11898 = vrcp.pop %v10988
  %v11899 = vrcp.pop %v10991
  %v11900 = vrcp.pop %v10994
  %v11901 = vrcp.pop %v10997
  %v11902 = vrcp.pop %v11000
  %v11903 = vrcp.pop %v11003
  %v11904 = vrcp.pop %v11006
  %v11905 = vrcp.pop %v11009
  %v11906 = vrcp.pop %v11012
  %v11907 = vrcp.pop %v11015
  %v11908 = vrcp.pop %v11018
  %v11909 = vrcp.pop %v11021
  %v11910 = vrcp.pop %v11024
  %v11911 = vrcp.pop %v11027
  %v11912 = vrcp.pop %v11030
  %v11913 = vrcp.pop %v11033
  %v11914 = vrcp.pop %v11036
  %v11915 = vrcp.pop %v11039
  %v11916 = vrcp.pop %v11042
  %v11917 = vrcp.pop %v11045
  %v11918 = vrcp.pop %v11048
  %v11919 = vrcp.pop %v11051
  %v11920 = vrcp.pop %v11054
  %v11921 = vrcp.pop %v11057
  %v11922 = vrcp.pop %v11060
  %v11923 = vrcp.pop %v11063
  %v11924 = vrcp.pop %v11066
  %v11925 = vrcp.pop %v11069
  %v11926 = vrcp.pop %v11072
  %v11927 = vrcp.pop %v11075
  %v11928 = vrcp.pop %v11078
  %v11929 = vrcp.pop %v11081
  %v11930 = vrcp.pop %v11084
  %v11931 = vrcp.pop %v11087
  %v11932 = vrcp.pop %v11090
  %v11933 = vrcp.pop %v11093
  %v11934 = vrcp.pop %v11096
  %v11935 = vrcp.pop %v11099
  %v11936 = vrcp.pop %v11102
  %v11937 = vrcp.pop %v11105
  %v11938 = vrcp.pop %v11108
  %v11939 = vrcp.pop %v11111
  %v11940 = vrcp.pop %v11114
  %v11941 = vrcp.pop %v11117
  %v11942 = vrcp.pop %v11120
  %v11943 = vrcp.pop %v11123
  %v11944 = vrcp.pop %v11126
  %v11945 = vrcp.pop %v11129
  %v11946 = vrcp.pop %v11132
  %v11947 = vrcp.pop %v11135
  %v11948 = vrcp.pop %v11138
  %v11949 = vrcp.pop %v11141
  %v11950 = vmul.f32 %v11233, %v11886
  %v11951 = vmul.f32 %v11236, %v11887
  %v11952 = vmul.f32 %v11241, %v11888
  %v11953 = vmul.f32 %v11244, %v11889
  %v11954 = vmul.f32 %v11249, %v11890
  %v11955 = vmul.f32 %v11252, %v11891
  %v11956 = vmul.f32 %v11257, %v11892
  %v11957 = vmul.f32 %v11260, %v11893
  %v11958 = vmul.f32 %v11322, %v11894
  %v11959 = vmul.f32 %v11325, %v11895
  %v11960 = vmul.f32 %v11330, %v11896
  %v11961 = vmul.f32 %v11333, %v11897
  %v11962 = vmul.f32 %v11338, %v11898
  %v11963 = vmul.f32 %v11341, %v11899
  %v11964 = vmul.f32 %v11346, %v11900
  %v11965 = vmul.f32 %v11349, %v11901
  %v11966 = vmul.f32 %v11411, %v11902
  %v11967 = vmul.f32 %v11414, %v11903
  %v11968 = vmul.f32 %v11419, %v11904
  %v11969 = vmul.f32 %v11422, %v11905
  %v11970 = vmul.f32 %v11427, %v11906
  %v11971 = vmul.f32 %v11430, %v11907
  %v11972 = vmul.f32 %v11435, %v11908
  %v11973 = vmul.f32 %v11438, %v11909
  %v11974 = vmul.f32 %v11500, %v11910
  %v11975 = vmul.f32 %v11503, %v11911
  %v11976 = vmul.f32 %v11508, %v11912
  %v11977 = vmul.f32 %v11511, %v11913
  %v11978 = vmul.f32 %v11516, %v11914
  %v11979 = vmul.f32 %v11519, %v11915
  %v11980 = vmul.f32 %v11524, %v11916
  %v11981 = vmul.f32 %v11527, %v11917
  %v11982 = vmul.f32 %v11589, %v11918
  %v11983 = vmul.f32 %v11592, %v11919
  %v11984 = vmul.f32 %v11597, %v11920
  %v11985 = vmul.f32 %v11600, %v11921
  %v11986 = vmul.f32 %v11605, %v11922
  %v11987 = vmul.f32 %v11608, %v11923
  %v11988 = vmul.f32 %v11613, %v11924
  %v11989 = vmul.f32 %v11616, %v11925
  %v11990 = vmul.f32 %v11678, %v11926
  %v11991 = vmul.f32 %v11681, %v11927
  %v11992 = vmul.f32 %v11686, %v11928
  %v11993 = vmul.f32 %v11689, %v11929
  %v11994 = vmul.f32 %v11694, %v11930
  %v11995 = vmul.f32 %v11697, %v11931
  %v11996 = vmul.f32 %v11702, %v11932
  %v11997 = vmul.f32 %v11705, %v11933
  %v11998 = vmul.f32 %v11767, %v11934
  %v11999 = vmul.f32 %v11770, %v11935
  %v12000 = vmul.f32 %v11775, %v11936
  %v12001 = vmul.f32 %v11778, %v11937
  %v12002 = vmul.f32 %v11783, %v11938
  %v12003 = vmul.f32 %v11786, %v11939
  %v12004 = vmul.f32 %v11791, %v11940
  %v12005 = vmul.f32 %v11794, %v11941
  %v12006 = vmul.f32 %v11856, %v11942
  %v12007 = vmul.f32 %v11859, %v11943
  %v12008 = vmul.f32 %v11864, %v11944
  %v12009 = vmul.f32 %v11867, %v11945
  %v12010 = vmul.f32 %v11872, %v11946
  %v12011 = vmul.f32 %v11875, %v11947
  %v12012 = vmul.f32 %v11880, %v11948
  %v12013 = vmul.f32 %v11883, %v11949
  %v12014 = vld [vmem:[#allocation3] sm:$0xff]
  %v12015 = vld [vmem:[#allocation3 + $0x8] sm:$0xff]
  %v12016 = vld [vmem:[#allocation3 + $0x10] sm:$0xff]
  %v12017 = vld [vmem:[#allocation3 + $0x18] sm:$0xff]
  %v12018 = vld [vmem:[#allocation3 + $0x20] sm:$0xff]
  %v12019 = vld [vmem:[#allocation3 + $0x28] sm:$0xff]
  %v12020 = vld [vmem:[#allocation3 + $0x30] sm:$0xff]
  %v12021 = vld [vmem:[#allocation3 + $0x38] sm:$0xff]
  %v12022 = vld [vmem:[#allocation3 + $0x40] sm:$0xff]
  %v12023 = vld [vmem:[#allocation3 + $0x48] sm:$0xff]
  %v12024 = vld [vmem:[#allocation3 + $0x50] sm:$0xff]
  %v12025 = vld [vmem:[#allocation3 + $0x58] sm:$0xff]
  %v12026 = vld [vmem:[#allocation3 + $0x60] sm:$0xff]
  %v12027 = vld [vmem:[#allocation3 + $0x68] sm:$0xff]
  %v12028 = vld [vmem:[#allocation3 + $0x70] sm:$0xff]
  %v12029 = vld [vmem:[#allocation3 + $0x78] sm:$0xff]
  %v12030 = vld [vmem:[#allocation3 + $0x80] sm:$0xff]
  %v12031 = vld [vmem:[#allocation3 + $0x88] sm:$0xff]
  %v12032 = vld [vmem:[#allocation3 + $0x90] sm:$0xff]
  %v12033 = vld [vmem:[#allocation3 + $0x98] sm:$0xff]
  %v12034 = vld [vmem:[#allocation3 + $0xa0] sm:$0xff]
  %v12035 = vld [vmem:[#allocation3 + $0xa8] sm:$0xff]
  %v12036 = vld [vmem:[#allocation3 + $0xb0] sm:$0xff]
  %v12037 = vld [vmem:[#allocation3 + $0xb8] sm:$0xff]
  %v12038 = vld [vmem:[#allocation3 + $0xc0] sm:$0xff]
  %v12039 = vld [vmem:[#allocation3 + $0xc8] sm:$0xff]
  %v12040 = vld [vmem:[#allocation3 + $0xd0] sm:$0xff]
  %v12041 = vld [vmem:[#allocation3 + $0xd8] sm:$0xff]
  %v12042 = vld [vmem:[#allocation3 + $0xe0] sm:$0xff]
  %v12043 = vld [vmem:[#allocation3 + $0xe8] sm:$0xff]
  %v12044 = vld [vmem:[#allocation3 + $0xf0] sm:$0xff]
  %v12045 = vld [vmem:[#allocation3 + $0xf8] sm:$0xff]
  %v12046 = vld [vmem:[#allocation3 + $0x100] sm:$0xff]
  %v12047 = vld [vmem:[#allocation3 + $0x108] sm:$0xff]
  %v12048 = vld [vmem:[#allocation3 + $0x110] sm:$0xff]
  %v12049 = vld [vmem:[#allocation3 + $0x118] sm:$0xff]
  %v12050 = vld [vmem:[#allocation3 + $0x120] sm:$0xff]
  %v12051 = vld [vmem:[#allocation3 + $0x128] sm:$0xff]
  %v12052 = vld [vmem:[#allocation3 + $0x130] sm:$0xff]
  %v12053 = vld [vmem:[#allocation3 + $0x138] sm:$0xff]
  %v12054 = vld [vmem:[#allocation3 + $0x140] sm:$0xff]
  %v12055 = vld [vmem:[#allocation3 + $0x148] sm:$0xff]
  %v12056 = vld [vmem:[#allocation3 + $0x150] sm:$0xff]
  %v12057 = vld [vmem:[#allocation3 + $0x158] sm:$0xff]
  %v12058 = vld [vmem:[#allocation3 + $0x160] sm:$0xff]
  %v12059 = vld [vmem:[#allocation3 + $0x168] sm:$0xff]
  %v12060 = vld [vmem:[#allocation3 + $0x170] sm:$0xff]
  %v12061 = vld [vmem:[#allocation3 + $0x178] sm:$0xff]
  %v12062 = vld [vmem:[#allocation3 + $0x180] sm:$0xff]
  %v12063 = vld [vmem:[#allocation3 + $0x188] sm:$0xff]
  %v12064 = vld [vmem:[#allocation3 + $0x190] sm:$0xff]
  %v12065 = vld [vmem:[#allocation3 + $0x198] sm:$0xff]
  %v12066 = vld [vmem:[#allocation3 + $0x1a0] sm:$0xff]
  %v12067 = vld [vmem:[#allocation3 + $0x1a8] sm:$0xff]
  %v12068 = vld [vmem:[#allocation3 + $0x1b0] sm:$0xff]
  %v12069 = vld [vmem:[#allocation3 + $0x1b8] sm:$0xff]
  %v12070 = vld [vmem:[#allocation3 + $0x1c0] sm:$0xff]
  %v12071 = vld [vmem:[#allocation3 + $0x1c8] sm:$0xff]
  %v12072 = vld [vmem:[#allocation3 + $0x1d0] sm:$0xff]
  %v12073 = vld [vmem:[#allocation3 + $0x1d8] sm:$0xff]
  %v12074 = vld [vmem:[#allocation3 + $0x1e0] sm:$0xff]
  %v12075 = vld [vmem:[#allocation3 + $0x1e8] sm:$0xff]
  %v12076 = vld [vmem:[#allocation3 + $0x1f0] sm:$0xff]
  %v12077 = vld [vmem:[#allocation3 + $0x1f8] sm:$0xff]
  %v12078 = vpack.c.bf16 %v11951, %v11950
  %v12079 = vpack.c.bf16 %v11953, %v11952
  %v12080 = vpack.c.bf16 %v11955, %v11954
  %v12081 = vpack.c.bf16 %v11957, %v11956
  %v12082 = vpack.c.bf16 %v11959, %v11958
  %v12083 = vpack.c.bf16 %v11961, %v11960
  %v12084 = vpack.c.bf16 %v11963, %v11962
  %v12085 = vpack.c.bf16 %v11965, %v11964
  %v12086 = vpack.c.bf16 %v11967, %v11966
  %v12087 = vpack.c.bf16 %v11969, %v11968
  %v12088 = vpack.c.bf16 %v11971, %v11970
  %v12089 = vpack.c.bf16 %v11973, %v11972
  %v12090 = vpack.c.bf16 %v11975, %v11974
  %v12091 = vpack.c.bf16 %v11977, %v11976
  %v12092 = vpack.c.bf16 %v11979, %v11978
  %v12093 = vpack.c.bf16 %v11981, %v11980
  %v12094 = vpack.c.bf16 %v11983, %v11982
  %v12095 = vpack.c.bf16 %v11985, %v11984
  %v12096 = vpack.c.bf16 %v11987, %v11986
  %v12097 = vpack.c.bf16 %v11989, %v11988
  %v12098 = vpack.c.bf16 %v11991, %v11990
  %v12099 = vpack.c.bf16 %v11993, %v11992
  %v12100 = vpack.c.bf16 %v11995, %v11994
  %v12101 = vpack.c.bf16 %v11997, %v11996
  %v12102 = vpack.c.bf16 %v11999, %v11998
  %v12103 = vpack.c.bf16 %v12001, %v12000
  %v12104 = vpack.c.bf16 %v12003, %v12002
  %v12105 = vpack.c.bf16 %v12005, %v12004
  %v12106 = vpack.c.bf16 %v12007, %v12006
  %v12107 = vpack.c.bf16 %v12009, %v12008
  %v12108 = vpack.c.bf16 %v12011, %v12010
  %v12109 = vpack.c.bf16 %v12013, %v12012
  %v12110 = vld [vmem:[%s3 + $0xc] sm:$0xf]
  %v12112 = vsel %vm845, %v12078, 0
  %v12115 = vsel %vm845, %v12079, 0
  %v12118 = vsel %vm845, %v12080, 0
  %v12121 = vsel %vm845, %v12081, 0
  %v12124 = vsel %vm845, %v12082, 0
  %v12127 = vsel %vm845, %v12083, 0
  %v12130 = vsel %vm845, %v12084, 0
  %v12133 = vsel %vm845, %v12085, 0
  %v12136 = vsel %vm845, %v12086, 0
  %v12139 = vsel %vm845, %v12087, 0
  %v12142 = vsel %vm845, %v12088, 0
  %v12145 = vsel %vm845, %v12089, 0
  %v12148 = vsel %vm845, %v12090, 0
  %v12151 = vsel %vm845, %v12091, 0
  %v12154 = vsel %vm845, %v12092, 0
  %v12157 = vsel %vm845, %v12093, 0
  %v12160 = vsel %vm845, %v12094, 0
  %v12163 = vsel %vm845, %v12095, 0
  %v12166 = vsel %vm845, %v12096, 0
  %v12169 = vsel %vm845, %v12097, 0
  %v12172 = vsel %vm845, %v12098, 0
  %v12175 = vsel %vm845, %v12099, 0
  %v12178 = vsel %vm845, %v12100, 0
  %v12181 = vsel %vm845, %v12101, 0
  %v12184 = vsel %vm845, %v12102, 0
  %v12187 = vsel %vm845, %v12103, 0
  %v12190 = vsel %vm845, %v12104, 0
  %v12193 = vsel %vm845, %v12105, 0
  %v12196 = vsel %vm845, %v12106, 0
  %v12199 = vsel %vm845, %v12107, 0
  %v12202 = vsel %vm845, %v12108, 0
  %v12205 = vsel %vm845, %v12109, 0
  %v12208 = vsel %vm3284, %v12110, 0
  %12210 = vmatprep.subr.bf16.mxu0 0
  %12211 = vmatpush1.bf16.msra.mxu0 %v12208
  %12212 = vmatprep.subr.bf16.mxu0 0
  %12213 = vmatpush1.bf16.msra.mxu0 0
  %12214 = vmatprep.subr.bf16.mxu0 0
  %12215 = vmatpush1.bf16.msra.mxu0 0
  %12216 = vmatprep.subr.bf16.mxu0 0
  %12217 = vmatpush1.bf16.msra.mxu0 0
  %12218 = vmatprep.subr.bf16.mxu0 0
  %12219 = vmatpush1.bf16.msra.mxu0 0
  %12220 = vmatprep.subr.bf16.mxu0 0
  %12221 = vmatpush1.bf16.msra.mxu0 0
  %12222 = vmatprep.subr.bf16.mxu0 0
  %12223 = vmatpush1.bf16.msra.mxu0 0
  %12224 = vmatprep.subr.bf16.mxu0 0
  %12225 = vmatpush1.bf16.msra.mxu0 0
  %12226 = vmatprep.subr.bf16.mxu0 0
  %12227 = vmatpush1.bf16.msra.mxu0 0
  %12228 = vmatprep.subr.bf16.mxu0 0
  %12229 = vmatpush1.bf16.msra.mxu0 0
  %12230 = vmatprep.subr.bf16.mxu0 0
  %12231 = vmatpush1.bf16.msra.mxu0 0
  %12232 = vmatprep.subr.bf16.mxu0 0
  %12233 = vmatpush1.bf16.msra.mxu0 0
  %12234 = vmatprep.subr.bf16.mxu0 0
  %12235 = vmatpush1.bf16.msra.mxu0 0
  %12236 = vmatprep.subr.bf16.mxu0 0
  %12237 = vmatpush1.bf16.msra.mxu0 0
  %12238 = vmatprep.subr.bf16.mxu0 0
  %12239 = vmatpush1.bf16.msra.mxu0 0
  %12240 = vmatprep.subr.bf16.mxu0 0
  %12241 = vmatpush1.bf16.msra.mxu0 0
  %12242 = vmatprep.mubr.bf16.mxu0 0
  %12243 = vmatmul.mubr.bf16.gmra.mrb[0].mxu0 %v12112
  %v12244 = vpop.f32.mrb[0].mxu0
  %v12245 = vadd.f32 0.0, %v12244
  %v12246 = vpop.f32.mrb[0].mxu0
  %v12247 = vpop.f32.mrb[0].mxu0
  %v12248 = vadd.f32 0.0, %v12247
  %v12249 = vpop.f32.mrb[0].mxu0
  %12250 = vmatprep.mubr.bf16.mxu0 0
  %12251 = vmatmul.mubr.bf16.gmra.mrb[0].mxu0 %v12115
  %v12252 = vpop.f32.mrb[0].mxu0
  %v12253 = vadd.f32 0.0, %v12252
  %v12254 = vpop.f32.mrb[0].mxu0
  %v12255 = vpop.f32.mrb[0].mxu0
  %v12256 = vadd.f32 0.0, %v12255
  %v12257 = vpop.f32.mrb[0].mxu0
  %12258 = vmatprep.mubr.bf16.mxu0 0
  %12259 = vmatmul.mubr.bf16.gmra.mrb[0].mxu0 %v12118
  %v12260 = vpop.f32.mrb[0].mxu0
  %v12261 = vadd.f32 0.0, %v12260
  %v12262 = vpop.f32.mrb[0].mxu0
  %v12263 = vpop.f32.mrb[0].mxu0
  %v12264 = vadd.f32 0.0, %v12263
  %v12265 = vpop.f32.mrb[0].mxu0
  %12266 = vmatprep.mubr.bf16.mxu0 0
  %12267 = vmatmul.mubr.bf16.gmra.mrb[0].mxu0 %v12121
  %v12268 = vpop.f32.mrb[0].mxu0
  %v12269 = vadd.f32 0.0, %v12268
  %v12270 = vpop.f32.mrb[0].mxu0
  %v12271 = vpop.f32.mrb[0].mxu0
  %v12272 = vadd.f32 0.0, %v12271
  %v12273 = vpop.f32.mrb[0].mxu0
  %12274 = vmatprep.mubr.bf16.mxu0 0
  %12275 = vmatmul.mubr.bf16.gmra.mrb[0].mxu0 %v12124
  %v12276 = vpop.f32.mrb[0].mxu0
  %v12277 = vadd.f32 0.0, %v12276
  %v12278 = vpop.f32.mrb[0].mxu0
  %v12279 = vpop.f32.mrb[0].mxu0
  %v12280 = vadd.f32 0.0, %v12279
  %v12281 = vpop.f32.mrb[0].mxu0
  %12282 = vmatprep.mubr.bf16.mxu0 0
  %12283 = vmatmul.mubr.bf16.gmra.mrb[0].mxu0 %v12127
  %v12284 = vpop.f32.mrb[0].mxu0
  %v12285 = vadd.f32 0.0, %v12284
  %v12286 = vpop.f32.mrb[0].mxu0
  %v12287 = vpop.f32.mrb[0].mxu0
  %v12288 = vadd.f32 0.0, %v12287
  %v12289 = vpop.f32.mrb[0].mxu0
  %12290 = vmatprep.mubr.bf16.mxu0 0
  %12291 = vmatmul.mubr.bf16.gmra.mrb[0].mxu0 %v12130
  %v12292 = vpop.f32.mrb[0].mxu0
  %v12293 = vadd.f32 0.0, %v12292
  %v12294 = vpop.f32.mrb[0].mxu0
  %v12295 = vpop.f32.mrb[0].mxu0
  %v12296 = vadd.f32 0.0, %v12295
  %v12297 = vpop.f32.mrb[0].mxu0
  %12298 = vmatprep.mubr.bf16.mxu0 0
  %12299 = vmatmul.mubr.bf16.gmra.mrb[0].mxu0 %v12133
  %v12300 = vpop.f32.mrb[0].mxu0
  %v12301 = vadd.f32 0.0, %v12300
  %v12302 = vpop.f32.mrb[0].mxu0
  %v12303 = vpop.f32.mrb[0].mxu0
  %v12304 = vadd.f32 0.0, %v12303
  %v12305 = vpop.f32.mrb[0].mxu0
  %12306 = vmatprep.mubr.bf16.mxu0 0
  %12307 = vmatmul.mubr.bf16.gmra.mrb[0].mxu0 %v12136
  %v12308 = vpop.f32.mrb[0].mxu0
  %v12309 = vadd.f32 0.0, %v12308
  %v12310 = vpop.f32.mrb[0].mxu0
  %v12311 = vpop.f32.mrb[0].mxu0
  %v12312 = vadd.f32 0.0, %v12311
  %v12313 = vpop.f32.mrb[0].mxu0
  %12314 = vmatprep.mubr.bf16.mxu0 0
  %12315 = vmatmul.mubr.bf16.gmra.mrb[0].mxu0 %v12139
  %v12316 = vpop.f32.mrb[0].mxu0
  %v12317 = vadd.f32 0.0, %v12316
  %v12318 = vpop.f32.mrb[0].mxu0
  %v12319 = vpop.f32.mrb[0].mxu0
  %v12320 = vadd.f32 0.0, %v12319
  %v12321 = vpop.f32.mrb[0].mxu0
  %12322 = vmatprep.mubr.bf16.mxu0 0
  %12323 = vmatmul.mubr.bf16.gmra.mrb[0].mxu0 %v12142
  %v12324 = vpop.f32.mrb[0].mxu0
  %v12325 = vadd.f32 0.0, %v12324
  %v12326 = vpop.f32.mrb[0].mxu0
  %v12327 = vpop.f32.mrb[0].mxu0
  %v12328 = vadd.f32 0.0, %v12327
  %v12329 = vpop.f32.mrb[0].mxu0
  %12330 = vmatprep.mubr.bf16.mxu0 0
  %12331 = vmatmul.mubr.bf16.gmra.mrb[0].mxu0 %v12145
  %v12332 = vpop.f32.mrb[0].mxu0
  %v12333 = vadd.f32 0.0, %v12332
  %v12334 = vpop.f32.mrb[0].mxu0
  %v12335 = vpop.f32.mrb[0].mxu0
  %v12336 = vadd.f32 0.0, %v12335
  %v12337 = vpop.f32.mrb[0].mxu0
  %12338 = vmatprep.mubr.bf16.mxu0 0
  %12339 = vmatmul.mubr.bf16.gmra.mrb[0].mxu0 %v12148
  %v12340 = vpop.f32.mrb[0].mxu0
  %v12341 = vadd.f32 0.0, %v12340
  %v12342 = vpop.f32.mrb[0].mxu0
  %v12343 = vpop.f32.mrb[0].mxu0
  %v12344 = vadd.f32 0.0, %v12343
  %v12345 = vpop.f32.mrb[0].mxu0
  %12346 = vmatprep.mubr.bf16.mxu0 0
  %12347 = vmatmul.mubr.bf16.gmra.mrb[0].mxu0 %v12151
  %v12348 = vpop.f32.mrb[0].mxu0
  %v12349 = vadd.f32 0.0, %v12348
  %v12350 = vpop.f32.mrb[0].mxu0
  %v12351 = vpop.f32.mrb[0].mxu0
  %v12352 = vadd.f32 0.0, %v12351
  %v12353 = vpop.f32.mrb[0].mxu0
  %12354 = vmatprep.mubr.bf16.mxu0 0
  %12355 = vmatmul.mubr.bf16.gmra.mrb[0].mxu0 %v12154
  %v12356 = vpop.f32.mrb[0].mxu0
  %v12357 = vadd.f32 0.0, %v12356
  %v12358 = vpop.f32.mrb[0].mxu0
  %v12359 = vpop.f32.mrb[0].mxu0
  %v12360 = vadd.f32 0.0, %v12359
  %v12361 = vpop.f32.mrb[0].mxu0
  %12362 = vmatprep.mubr.bf16.mxu0 0
  %12363 = vmatmul.mubr.bf16.gmra.mrb[0].mxu0 %v12157
  %v12364 = vpop.f32.mrb[0].mxu0
  %v12365 = vadd.f32 0.0, %v12364
  %v12366 = vpop.f32.mrb[0].mxu0
  %v12367 = vpop.f32.mrb[0].mxu0
  %v12368 = vadd.f32 0.0, %v12367
  %v12369 = vpop.f32.mrb[0].mxu0
  %12370 = vmatprep.mubr.bf16.mxu0 0
  %12371 = vmatmul.mubr.bf16.gmra.mrb[0].mxu0 %v12160
  %v12372 = vpop.f32.mrb[0].mxu0
  %v12373 = vadd.f32 0.0, %v12372
  %v12374 = vpop.f32.mrb[0].mxu0
  %v12375 = vpop.f32.mrb[0].mxu0
  %v12376 = vadd.f32 0.0, %v12375
  %v12377 = vpop.f32.mrb[0].mxu0
  %12378 = vmatprep.mubr.bf16.mxu0 0
  %12379 = vmatmul.mubr.bf16.gmra.mrb[0].mxu0 %v12163
  %v12380 = vpop.f32.mrb[0].mxu0
  %v12381 = vadd.f32 0.0, %v12380
  %v12382 = vpop.f32.mrb[0].mxu0
  %v12383 = vpop.f32.mrb[0].mxu0
  %v12384 = vadd.f32 0.0, %v12383
  %v12385 = vpop.f32.mrb[0].mxu0
  %12386 = vmatprep.mubr.bf16.mxu0 0
  %12387 = vmatmul.mubr.bf16.gmra.mrb[0].mxu0 %v12166
  %v12388 = vpop.f32.mrb[0].mxu0
  %v12389 = vadd.f32 0.0, %v12388
  %v12390 = vpop.f32.mrb[0].mxu0
  %v12391 = vpop.f32.mrb[0].mxu0
  %v12392 = vadd.f32 0.0, %v12391
  %v12393 = vpop.f32.mrb[0].mxu0
  %12394 = vmatprep.mubr.bf16.mxu0 0
  %12395 = vmatmul.mubr.bf16.gmra.mrb[0].mxu0 %v12169
  %v12396 = vpop.f32.mrb[0].mxu0
  %v12397 = vadd.f32 0.0, %v12396
  %v12398 = vpop.f32.mrb[0].mxu0
  %v12399 = vpop.f32.mrb[0].mxu0
  %v12400 = vadd.f32 0.0, %v12399
  %v12401 = vpop.f32.mrb[0].mxu0
  %12402 = vmatprep.mubr.bf16.mxu0 0
  %12403 = vmatmul.mubr.bf16.gmra.mrb[0].mxu0 %v12172
  %v12404 = vpop.f32.mrb[0].mxu0
  %v12405 = vadd.f32 0.0, %v12404
  %v12406 = vpop.f32.mrb[0].mxu0
  %v12407 = vpop.f32.mrb[0].mxu0
  %v12408 = vadd.f32 0.0, %v12407
  %v12409 = vpop.f32.mrb[0].mxu0
  %12410 = vmatprep.mubr.bf16.mxu0 0
  %12411 = vmatmul.mubr.bf16.gmra.mrb[0].mxu0 %v12175
  %v12412 = vpop.f32.mrb[0].mxu0
  %v12413 = vadd.f32 0.0, %v12412
  %v12414 = vpop.f32.mrb[0].mxu0
  %v12415 = vpop.f32.mrb[0].mxu0
  %v12416 = vadd.f32 0.0, %v12415
  %v12417 = vpop.f32.mrb[0].mxu0
  %12418 = vmatprep.mubr.bf16.mxu0 0
  %12419 = vmatmul.mubr.bf16.gmra.mrb[0].mxu0 %v12178
  %v12420 = vpop.f32.mrb[0].mxu0
  %v12421 = vadd.f32 0.0, %v12420
  %v12422 = vpop.f32.mrb[0].mxu0
  %v12423 = vpop.f32.mrb[0].mxu0
  %v12424 = vadd.f32 0.0, %v12423
  %v12425 = vpop.f32.mrb[0].mxu0
  %12426 = vmatprep.mubr.bf16.mxu0 0
  %12427 = vmatmul.mubr.bf16.gmra.mrb[0].mxu0 %v12181
  %v12428 = vpop.f32.mrb[0].mxu0
  %v12429 = vadd.f32 0.0, %v12428
  %v12430 = vpop.f32.mrb[0].mxu0
  %v12431 = vpop.f32.mrb[0].mxu0
  %v12432 = vadd.f32 0.0, %v12431
  %v12433 = vpop.f32.mrb[0].mxu0
  %12434 = vmatprep.mubr.bf16.mxu0 0
  %12435 = vmatmul.mubr.bf16.gmra.mrb[0].mxu0 %v12184
  %v12436 = vpop.f32.mrb[0].mxu0
  %v12437 = vadd.f32 0.0, %v12436
  %v12438 = vpop.f32.mrb[0].mxu0
  %v12439 = vpop.f32.mrb[0].mxu0
  %v12440 = vadd.f32 0.0, %v12439
  %v12441 = vpop.f32.mrb[0].mxu0
  %12442 = vmatprep.mubr.bf16.mxu0 0
  %12443 = vmatmul.mubr.bf16.gmra.mrb[0].mxu0 %v12187
  %v12444 = vpop.f32.mrb[0].mxu0
  %v12445 = vadd.f32 0.0, %v12444
  %v12446 = vpop.f32.mrb[0].mxu0
  %v12447 = vpop.f32.mrb[0].mxu0
  %v12448 = vadd.f32 0.0, %v12447
  %v12449 = vpop.f32.mrb[0].mxu0
  %12450 = vmatprep.mubr.bf16.mxu0 0
  %12451 = vmatmul.mubr.bf16.gmra.mrb[0].mxu0 %v12190
  %v12452 = vpop.f32.mrb[0].mxu0
  %v12453 = vadd.f32 0.0, %v12452
  %v12454 = vpop.f32.mrb[0].mxu0
  %v12455 = vpop.f32.mrb[0].mxu0
  %v12456 = vadd.f32 0.0, %v12455
  %v12457 = vpop.f32.mrb[0].mxu0
  %12458 = vmatprep.mubr.bf16.mxu0 0
  %12459 = vmatmul.mubr.bf16.gmra.mrb[0].mxu0 %v12193
  %v12460 = vpop.f32.mrb[0].mxu0
  %v12461 = vadd.f32 0.0, %v12460
  %v12462 = vpop.f32.mrb[0].mxu0
  %v12463 = vpop.f32.mrb[0].mxu0
  %v12464 = vadd.f32 0.0, %v12463
  %v12465 = vpop.f32.mrb[0].mxu0
  %12466 = vmatprep.mubr.bf16.mxu0 0
  %12467 = vmatmul.mubr.bf16.gmra.mrb[0].mxu0 %v12196
  %v12468 = vpop.f32.mrb[0].mxu0
  %v12469 = vadd.f32 0.0, %v12468
  %v12470 = vpop.f32.mrb[0].mxu0
  %v12471 = vpop.f32.mrb[0].mxu0
  %v12472 = vadd.f32 0.0, %v12471
  %v12473 = vpop.f32.mrb[0].mxu0
  %12474 = vmatprep.mubr.bf16.mxu0 0
  %12475 = vmatmul.mubr.bf16.gmra.mrb[0].mxu0 %v12199
  %v12476 = vpop.f32.mrb[0].mxu0
  %v12477 = vadd.f32 0.0, %v12476
  %v12478 = vpop.f32.mrb[0].mxu0
  %v12479 = vpop.f32.mrb[0].mxu0
  %v12480 = vadd.f32 0.0, %v12479
  %v12481 = vpop.f32.mrb[0].mxu0
  %12482 = vmatprep.mubr.bf16.mxu0 0
  %12483 = vmatmul.mubr.bf16.gmra.mrb[0].mxu0 %v12202
  %v12484 = vpop.f32.mrb[0].mxu0
  %v12485 = vadd.f32 0.0, %v12484
  %v12486 = vpop.f32.mrb[0].mxu0
  %v12487 = vpop.f32.mrb[0].mxu0
  %v12488 = vadd.f32 0.0, %v12487
  %v12489 = vpop.f32.mrb[0].mxu0
  %12490 = vmatprep.mubr.bf16.mxu0 0
  %12491 = vmatmul.mubr.bf16.gmra.mrb[0].mxu0 %v12205
  %v12492 = vpop.f32.mrb[0].mxu0
  %v12493 = vadd.f32 0.0, %v12492
  %v12494 = vpop.f32.mrb[0].mxu0
  %v12495 = vpop.f32.mrb[0].mxu0
  %v12496 = vadd.f32 0.0, %v12495
  %v12497 = vpop.f32.mrb[0].mxu0
  %12498 = vdwg.mxu0
  %v12499 = vadd.f32 %v12014, %v12245
  %v12500 = vadd.f32 %v12015, %v12248
  %v12501 = vadd.f32 %v12016, %v12253
  %v12502 = vadd.f32 %v12017, %v12256
  %v12503 = vadd.f32 %v12018, %v12261
  %v12504 = vadd.f32 %v12019, %v12264
  %v12505 = vadd.f32 %v12020, %v12269
  %v12506 = vadd.f32 %v12021, %v12272
  %v12507 = vadd.f32 %v12022, %v12277
  %v12508 = vadd.f32 %v12023, %v12280
  %v12509 = vadd.f32 %v12024, %v12285
  %v12510 = vadd.f32 %v12025, %v12288
  %v12511 = vadd.f32 %v12026, %v12293
  %v12512 = vadd.f32 %v12027, %v12296
  %v12513 = vadd.f32 %v12028, %v12301
  %v12514 = vadd.f32 %v12029, %v12304
  %v12515 = vadd.f32 %v12030, %v12309
  %v12516 = vadd.f32 %v12031, %v12312
  %v12517 = vadd.f32 %v12032, %v12317
  %v12518 = vadd.f32 %v12033, %v12320
  %v12519 = vadd.f32 %v12034, %v12325
  %v12520 = vadd.f32 %v12035, %v12328
  %v12521 = vadd.f32 %v12036, %v12333
  %v12522 = vadd.f32 %v12037, %v12336
  %v12523 = vadd.f32 %v12038, %v12341
  %v12524 = vadd.f32 %v12039, %v12344
  %v12525 = vadd.f32 %v12040, %v12349
  %v12526 = vadd.f32 %v12041, %v12352
  %v12527 = vadd.f32 %v12042, %v12357
  %v12528 = vadd.f32 %v12043, %v12360
  %v12529 = vadd.f32 %v12044, %v12365
  %v12530 = vadd.f32 %v12045, %v12368
  %v12531 = vadd.f32 %v12046, %v12373
  %v12532 = vadd.f32 %v12047, %v12376
  %v12533 = vadd.f32 %v12048, %v12381
  %v12534 = vadd.f32 %v12049, %v12384
  %v12535 = vadd.f32 %v12050, %v12389
  %v12536 = vadd.f32 %v12051, %v12392
  %v12537 = vadd.f32 %v12052, %v12397
  %v12538 = vadd.f32 %v12053, %v12400
  %v12539 = vadd.f32 %v12054, %v12405
  %v12540 = vadd.f32 %v12055, %v12408
  %v12541 = vadd.f32 %v12056, %v12413
  %v12542 = vadd.f32 %v12057, %v12416
  %v12543 = vadd.f32 %v12058, %v12421
  %v12544 = vadd.f32 %v12059, %v12424
  %v12545 = vadd.f32 %v12060, %v12429
  %v12546 = vadd.f32 %v12061, %v12432
  %v12547 = vadd.f32 %v12062, %v12437
  %v12548 = vadd.f32 %v12063, %v12440
  %v12549 = vadd.f32 %v12064, %v12445
  %v12550 = vadd.f32 %v12065, %v12448
  %v12551 = vadd.f32 %v12066, %v12453
  %v12552 = vadd.f32 %v12067, %v12456
  %v12553 = vadd.f32 %v12068, %v12461
  %v12554 = vadd.f32 %v12069, %v12464
  %v12555 = vadd.f32 %v12070, %v12469
  %v12556 = vadd.f32 %v12071, %v12472
  %v12557 = vadd.f32 %v12072, %v12477
  %v12558 = vadd.f32 %v12073, %v12480
  %v12559 = vadd.f32 %v12074, %v12485
  %v12560 = vadd.f32 %v12075, %v12488
  %v12561 = vadd.f32 %v12076, %v12493
  %v12562 = vadd.f32 %v12077, %v12496
  %12563 = vst.msk [vmem:[#allocation3] sm:$0xff] %vm271, %v12499
  %12564 = vst.msk [vmem:[#allocation3 + $0x8] sm:$0xff] %vm271, %v12500
  %12565 = vst.msk [vmem:[#allocation3 + $0x10] sm:$0xff] %vm271, %v12501
  %12566 = vst.msk [vmem:[#allocation3 + $0x18] sm:$0xff] %vm271, %v12502
  %12567 = vst.msk [vmem:[#allocation3 + $0x20] sm:$0xff] %vm271, %v12503
  %12568 = vst.msk [vmem:[#allocation3 + $0x28] sm:$0xff] %vm271, %v12504
  %12569 = vst.msk [vmem:[#allocation3 + $0x30] sm:$0xff] %vm271, %v12505
  %12570 = vst.msk [vmem:[#allocation3 + $0x38] sm:$0xff] %vm271, %v12506
  %12571 = vst.msk [vmem:[#allocation3 + $0x40] sm:$0xff] %vm271, %v12507
  %12572 = vst.msk [vmem:[#allocation3 + $0x48] sm:$0xff] %vm271, %v12508
  %12573 = vst.msk [vmem:[#allocation3 + $0x50] sm:$0xff] %vm271, %v12509
  %12574 = vst.msk [vmem:[#allocation3 + $0x58] sm:$0xff] %vm271, %v12510
  %12575 = vst.msk [vmem:[#allocation3 + $0x60] sm:$0xff] %vm271, %v12511
  %12576 = vst.msk [vmem:[#allocation3 + $0x68] sm:$0xff] %vm271, %v12512
  %12577 = vst.msk [vmem:[#allocation3 + $0x70] sm:$0xff] %vm271, %v12513
  %12578 = vst.msk [vmem:[#allocation3 + $0x78] sm:$0xff] %vm271, %v12514
  %12579 = vst.msk [vmem:[#allocation3 + $0x80] sm:$0xff] %vm271, %v12515
  %12580 = vst.msk [vmem:[#allocation3 + $0x88] sm:$0xff] %vm271, %v12516
  %12581 = vst.msk [vmem:[#allocation3 + $0x90] sm:$0xff] %vm271, %v12517
  %12582 = vst.msk [vmem:[#allocation3 + $0x98] sm:$0xff] %vm271, %v12518
  %12583 = vst.msk [vmem:[#allocation3 + $0xa0] sm:$0xff] %vm271, %v12519
  %12584 = vst.msk [vmem:[#allocation3 + $0xa8] sm:$0xff] %vm271, %v12520
  %12585 = vst.msk [vmem:[#allocation3 + $0xb0] sm:$0xff] %vm271, %v12521
  %12586 = vst.msk [vmem:[#allocation3 + $0xb8] sm:$0xff] %vm271, %v12522
  %12587 = vst.msk [vmem:[#allocation3 + $0xc0] sm:$0xff] %vm271, %v12523
  %12588 = vst.msk [vmem:[#allocation3 + $0xc8] sm:$0xff] %vm271, %v12524
  %12589 = vst.msk [vmem:[#allocation3 + $0xd0] sm:$0xff] %vm271, %v12525
  %12590 = vst.msk [vmem:[#allocation3 + $0xd8] sm:$0xff] %vm271, %v12526
  %12591 = vst.msk [vmem:[#allocation3 + $0xe0] sm:$0xff] %vm271, %v12527
  %12592 = vst.msk [vmem:[#allocation3 + $0xe8] sm:$0xff] %vm271, %v12528
  %12593 = vst.msk [vmem:[#allocation3 + $0xf0] sm:$0xff] %vm271, %v12529
  %12594 = vst.msk [vmem:[#allocation3 + $0xf8] sm:$0xff] %vm271, %v12530
  %12595 = vst.msk [vmem:[#allocation3 + $0x100] sm:$0xff] %vm271, %v12531
  %12596 = vst.msk [vmem:[#allocation3 + $0x108] sm:$0xff] %vm271, %v12532
  %12597 = vst.msk [vmem:[#allocation3 + $0x110] sm:$0xff] %vm271, %v12533
  %12598 = vst.msk [vmem:[#allocation3 + $0x118] sm:$0xff] %vm271, %v12534
  %12599 = vst.msk [vmem:[#allocation3 + $0x120] sm:$0xff] %vm271, %v12535
  %12600 = vst.msk [vmem:[#allocation3 + $0x128] sm:$0xff] %vm271, %v12536
  %12601 = vst.msk [vmem:[#allocation3 + $0x130] sm:$0xff] %vm271, %v12537
  %12602 = vst.msk [vmem:[#allocation3 + $0x138] sm:$0xff] %vm271, %v12538
  %12603 = vst.msk [vmem:[#allocation3 + $0x140] sm:$0xff] %vm271, %v12539
  %12604 = vst.msk [vmem:[#allocation3 + $0x148] sm:$0xff] %vm271, %v12540
  %12605 = vst.msk [vmem:[#allocation3 + $0x150] sm:$0xff] %vm271, %v12541
  %12606 = vst.msk [vmem:[#allocation3 + $0x158] sm:$0xff] %vm271, %v12542
  %12607 = vst.msk [vmem:[#allocation3 + $0x160] sm:$0xff] %vm271, %v12543
  %12608 = vst.msk [vmem:[#allocation3 + $0x168] sm:$0xff] %vm271, %v12544
  %12609 = vst.msk [vmem:[#allocation3 + $0x170] sm:$0xff] %vm271, %v12545
  %12610 = vst.msk [vmem:[#allocation3 + $0x178] sm:$0xff] %vm271, %v12546
  %12611 = vst.msk [vmem:[#allocation3 + $0x180] sm:$0xff] %vm271, %v12547
  %12612 = vst.msk [vmem:[#allocation3 + $0x188] sm:$0xff] %vm271, %v12548
  %12613 = vst.msk [vmem:[#allocation3 + $0x190] sm:$0xff] %vm271, %v12549
  %12614 = vst.msk [vmem:[#allocation3 + $0x198] sm:$0xff] %vm271, %v12550
  %12615 = vst.msk [vmem:[#allocation3 + $0x1a0] sm:$0xff] %vm271, %v12551
  %12616 = vst.msk [vmem:[#allocation3 + $0x1a8] sm:$0xff] %vm271, %v12552
  %12617 = vst.msk [vmem:[#allocation3 + $0x1b0] sm:$0xff] %vm271, %v12553
  %12618 = vst.msk [vmem:[#allocation3 + $0x1b8] sm:$0xff] %vm271, %v12554
  %12619 = vst.msk [vmem:[#allocation3 + $0x1c0] sm:$0xff] %vm271, %v12555
  %12620 = vst.msk [vmem:[#allocation3 + $0x1c8] sm:$0xff] %vm271, %v12556
  %12621 = vst.msk [vmem:[#allocation3 + $0x1d0] sm:$0xff] %vm271, %v12557
  %12622 = vst.msk [vmem:[#allocation3 + $0x1d8] sm:$0xff] %vm271, %v12558
  %12623 = vst.msk [vmem:[#allocation3 + $0x1e0] sm:$0xff] %vm271, %v12559
  %12624 = vst.msk [vmem:[#allocation3 + $0x1e8] sm:$0xff] %vm271, %v12560
  %12625 = vst.msk [vmem:[#allocation3 + $0x1f0] sm:$0xff] %vm271, %v12561
  %12626 = vst.msk [vmem:[#allocation3 + $0x1f8] sm:$0xff] %vm271, %v12562
  %v12627 = vld [vmem:[#allocation3] sm:$0xff]
  %v12628 = vld [vmem:[#allocation3 + $0x8] sm:$0xff]
  %v12629 = vld [vmem:[#allocation3 + $0x10] sm:$0xff]
  %v12630 = vld [vmem:[#allocation3 + $0x18] sm:$0xff]
  %v12631 = vld [vmem:[#allocation3 + $0x20] sm:$0xff]
  %v12632 = vld [vmem:[#allocation3 + $0x28] sm:$0xff]
  %v12633 = vld [vmem:[#allocation3 + $0x30] sm:$0xff]
  %v12634 = vld [vmem:[#allocation3 + $0x38] sm:$0xff]
  %v12635 = vld [vmem:[#allocation3 + $0x40] sm:$0xff]
  %v12636 = vld [vmem:[#allocation3 + $0x48] sm:$0xff]
  %v12637 = vld [vmem:[#allocation3 + $0x50] sm:$0xff]
  %v12638 = vld [vmem:[#allocation3 + $0x58] sm:$0xff]
  %v12639 = vld [vmem:[#allocation3 + $0x60] sm:$0xff]
  %v12640 = vld [vmem:[#allocation3 + $0x68] sm:$0xff]
  %v12641 = vld [vmem:[#allocation3 + $0x70] sm:$0xff]
  %v12642 = vld [vmem:[#allocation3 + $0x78] sm:$0xff]
  %v12643 = vld [vmem:[#allocation3 + $0x80] sm:$0xff]
  %v12644 = vld [vmem:[#allocation3 + $0x88] sm:$0xff]
  %v12645 = vld [vmem:[#allocation3 + $0x90] sm:$0xff]
  %v12646 = vld [vmem:[#allocation3 + $0x98] sm:$0xff]
  %v12647 = vld [vmem:[#allocation3 + $0xa0] sm:$0xff]
  %v12648 = vld [vmem:[#allocation3 + $0xa8] sm:$0xff]
  %v12649 = vld [vmem:[#allocation3 + $0xb0] sm:$0xff]
  %v12650 = vld [vmem:[#allocation3 + $0xb8] sm:$0xff]
  %v12651 = vld [vmem:[#allocation3 + $0xc0] sm:$0xff]
  %v12652 = vld [vmem:[#allocation3 + $0xc8] sm:$0xff]
  %v12653 = vld [vmem:[#allocation3 + $0xd0] sm:$0xff]
  %v12654 = vld [vmem:[#allocation3 + $0xd8] sm:$0xff]
  %v12655 = vld [vmem:[#allocation3 + $0xe0] sm:$0xff]
  %v12656 = vld [vmem:[#allocation3 + $0xe8] sm:$0xff]
  %v12657 = vld [vmem:[#allocation3 + $0xf0] sm:$0xff]
  %v12658 = vld [vmem:[#allocation3 + $0xf8] sm:$0xff]
  %v12659 = vld [vmem:[#allocation3 + $0x100] sm:$0xff]
  %v12660 = vld [vmem:[#allocation3 + $0x108] sm:$0xff]
  %v12661 = vld [vmem:[#allocation3 + $0x110] sm:$0xff]
  %v12662 = vld [vmem:[#allocation3 + $0x118] sm:$0xff]
  %v12663 = vld [vmem:[#allocation3 + $0x120] sm:$0xff]
  %v12664 = vld [vmem:[#allocation3 + $0x128] sm:$0xff]
  %v12665 = vld [vmem:[#allocation3 + $0x130] sm:$0xff]
  %v12666 = vld [vmem:[#allocation3 + $0x138] sm:$0xff]
  %v12667 = vld [vmem:[#allocation3 + $0x140] sm:$0xff]
  %v12668 = vld [vmem:[#allocation3 + $0x148] sm:$0xff]
  %v12669 = vld [vmem:[#allocation3 + $0x150] sm:$0xff]
  %v12670 = vld [vmem:[#allocation3 + $0x158] sm:$0xff]
  %v12671 = vld [vmem:[#allocation3 + $0x160] sm:$0xff]
  %v12672 = vld [vmem:[#allocation3 + $0x168] sm:$0xff]
  %v12673 = vld [vmem:[#allocation3 + $0x170] sm:$0xff]
  %v12674 = vld [vmem:[#allocation3 + $0x178] sm:$0xff]
  %v12675 = vld [vmem:[#allocation3 + $0x180] sm:$0xff]
  %v12676 = vld [vmem:[#allocation3 + $0x188] sm:$0xff]
  %v12677 = vld [vmem:[#allocation3 + $0x190] sm:$0xff]
  %v12678 = vld [vmem:[#allocation3 + $0x198] sm:$0xff]
  %v12679 = vld [vmem:[#allocation3 + $0x1a0] sm:$0xff]
  %v12680 = vld [vmem:[#allocation3 + $0x1a8] sm:$0xff]
  %v12681 = vld [vmem:[#allocation3 + $0x1b0] sm:$0xff]
  %v12682 = vld [vmem:[#allocation3 + $0x1b8] sm:$0xff]
  %v12683 = vld [vmem:[#allocation3 + $0x1c0] sm:$0xff]
  %v12684 = vld [vmem:[#allocation3 + $0x1c8] sm:$0xff]
  %v12685 = vld [vmem:[#allocation3 + $0x1d0] sm:$0xff]
  %v12686 = vld [vmem:[#allocation3 + $0x1d8] sm:$0xff]
  %v12687 = vld [vmem:[#allocation3 + $0x1e0] sm:$0xff]
  %v12688 = vld [vmem:[#allocation3 + $0x1e8] sm:$0xff]
  %v12689 = vld [vmem:[#allocation3 + $0x1f0] sm:$0xff]
  %v12690 = vld [vmem:[#allocation3 + $0x1f8] sm:$0xff]
  %12691 = vst.msk [vmem:[%s6] sm:$0xff] %vm271, %v12627
  %12692 = vst.msk [vmem:[%s6 + $0x8] sm:$0xff] %vm271, %v12628
  %12693 = vst.msk [vmem:[%s6 + $0x10] sm:$0xff] %vm271, %v12629
  %12694 = vst.msk [vmem:[%s6 + $0x18] sm:$0xff] %vm271, %v12630
  %12695 = vst.msk [vmem:[%s6 + $0x20] sm:$0xff] %vm271, %v12631
  %12696 = vst.msk [vmem:[%s6 + $0x28] sm:$0xff] %vm271, %v12632
  %12697 = vst.msk [vmem:[%s6 + $0x30] sm:$0xff] %vm271, %v12633
  %12698 = vst.msk [vmem:[%s6 + $0x38] sm:$0xff] %vm271, %v12634
  %12699 = vst.msk [vmem:[%s6 + $0x40] sm:$0xff] %vm271, %v12635
  %12700 = vst.msk [vmem:[%s6 + $0x48] sm:$0xff] %vm271, %v12636
  %12701 = vst.msk [vmem:[%s6 + $0x50] sm:$0xff] %vm271, %v12637
  %12702 = vst.msk [vmem:[%s6 + $0x58] sm:$0xff] %vm271, %v12638
  %12703 = vst.msk [vmem:[%s6 + $0x60] sm:$0xff] %vm271, %v12639
  %12704 = vst.msk [vmem:[%s6 + $0x68] sm:$0xff] %vm271, %v12640
  %12705 = vst.msk [vmem:[%s6 + $0x70] sm:$0xff] %vm271, %v12641
  %12706 = vst.msk [vmem:[%s6 + $0x78] sm:$0xff] %vm271, %v12642
  %12707 = vst.msk [vmem:[%s6 + $0x80] sm:$0xff] %vm271, %v12643
  %12708 = vst.msk [vmem:[%s6 + $0x88] sm:$0xff] %vm271, %v12644
  %12709 = vst.msk [vmem:[%s6 + $0x90] sm:$0xff] %vm271, %v12645
  %12710 = vst.msk [vmem:[%s6 + $0x98] sm:$0xff] %vm271, %v12646
  %12711 = vst.msk [vmem:[%s6 + $0xa0] sm:$0xff] %vm271, %v12647
  %12712 = vst.msk [vmem:[%s6 + $0xa8] sm:$0xff] %vm271, %v12648
  %12713 = vst.msk [vmem:[%s6 + $0xb0] sm:$0xff] %vm271, %v12649
  %12714 = vst.msk [vmem:[%s6 + $0xb8] sm:$0xff] %vm271, %v12650
  %12715 = vst.msk [vmem:[%s6 + $0xc0] sm:$0xff] %vm271, %v12651
  %12716 = vst.msk [vmem:[%s6 + $0xc8] sm:$0xff] %vm271, %v12652
  %12717 = vst.msk [vmem:[%s6 + $0xd0] sm:$0xff] %vm271, %v12653
  %12718 = vst.msk [vmem:[%s6 + $0xd8] sm:$0xff] %vm271, %v12654
  %12719 = vst.msk [vmem:[%s6 + $0xe0] sm:$0xff] %vm271, %v12655
  %12720 = vst.msk [vmem:[%s6 + $0xe8] sm:$0xff] %vm271, %v12656
  %12721 = vst.msk [vmem:[%s6 + $0xf0] sm:$0xff] %vm271, %v12657
  %12722 = vst.msk [vmem:[%s6 + $0xf8] sm:$0xff] %vm271, %v12658
  %12723 = vst.msk [vmem:[%s6 + $0x100] sm:$0xff] %vm271, %v12659
  %12724 = vst.msk [vmem:[%s6 + $0x108] sm:$0xff] %vm271, %v12660
  %12725 = vst.msk [vmem:[%s6 + $0x110] sm:$0xff] %vm271, %v12661
  %12726 = vst.msk [vmem:[%s6 + $0x118] sm:$0xff] %vm271, %v12662
  %12727 = vst.msk [vmem:[%s6 + $0x120] sm:$0xff] %vm271, %v12663
  %12728 = vst.msk [vmem:[%s6 + $0x128] sm:$0xff] %vm271, %v12664
  %12729 = vst.msk [vmem:[%s6 + $0x130] sm:$0xff] %vm271, %v12665
  %12730 = vst.msk [vmem:[%s6 + $0x138] sm:$0xff] %vm271, %v12666
  %12731 = vst.msk [vmem:[%s6 + $0x140] sm:$0xff] %vm271, %v12667
  %12732 = vst.msk [vmem:[%s6 + $0x148] sm:$0xff] %vm271, %v12668
  %12733 = vst.msk [vmem:[%s6 + $0x150] sm:$0xff] %vm271, %v12669
  %12734 = vst.msk [vmem:[%s6 + $0x158] sm:$0xff] %vm271, %v12670
  %12735 = vst.msk [vmem:[%s6 + $0x160] sm:$0xff] %vm271, %v12671
  %12736 = vst.msk [vmem:[%s6 + $0x168] sm:$0xff] %vm271, %v12672
  %12737 = vst.msk [vmem:[%s6 + $0x170] sm:$0xff] %vm271, %v12673
  %12738 = vst.msk [vmem:[%s6 + $0x178] sm:$0xff] %vm271, %v12674
  %12739 = vst.msk [vmem:[%s6 + $0x180] sm:$0xff] %vm271, %v12675
  %12740 = vst.msk [vmem:[%s6 + $0x188] sm:$0xff] %vm271, %v12676
  %12741 = vst.msk [vmem:[%s6 + $0x190] sm:$0xff] %vm271, %v12677
  %12742 = vst.msk [vmem:[%s6 + $0x198] sm:$0xff] %vm271, %v12678
  %12743 = vst.msk [vmem:[%s6 + $0x1a0] sm:$0xff] %vm271, %v12679
  %12744 = vst.msk [vmem:[%s6 + $0x1a8] sm:$0xff] %vm271, %v12680
  %12745 = vst.msk [vmem:[%s6 + $0x1b0] sm:$0xff] %vm271, %v12681
  %12746 = vst.msk [vmem:[%s6 + $0x1b8] sm:$0xff] %vm271, %v12682
  %12747 = vst.msk [vmem:[%s6 + $0x1c0] sm:$0xff] %vm271, %v12683
  %12748 = vst.msk [vmem:[%s6 + $0x1c8] sm:$0xff] %vm271, %v12684
  %12749 = vst.msk [vmem:[%s6 + $0x1d0] sm:$0xff] %vm271, %v12685
  %12750 = vst.msk [vmem:[%s6 + $0x1d8] sm:$0xff] %vm271, %v12686
  %12751 = vst.msk [vmem:[%s6 + $0x1e0] sm:$0xff] %vm271, %v12687
  %12752 = vst.msk [vmem:[%s6 + $0x1e8] sm:$0xff] %vm271, %v12688
  %12753 = vst.msk [vmem:[%s6 + $0x1f0] sm:$0xff] %vm271, %v12689
  %12754 = vst.msk [vmem:[%s6 + $0x1f8] sm:$0xff] %vm271, %v12690
  // Predicated region
  $region26: #{tpu_custom_call.1} parent=0 // pred_check
    _
  $region27: #{tpu_custom_call.1} parent=0 // pred_check_branch
    %12756 = sbr.rel (0) target = $region29
  $region28: #{tpu_custom_call.1} parent=0 // pred_region
    _
  $region29: #{tpu_custom_call.1} parent=0 // pred_fallthru
    _
  // Predicated region
  $region30: #{tpu_custom_call.1} parent=0 // pred_check
    _
  $region31: #{tpu_custom_call.1} parent=0 // pred_check_branch
    %12758 = sbr.rel (0) target = $region33
  $region32: #{tpu_custom_call.1} parent=0 // pred_region
    _
  $region33: #{tpu_custom_call.1} parent=0 // pred_fallthru
    _

</llo_original>
